<compile_context>
chip_gen: v7x
topology: tpu7x:2x2x1
jax: 0.10.0
libtpu: 0.0.40
codegen_flags: <defaults>
</compile_context>

<pallas_src>
import functools
import math
from typing import NamedTuple, Tuple

import numpy as np
import jax
import jax.numpy as jnp
from jax.experimental import pallas as pl
from jax.experimental.pallas import tpu as pltpu

LEAK = 0.01  # nn.LeakyReLU default negative_slope


class ConvGeom(NamedTuple):
    h: int
    w: int
    cin: int
    k: int
    s: int
    ho: int
    wo: int
    cout: int


def _round_up(n: int, m: int) -> int:
    return ((n + m - 1) // m) * m


def _row_pad_for_stride(row_len: int, s: int) -> int:
    """Smallest padded per-h row length so s * row_len_pad is a multiple of 128
    (=> every ho slice of the flattened activation starts lane-aligned)."""
    unit = 128 // math.gcd(128, s)
    return _round_up(row_len, unit)


def make_geoms(c: int, h: int, w: int) -> Tuple[ConvGeom, ...]:
    """Conv geometry of the RndConvNet body: (32,k8,s4), (64,k4,s2), (64,k3,s1), no padding."""
    specs = [(32, 8, 4), (64, 4, 2), (64, 3, 1)]
    geoms = []
    cin, hh, ww = c, h, w
    for cout, k, s in specs:
        ho, wo = (hh - k) // s + 1, (ww - k) // s + 1
        geoms.append(ConvGeom(hh, ww, cin, k, s, ho, wo, cout))
        cin, hh, ww = cout, ho, wo
    return tuple(geoms)


def _pick_bm(B: int) -> int:
    """Batch tile: multiple of 16 (bf16 sublane pack); >=2 grid steps when batch allows."""
    cap = 256 if B >= 512 else 128
    bm = min(cap, _round_up(B, 16))
    if B >= 32:
        bm = min(bm, _round_up((B + 1) // 2, 16))
    return max(bm, 16)


# ----------------------------------------------------------------------------
# Pallas kernel: entire RndConvNet forward on one (bm, :) batch tile
# ----------------------------------------------------------------------------
def _rnd_kernel(x_ref,
                w1_ref, b1_ref, w2_ref, b2_ref, w3_ref, b3_ref,
                hw0_ref, hb0_ref, hw1_ref, hb1_ref, hw2_ref, hb2_ref,
                out_ref,
                act1_ref, act2_ref, act3_ref,
                *, geoms, row_pad0, out_pads):
    bm = out_ref.shape[0]

    def conv_layer(src_ref, dst_ref, w_ref, b_ref, g: ConvGeom, stride_in, n_out):
        # src_ref: (bm, g.h * stride_in) bf16, row-major (h, (w, c) padded-to-stride_in)
        # dst_ref: (bm, g.ho * n_out)   bf16, same convention for the next layer
        step = g.s * stride_in            # lane offset between consecutive ho slices
        slab = g.k * stride_in            # contiguous input span for one output row
        w = w_ref[...]
        bias = jnp.broadcast_to(b_ref[...], (bm, n_out))   # hoisted out of the ho loop
        for ho in range(g.ho):            # static, fully unrolled; stores bound live ranges
            sl = src_ref[:, ho * step: ho * step + slab]
            y = jnp.dot(sl, w, preferred_element_type=jnp.float32) + bias
            y = jnp.maximum(y, LEAK * y)                     # LeakyReLU (f32)
            dst_ref[:, ho * n_out:(ho + 1) * n_out] = y.astype(jnp.bfloat16)

    g1, g2, g3 = geoms
    p1, p2, p3 = out_pads
    conv_layer(x_ref,    act1_ref, w1_ref, b1_ref, g1, row_pad0, p1)
    conv_layer(act1_ref, act2_ref, w2_ref, b2_ref, g2, p1, p2)
    conv_layer(act2_ref, act3_ref, w3_ref, b3_ref, g3, p2, p3)

    feat = act3_ref[...]                                     # (bm, ho3*p3) bf16
    h = jnp.dot(feat, hw0_ref[...], preferred_element_type=jnp.float32) + hb0_ref[...]
    h = jnp.maximum(h, 0.0).astype(jnp.bfloat16)
    h = jnp.dot(h, hw1_ref[...], preferred_element_type=jnp.float32) + hb1_ref[...]
    h = jnp.maximum(h, 0.0).astype(jnp.bfloat16)
    o = jnp.dot(h, hw2_ref[...], preferred_element_type=jnp.float32) + hb2_ref[...]
    out_ref[...] = o.astype(out_ref.dtype)                   # lane-dense (bm, 256)


# ----------------------------------------------------------------------------
# Wrapper
# ----------------------------------------------------------------------------
@functools.partial(jax.jit, static_argnames=("geoms", "latent_dim"))
def rnd_forward(x, kernel_params, *, geoms, latent_dim):
    """x: (B, C, H, W) float32 (NCHW, like PyTorch) -> (B, latent_dim) float32."""
    B, _, H, W = x.shape
    g0 = geoms[0]
    row_pad0 = _row_pad_for_stride(W * g0.cin, g0.s)
    out_pads = tuple(_round_up(g.wo * g.cout, 128) for g in geoms)
    in_cols = H * row_pad0

    bm = _pick_bm(B)
    bp = _round_up(B, bm)

    # Layout-only prep in XLA: cast to bf16 FIRST (halves the materialized copy),
    # NCHW -> NHWC, zero-pad each per-h row W*C -> row_pad0 (lane alignment for conv1
    # slices), pad batch to the tile multiple, flatten per sample.
    x_bf = x.astype(jnp.bfloat16)
    x_rows = jnp.transpose(x_bf, (0, 2, 3, 1)).reshape(B, H, W * g0.cin)
    x_rows = jnp.pad(x_rows, ((0, bp - B), (0, 0), (0, row_pad0 - W * g0.cin)))
    x_flat = x_rows.reshape(bp, in_cols)

    weight_specs = [pl.BlockSpec(p.shape, lambda i: (0, 0)) for p in kernel_params]
    scratch = [pltpu.VMEM((bm, g.ho * op), jnp.bfloat16) for g, op in zip(geoms, out_pads)]

    out = pl.pallas_call(
        functools.partial(_rnd_kernel, geoms=geoms, row_pad0=row_pad0, out_pads=out_pads),
        out_shape=jax.ShapeDtypeStruct((bp, latent_dim), jnp.float32),
        grid=(bp // bm,),
        in_specs=[pl.BlockSpec((bm, in_cols), lambda i: (i, 0))] + weight_specs,
        out_specs=pl.BlockSpec((bm, latent_dim), lambda i: (i, 0)),
        scratch_shapes=scratch,
        compiler_params=pltpu.CompilerParams(
            dimension_semantics=("parallel",),      # batch tiles shard across v7x TCs
            vmem_limit_bytes=32 * 1024 * 1024,
        ),
    )(x_flat, *kernel_params)
    return out[:B]


# ----------------------------------------------------------------------------
# Parameter construction (PyTorch layouts) + one-time conversion to kernel layout
# ----------------------------------------------------------------------------
def init_torch_params(key, c, conv_out, latent_dim):
    # Spec uses nn.init.orthogonal_(gain=sqrt(2)) and zero biases; a scaled-normal
    # init (and small random biases, so the bias path is exercised by the check) is
    # used here -- the init scheme does not affect the forward op.
    ks = jax.random.split(key, 12)

    def w(k, shape, fan_in):
        return jnp.sqrt(2.0 / fan_in) * jax.random.normal(k, shape, jnp.float32)

    def b(k, n):
        return 0.1 * jax.random.normal(k, (n,), jnp.float32)

    p = {}
    p["conv1_w"] = w(ks[0], (32, c, 8, 8), c * 64);      p["conv1_b"] = b(ks[1], 32)
    p["conv2_w"] = w(ks[2], (64, 32, 4, 4), 32 * 16);    p["conv2_b"] = b(ks[3], 64)
    p["conv3_w"] = w(ks[4], (64, 64, 3, 3), 64 * 9);     p["conv3_b"] = b(ks[5], 64)
    p["fc0_w"] = w(ks[6], (512, conv_out), conv_out);    p["fc0_b"] = b(ks[7], 512)
    p["fc1_w"] = w(ks[8], (512, 512), 512);              p["fc1_b"] = b(ks[9], 512)
    p["fc2_w"] = w(ks[10], (latent_dim, 512), 512);      p["fc2_b"] = b(ks[11], latent_dim)
    return p


def prepare_kernel_params(tp, geoms, latent_dim, row_pad0, out_pads):
    """One-time conversion of PyTorch-layout params to the kernel's band-matrix layout."""
    def band(w_oihw, g: ConvGeom, stride_in, n_out):
        w = np.asarray(w_oihw, np.float32)          # (Cout, Cin, kh, kw)
        cout, cin, kh, kw = w.shape
        m = np.zeros((kh * stride_in, n_out), np.float32)
        for i in range(kh):
            for wo in range(g.wo):
                for j in range(kw):
                    col = wo * g.s + j              # input width position
                    r0 = i * stride_in + col * cin
                    m[r0:r0 + cin, wo * cout:(wo + 1) * cout] = w[:, :, i, j].T
        return m

    def conv_bias(b, g: ConvGeom, n_out):
        t = np.tile(np.asarray(b, np.float32), g.wo)
        return np.pad(t, (0, n_out - t.shape[0]))

    def bf16(a):
        return jnp.asarray(a, jnp.bfloat16)

    def f32row(a):
        return jnp.asarray(np.asarray(a, np.float32).reshape(1, -1), jnp.float32)

    g1, g2, g3 = geoms
    p1, p2, p3 = out_pads
    params = [
        bf16(band(tp["conv1_w"], g1, row_pad0, p1)), f32row(conv_bias(tp["conv1_b"], g1, p1)),
        bf16(band(tp["conv2_w"], g2, p1, p2)),       f32row(conv_bias(tp["conv2_b"], g2, p2)),
        bf16(band(tp["conv3_w"], g3, p2, p3)),       f32row(conv_bias(tp["conv3_b"], g3, p3)),
    ]

    # Head layer 0: remap K from PyTorch NCHW-flatten order (c, h, w) to the kernel's
    # padded feature layout (h-major, (w, c) within each padded row of stride p3),
    # stored as (in, out); rows for padded feature positions stay zero.
    w0 = np.asarray(tp["fc0_w"], np.float32)        # (512, conv_out)
    w0k = np.zeros((g3.ho * p3, w0.shape[0]), np.float32)
    for hh in range(g3.ho):
        for ww in range(g3.wo):
            for cc in range(g3.cout):
                src = cc * g3.ho * g3.wo + hh * g3.wo + ww   # torch NCHW flatten index
                dst = hh * p3 + ww * g3.cout + cc            # kernel feature index
                w0k[dst, :] = w0[:, src]
    params += [bf16(w0k), f32row(tp["fc0_b"])]
    params += [bf16(np.asarray(tp["fc1_w"], np.float32).T), f32row(tp["fc1_b"])]
    params += [bf16(np.asarray(tp["fc2_w"], np.float32).T), f32row(tp["fc2_b"])]
    return tuple(params)


# ----------------------------------------------------------------------------
# Pure-JAX reference (PyTorch semantics) for validation
# ----------------------------------------------------------------------------
def rnd_forward_reference(tp, x):
    def leaky(v):
        return jnp.maximum(v, LEAK * v)

    y = x
    for idx, s in ((1, 4), (2, 2), (3, 1)):
        y = jax.lax.conv_general_dilated(
            y, tp[f"conv{idx}_w"], (s, s), "VALID",
            dimension_numbers=("NCHW", "OIHW", "NCHW"))
        y = leaky(y + tp[f"conv{idx}_b"].reshape(1, -1, 1, 1))
    f = y.reshape(y.shape[0], -1)                               # NCHW flatten
    h = jnp.maximum(f @ tp["fc0_w"].T + tp["fc0_b"], 0.0)
    h = jnp.maximum(h @ tp["fc1_w"].T + tp["fc1_b"], 0.0)
    return h @ tp["fc2_w"].T + tp["fc2_b"]


if __name__ == "__main__":
    # 36x36 is the smallest spatial size the (k8,s4)->(k4,s2)->(k3,s1) stack admits:
    # 36 -> 8 -> 3 -> 1, so conv2d_out_size = 64 * 1 * 1 = 64.
    B, C, H, W = 2, 4, 36, 36
    LATENT = 256

    geoms = make_geoms(C, H, W)
    g3 = geoms[-1]
    conv_out = g3.cout * g3.ho * g3.wo
    row_pad0 = _row_pad_for_stride(W * C, geoms[0].s)
    out_pads = tuple(_round_up(g.wo * g.cout, 128) for g in geoms)

    key = jax.random.PRNGKey(0)
    k_param, k_x = jax.random.split(key)
    torch_params = init_torch_params(k_param, C, conv_out, LATENT)
    kernel_params = prepare_kernel_params(torch_params, geoms, LATENT, row_pad0, out_pads)

    x = jax.random.normal(k_x, (B, C, H, W), jnp.float32)

    out = rnd_forward(x, kernel_params, geoms=geoms, latent_dim=LATENT)
    jax.block_until_ready(out)
    assert out.shape == (B, LATENT)

    # Validate against the pure-JAX (f32) reference; tolerance covers bf16 operands
    # and the intentional f32->bf16 re-quantization between layers.
    ref = rnd_forward_reference(torch_params, x)
    err = float(jnp.max(jnp.abs(out - ref)))
    scale = float(jnp.max(jnp.abs(ref)))
    assert err <= 0.08 * scale + 0.1, f"kernel/reference mismatch: err={err}, scale={scale}"

    print("KERNEL_OK")
</pallas_src>

<mosaic_0001>
module attributes {stable_mosaic.version = 11 : i64} {
  func.func @_rnd_kernel(%arg0: i32, %arg1: memref<16x5760xbf16, #tpu.memory_space<vmem>>, %arg2: memref<1280x256xbf16, #tpu.memory_space<vmem>>, %arg3: memref<1x256xf32, #tpu.memory_space<vmem>>, %arg4: memref<1024x256xbf16, #tpu.memory_space<vmem>>, %arg5: memref<1x256xf32, #tpu.memory_space<vmem>>, %arg6: memref<768x128xbf16, #tpu.memory_space<vmem>>, %arg7: memref<1x128xf32, #tpu.memory_space<vmem>>, %arg8: memref<128x512xbf16, #tpu.memory_space<vmem>>, %arg9: memref<1x512xf32, #tpu.memory_space<vmem>>, %arg10: memref<512x512xbf16, #tpu.memory_space<vmem>>, %arg11: memref<1x512xf32, #tpu.memory_space<vmem>>, %arg12: memref<512x256xbf16, #tpu.memory_space<vmem>>, %arg13: memref<1x256xf32, #tpu.memory_space<vmem>>, %arg14: memref<16x256xf32, #tpu.memory_space<vmem>>, %arg15: memref<16x2048xbf16, #tpu.memory_space<vmem>>, %arg16: memref<16x768xbf16, #tpu.memory_space<vmem>>, %arg17: memref<16x128xbf16, #tpu.memory_space<vmem>>) attributes {dimension_semantics = [#tpu.dimension_semantics<parallel>], iteration_bounds = array<i64: 1>, scalar_prefetch = 0 : i64, scratch_operands = 3 : i64, tpu.core_type = #tpu.core_type<tc>, window_params = [{transform_indices = @transform_0, window_bounds = array<i64: 16, 5760>}, {pipeline_mode = #tpu.pipeline_mode<synchronous>, transform_indices = @transform_1, window_bounds = array<i64: 1280, 256>}, {pipeline_mode = #tpu.pipeline_mode<synchronous>, transform_indices = @transform_2, window_bounds = array<i64: 1, 256>}, {pipeline_mode = #tpu.pipeline_mode<synchronous>, transform_indices = @transform_3, window_bounds = array<i64: 1024, 256>}, {pipeline_mode = #tpu.pipeline_mode<synchronous>, transform_indices = @transform_4, window_bounds = array<i64: 1, 256>}, {pipeline_mode = #tpu.pipeline_mode<synchronous>, transform_indices = @transform_5, window_bounds = array<i64: 768, 128>}, {pipeline_mode = #tpu.pipeline_mode<synchronous>, transform_indices = @transform_6, window_bounds = array<i64: 1, 128>}, {pipeline_mode = #tpu.pipeline_mode<synchronous>, transform_indices = @transform_7, window_bounds = array<i64: 128, 512>}, {pipeline_mode = #tpu.pipeline_mode<synchronous>, transform_indices = @transform_8, window_bounds = array<i64: 1, 512>}, {pipeline_mode = #tpu.pipeline_mode<synchronous>, transform_indices = @transform_9, window_bounds = array<i64: 512, 512>}, {pipeline_mode = #tpu.pipeline_mode<synchronous>, transform_indices = @transform_10, window_bounds = array<i64: 1, 512>}, {pipeline_mode = #tpu.pipeline_mode<synchronous>, transform_indices = @transform_11, window_bounds = array<i64: 512, 256>}, {pipeline_mode = #tpu.pipeline_mode<synchronous>, transform_indices = @transform_12, window_bounds = array<i64: 1, 256>}, {transform_indices = @transform_13, window_bounds = array<i64: 16, 256>}]} {
    %c0 = arith.constant 0 : index
    %c0_0 = arith.constant 0 : index
    %0 = vector.load %arg2[%c0, %c0_0] : memref<1280x256xbf16, #tpu.memory_space<vmem>>, vector<1280x256xbf16>
    %c0_1 = arith.constant 0 : index
    %c0_2 = arith.constant 0 : index
    %1 = vector.load %arg3[%c0_1, %c0_2] : memref<1x256xf32, #tpu.memory_space<vmem>>, vector<1x256xf32>
    %2 = vector.shape_cast %1 : vector<1x256xf32> to vector<1x256xf32>
    %3 = vector.broadcast %2 : vector<1x256xf32> to vector<16x256xf32>
    %c0_3 = arith.constant 0 : index
    %c0_4 = arith.constant 0 : index
    %4 = vector.load %arg1[%c0_3, %c0_4] : memref<16x5760xbf16, #tpu.memory_space<vmem>>, vector<16x1280xbf16>
    %cst = arith.constant dense<0.000000e+00> : vector<16x256xf32>
    %5 = tpu.matmul %4, %0, %cst {dimension_numbers = #tpu.dot_dimension_numbers<[1], [0], [0], [1], [0, 0, 1, 1], [], []>} : vector<16x1280xbf16>, vector<1280x256xbf16>, vector<16x256xf32> -> vector<16x256xf32>
    %6 = arith.addf %5, %3 : vector<16x256xf32>
    %cst_5 = arith.constant 0.00999999977 : f32
    %7 = vector.broadcast %cst_5 : f32 to vector<16x256xf32>
    %8 = arith.mulf %7, %6 : vector<16x256xf32>
    %9 = arith.maximumf %6, %8 : vector<16x256xf32>
    %10 = arith.truncf %9 : vector<16x256xf32> to vector<16x256xbf16>
    %c0_6 = arith.constant 0 : index
    %c0_7 = arith.constant 0 : index
    %11 = vector.load %arg15[%c0_6, %c0_7] : memref<16x2048xbf16, #tpu.memory_space<vmem>>, vector<16x256xbf16>
    tpu.vector_store %arg15[%c0_6, %c0_7], %10 {strides = array<i32>} : memref<16x2048xbf16, #tpu.memory_space<vmem>>, vector<16x256xbf16>,
    %c0_8 = arith.constant 0 : index
    %c640 = arith.constant 640 : index
    %12 = vector.load %arg1[%c0_8, %c640] : memref<16x5760xbf16, #tpu.memory_space<vmem>>, vector<16x1280xbf16>
    %cst_9 = arith.constant dense<0.000000e+00> : vector<16x256xf32>
    %13 = tpu.matmul %12, %0, %cst_9 {dimension_numbers = #tpu.dot_dimension_numbers<[1], [0], [0], [1], [0, 0, 1, 1], [], []>} : vector<16x1280xbf16>, vector<1280x256xbf16>, vector<16x256xf32> -> vector<16x256xf32>
    %14 = arith.addf %13, %3 : vector<16x256xf32>
    %cst_10 = arith.constant 0.00999999977 : f32
    %15 = vector.broadcast %cst_10 : f32 to vector<16x256xf32>
    %16 = arith.mulf %15, %14 : vector<16x256xf32>
    %17 = arith.maximumf %14, %16 : vector<16x256xf32>
    %18 = arith.truncf %17 : vector<16x256xf32> to vector<16x256xbf16>
    %c0_11 = arith.constant 0 : index
    %c256 = arith.constant 256 : index
    %19 = vector.load %arg15[%c0_11, %c256] : memref<16x2048xbf16, #tpu.memory_space<vmem>>, vector<16x256xbf16>
    tpu.vector_store %arg15[%c0_11, %c256], %18 {strides = array<i32>} : memref<16x2048xbf16, #tpu.memory_space<vmem>>, vector<16x256xbf16>,
    %c0_12 = arith.constant 0 : index
    %c1280 = arith.constant 1280 : index
    %20 = vector.load %arg1[%c0_12, %c1280] : memref<16x5760xbf16, #tpu.memory_space<vmem>>, vector<16x1280xbf16>
    %cst_13 = arith.constant dense<0.000000e+00> : vector<16x256xf32>
    %21 = tpu.matmul %20, %0, %cst_13 {dimension_numbers = #tpu.dot_dimension_numbers<[1], [0], [0], [1], [0, 0, 1, 1], [], []>} : vector<16x1280xbf16>, vector<1280x256xbf16>, vector<16x256xf32> -> vector<16x256xf32>
    %22 = arith.addf %21, %3 : vector<16x256xf32>
    %cst_14 = arith.constant 0.00999999977 : f32
    %23 = vector.broadcast %cst_14 : f32 to vector<16x256xf32>
    %24 = arith.mulf %23, %22 : vector<16x256xf32>
    %25 = arith.maximumf %22, %24 : vector<16x256xf32>
    %26 = arith.truncf %25 : vector<16x256xf32> to vector<16x256xbf16>
    %c0_15 = arith.constant 0 : index
    %c512 = arith.constant 512 : index
    %27 = vector.load %arg15[%c0_15, %c512] : memref<16x2048xbf16, #tpu.memory_space<vmem>>, vector<16x256xbf16>
    tpu.vector_store %arg15[%c0_15, %c512], %26 {strides = array<i32>} : memref<16x2048xbf16, #tpu.memory_space<vmem>>, vector<16x256xbf16>,
    %c0_16 = arith.constant 0 : index
    %c1920 = arith.constant 1920 : index
    %28 = vector.load %arg1[%c0_16, %c1920] : memref<16x5760xbf16, #tpu.memory_space<vmem>>, vector<16x1280xbf16>
    %cst_17 = arith.constant dense<0.000000e+00> : vector<16x256xf32>
    %29 = tpu.matmul %28, %0, %cst_17 {dimension_numbers = #tpu.dot_dimension_numbers<[1], [0], [0], [1], [0, 0, 1, 1], [], []>} : vector<16x1280xbf16>, vector<1280x256xbf16>, vector<16x256xf32> -> vector<16x256xf32>
    %30 = arith.addf %29, %3 : vector<16x256xf32>
    %cst_18 = arith.constant 0.00999999977 : f32
    %31 = vector.broadcast %cst_18 : f32 to vector<16x256xf32>
    %32 = arith.mulf %31, %30 : vector<16x256xf32>
    %33 = arith.maximumf %30, %32 : vector<16x256xf32>
    %34 = arith.truncf %33 : vector<16x256xf32> to vector<16x256xbf16>
    %c0_19 = arith.constant 0 : index
    %c768 = arith.constant 768 : index
    %35 = vector.load %arg15[%c0_19, %c768] : memref<16x2048xbf16, #tpu.memory_space<vmem>>, vector<16x256xbf16>
    tpu.vector_store %arg15[%c0_19, %c768], %34 {strides = array<i32>} : memref<16x2048xbf16, #tpu.memory_space<vmem>>, vector<16x256xbf16>,
    %c0_20 = arith.constant 0 : index
    %c2560 = arith.constant 2560 : index
    %36 = vector.load %arg1[%c0_20, %c2560] : memref<16x5760xbf16, #tpu.memory_space<vmem>>, vector<16x1280xbf16>
    %cst_21 = arith.constant dense<0.000000e+00> : vector<16x256xf32>
    %37 = tpu.matmul %36, %0, %cst_21 {dimension_numbers = #tpu.dot_dimension_numbers<[1], [0], [0], [1], [0, 0, 1, 1], [], []>} : vector<16x1280xbf16>, vector<1280x256xbf16>, vector<16x256xf32> -> vector<16x256xf32>
    %38 = arith.addf %37, %3 : vector<16x256xf32>
    %cst_22 = arith.constant 0.00999999977 : f32
    %39 = vector.broadcast %cst_22 : f32 to vector<16x256xf32>
    %40 = arith.mulf %39, %38 : vector<16x256xf32>
    %41 = arith.maximumf %38, %40 : vector<16x256xf32>
    %42 = arith.truncf %41 : vector<16x256xf32> to vector<16x256xbf16>
    %c0_23 = arith.constant 0 : index
    %c1024 = arith.constant 1024 : index
    %43 = vector.load %arg15[%c0_23, %c1024] : memref<16x2048xbf16, #tpu.memory_space<vmem>>, vector<16x256xbf16>
    tpu.vector_store %arg15[%c0_23, %c1024], %42 {strides = array<i32>} : memref<16x2048xbf16, #tpu.memory_space<vmem>>, vector<16x256xbf16>,
    %c0_24 = arith.constant 0 : index
    %c3200 = arith.constant 3200 : index
    %44 = vector.load %arg1[%c0_24, %c3200] : memref<16x5760xbf16, #tpu.memory_space<vmem>>, vector<16x1280xbf16>
    %cst_25 = arith.constant dense<0.000000e+00> : vector<16x256xf32>
    %45 = tpu.matmul %44, %0, %cst_25 {dimension_numbers = #tpu.dot_dimension_numbers<[1], [0], [0], [1], [0, 0, 1, 1], [], []>} : vector<16x1280xbf16>, vector<1280x256xbf16>, vector<16x256xf32> -> vector<16x256xf32>
    %46 = arith.addf %45, %3 : vector<16x256xf32>
    %cst_26 = arith.constant 0.00999999977 : f32
    %47 = vector.broadcast %cst_26 : f32 to vector<16x256xf32>
    %48 = arith.mulf %47, %46 : vector<16x256xf32>
    %49 = arith.maximumf %46, %48 : vector<16x256xf32>
    %50 = arith.truncf %49 : vector<16x256xf32> to vector<16x256xbf16>
    %c0_27 = arith.constant 0 : index
    %c1280_28 = arith.constant 1280 : index
    %51 = vector.load %arg15[%c0_27, %c1280_28] : memref<16x2048xbf16, #tpu.memory_space<vmem>>, vector<16x256xbf16>
    tpu.vector_store %arg15[%c0_27, %c1280_28], %50 {strides = array<i32>} : memref<16x2048xbf16, #tpu.memory_space<vmem>>, vector<16x256xbf16>,
    %c0_29 = arith.constant 0 : index
    %c3840 = arith.constant 3840 : index
    %52 = vector.load %arg1[%c0_29, %c3840] : memref<16x5760xbf16, #tpu.memory_space<vmem>>, vector<16x1280xbf16>
    %cst_30 = arith.constant dense<0.000000e+00> : vector<16x256xf32>
    %53 = tpu.matmul %52, %0, %cst_30 {dimension_numbers = #tpu.dot_dimension_numbers<[1], [0], [0], [1], [0, 0, 1, 1], [], []>} : vector<16x1280xbf16>, vector<1280x256xbf16>, vector<16x256xf32> -> vector<16x256xf32>
    %54 = arith.addf %53, %3 : vector<16x256xf32>
    %cst_31 = arith.constant 0.00999999977 : f32
    %55 = vector.broadcast %cst_31 : f32 to vector<16x256xf32>
    %56 = arith.mulf %55, %54 : vector<16x256xf32>
    %57 = arith.maximumf %54, %56 : vector<16x256xf32>
    %58 = arith.truncf %57 : vector<16x256xf32> to vector<16x256xbf16>
    %c0_32 = arith.constant 0 : index
    %c1536 = arith.constant 1536 : index
    %59 = vector.load %arg15[%c0_32, %c1536] : memref<16x2048xbf16, #tpu.memory_space<vmem>>, vector<16x256xbf16>
    tpu.vector_store %arg15[%c0_32, %c1536], %58 {strides = array<i32>} : memref<16x2048xbf16, #tpu.memory_space<vmem>>, vector<16x256xbf16>,
    %c0_33 = arith.constant 0 : index
    %c4480 = arith.constant 4480 : index
    %60 = vector.load %arg1[%c0_33, %c4480] : memref<16x5760xbf16, #tpu.memory_space<vmem>>, vector<16x1280xbf16>
    %cst_34 = arith.constant dense<0.000000e+00> : vector<16x256xf32>
    %61 = tpu.matmul %60, %0, %cst_34 {dimension_numbers = #tpu.dot_dimension_numbers<[1], [0], [0], [1], [0, 0, 1, 1], [], []>} : vector<16x1280xbf16>, vector<1280x256xbf16>, vector<16x256xf32> -> vector<16x256xf32>
    %62 = arith.addf %61, %3 : vector<16x256xf32>
    %cst_35 = arith.constant 0.00999999977 : f32
    %63 = vector.broadcast %cst_35 : f32 to vector<16x256xf32>
    %64 = arith.mulf %63, %62 : vector<16x256xf32>
    %65 = arith.maximumf %62, %64 : vector<16x256xf32>
    %66 = arith.truncf %65 : vector<16x256xf32> to vector<16x256xbf16>
    %c0_36 = arith.constant 0 : index
    %c1792 = arith.constant 1792 : index
    %67 = vector.load %arg15[%c0_36, %c1792] : memref<16x2048xbf16, #tpu.memory_space<vmem>>, vector<16x256xbf16>
    tpu.vector_store %arg15[%c0_36, %c1792], %66 {strides = array<i32>} : memref<16x2048xbf16, #tpu.memory_space<vmem>>, vector<16x256xbf16>,
    %c0_37 = arith.constant 0 : index
    %c0_38 = arith.constant 0 : index
    %68 = vector.load %arg4[%c0_37, %c0_38] : memref<1024x256xbf16, #tpu.memory_space<vmem>>, vector<1024x256xbf16>
    %c0_39 = arith.constant 0 : index
    %c0_40 = arith.constant 0 : index
    %69 = vector.load %arg5[%c0_39, %c0_40] : memref<1x256xf32, #tpu.memory_space<vmem>>, vector<1x256xf32>
    %70 = vector.shape_cast %69 : vector<1x256xf32> to vector<1x256xf32>
    %71 = vector.broadcast %70 : vector<1x256xf32> to vector<16x256xf32>
    %c0_41 = arith.constant 0 : index
    %c0_42 = arith.constant 0 : index
    %72 = vector.load %arg15[%c0_41, %c0_42] : memref<16x2048xbf16, #tpu.memory_space<vmem>>, vector<16x1024xbf16>
    %cst_43 = arith.constant dense<0.000000e+00> : vector<16x256xf32>
    %73 = tpu.matmul %72, %68, %cst_43 {dimension_numbers = #tpu.dot_dimension_numbers<[1], [0], [0], [1], [0, 0, 1, 1], [], []>} : vector<16x1024xbf16>, vector<1024x256xbf16>, vector<16x256xf32> -> vector<16x256xf32>
    %74 = arith.addf %73, %71 : vector<16x256xf32>
    %cst_44 = arith.constant 0.00999999977 : f32
    %75 = vector.broadcast %cst_44 : f32 to vector<16x256xf32>
    %76 = arith.mulf %75, %74 : vector<16x256xf32>
    %77 = arith.maximumf %74, %76 : vector<16x256xf32>
    %78 = arith.truncf %77 : vector<16x256xf32> to vector<16x256xbf16>
    %c0_45 = arith.constant 0 : index
    %c0_46 = arith.constant 0 : index
    %79 = vector.load %arg16[%c0_45, %c0_46] : memref<16x768xbf16, #tpu.memory_space<vmem>>, vector<16x256xbf16>
    tpu.vector_store %arg16[%c0_45, %c0_46], %78 {strides = array<i32>} : memref<16x768xbf16, #tpu.memory_space<vmem>>, vector<16x256xbf16>,
    %c0_47 = arith.constant 0 : index
    %c512_48 = arith.constant 512 : index
    %80 = vector.load %arg15[%c0_47, %c512_48] : memref<16x2048xbf16, #tpu.memory_space<vmem>>, vector<16x1024xbf16>
    %cst_49 = arith.constant dense<0.000000e+00> : vector<16x256xf32>
    %81 = tpu.matmul %80, %68, %cst_49 {dimension_numbers = #tpu.dot_dimension_numbers<[1], [0], [0], [1], [0, 0, 1, 1], [], []>} : vector<16x1024xbf16>, vector<1024x256xbf16>, vector<16x256xf32> -> vector<16x256xf32>
    %82 = arith.addf %81, %71 : vector<16x256xf32>
    %cst_50 = arith.constant 0.00999999977 : f32
    %83 = vector.broadcast %cst_50 : f32 to vector<16x256xf32>
    %84 = arith.mulf %83, %82 : vector<16x256xf32>
    %85 = arith.maximumf %82, %84 : vector<16x256xf32>
    %86 = arith.truncf %85 : vector<16x256xf32> to vector<16x256xbf16>
    %c0_51 = arith.constant 0 : index
    %c256_52 = arith.constant 256 : index
    %87 = vector.load %arg16[%c0_51, %c256_52] : memref<16x768xbf16, #tpu.memory_space<vmem>>, vector<16x256xbf16>
    tpu.vector_store %arg16[%c0_51, %c256_52], %86 {strides = array<i32>} : memref<16x768xbf16, #tpu.memory_space<vmem>>, vector<16x256xbf16>,
    %c0_53 = arith.constant 0 : index
    %c1024_54 = arith.constant 1024 : index
    %88 = vector.load %arg15[%c0_53, %c1024_54] : memref<16x2048xbf16, #tpu.memory_space<vmem>>, vector<16x1024xbf16>
    %cst_55 = arith.constant dense<0.000000e+00> : vector<16x256xf32>
    %89 = tpu.matmul %88, %68, %cst_55 {dimension_numbers = #tpu.dot_dimension_numbers<[1], [0], [0], [1], [0, 0, 1, 1], [], []>} : vector<16x1024xbf16>, vector<1024x256xbf16>, vector<16x256xf32> -> vector<16x256xf32>
    %90 = arith.addf %89, %71 : vector<16x256xf32>
    %cst_56 = arith.constant 0.00999999977 : f32
    %91 = vector.broadcast %cst_56 : f32 to vector<16x256xf32>
    %92 = arith.mulf %91, %90 : vector<16x256xf32>
    %93 = arith.maximumf %90, %92 : vector<16x256xf32>
    %94 = arith.truncf %93 : vector<16x256xf32> to vector<16x256xbf16>
    %c0_57 = arith.constant 0 : index
    %c512_58 = arith.constant 512 : index
    %95 = vector.load %arg16[%c0_57, %c512_58] : memref<16x768xbf16, #tpu.memory_space<vmem>>, vector<16x256xbf16>
    tpu.vector_store %arg16[%c0_57, %c512_58], %94 {strides = array<i32>} : memref<16x768xbf16, #tpu.memory_space<vmem>>, vector<16x256xbf16>,
    %c0_59 = arith.constant 0 : index
    %c0_60 = arith.constant 0 : index
    %96 = vector.load %arg6[%c0_59, %c0_60] : memref<768x128xbf16, #tpu.memory_space<vmem>>, vector<768x128xbf16>
    %c0_61 = arith.constant 0 : index
    %c0_62 = arith.constant 0 : index
    %97 = vector.load %arg7[%c0_61, %c0_62] : memref<1x128xf32, #tpu.memory_space<vmem>>, vector<1x128xf32>
    %98 = vector.shape_cast %97 : vector<1x128xf32> to vector<1x128xf32>
    %99 = vector.broadcast %98 : vector<1x128xf32> to vector<16x128xf32>
    %c0_63 = arith.constant 0 : index
    %c0_64 = arith.constant 0 : index
    %100 = vector.load %arg16[%c0_63, %c0_64] : memref<16x768xbf16, #tpu.memory_space<vmem>>, vector<16x768xbf16>
    %cst_65 = arith.constant dense<0.000000e+00> : vector<16x128xf32>
    %101 = tpu.matmul %100, %96, %cst_65 {dimension_numbers = #tpu.dot_dimension_numbers<[1], [0], [0], [1], [0, 0, 1, 1], [], []>} : vector<16x768xbf16>, vector<768x128xbf16>, vector<16x128xf32> -> vector<16x128xf32>
    %102 = arith.addf %101, %99 : vector<16x128xf32>
    %cst_66 = arith.constant 0.00999999977 : f32
    %103 = vector.broadcast %cst_66 : f32 to vector<16x128xf32>
    %104 = arith.mulf %103, %102 : vector<16x128xf32>
    %105 = arith.maximumf %102, %104 : vector<16x128xf32>
    %106 = arith.truncf %105 : vector<16x128xf32> to vector<16x128xbf16>
    %c0_67 = arith.constant 0 : index
    %c0_68 = arith.constant 0 : index
    %107 = vector.load %arg17[%c0_67, %c0_68] : memref<16x128xbf16, #tpu.memory_space<vmem>>, vector<16x128xbf16>
    tpu.vector_store %arg17[%c0_67, %c0_68], %106 {strides = array<i32>} : memref<16x128xbf16, #tpu.memory_space<vmem>>, vector<16x128xbf16>,
    %c0_69 = arith.constant 0 : index
    %c0_70 = arith.constant 0 : index
    %108 = vector.load %arg17[%c0_69, %c0_70] : memref<16x128xbf16, #tpu.memory_space<vmem>>, vector<16x128xbf16>
    %c0_71 = arith.constant 0 : index
    %c0_72 = arith.constant 0 : index
    %109 = vector.load %arg8[%c0_71, %c0_72] : memref<128x512xbf16, #tpu.memory_space<vmem>>, vector<128x512xbf16>
    %cst_73 = arith.constant dense<0.000000e+00> : vector<16x512xf32>
    %110 = tpu.matmul %108, %109, %cst_73 {dimension_numbers = #tpu.dot_dimension_numbers<[1], [0], [0], [1], [0, 0, 1, 1], [], []>} : vector<16x128xbf16>, vector<128x512xbf16>, vector<16x512xf32> -> vector<16x512xf32>
    %c0_74 = arith.constant 0 : index
    %c0_75 = arith.constant 0 : index
    %111 = vector.load %arg9[%c0_74, %c0_75] : memref<1x512xf32, #tpu.memory_space<vmem>>, vector<1x512xf32>
    %112 = vector.broadcast %111 : vector<1x512xf32> to vector<16x512xf32>
    %113 = arith.addf %110, %112 : vector<16x512xf32>
    %cst_76 = arith.constant 0.000000e+00 : f32
    %114 = vector.broadcast %cst_76 : f32 to vector<16x512xf32>
    %115 = arith.maximumf %113, %114 : vector<16x512xf32>
    %116 = arith.truncf %115 : vector<16x512xf32> to vector<16x512xbf16>
    %c0_77 = arith.constant 0 : index
    %c0_78 = arith.constant 0 : index
    %117 = vector.load %arg10[%c0_77, %c0_78] : memref<512x512xbf16, #tpu.memory_space<vmem>>, vector<512x512xbf16>
    %cst_79 = arith.constant dense<0.000000e+00> : vector<16x512xf32>
    %118 = tpu.matmul %116, %117, %cst_79 {dimension_numbers = #tpu.dot_dimension_numbers<[1], [0], [0], [1], [0, 0, 1, 1], [], []>} : vector<16x512xbf16>, vector<512x512xbf16>, vector<16x512xf32> -> vector<16x512xf32>
    %c0_80 = arith.constant 0 : index
    %c0_81 = arith.constant 0 : index
    %119 = vector.load %arg11[%c0_80, %c0_81] : memref<1x512xf32, #tpu.memory_space<vmem>>, vector<1x512xf32>
    %120 = vector.broadcast %119 : vector<1x512xf32> to vector<16x512xf32>
    %121 = arith.addf %118, %120 : vector<16x512xf32>
    %cst_82 = arith.constant 0.000000e+00 : f32
    %122 = vector.broadcast %cst_82 : f32 to vector<16x512xf32>
    %123 = arith.maximumf %121, %122 : vector<16x512xf32>
    %124 = arith.truncf %123 : vector<16x512xf32> to vector<16x512xbf16>
    %c0_83 = arith.constant 0 : index
    %c0_84 = arith.constant 0 : index
    %125 = vector.load %arg12[%c0_83, %c0_84] : memref<512x256xbf16, #tpu.memory_space<vmem>>, vector<512x256xbf16>
    %cst_85 = arith.constant dense<0.000000e+00> : vector<16x256xf32>
    %126 = tpu.matmul %124, %125, %cst_85 {dimension_numbers = #tpu.dot_dimension_numbers<[1], [0], [0], [1], [0, 0, 1, 1], [], []>} : vector<16x512xbf16>, vector<512x256xbf16>, vector<16x256xf32> -> vector<16x256xf32>
    %c0_86 = arith.constant 0 : index
    %c0_87 = arith.constant 0 : index
    %127 = vector.load %arg13[%c0_86, %c0_87] : memref<1x256xf32, #tpu.memory_space<vmem>>, vector<1x256xf32>
    %128 = vector.broadcast %127 : vector<1x256xf32> to vector<16x256xf32>
    %129 = arith.addf %126, %128 : vector<16x256xf32>
    %c0_88 = arith.constant 0 : index
    %c0_89 = arith.constant 0 : index
    %130 = vector.load %arg14[%c0_88, %c0_89] : memref<16x256xf32, #tpu.memory_space<vmem>>, vector<16x256xf32>
    tpu.vector_store %arg14[%c0_88, %c0_89], %129 {strides = array<i32>} : memref<16x256xf32, #tpu.memory_space<vmem>>, vector<16x256xf32>,
    return
  }
  func.func @transform_0(%arg0: i32) -> (i32, i32) {
    %c0_i32 = arith.constant 0 : i32
    %c0_i32_0 = arith.constant 0 : i32
    return %arg0, %c0_i32 : i32, i32
  }
  func.func @transform_1(%arg0: i32) -> (i32, i32) {
    %c0_i32 = arith.constant 0 : i32
    %c0_i32_0 = arith.constant 0 : i32
    %c0_i32_1 = arith.constant 0 : i32
    return %c0_i32, %c0_i32_0 : i32, i32
  }
  func.func @transform_2(%arg0: i32) -> (i32, i32) {
    %c0_i32 = arith.constant 0 : i32
    %c0_i32_0 = arith.constant 0 : i32
    %c0_i32_1 = arith.constant 0 : i32
    return %c0_i32, %c0_i32_0 : i32, i32
  }
  func.func @transform_3(%arg0: i32) -> (i32, i32) {
    %c0_i32 = arith.constant 0 : i32
    %c0_i32_0 = arith.constant 0 : i32
    %c0_i32_1 = arith.constant 0 : i32
    return %c0_i32, %c0_i32_0 : i32, i32
  }
  func.func @transform_4(%arg0: i32) -> (i32, i32) {
    %c0_i32 = arith.constant 0 : i32
    %c0_i32_0 = arith.constant 0 : i32
    %c0_i32_1 = arith.constant 0 : i32
    return %c0_i32, %c0_i32_0 : i32, i32
  }
  func.func @transform_5(%arg0: i32) -> (i32, i32) {
    %c0_i32 = arith.constant 0 : i32
    %c0_i32_0 = arith.constant 0 : i32
    %c0_i32_1 = arith.constant 0 : i32
    return %c0_i32, %c0_i32_0 : i32, i32
  }
  func.func @transform_6(%arg0: i32) -> (i32, i32) {
    %c0_i32 = arith.constant 0 : i32
    %c0_i32_0 = arith.constant 0 : i32
    %c0_i32_1 = arith.constant 0 : i32
    return %c0_i32, %c0_i32_0 : i32, i32
  }
  func.func @transform_7(%arg0: i32) -> (i32, i32) {
    %c0_i32 = arith.constant 0 : i32
    %c0_i32_0 = arith.constant 0 : i32
    %c0_i32_1 = arith.constant 0 : i32
    return %c0_i32, %c0_i32_0 : i32, i32
  }
  func.func @transform_8(%arg0: i32) -> (i32, i32) {
    %c0_i32 = arith.constant 0 : i32
    %c0_i32_0 = arith.constant 0 : i32
    %c0_i32_1 = arith.constant 0 : i32
    return %c0_i32, %c0_i32_0 : i32, i32
  }
  func.func @transform_9(%arg0: i32) -> (i32, i32) {
    %c0_i32 = arith.constant 0 : i32
    %c0_i32_0 = arith.constant 0 : i32
    %c0_i32_1 = arith.constant 0 : i32
    return %c0_i32, %c0_i32_0 : i32, i32
  }
  func.func @transform_10(%arg0: i32) -> (i32, i32) {
    %c0_i32 = arith.constant 0 : i32
    %c0_i32_0 = arith.constant 0 : i32
    %c0_i32_1 = arith.constant 0 : i32
    return %c0_i32, %c0_i32_0 : i32, i32
  }
  func.func @transform_11(%arg0: i32) -> (i32, i32) {
    %c0_i32 = arith.constant 0 : i32
    %c0_i32_0 = arith.constant 0 : i32
    %c0_i32_1 = arith.constant 0 : i32
    return %c0_i32, %c0_i32_0 : i32, i32
  }
  func.func @transform_12(%arg0: i32) -> (i32, i32) {
    %c0_i32 = arith.constant 0 : i32
    %c0_i32_0 = arith.constant 0 : i32
    %c0_i32_1 = arith.constant 0 : i32
    return %c0_i32, %c0_i32_0 : i32, i32
  }
  func.func @transform_13(%arg0: i32) -> (i32, i32) {
    %c0_i32 = arith.constant 0 : i32
    %c0_i32_0 = arith.constant 0 : i32
    return %arg0, %c0_i32 : i32, i32
  }
}

</mosaic_0001>

<llo_original>
// kernel: rnd_forward.1
$region0: #{rnd_forward.1}
  #allocation0 [shape = 'u32[]', space=smem, size = 0x4, offset = 0x4, fixed_abs, tag = 'smem constant byte address 0x4 - core index']
  #allocation1 [shape = 'u32[144,128]{1,0:T(1,128)}', space=vmem, size = 0x12000, scoped, tag = 'internal scratch']
  #allocation2 [shape = 'bf16[16,2048]{1,0:T(16,128)(2,1)}', space=vmem, size = 0x10000, scoped, tag = 'scratch operand']
  #allocation3 [shape = 'bf16[16,768]{1,0:T(16,128)(2,1)}', space=vmem, size = 0x6000, scoped, tag = 'scratch operand']
  #allocation4 [shape = 'bf16[16,128]{1,0:T(16,128)(2,1)}', space=vmem, size = 0x1000, scoped, tag = 'scratch operand']
  %s0 = inlined_call_operand.vmem [shape: bf16[16,5760], index: 0, kind: input, shape index: {}]
  %s1 = inlined_call_operand.vmem [shape: bf16[1280,256], index: 1, kind: input, shape index: {}]
  %s2 = inlined_call_operand.vmem [shape: f32[1,256], index: 2, kind: input, shape index: {}]
  %s3 = inlined_call_operand.vmem [shape: bf16[1024,256], index: 3, kind: input, shape index: {}]
  %s4 = inlined_call_operand.vmem [shape: f32[1,256], index: 4, kind: input, shape index: {}]
  %s5 = inlined_call_operand.hbm [shape: bf16[768,128], index: 5, kind: input, shape index: {}]
  %s6 = inlined_call_operand.vmem [shape: f32[1,128], index: 6, kind: input, shape index: {}]
  %s7 = inlined_call_operand.vmem [shape: bf16[128,512], index: 7, kind: input, shape index: {}]
  %s8 = inlined_call_operand.vmem [shape: f32[1,512], index: 8, kind: input, shape index: {}]
  %s9 = inlined_call_operand.hbm [shape: bf16[512,512], index: 9, kind: input, shape index: {}]
  %s10 = inlined_call_operand.vmem [shape: f32[1,512], index: 10, kind: input, shape index: {}]
  %s11 = inlined_call_operand.hbm [shape: bf16[512,256], index: 11, kind: input, shape index: {}]
  %s12 = inlined_call_operand.vmem [shape: f32[1,256], index: 12, kind: input, shape index: {}]
  %s13 = inlined_call_operand.vmem [shape: f32[16,256], index: 13, kind: output, shape index: {}]
  %s14 = sld [smem:[#allocation0]]
  $region74: #{rnd_forward.1} parent=0
    _
  %s16 = ssub.s32 1, %s14
  %s17 = scalar_select 0, %s16, %s14
  $region1: #{rnd_forward.1} parent=0
    #allocation5 [shape = 'u8[196608]{0}', space=vmem, size = 0x30000, scoped, tag = 'input window, operand 5, single buffered']
    #allocation6 [shape = 's32[1]{0}', space=sflag, size = 0x4, scoped, tag = 'scoped memory for rnd_forward.1']
    #allocation7 [shape = 'u8[524288]{0}', space=vmem, size = 0x80000, scoped, tag = 'input window, operand 9, single buffered']
    #allocation8 [shape = 's32[1]{0}', space=sflag, size = 0x4, scoped, tag = 'scoped memory for rnd_forward.1']
    #allocation9 [shape = 'u8[262144]{0}', space=vmem, size = 0x40000, scoped, tag = 'input window, operand 11, single buffered']
    %18 = vsyncpa [#allocation6], 0
    %19 = vsyncpa [#allocation8], 0
    // Predicated region
    $region2: #{rnd_forward.1} parent=1 // pred_check
      _
    $region3: #{rnd_forward.1} parent=1 // pred_check_branch
      %21 = sbr.rel (0) target = $region5
    $region4: #{rnd_forward.1} parent=1 // pred_region
      _
    $region5: #{rnd_forward.1} parent=1 // pred_fallthru
      _
    // Predicated region
    $region6: #{rnd_forward.1} parent=1 // pred_check
      _
    $region7: #{rnd_forward.1} parent=1 // pred_check_branch
      %23 = sbr.rel (0) target = $region9
    $region8: #{rnd_forward.1} parent=1 // pred_region
      _
    $region9: #{rnd_forward.1} parent=1 // pred_fallthru
      _
    // Predicated region
    $region10: #{rnd_forward.1} parent=1 // pred_check
      _
    $region11: #{rnd_forward.1} parent=1 // pred_check_branch
      %25 = sbr.rel (0) target = $region13
    $region12: #{rnd_forward.1} parent=1 // pred_region
      _
    $region13: #{rnd_forward.1} parent=1 // pred_fallthru
      _
    // Predicated region
    $region14: #{rnd_forward.1} parent=1 // pred_check
      _
    $region15: #{rnd_forward.1} parent=1 // pred_check_branch
      %27 = sbr.rel (0) target = $region17
    $region16: #{rnd_forward.1} parent=1 // pred_region
      _
    $region17: #{rnd_forward.1} parent=1 // pred_fallthru
      _
    // Predicated region
    $region18: #{rnd_forward.1} parent=1 // pred_check
      _
    $region19: #{rnd_forward.1} parent=1 // pred_check_branch
      %29 = sbr.rel (0) target = $region21
    $region20: #{rnd_forward.1} parent=1 // pred_region
      _
    $region21: #{rnd_forward.1} parent=1 // pred_fallthru
      _
    // Predicated region
    $region22: #{rnd_forward.1} parent=1 // pred_check
      _
    $region23: #{rnd_forward.1} parent=1 // pred_check_branch
      %31 = sbr.rel (0) target = $region25
    $region24: #{rnd_forward.1} parent=1 // pred_region
      %s33 = ssub.s32 6144, 6144
      %34 = vsyncadd [#allocation6], %s33
      %s35 = sshll.u32 [#allocation5], 4
      %s36 = int_to_ptr.vmem [resolvable:$true] %s35
      %41 = dma.hbm_to_vmem [thread:$0]  %s5, 6144, %s36, [#allocation6], 64, 64, 4
    $region25: #{rnd_forward.1} parent=1 // pred_fallthru
      _
    // Predicated region
    $region26: #{rnd_forward.1} parent=1 // pred_check
      _
    $region27: #{rnd_forward.1} parent=1 // pred_check_branch
      %43 = sbr.rel (0) target = $region29
    $region28: #{rnd_forward.1} parent=1 // pred_region
      _
    $region29: #{rnd_forward.1} parent=1 // pred_fallthru
      _
    // Predicated region
    $region30: #{rnd_forward.1} parent=1 // pred_check
      _
    $region31: #{rnd_forward.1} parent=1 // pred_check_branch
      %45 = sbr.rel (0) target = $region33
    $region32: #{rnd_forward.1} parent=1 // pred_region
      _
    $region33: #{rnd_forward.1} parent=1 // pred_fallthru
      _
    // Predicated region
    $region34: #{rnd_forward.1} parent=1 // pred_check
      _
    $region35: #{rnd_forward.1} parent=1 // pred_check_branch
      %47 = sbr.rel (0) target = $region37
    $region36: #{rnd_forward.1} parent=1 // pred_region
      _
    $region37: #{rnd_forward.1} parent=1 // pred_fallthru
      _
    // Predicated region
    $region38: #{rnd_forward.1} parent=1 // pred_check
      _
    $region39: #{rnd_forward.1} parent=1 // pred_check_branch
      %49 = sbr.rel (0) target = $region41
    $region40: #{rnd_forward.1} parent=1 // pred_region
      %s51 = ssub.s32 16384, 16384
      %52 = vsyncadd [#allocation8], %s51
      %s53 = sshll.u32 [#allocation7], 4
      %s54 = int_to_ptr.vmem [resolvable:$true] %s53
      %59 = dma.hbm_to_vmem [thread:$0]  %s9, 16384, %s54, [#allocation8], 256, 256, 16
    $region41: #{rnd_forward.1} parent=1 // pred_fallthru
      _
    // Predicated region
    $region42: #{rnd_forward.1} parent=1 // pred_check
      _
    $region43: #{rnd_forward.1} parent=1 // pred_check_branch
      %61 = sbr.rel (0) target = $region45
    $region44: #{rnd_forward.1} parent=1 // pred_region
      _
    $region45: #{rnd_forward.1} parent=1 // pred_fallthru
      _
    // Predicated region
    $region46: #{rnd_forward.1} parent=1 // pred_check
      _
    $region47: #{rnd_forward.1} parent=1 // pred_check_branch
      %63 = sbr.rel (0) target = $region49
    $region48: #{rnd_forward.1} parent=1 // pred_region
      %s65 = ssub.s32 8192, 8192
      %66 = vsyncadd [#allocation8], %s65
      %s67 = sshll.u32 [#allocation9], 4
      %s68 = int_to_ptr.vmem [resolvable:$true] %s67
      %73 = dma.hbm_to_vmem [thread:$0]  %s11, 8192, %s68, [#allocation8], 128, 128, 8
    $region49: #{rnd_forward.1} parent=1 // pred_fallthru
      _
    // Predicated region
    $region50: #{rnd_forward.1} parent=1 // pred_check
      _
    $region51: #{rnd_forward.1} parent=1 // pred_check_branch
      %75 = sbr.rel (0) target = $region53
    $region52: #{rnd_forward.1} parent=1 // pred_region
      _
    $region53: #{rnd_forward.1} parent=1 // pred_fallthru
      _
    // Predicated region
    $region54: #{rnd_forward.1} parent=1 // pred_check
      _
    $region55: #{rnd_forward.1} parent=1 // pred_check_branch
      %77 = sbr.rel (0) target = $region57
    $region56: #{rnd_forward.1} parent=1 // pred_region
      %78 = dma.done [#allocation6], 6144
    $region57: #{rnd_forward.1} parent=1 // pred_fallthru
      _
    // Predicated region
    $region58: #{rnd_forward.1} parent=1 // pred_check
      _
    $region59: #{rnd_forward.1} parent=1 // pred_check_branch
      %80 = sbr.rel (0) target = $region61
    $region60: #{rnd_forward.1} parent=1 // pred_region
      %81 = dma.done [#allocation8], 16384
    $region61: #{rnd_forward.1} parent=1 // pred_fallthru
      _
    // Predicated region
    $region62: #{rnd_forward.1} parent=1 // pred_check
      _
    $region63: #{rnd_forward.1} parent=1 // pred_check_branch
      %83 = sbr.rel (0) target = $region65
    $region64: #{rnd_forward.1} parent=1 // pred_region
      %84 = dma.done [#allocation8], 8192
    $region65: #{rnd_forward.1} parent=1 // pred_fallthru
      _
    %v86 = vld [vmem:[%s1] sm:$0xff]
    %v87 = vld [vmem:[%s1 + $0x8] sm:$0xff]
    %v88 = vld [vmem:[%s1 + $0x10] sm:$0xff]
    %v89 = vld [vmem:[%s1 + $0x18] sm:$0xff]
    %v90 = vld [vmem:[%s1 + $0x20] sm:$0xff]
    %v91 = vld [vmem:[%s1 + $0x28] sm:$0xff]
    %v92 = vld [vmem:[%s1 + $0x30] sm:$0xff]
    %v93 = vld [vmem:[%s1 + $0x38] sm:$0xff]
    %v94 = vld [vmem:[%s1 + $0x40] sm:$0xff]
    %v95 = vld [vmem:[%s1 + $0x48] sm:$0xff]
    %v96 = vld [vmem:[%s1 + $0x50] sm:$0xff]
    %v97 = vld [vmem:[%s1 + $0x58] sm:$0xff]
    %v98 = vld [vmem:[%s1 + $0x60] sm:$0xff]
    %v99 = vld [vmem:[%s1 + $0x68] sm:$0xff]
    %v100 = vld [vmem:[%s1 + $0x70] sm:$0xff]
    %v101 = vld [vmem:[%s1 + $0x78] sm:$0xff]
    %v102 = vld [vmem:[%s1 + $0x80] sm:$0xff]
    %v103 = vld [vmem:[%s1 + $0x88] sm:$0xff]
    %v104 = vld [vmem:[%s1 + $0x90] sm:$0xff]
    %v105 = vld [vmem:[%s1 + $0x98] sm:$0xff]
    %v106 = vld [vmem:[%s1 + $0xa0] sm:$0xff]
    %v107 = vld [vmem:[%s1 + $0xa8] sm:$0xff]
    %v108 = vld [vmem:[%s1 + $0xb0] sm:$0xff]
    %v109 = vld [vmem:[%s1 + $0xb8] sm:$0xff]
    %v110 = vld [vmem:[%s1 + $0xc0] sm:$0xff]
    %v111 = vld [vmem:[%s1 + $0xc8] sm:$0xff]
    %v112 = vld [vmem:[%s1 + $0xd0] sm:$0xff]
    %v113 = vld [vmem:[%s1 + $0xd8] sm:$0xff]
    %v114 = vld [vmem:[%s1 + $0xe0] sm:$0xff]
    %v115 = vld [vmem:[%s1 + $0xe8] sm:$0xff]
    %v116 = vld [vmem:[%s1 + $0xf0] sm:$0xff]
    %v117 = vld [vmem:[%s1 + $0xf8] sm:$0xff]
    %v118 = vld [vmem:[%s1 + $0x100] sm:$0xff]
    %v119 = vld [vmem:[%s1 + $0x108] sm:$0xff]
    %v120 = vld [vmem:[%s1 + $0x110] sm:$0xff]
    %v121 = vld [vmem:[%s1 + $0x118] sm:$0xff]
    %v122 = vld [vmem:[%s1 + $0x120] sm:$0xff]
    %v123 = vld [vmem:[%s1 + $0x128] sm:$0xff]
    %v124 = vld [vmem:[%s1 + $0x130] sm:$0xff]
    %v125 = vld [vmem:[%s1 + $0x138] sm:$0xff]
    %v126 = vld [vmem:[%s1 + $0x140] sm:$0xff]
    %v127 = vld [vmem:[%s1 + $0x148] sm:$0xff]
    %v128 = vld [vmem:[%s1 + $0x150] sm:$0xff]
    %v129 = vld [vmem:[%s1 + $0x158] sm:$0xff]
    %v130 = vld [vmem:[%s1 + $0x160] sm:$0xff]
    %v131 = vld [vmem:[%s1 + $0x168] sm:$0xff]
    %v132 = vld [vmem:[%s1 + $0x170] sm:$0xff]
    %v133 = vld [vmem:[%s1 + $0x178] sm:$0xff]
    %v134 = vld [vmem:[%s1 + $0x180] sm:$0xff]
    %v135 = vld [vmem:[%s1 + $0x188] sm:$0xff]
    %v136 = vld [vmem:[%s1 + $0x190] sm:$0xff]
    %v137 = vld [vmem:[%s1 + $0x198] sm:$0xff]
    %v138 = vld [vmem:[%s1 + $0x1a0] sm:$0xff]
    %v139 = vld [vmem:[%s1 + $0x1a8] sm:$0xff]
    %v140 = vld [vmem:[%s1 + $0x1b0] sm:$0xff]
    %v141 = vld [vmem:[%s1 + $0x1b8] sm:$0xff]
    %v142 = vld [vmem:[%s1 + $0x1c0] sm:$0xff]
    %v143 = vld [vmem:[%s1 + $0x1c8] sm:$0xff]
    %v144 = vld [vmem:[%s1 + $0x1d0] sm:$0xff]
    %v145 = vld [vmem:[%s1 + $0x1d8] sm:$0xff]
    %v146 = vld [vmem:[%s1 + $0x1e0] sm:$0xff]
    %v147 = vld [vmem:[%s1 + $0x1e8] sm:$0xff]
    %v148 = vld [vmem:[%s1 + $0x1f0] sm:$0xff]
    %v149 = vld [vmem:[%s1 + $0x1f8] sm:$0xff]
    %v150 = vld [vmem:[%s1 + $0x200] sm:$0xff]
    %v151 = vld [vmem:[%s1 + $0x208] sm:$0xff]
    %v152 = vld [vmem:[%s1 + $0x210] sm:$0xff]
    %v153 = vld [vmem:[%s1 + $0x218] sm:$0xff]
    %v154 = vld [vmem:[%s1 + $0x220] sm:$0xff]
    %v155 = vld [vmem:[%s1 + $0x228] sm:$0xff]
    %v156 = vld [vmem:[%s1 + $0x230] sm:$0xff]
    %v157 = vld [vmem:[%s1 + $0x238] sm:$0xff]
    %v158 = vld [vmem:[%s1 + $0x240] sm:$0xff]
    %v159 = vld [vmem:[%s1 + $0x248] sm:$0xff]
    %v160 = vld [vmem:[%s1 + $0x250] sm:$0xff]
    %v161 = vld [vmem:[%s1 + $0x258] sm:$0xff]
    %v162 = vld [vmem:[%s1 + $0x260] sm:$0xff]
    %v163 = vld [vmem:[%s1 + $0x268] sm:$0xff]
    %v164 = vld [vmem:[%s1 + $0x270] sm:$0xff]
    %v165 = vld [vmem:[%s1 + $0x278] sm:$0xff]
    %v166 = vld [vmem:[%s1 + $0x280] sm:$0xff]
    %v167 = vld [vmem:[%s1 + $0x288] sm:$0xff]
    %v168 = vld [vmem:[%s1 + $0x290] sm:$0xff]
    %v169 = vld [vmem:[%s1 + $0x298] sm:$0xff]
    %v170 = vld [vmem:[%s1 + $0x2a0] sm:$0xff]
    %v171 = vld [vmem:[%s1 + $0x2a8] sm:$0xff]
    %v172 = vld [vmem:[%s1 + $0x2b0] sm:$0xff]
    %v173 = vld [vmem:[%s1 + $0x2b8] sm:$0xff]
    %v174 = vld [vmem:[%s1 + $0x2c0] sm:$0xff]
    %v175 = vld [vmem:[%s1 + $0x2c8] sm:$0xff]
    %v176 = vld [vmem:[%s1 + $0x2d0] sm:$0xff]
    %v177 = vld [vmem:[%s1 + $0x2d8] sm:$0xff]
    %v178 = vld [vmem:[%s1 + $0x2e0] sm:$0xff]
    %v179 = vld [vmem:[%s1 + $0x2e8] sm:$0xff]
    %v180 = vld [vmem:[%s1 + $0x2f0] sm:$0xff]
    %v181 = vld [vmem:[%s1 + $0x2f8] sm:$0xff]
    %v182 = vld [vmem:[%s1 + $0x300] sm:$0xff]
    %v183 = vld [vmem:[%s1 + $0x308] sm:$0xff]
    %v184 = vld [vmem:[%s1 + $0x310] sm:$0xff]
    %v185 = vld [vmem:[%s1 + $0x318] sm:$0xff]
    %v186 = vld [vmem:[%s1 + $0x320] sm:$0xff]
    %v187 = vld [vmem:[%s1 + $0x328] sm:$0xff]
    %v188 = vld [vmem:[%s1 + $0x330] sm:$0xff]
    %v189 = vld [vmem:[%s1 + $0x338] sm:$0xff]
    %v190 = vld [vmem:[%s1 + $0x340] sm:$0xff]
    %v191 = vld [vmem:[%s1 + $0x348] sm:$0xff]
    %v192 = vld [vmem:[%s1 + $0x350] sm:$0xff]
    %v193 = vld [vmem:[%s1 + $0x358] sm:$0xff]
    %v194 = vld [vmem:[%s1 + $0x360] sm:$0xff]
    %v195 = vld [vmem:[%s1 + $0x368] sm:$0xff]
    %v196 = vld [vmem:[%s1 + $0x370] sm:$0xff]
    %v197 = vld [vmem:[%s1 + $0x378] sm:$0xff]
    %v198 = vld [vmem:[%s1 + $0x380] sm:$0xff]
    %v199 = vld [vmem:[%s1 + $0x388] sm:$0xff]
    %v200 = vld [vmem:[%s1 + $0x390] sm:$0xff]
    %v201 = vld [vmem:[%s1 + $0x398] sm:$0xff]
    %v202 = vld [vmem:[%s1 + $0x3a0] sm:$0xff]
    %v203 = vld [vmem:[%s1 + $0x3a8] sm:$0xff]
    %v204 = vld [vmem:[%s1 + $0x3b0] sm:$0xff]
    %v205 = vld [vmem:[%s1 + $0x3b8] sm:$0xff]
    %v206 = vld [vmem:[%s1 + $0x3c0] sm:$0xff]
    %v207 = vld [vmem:[%s1 + $0x3c8] sm:$0xff]
    %v208 = vld [vmem:[%s1 + $0x3d0] sm:$0xff]
    %v209 = vld [vmem:[%s1 + $0x3d8] sm:$0xff]
    %v210 = vld [vmem:[%s1 + $0x3e0] sm:$0xff]
    %v211 = vld [vmem:[%s1 + $0x3e8] sm:$0xff]
    %v212 = vld [vmem:[%s1 + $0x3f0] sm:$0xff]
    %v213 = vld [vmem:[%s1 + $0x3f8] sm:$0xff]
    %v214 = vld [vmem:[%s1 + $0x400] sm:$0xff]
    %v215 = vld [vmem:[%s1 + $0x408] sm:$0xff]
    %v216 = vld [vmem:[%s1 + $0x410] sm:$0xff]
    %v217 = vld [vmem:[%s1 + $0x418] sm:$0xff]
    %v218 = vld [vmem:[%s1 + $0x420] sm:$0xff]
    %v219 = vld [vmem:[%s1 + $0x428] sm:$0xff]
    %v220 = vld [vmem:[%s1 + $0x430] sm:$0xff]
    %v221 = vld [vmem:[%s1 + $0x438] sm:$0xff]
    %v222 = vld [vmem:[%s1 + $0x440] sm:$0xff]
    %v223 = vld [vmem:[%s1 + $0x448] sm:$0xff]
    %v224 = vld [vmem:[%s1 + $0x450] sm:$0xff]
    %v225 = vld [vmem:[%s1 + $0x458] sm:$0xff]
    %v226 = vld [vmem:[%s1 + $0x460] sm:$0xff]
    %v227 = vld [vmem:[%s1 + $0x468] sm:$0xff]
    %v228 = vld [vmem:[%s1 + $0x470] sm:$0xff]
    %v229 = vld [vmem:[%s1 + $0x478] sm:$0xff]
    %v230 = vld [vmem:[%s1 + $0x480] sm:$0xff]
    %v231 = vld [vmem:[%s1 + $0x488] sm:$0xff]
    %v232 = vld [vmem:[%s1 + $0x490] sm:$0xff]
    %v233 = vld [vmem:[%s1 + $0x498] sm:$0xff]
    %v234 = vld [vmem:[%s1 + $0x4a0] sm:$0xff]
    %v235 = vld [vmem:[%s1 + $0x4a8] sm:$0xff]
    %v236 = vld [vmem:[%s1 + $0x4b0] sm:$0xff]
    %v237 = vld [vmem:[%s1 + $0x4b8] sm:$0xff]
    %v238 = vld [vmem:[%s1 + $0x4c0] sm:$0xff]
    %v239 = vld [vmem:[%s1 + $0x4c8] sm:$0xff]
    %v240 = vld [vmem:[%s1 + $0x4d0] sm:$0xff]
    %v241 = vld [vmem:[%s1 + $0x4d8] sm:$0xff]
    %v242 = vld [vmem:[%s1 + $0x4e0] sm:$0xff]
    %v243 = vld [vmem:[%s1 + $0x4e8] sm:$0xff]
    %v244 = vld [vmem:[%s1 + $0x4f0] sm:$0xff]
    %v245 = vld [vmem:[%s1 + $0x4f8] sm:$0xff]
    %v246 = vld [vmem:[%s2] sm:$0x3]
    %v248 = vlaneseq
    %v249 = vshrl.u32 %v248, 7
    %v250 = vsub.s32 0, %v249
    %v251 = vrot.slane %v246, %v250
    %v252 = vlaneseq
    %v253 = vshrl.u32 %v252, 7
    %v254 = vsub.s32 1, %v253
    %v255 = vrot.slane %v246, %v254
    %v258 = vld [vmem:[%s0] sm:$0xff]
    %v259 = vld [vmem:[%s0 + $0x8] sm:$0xff]
    %v260 = vld [vmem:[%s0 + $0x10] sm:$0xff]
    %v261 = vld [vmem:[%s0 + $0x18] sm:$0xff]
    %v262 = vld [vmem:[%s0 + $0x20] sm:$0xff]
    %v263 = vld [vmem:[%s0 + $0xb4] sm:$0xff]
    %v264 = vld [vmem:[%s0 + $0xbc] sm:$0xff]
    %v265 = vld [vmem:[%s0 + $0xc4] sm:$0xff]
    %v266 = vld [vmem:[%s0 + $0xcc] sm:$0xff]
    %v267 = vld [vmem:[%s0 + $0xd4] sm:$0xff]
    %v278 = vunpack.c.l.b16 %v258
    %v279 = vunpack.c.h.b16 %v258
    %v280 = vunpack.c.l.b16 %v259
    %v281 = vunpack.c.h.b16 %v259
    %v282 = vunpack.c.l.b16 %v260
    %v283 = vunpack.c.h.b16 %v260
    %v284 = vunpack.c.l.b16 %v261
    %v285 = vunpack.c.h.b16 %v261
    %v286 = vunpack.c.l.b16 %v262
    %v287 = vunpack.c.h.b16 %v262
    %v288 = vunpack.c.l.b16 %v263
    %v289 = vunpack.c.h.b16 %v263
    %v290 = vunpack.c.l.b16 %v264
    %v291 = vunpack.c.h.b16 %v264
    %v292 = vunpack.c.l.b16 %v265
    %v293 = vunpack.c.h.b16 %v265
    %v294 = vunpack.c.l.b16 %v266
    %v295 = vunpack.c.h.b16 %v266
    %v296 = vunpack.c.l.b16 %v267
    %v297 = vunpack.c.h.b16 %v267
    %v298 = vpack.c.b16 %v288, %v278
    %v299 = vpack.c.b16 %v289, %v279
    %v300 = vpack.c.b16 %v290, %v280
    %v301 = vpack.c.b16 %v291, %v281
    %v302 = vpack.c.b16 %v292, %v282
    %v303 = vpack.c.b16 %v293, %v283
    %v304 = vpack.c.b16 %v294, %v284
    %v305 = vpack.c.b16 %v295, %v285
    %v306 = vpack.c.b16 %v296, %v286
    %v307 = vpack.c.b16 %v297, %v287
    %v478 = vunpack.c.l.b16 %v86
    %v479 = vunpack.c.h.b16 %v86
    %v480 = vunpack.c.l.b16 %v87
    %v481 = vunpack.c.h.b16 %v87
    %v482 = vunpack.c.l.b16 %v88
    %v483 = vunpack.c.h.b16 %v88
    %v484 = vunpack.c.l.b16 %v89
    %v485 = vunpack.c.h.b16 %v89
    %v486 = vunpack.c.l.b16 %v90
    %v487 = vunpack.c.h.b16 %v90
    %v488 = vunpack.c.l.b16 %v91
    %v489 = vunpack.c.h.b16 %v91
    %v490 = vunpack.c.l.b16 %v92
    %v491 = vunpack.c.h.b16 %v92
    %v492 = vunpack.c.l.b16 %v93
    %v493 = vunpack.c.h.b16 %v93
    %v494 = vunpack.c.l.b16 %v94
    %v495 = vunpack.c.h.b16 %v94
    %v496 = vunpack.c.l.b16 %v95
    %v497 = vunpack.c.h.b16 %v95
    %v498 = vunpack.c.l.b16 %v96
    %v499 = vunpack.c.h.b16 %v96
    %v500 = vunpack.c.l.b16 %v97
    %v501 = vunpack.c.h.b16 %v97
    %v502 = vunpack.c.l.b16 %v98
    %v503 = vunpack.c.h.b16 %v98
    %v504 = vunpack.c.l.b16 %v99
    %v505 = vunpack.c.h.b16 %v99
    %v506 = vunpack.c.l.b16 %v100
    %v507 = vunpack.c.h.b16 %v100
    %v508 = vunpack.c.l.b16 %v101
    %v509 = vunpack.c.h.b16 %v101
    %v510 = vunpack.c.l.b16 %v102
    %v511 = vunpack.c.h.b16 %v102
    %v512 = vunpack.c.l.b16 %v103
    %v513 = vunpack.c.h.b16 %v103
    %v514 = vunpack.c.l.b16 %v104
    %v515 = vunpack.c.h.b16 %v104
    %v516 = vunpack.c.l.b16 %v105
    %v517 = vunpack.c.h.b16 %v105
    %v518 = vunpack.c.l.b16 %v106
    %v519 = vunpack.c.h.b16 %v106
    %v520 = vunpack.c.l.b16 %v107
    %v521 = vunpack.c.h.b16 %v107
    %v522 = vunpack.c.l.b16 %v108
    %v523 = vunpack.c.h.b16 %v108
    %v524 = vunpack.c.l.b16 %v109
    %v525 = vunpack.c.h.b16 %v109
    %v526 = vunpack.c.l.b16 %v110
    %v527 = vunpack.c.h.b16 %v110
    %v528 = vunpack.c.l.b16 %v111
    %v529 = vunpack.c.h.b16 %v111
    %v530 = vunpack.c.l.b16 %v112
    %v531 = vunpack.c.h.b16 %v112
    %v532 = vunpack.c.l.b16 %v113
    %v533 = vunpack.c.h.b16 %v113
    %v534 = vunpack.c.l.b16 %v114
    %v535 = vunpack.c.h.b16 %v114
    %v536 = vunpack.c.l.b16 %v115
    %v537 = vunpack.c.h.b16 %v115
    %v538 = vunpack.c.l.b16 %v116
    %v539 = vunpack.c.h.b16 %v116
    %v540 = vunpack.c.l.b16 %v117
    %v541 = vunpack.c.h.b16 %v117
    %v542 = vunpack.c.l.b16 %v118
    %v543 = vunpack.c.h.b16 %v118
    %v544 = vunpack.c.l.b16 %v119
    %v545 = vunpack.c.h.b16 %v119
    %v546 = vunpack.c.l.b16 %v120
    %v547 = vunpack.c.h.b16 %v120
    %v548 = vunpack.c.l.b16 %v121
    %v549 = vunpack.c.h.b16 %v121
    %v550 = vunpack.c.l.b16 %v122
    %v551 = vunpack.c.h.b16 %v122
    %v552 = vunpack.c.l.b16 %v123
    %v553 = vunpack.c.h.b16 %v123
    %v554 = vunpack.c.l.b16 %v124
    %v555 = vunpack.c.h.b16 %v124
    %v556 = vunpack.c.l.b16 %v125
    %v557 = vunpack.c.h.b16 %v125
    %v558 = vunpack.c.l.b16 %v126
    %v559 = vunpack.c.h.b16 %v126
    %v560 = vunpack.c.l.b16 %v127
    %v561 = vunpack.c.h.b16 %v127
    %v562 = vunpack.c.l.b16 %v128
    %v563 = vunpack.c.h.b16 %v128
    %v564 = vunpack.c.l.b16 %v129
    %v565 = vunpack.c.h.b16 %v129
    %v566 = vunpack.c.l.b16 %v130
    %v567 = vunpack.c.h.b16 %v130
    %v568 = vunpack.c.l.b16 %v131
    %v569 = vunpack.c.h.b16 %v131
    %v570 = vunpack.c.l.b16 %v132
    %v571 = vunpack.c.h.b16 %v132
    %v572 = vunpack.c.l.b16 %v133
    %v573 = vunpack.c.h.b16 %v133
    %v574 = vunpack.c.l.b16 %v134
    %v575 = vunpack.c.h.b16 %v134
    %v576 = vunpack.c.l.b16 %v135
    %v577 = vunpack.c.h.b16 %v135
    %v578 = vunpack.c.l.b16 %v136
    %v579 = vunpack.c.h.b16 %v136
    %v580 = vunpack.c.l.b16 %v137
    %v581 = vunpack.c.h.b16 %v137
    %v582 = vunpack.c.l.b16 %v138
    %v583 = vunpack.c.h.b16 %v138
    %v584 = vunpack.c.l.b16 %v139
    %v585 = vunpack.c.h.b16 %v139
    %v586 = vunpack.c.l.b16 %v140
    %v587 = vunpack.c.h.b16 %v140
    %v588 = vunpack.c.l.b16 %v141
    %v589 = vunpack.c.h.b16 %v141
    %v590 = vunpack.c.l.b16 %v142
    %v591 = vunpack.c.h.b16 %v142
    %v592 = vunpack.c.l.b16 %v143
    %v593 = vunpack.c.h.b16 %v143
    %v594 = vunpack.c.l.b16 %v144
    %v595 = vunpack.c.h.b16 %v144
    %v596 = vunpack.c.l.b16 %v145
    %v597 = vunpack.c.h.b16 %v145
    %v598 = vunpack.c.l.b16 %v146
    %v599 = vunpack.c.h.b16 %v146
    %v600 = vunpack.c.l.b16 %v147
    %v601 = vunpack.c.h.b16 %v147
    %v602 = vunpack.c.l.b16 %v148
    %v603 = vunpack.c.h.b16 %v148
    %v604 = vunpack.c.l.b16 %v149
    %v605 = vunpack.c.h.b16 %v149
    %v606 = vunpack.c.l.b16 %v150
    %v607 = vunpack.c.h.b16 %v150
    %v608 = vunpack.c.l.b16 %v151
    %v609 = vunpack.c.h.b16 %v151
    %v610 = vunpack.c.l.b16 %v152
    %v611 = vunpack.c.h.b16 %v152
    %v612 = vunpack.c.l.b16 %v153
    %v613 = vunpack.c.h.b16 %v153
    %v614 = vunpack.c.l.b16 %v154
    %v615 = vunpack.c.h.b16 %v154
    %v616 = vunpack.c.l.b16 %v155
    %v617 = vunpack.c.h.b16 %v155
    %v618 = vunpack.c.l.b16 %v156
    %v619 = vunpack.c.h.b16 %v156
    %v620 = vunpack.c.l.b16 %v157
    %v621 = vunpack.c.h.b16 %v157
    %v622 = vunpack.c.l.b16 %v158
    %v623 = vunpack.c.h.b16 %v158
    %v624 = vunpack.c.l.b16 %v159
    %v625 = vunpack.c.h.b16 %v159
    %v626 = vunpack.c.l.b16 %v160
    %v627 = vunpack.c.h.b16 %v160
    %v628 = vunpack.c.l.b16 %v161
    %v629 = vunpack.c.h.b16 %v161
    %v630 = vunpack.c.l.b16 %v162
    %v631 = vunpack.c.h.b16 %v162
    %v632 = vunpack.c.l.b16 %v163
    %v633 = vunpack.c.h.b16 %v163
    %v634 = vunpack.c.l.b16 %v164
    %v635 = vunpack.c.h.b16 %v164
    %v636 = vunpack.c.l.b16 %v165
    %v637 = vunpack.c.h.b16 %v165
    %v638 = vunpack.c.l.b16 %v166
    %v639 = vunpack.c.h.b16 %v166
    %v640 = vunpack.c.l.b16 %v167
    %v641 = vunpack.c.h.b16 %v167
    %v642 = vunpack.c.l.b16 %v168
    %v643 = vunpack.c.h.b16 %v168
    %v644 = vunpack.c.l.b16 %v169
    %v645 = vunpack.c.h.b16 %v169
    %v646 = vunpack.c.l.b16 %v170
    %v647 = vunpack.c.h.b16 %v170
    %v648 = vunpack.c.l.b16 %v171
    %v649 = vunpack.c.h.b16 %v171
    %v650 = vunpack.c.l.b16 %v172
    %v651 = vunpack.c.h.b16 %v172
    %v652 = vunpack.c.l.b16 %v173
    %v653 = vunpack.c.h.b16 %v173
    %v654 = vunpack.c.l.b16 %v174
    %v655 = vunpack.c.h.b16 %v174
    %v656 = vunpack.c.l.b16 %v175
    %v657 = vunpack.c.h.b16 %v175
    %v658 = vunpack.c.l.b16 %v176
    %v659 = vunpack.c.h.b16 %v176
    %v660 = vunpack.c.l.b16 %v177
    %v661 = vunpack.c.h.b16 %v177
    %v662 = vunpack.c.l.b16 %v178
    %v663 = vunpack.c.h.b16 %v178
    %v664 = vunpack.c.l.b16 %v179
    %v665 = vunpack.c.h.b16 %v179
    %v666 = vunpack.c.l.b16 %v180
    %v667 = vunpack.c.h.b16 %v180
    %v668 = vunpack.c.l.b16 %v181
    %v669 = vunpack.c.h.b16 %v181
    %v670 = vunpack.c.l.b16 %v182
    %v671 = vunpack.c.h.b16 %v182
    %v672 = vunpack.c.l.b16 %v183
    %v673 = vunpack.c.h.b16 %v183
    %v674 = vunpack.c.l.b16 %v184
    %v675 = vunpack.c.h.b16 %v184
    %v676 = vunpack.c.l.b16 %v185
    %v677 = vunpack.c.h.b16 %v185
    %v678 = vunpack.c.l.b16 %v186
    %v679 = vunpack.c.h.b16 %v186
    %v680 = vunpack.c.l.b16 %v187
    %v681 = vunpack.c.h.b16 %v187
    %v682 = vunpack.c.l.b16 %v188
    %v683 = vunpack.c.h.b16 %v188
    %v684 = vunpack.c.l.b16 %v189
    %v685 = vunpack.c.h.b16 %v189
    %v686 = vunpack.c.l.b16 %v190
    %v687 = vunpack.c.h.b16 %v190
    %v688 = vunpack.c.l.b16 %v191
    %v689 = vunpack.c.h.b16 %v191
    %v690 = vunpack.c.l.b16 %v192
    %v691 = vunpack.c.h.b16 %v192
    %v692 = vunpack.c.l.b16 %v193
    %v693 = vunpack.c.h.b16 %v193
    %v694 = vunpack.c.l.b16 %v194
    %v695 = vunpack.c.h.b16 %v194
    %v696 = vunpack.c.l.b16 %v195
    %v697 = vunpack.c.h.b16 %v195
    %v698 = vunpack.c.l.b16 %v196
    %v699 = vunpack.c.h.b16 %v196
    %v700 = vunpack.c.l.b16 %v197
    %v701 = vunpack.c.h.b16 %v197
    %v702 = vunpack.c.l.b16 %v198
    %v703 = vunpack.c.h.b16 %v198
    %v704 = vunpack.c.l.b16 %v199
    %v705 = vunpack.c.h.b16 %v199
    %v706 = vunpack.c.l.b16 %v200
    %v707 = vunpack.c.h.b16 %v200
    %v708 = vunpack.c.l.b16 %v201
    %v709 = vunpack.c.h.b16 %v201
    %v710 = vunpack.c.l.b16 %v202
    %v711 = vunpack.c.h.b16 %v202
    %v712 = vunpack.c.l.b16 %v203
    %v713 = vunpack.c.h.b16 %v203
    %v714 = vunpack.c.l.b16 %v204
    %v715 = vunpack.c.h.b16 %v204
    %v716 = vunpack.c.l.b16 %v205
    %v717 = vunpack.c.h.b16 %v205
    %v718 = vunpack.c.l.b16 %v206
    %v719 = vunpack.c.h.b16 %v206
    %v720 = vunpack.c.l.b16 %v207
    %v721 = vunpack.c.h.b16 %v207
    %v722 = vunpack.c.l.b16 %v208
    %v723 = vunpack.c.h.b16 %v208
    %v724 = vunpack.c.l.b16 %v209
    %v725 = vunpack.c.h.b16 %v209
    %v726 = vunpack.c.l.b16 %v210
    %v727 = vunpack.c.h.b16 %v210
    %v728 = vunpack.c.l.b16 %v211
    %v729 = vunpack.c.h.b16 %v211
    %v730 = vunpack.c.l.b16 %v212
    %v731 = vunpack.c.h.b16 %v212
    %v732 = vunpack.c.l.b16 %v213
    %v733 = vunpack.c.h.b16 %v213
    %v734 = vunpack.c.l.b16 %v214
    %v735 = vunpack.c.h.b16 %v214
    %v736 = vunpack.c.l.b16 %v215
    %v737 = vunpack.c.h.b16 %v215
    %v738 = vunpack.c.l.b16 %v216
    %v739 = vunpack.c.h.b16 %v216
    %v740 = vunpack.c.l.b16 %v217
    %v741 = vunpack.c.h.b16 %v217
    %v742 = vunpack.c.l.b16 %v218
    %v743 = vunpack.c.h.b16 %v218
    %v744 = vunpack.c.l.b16 %v219
    %v745 = vunpack.c.h.b16 %v219
    %v746 = vunpack.c.l.b16 %v220
    %v747 = vunpack.c.h.b16 %v220
    %v748 = vunpack.c.l.b16 %v221
    %v749 = vunpack.c.h.b16 %v221
    %v750 = vunpack.c.l.b16 %v222
    %v751 = vunpack.c.h.b16 %v222
    %v752 = vunpack.c.l.b16 %v223
    %v753 = vunpack.c.h.b16 %v223
    %v754 = vunpack.c.l.b16 %v224
    %v755 = vunpack.c.h.b16 %v224
    %v756 = vunpack.c.l.b16 %v225
    %v757 = vunpack.c.h.b16 %v225
    %v758 = vunpack.c.l.b16 %v226
    %v759 = vunpack.c.h.b16 %v226
    %v760 = vunpack.c.l.b16 %v227
    %v761 = vunpack.c.h.b16 %v227
    %v762 = vunpack.c.l.b16 %v228
    %v763 = vunpack.c.h.b16 %v228
    %v764 = vunpack.c.l.b16 %v229
    %v765 = vunpack.c.h.b16 %v229
    %v766 = vunpack.c.l.b16 %v230
    %v767 = vunpack.c.h.b16 %v230
    %v768 = vunpack.c.l.b16 %v231
    %v769 = vunpack.c.h.b16 %v231
    %v770 = vunpack.c.l.b16 %v232
    %v771 = vunpack.c.h.b16 %v232
    %v772 = vunpack.c.l.b16 %v233
    %v773 = vunpack.c.h.b16 %v233
    %v774 = vunpack.c.l.b16 %v234
    %v775 = vunpack.c.h.b16 %v234
    %v776 = vunpack.c.l.b16 %v235
    %v777 = vunpack.c.h.b16 %v235
    %v778 = vunpack.c.l.b16 %v236
    %v779 = vunpack.c.h.b16 %v236
    %v780 = vunpack.c.l.b16 %v237
    %v781 = vunpack.c.h.b16 %v237
    %v782 = vunpack.c.l.b16 %v238
    %v783 = vunpack.c.h.b16 %v238
    %v784 = vunpack.c.l.b16 %v239
    %v785 = vunpack.c.h.b16 %v239
    %v786 = vunpack.c.l.b16 %v240
    %v787 = vunpack.c.h.b16 %v240
    %v788 = vunpack.c.l.b16 %v241
    %v789 = vunpack.c.h.b16 %v241
    %v790 = vunpack.c.l.b16 %v242
    %v791 = vunpack.c.h.b16 %v242
    %v792 = vunpack.c.l.b16 %v243
    %v793 = vunpack.c.h.b16 %v243
    %v794 = vunpack.c.l.b16 %v244
    %v795 = vunpack.c.h.b16 %v244
    %v796 = vunpack.c.l.b16 %v245
    %v797 = vunpack.c.h.b16 %v245
    %v798 = vpack.c.b16 %v480, %v478
    %v799 = vpack.c.b16 %v481, %v479
    %v800 = vpack.c.b16 %v484, %v482
    %v801 = vpack.c.b16 %v485, %v483
    %v802 = vpack.c.b16 %v488, %v486
    %v803 = vpack.c.b16 %v489, %v487
    %v804 = vpack.c.b16 %v492, %v490
    %v805 = vpack.c.b16 %v493, %v491
    %v806 = vpack.c.b16 %v496, %v494
    %v807 = vpack.c.b16 %v497, %v495
    %v808 = vpack.c.b16 %v500, %v498
    %v809 = vpack.c.b16 %v501, %v499
    %v810 = vpack.c.b16 %v504, %v502
    %v811 = vpack.c.b16 %v505, %v503
    %v812 = vpack.c.b16 %v508, %v506
    %v813 = vpack.c.b16 %v509, %v507
    %v814 = vpack.c.b16 %v512, %v510
    %v815 = vpack.c.b16 %v513, %v511
    %v816 = vpack.c.b16 %v516, %v514
    %v817 = vpack.c.b16 %v517, %v515
    %v818 = vpack.c.b16 %v520, %v518
    %v819 = vpack.c.b16 %v521, %v519
    %v820 = vpack.c.b16 %v524, %v522
    %v821 = vpack.c.b16 %v525, %v523
    %v822 = vpack.c.b16 %v528, %v526
    %v823 = vpack.c.b16 %v529, %v527
    %v824 = vpack.c.b16 %v532, %v530
    %v825 = vpack.c.b16 %v533, %v531
    %v826 = vpack.c.b16 %v536, %v534
    %v827 = vpack.c.b16 %v537, %v535
    %v828 = vpack.c.b16 %v540, %v538
    %v829 = vpack.c.b16 %v541, %v539
    %v830 = vpack.c.b16 %v544, %v542
    %v831 = vpack.c.b16 %v545, %v543
    %v832 = vpack.c.b16 %v548, %v546
    %v833 = vpack.c.b16 %v549, %v547
    %v834 = vpack.c.b16 %v552, %v550
    %v835 = vpack.c.b16 %v553, %v551
    %v836 = vpack.c.b16 %v556, %v554
    %v837 = vpack.c.b16 %v557, %v555
    %v838 = vpack.c.b16 %v560, %v558
    %v839 = vpack.c.b16 %v561, %v559
    %v840 = vpack.c.b16 %v564, %v562
    %v841 = vpack.c.b16 %v565, %v563
    %v842 = vpack.c.b16 %v568, %v566
    %v843 = vpack.c.b16 %v569, %v567
    %v844 = vpack.c.b16 %v572, %v570
    %v845 = vpack.c.b16 %v573, %v571
    %v846 = vpack.c.b16 %v576, %v574
    %v847 = vpack.c.b16 %v577, %v575
    %v848 = vpack.c.b16 %v580, %v578
    %v849 = vpack.c.b16 %v581, %v579
    %v850 = vpack.c.b16 %v584, %v582
    %v851 = vpack.c.b16 %v585, %v583
    %v852 = vpack.c.b16 %v588, %v586
    %v853 = vpack.c.b16 %v589, %v587
    %v854 = vpack.c.b16 %v592, %v590
    %v855 = vpack.c.b16 %v593, %v591
    %v856 = vpack.c.b16 %v596, %v594
    %v857 = vpack.c.b16 %v597, %v595
    %v858 = vpack.c.b16 %v600, %v598
    %v859 = vpack.c.b16 %v601, %v599
    %v860 = vpack.c.b16 %v604, %v602
    %v861 = vpack.c.b16 %v605, %v603
    %v862 = vpack.c.b16 %v608, %v606
    %v863 = vpack.c.b16 %v609, %v607
    %v864 = vpack.c.b16 %v612, %v610
    %v865 = vpack.c.b16 %v613, %v611
    %v866 = vpack.c.b16 %v616, %v614
    %v867 = vpack.c.b16 %v617, %v615
    %v868 = vpack.c.b16 %v620, %v618
    %v869 = vpack.c.b16 %v621, %v619
    %v870 = vpack.c.b16 %v624, %v622
    %v871 = vpack.c.b16 %v625, %v623
    %v872 = vpack.c.b16 %v628, %v626
    %v873 = vpack.c.b16 %v629, %v627
    %v874 = vpack.c.b16 %v632, %v630
    %v875 = vpack.c.b16 %v633, %v631
    %v876 = vpack.c.b16 %v636, %v634
    %v877 = vpack.c.b16 %v637, %v635
    %v878 = vpack.c.b16 %v640, %v638
    %v879 = vpack.c.b16 %v641, %v639
    %v880 = vpack.c.b16 %v644, %v642
    %v881 = vpack.c.b16 %v645, %v643
    %v882 = vpack.c.b16 %v648, %v646
    %v883 = vpack.c.b16 %v649, %v647
    %v884 = vpack.c.b16 %v652, %v650
    %v885 = vpack.c.b16 %v653, %v651
    %v886 = vpack.c.b16 %v656, %v654
    %v887 = vpack.c.b16 %v657, %v655
    %v888 = vpack.c.b16 %v660, %v658
    %v889 = vpack.c.b16 %v661, %v659
    %v890 = vpack.c.b16 %v664, %v662
    %v891 = vpack.c.b16 %v665, %v663
    %v892 = vpack.c.b16 %v668, %v666
    %v893 = vpack.c.b16 %v669, %v667
    %v894 = vpack.c.b16 %v672, %v670
    %v895 = vpack.c.b16 %v673, %v671
    %v896 = vpack.c.b16 %v676, %v674
    %v897 = vpack.c.b16 %v677, %v675
    %v898 = vpack.c.b16 %v680, %v678
    %v899 = vpack.c.b16 %v681, %v679
    %v900 = vpack.c.b16 %v684, %v682
    %v901 = vpack.c.b16 %v685, %v683
    %v902 = vpack.c.b16 %v688, %v686
    %v903 = vpack.c.b16 %v689, %v687
    %v904 = vpack.c.b16 %v692, %v690
    %v905 = vpack.c.b16 %v693, %v691
    %v906 = vpack.c.b16 %v696, %v694
    %v907 = vpack.c.b16 %v697, %v695
    %v908 = vpack.c.b16 %v700, %v698
    %v909 = vpack.c.b16 %v701, %v699
    %v910 = vpack.c.b16 %v704, %v702
    %v911 = vpack.c.b16 %v705, %v703
    %v912 = vpack.c.b16 %v708, %v706
    %v913 = vpack.c.b16 %v709, %v707
    %v914 = vpack.c.b16 %v712, %v710
    %v915 = vpack.c.b16 %v713, %v711
    %v916 = vpack.c.b16 %v716, %v714
    %v917 = vpack.c.b16 %v717, %v715
    %v918 = vpack.c.b16 %v720, %v718
    %v919 = vpack.c.b16 %v721, %v719
    %v920 = vpack.c.b16 %v724, %v722
    %v921 = vpack.c.b16 %v725, %v723
    %v922 = vpack.c.b16 %v728, %v726
    %v923 = vpack.c.b16 %v729, %v727
    %v924 = vpack.c.b16 %v732, %v730
    %v925 = vpack.c.b16 %v733, %v731
    %v926 = vpack.c.b16 %v736, %v734
    %v927 = vpack.c.b16 %v737, %v735
    %v928 = vpack.c.b16 %v740, %v738
    %v929 = vpack.c.b16 %v741, %v739
    %v930 = vpack.c.b16 %v744, %v742
    %v931 = vpack.c.b16 %v745, %v743
    %v932 = vpack.c.b16 %v748, %v746
    %v933 = vpack.c.b16 %v749, %v747
    %v934 = vpack.c.b16 %v752, %v750
    %v935 = vpack.c.b16 %v753, %v751
    %v936 = vpack.c.b16 %v756, %v754
    %v937 = vpack.c.b16 %v757, %v755
    %v938 = vpack.c.b16 %v760, %v758
    %v939 = vpack.c.b16 %v761, %v759
    %v940 = vpack.c.b16 %v764, %v762
    %v941 = vpack.c.b16 %v765, %v763
    %v942 = vpack.c.b16 %v768, %v766
    %v943 = vpack.c.b16 %v769, %v767
    %v944 = vpack.c.b16 %v772, %v770
    %v945 = vpack.c.b16 %v773, %v771
    %v946 = vpack.c.b16 %v776, %v774
    %v947 = vpack.c.b16 %v777, %v775
    %v948 = vpack.c.b16 %v780, %v778
    %v949 = vpack.c.b16 %v781, %v779
    %v950 = vpack.c.b16 %v784, %v782
    %v951 = vpack.c.b16 %v785, %v783
    %v952 = vpack.c.b16 %v788, %v786
    %v953 = vpack.c.b16 %v789, %v787
    %v954 = vpack.c.b16 %v792, %v790
    %v955 = vpack.c.b16 %v793, %v791
    %v956 = vpack.c.b16 %v796, %v794
    %v957 = vpack.c.b16 %v797, %v795
    %1118 = vmatprep.subr.bf16.mxu0 %v799
    %1119 = vmatpush1.bf16.msra.mxu0 %v798
    %1120 = vmatprep.subr.bf16.mxu0 %v801
    %1121 = vmatpush1.bf16.msra.mxu0 %v800
    %1122 = vmatprep.subr.bf16.mxu0 %v803
    %1123 = vmatpush1.bf16.msra.mxu0 %v802
    %1124 = vmatprep.subr.bf16.mxu0 %v805
    %1125 = vmatpush1.bf16.msra.mxu0 %v804
    %1126 = vmatprep.subr.bf16.mxu0 %v807
    %1127 = vmatpush1.bf16.msra.mxu0 %v806
    %1128 = vmatprep.subr.bf16.mxu0 %v809
    %1129 = vmatpush1.bf16.msra.mxu0 %v808
    %1130 = vmatprep.subr.bf16.mxu0 %v811
    %1131 = vmatpush1.bf16.msra.mxu0 %v810
    %1132 = vmatprep.subr.bf16.mxu0 %v813
    %1133 = vmatpush1.bf16.msra.mxu0 %v812
    %1134 = vmatprep.subr.bf16.mxu0 %v815
    %1135 = vmatpush1.bf16.msra.mxu0 %v814
    %1136 = vmatprep.subr.bf16.mxu0 %v817
    %1137 = vmatpush1.bf16.msra.mxu0 %v816
    %1138 = vmatprep.subr.bf16.mxu0 %v819
    %1139 = vmatpush1.bf16.msra.mxu0 %v818
    %1140 = vmatprep.subr.bf16.mxu0 %v821
    %1141 = vmatpush1.bf16.msra.mxu0 %v820
    %1142 = vmatprep.subr.bf16.mxu0 %v823
    %1143 = vmatpush1.bf16.msra.mxu0 %v822
    %1144 = vmatprep.subr.bf16.mxu0 %v825
    %1145 = vmatpush1.bf16.msra.mxu0 %v824
    %1146 = vmatprep.subr.bf16.mxu0 %v827
    %1147 = vmatpush1.bf16.msra.mxu0 %v826
    %1148 = vmatprep.subr.bf16.mxu0 %v829
    %1149 = vmatpush1.bf16.msra.mxu0 %v828
    %1150 = vmatprep.mubr.bf16.mxu0 %v299
    %1151 = vmatmul.mubr.bf16.gmra.mrb[0].mxu0 %v298
    %v1152 = vpop.f32.mrb[0].mxu0
    %v1153 = vadd.f32 %v251, %v1152
    %v1154 = vpop.f32.mrb[0].mxu0
    %v1155 = vadd.f32 %v255, %v1154
    %v1156 = vpop.f32.mrb[0].mxu0
    %v1157 = vadd.f32 %v251, %v1156
    %v1158 = vpop.f32.mrb[0].mxu0
    %v1159 = vadd.f32 %v255, %v1158
    %1160 = vdwg.mxu0
    %1161 = vmatprep.subr.bf16.mxu0 %v831
    %1162 = vmatpush1.bf16.msra.mxu0 %v830
    %1163 = vmatprep.subr.bf16.mxu0 %v833
    %1164 = vmatpush1.bf16.msra.mxu0 %v832
    %1165 = vmatprep.subr.bf16.mxu0 %v835
    %1166 = vmatpush1.bf16.msra.mxu0 %v834
    %1167 = vmatprep.subr.bf16.mxu0 %v837
    %1168 = vmatpush1.bf16.msra.mxu0 %v836
    %1169 = vmatprep.subr.bf16.mxu0 %v839
    %1170 = vmatpush1.bf16.msra.mxu0 %v838
    %1171 = vmatprep.subr.bf16.mxu0 %v841
    %1172 = vmatpush1.bf16.msra.mxu0 %v840
    %1173 = vmatprep.subr.bf16.mxu0 %v843
    %1174 = vmatpush1.bf16.msra.mxu0 %v842
    %1175 = vmatprep.subr.bf16.mxu0 %v845
    %1176 = vmatpush1.bf16.msra.mxu0 %v844
    %1177 = vmatprep.subr.bf16.mxu0 %v847
    %1178 = vmatpush1.bf16.msra.mxu0 %v846
    %1179 = vmatprep.subr.bf16.mxu0 %v849
    %1180 = vmatpush1.bf16.msra.mxu0 %v848
    %1181 = vmatprep.subr.bf16.mxu0 %v851
    %1182 = vmatpush1.bf16.msra.mxu0 %v850
    %1183 = vmatprep.subr.bf16.mxu0 %v853
    %1184 = vmatpush1.bf16.msra.mxu0 %v852
    %1185 = vmatprep.subr.bf16.mxu0 %v855
    %1186 = vmatpush1.bf16.msra.mxu0 %v854
    %1187 = vmatprep.subr.bf16.mxu0 %v857
    %1188 = vmatpush1.bf16.msra.mxu0 %v856
    %1189 = vmatprep.subr.bf16.mxu0 %v859
    %1190 = vmatpush1.bf16.msra.mxu0 %v858
    %1191 = vmatprep.subr.bf16.mxu0 %v861
    %1192 = vmatpush1.bf16.msra.mxu0 %v860
    %1193 = vmatprep.mubr.bf16.mxu0 %v301
    %1194 = vmatmul.mubr.bf16.gmra.mrb[0].mxu0 %v300
    %v1195 = vpop.f32.mrb[0].mxu0
    %v1196 = vadd.f32 %v1153, %v1195
    %v1197 = vpop.f32.mrb[0].mxu0
    %v1198 = vadd.f32 %v1155, %v1197
    %v1199 = vpop.f32.mrb[0].mxu0
    %v1200 = vadd.f32 %v1157, %v1199
    %v1201 = vpop.f32.mrb[0].mxu0
    %v1202 = vadd.f32 %v1159, %v1201
    %1203 = vdwg.mxu0
    %1204 = vmatprep.subr.bf16.mxu0 %v863
    %1205 = vmatpush1.bf16.msra.mxu0 %v862
    %1206 = vmatprep.subr.bf16.mxu0 %v865
    %1207 = vmatpush1.bf16.msra.mxu0 %v864
    %1208 = vmatprep.subr.bf16.mxu0 %v867
    %1209 = vmatpush1.bf16.msra.mxu0 %v866
    %1210 = vmatprep.subr.bf16.mxu0 %v869
    %1211 = vmatpush1.bf16.msra.mxu0 %v868
    %1212 = vmatprep.subr.bf16.mxu0 %v871
    %1213 = vmatpush1.bf16.msra.mxu0 %v870
    %1214 = vmatprep.subr.bf16.mxu0 %v873
    %1215 = vmatpush1.bf16.msra.mxu0 %v872
    %1216 = vmatprep.subr.bf16.mxu0 %v875
    %1217 = vmatpush1.bf16.msra.mxu0 %v874
    %1218 = vmatprep.subr.bf16.mxu0 %v877
    %1219 = vmatpush1.bf16.msra.mxu0 %v876
    %1220 = vmatprep.subr.bf16.mxu0 %v879
    %1221 = vmatpush1.bf16.msra.mxu0 %v878
    %1222 = vmatprep.subr.bf16.mxu0 %v881
    %1223 = vmatpush1.bf16.msra.mxu0 %v880
    %1224 = vmatprep.subr.bf16.mxu0 %v883
    %1225 = vmatpush1.bf16.msra.mxu0 %v882
    %1226 = vmatprep.subr.bf16.mxu0 %v885
    %1227 = vmatpush1.bf16.msra.mxu0 %v884
    %1228 = vmatprep.subr.bf16.mxu0 %v887
    %1229 = vmatpush1.bf16.msra.mxu0 %v886
    %1230 = vmatprep.subr.bf16.mxu0 %v889
    %1231 = vmatpush1.bf16.msra.mxu0 %v888
    %1232 = vmatprep.subr.bf16.mxu0 %v891
    %1233 = vmatpush1.bf16.msra.mxu0 %v890
    %1234 = vmatprep.subr.bf16.mxu0 %v893
    %1235 = vmatpush1.bf16.msra.mxu0 %v892
    %1236 = vmatprep.mubr.bf16.mxu0 %v303
    %1237 = vmatmul.mubr.bf16.gmra.mrb[0].mxu0 %v302
    %v1238 = vpop.f32.mrb[0].mxu0
    %v1239 = vadd.f32 %v1196, %v1238
    %v1240 = vpop.f32.mrb[0].mxu0
    %v1241 = vadd.f32 %v1198, %v1240
    %v1242 = vpop.f32.mrb[0].mxu0
    %v1243 = vadd.f32 %v1200, %v1242
    %v1244 = vpop.f32.mrb[0].mxu0
    %v1245 = vadd.f32 %v1202, %v1244
    %1246 = vdwg.mxu0
    %1247 = vmatprep.subr.bf16.mxu0 %v895
    %1248 = vmatpush1.bf16.msra.mxu0 %v894
    %1249 = vmatprep.subr.bf16.mxu0 %v897
    %1250 = vmatpush1.bf16.msra.mxu0 %v896
    %1251 = vmatprep.subr.bf16.mxu0 %v899
    %1252 = vmatpush1.bf16.msra.mxu0 %v898
    %1253 = vmatprep.subr.bf16.mxu0 %v901
    %1254 = vmatpush1.bf16.msra.mxu0 %v900
    %1255 = vmatprep.subr.bf16.mxu0 %v903
    %1256 = vmatpush1.bf16.msra.mxu0 %v902
    %1257 = vmatprep.subr.bf16.mxu0 %v905
    %1258 = vmatpush1.bf16.msra.mxu0 %v904
    %1259 = vmatprep.subr.bf16.mxu0 %v907
    %1260 = vmatpush1.bf16.msra.mxu0 %v906
    %1261 = vmatprep.subr.bf16.mxu0 %v909
    %1262 = vmatpush1.bf16.msra.mxu0 %v908
    %1263 = vmatprep.subr.bf16.mxu0 %v911
    %1264 = vmatpush1.bf16.msra.mxu0 %v910
    %1265 = vmatprep.subr.bf16.mxu0 %v913
    %1266 = vmatpush1.bf16.msra.mxu0 %v912
    %1267 = vmatprep.subr.bf16.mxu0 %v915
    %1268 = vmatpush1.bf16.msra.mxu0 %v914
    %1269 = vmatprep.subr.bf16.mxu0 %v917
    %1270 = vmatpush1.bf16.msra.mxu0 %v916
    %1271 = vmatprep.subr.bf16.mxu0 %v919
    %1272 = vmatpush1.bf16.msra.mxu0 %v918
    %1273 = vmatprep.subr.bf16.mxu0 %v921
    %1274 = vmatpush1.bf16.msra.mxu0 %v920
    %1275 = vmatprep.subr.bf16.mxu0 %v923
    %1276 = vmatpush1.bf16.msra.mxu0 %v922
    %1277 = vmatprep.subr.bf16.mxu0 %v925
    %1278 = vmatpush1.bf16.msra.mxu0 %v924
    %1279 = vmatprep.mubr.bf16.mxu0 %v305
    %1280 = vmatmul.mubr.bf16.gmra.mrb[0].mxu0 %v304
    %v1281 = vpop.f32.mrb[0].mxu0
    %v1282 = vadd.f32 %v1239, %v1281
    %v1283 = vpop.f32.mrb[0].mxu0
    %v1284 = vadd.f32 %v1241, %v1283
    %v1285 = vpop.f32.mrb[0].mxu0
    %v1286 = vadd.f32 %v1243, %v1285
    %v1287 = vpop.f32.mrb[0].mxu0
    %v1288 = vadd.f32 %v1245, %v1287
    %1289 = vdwg.mxu0
    %1290 = vmatprep.subr.bf16.mxu0 %v927
    %1291 = vmatpush1.bf16.msra.mxu0 %v926
    %1292 = vmatprep.subr.bf16.mxu0 %v929
    %1293 = vmatpush1.bf16.msra.mxu0 %v928
    %1294 = vmatprep.subr.bf16.mxu0 %v931
    %1295 = vmatpush1.bf16.msra.mxu0 %v930
    %1296 = vmatprep.subr.bf16.mxu0 %v933
    %1297 = vmatpush1.bf16.msra.mxu0 %v932
    %1298 = vmatprep.subr.bf16.mxu0 %v935
    %1299 = vmatpush1.bf16.msra.mxu0 %v934
    %1300 = vmatprep.subr.bf16.mxu0 %v937
    %1301 = vmatpush1.bf16.msra.mxu0 %v936
    %1302 = vmatprep.subr.bf16.mxu0 %v939
    %1303 = vmatpush1.bf16.msra.mxu0 %v938
    %1304 = vmatprep.subr.bf16.mxu0 %v941
    %1305 = vmatpush1.bf16.msra.mxu0 %v940
    %1306 = vmatprep.subr.bf16.mxu0 %v943
    %1307 = vmatpush1.bf16.msra.mxu0 %v942
    %1308 = vmatprep.subr.bf16.mxu0 %v945
    %1309 = vmatpush1.bf16.msra.mxu0 %v944
    %1310 = vmatprep.subr.bf16.mxu0 %v947
    %1311 = vmatpush1.bf16.msra.mxu0 %v946
    %1312 = vmatprep.subr.bf16.mxu0 %v949
    %1313 = vmatpush1.bf16.msra.mxu0 %v948
    %1314 = vmatprep.subr.bf16.mxu0 %v951
    %1315 = vmatpush1.bf16.msra.mxu0 %v950
    %1316 = vmatprep.subr.bf16.mxu0 %v953
    %1317 = vmatpush1.bf16.msra.mxu0 %v952
    %1318 = vmatprep.subr.bf16.mxu0 %v955
    %1319 = vmatpush1.bf16.msra.mxu0 %v954
    %1320 = vmatprep.subr.bf16.mxu0 %v957
    %1321 = vmatpush1.bf16.msra.mxu0 %v956
    %1322 = vmatprep.mubr.bf16.mxu0 %v307
    %1323 = vmatmul.mubr.bf16.gmra.mrb[0].mxu0 %v306
    %v1324 = vpop.f32.mrb[0].mxu0
    %v1325 = vadd.f32 %v1282, %v1324
    %v1326 = vpop.f32.mrb[0].mxu0
    %v1327 = vadd.f32 %v1284, %v1326
    %v1328 = vpop.f32.mrb[0].mxu0
    %v1329 = vadd.f32 %v1286, %v1328
    %v1330 = vpop.f32.mrb[0].mxu0
    %v1331 = vadd.f32 %v1288, %v1330
    %1332 = vdwg.mxu0
    %v1333 = vmul.f32 %v1325, 0.01
    %v1334 = vmul.f32 %v1327, 0.01
    %v1335 = vmul.f32 %v1329, 0.01
    %v1336 = vmul.f32 %v1331, 0.01
    %v1337 = vmax.f32 %v1325, %v1333
    %v1338 = vmax.f32 %v1327, %v1334
    %v1339 = vmax.f32 %v1329, %v1335
    %v1340 = vmax.f32 %v1331, %v1336
    %v1341 = vpack.c.bf16 %v1339, %v1337
    %v1342 = vpack.c.bf16 %v1340, %v1338
    %1343 = vst [vmem:[#allocation2] sm:$0xff] %v1341
    %1344 = vst [vmem:[#allocation2 + $0x8] sm:$0xff] %v1342
    %v1345 = vld [vmem:[%s0 + $0x14] sm:$0xff]
    %v1346 = vld [vmem:[%s0 + $0x1c] sm:$0xff]
    %v1347 = vld [vmem:[%s0 + $0x24] sm:$0xff]
    %v1348 = vld [vmem:[%s0 + $0x2c] sm:$0xff]
    %v1349 = vld [vmem:[%s0 + $0x34] sm:$0xff]
    %v1350 = vld [vmem:[%s0 + $0xc8] sm:$0xff]
    %v1351 = vld [vmem:[%s0 + $0xd0] sm:$0xff]
    %v1352 = vld [vmem:[%s0 + $0xd8] sm:$0xff]
    %v1353 = vld [vmem:[%s0 + $0xe0] sm:$0xff]
    %v1354 = vld [vmem:[%s0 + $0xe8] sm:$0xff]
    %v1365 = vunpack.c.l.b16 %v1345
    %v1366 = vunpack.c.h.b16 %v1345
    %v1367 = vunpack.c.l.b16 %v1346
    %v1368 = vunpack.c.h.b16 %v1346
    %v1369 = vunpack.c.l.b16 %v1347
    %v1370 = vunpack.c.h.b16 %v1347
    %v1371 = vunpack.c.l.b16 %v1348
    %v1372 = vunpack.c.h.b16 %v1348
    %v1373 = vunpack.c.l.b16 %v1349
    %v1374 = vunpack.c.h.b16 %v1349
    %v1375 = vunpack.c.l.b16 %v1350
    %v1376 = vunpack.c.h.b16 %v1350
    %v1377 = vunpack.c.l.b16 %v1351
    %v1378 = vunpack.c.h.b16 %v1351
    %v1379 = vunpack.c.l.b16 %v1352
    %v1380 = vunpack.c.h.b16 %v1352
    %v1381 = vunpack.c.l.b16 %v1353
    %v1382 = vunpack.c.h.b16 %v1353
    %v1383 = vunpack.c.l.b16 %v1354
    %v1384 = vunpack.c.h.b16 %v1354
    %v1385 = vpack.c.b16 %v1375, %v1365
    %v1386 = vpack.c.b16 %v1376, %v1366
    %v1387 = vpack.c.b16 %v1377, %v1367
    %v1388 = vpack.c.b16 %v1378, %v1368
    %v1389 = vpack.c.b16 %v1379, %v1369
    %v1390 = vpack.c.b16 %v1380, %v1370
    %v1391 = vpack.c.b16 %v1381, %v1371
    %v1392 = vpack.c.b16 %v1382, %v1372
    %v1393 = vpack.c.b16 %v1383, %v1373
    %v1394 = vpack.c.b16 %v1384, %v1374
    %1405 = vmatprep.subr.bf16.mxu0 %v799
    %1406 = vmatpush1.bf16.msra.mxu0 %v798
    %1407 = vmatprep.subr.bf16.mxu0 %v801
    %1408 = vmatpush1.bf16.msra.mxu0 %v800
    %1409 = vmatprep.subr.bf16.mxu0 %v803
    %1410 = vmatpush1.bf16.msra.mxu0 %v802
    %1411 = vmatprep.subr.bf16.mxu0 %v805
    %1412 = vmatpush1.bf16.msra.mxu0 %v804
    %1413 = vmatprep.subr.bf16.mxu0 %v807
    %1414 = vmatpush1.bf16.msra.mxu0 %v806
    %1415 = vmatprep.subr.bf16.mxu0 %v809
    %1416 = vmatpush1.bf16.msra.mxu0 %v808
    %1417 = vmatprep.subr.bf16.mxu0 %v811
    %1418 = vmatpush1.bf16.msra.mxu0 %v810
    %1419 = vmatprep.subr.bf16.mxu0 %v813
    %1420 = vmatpush1.bf16.msra.mxu0 %v812
    %1421 = vmatprep.subr.bf16.mxu0 %v815
    %1422 = vmatpush1.bf16.msra.mxu0 %v814
    %1423 = vmatprep.subr.bf16.mxu0 %v817
    %1424 = vmatpush1.bf16.msra.mxu0 %v816
    %1425 = vmatprep.subr.bf16.mxu0 %v819
    %1426 = vmatpush1.bf16.msra.mxu0 %v818
    %1427 = vmatprep.subr.bf16.mxu0 %v821
    %1428 = vmatpush1.bf16.msra.mxu0 %v820
    %1429 = vmatprep.subr.bf16.mxu0 %v823
    %1430 = vmatpush1.bf16.msra.mxu0 %v822
    %1431 = vmatprep.subr.bf16.mxu0 %v825
    %1432 = vmatpush1.bf16.msra.mxu0 %v824
    %1433 = vmatprep.subr.bf16.mxu0 %v827
    %1434 = vmatpush1.bf16.msra.mxu0 %v826
    %1435 = vmatprep.subr.bf16.mxu0 %v829
    %1436 = vmatpush1.bf16.msra.mxu0 %v828
    %1437 = vmatprep.mubr.bf16.mxu0 %v1386
    %1438 = vmatmul.mubr.bf16.gmra.mrb[0].mxu0 %v1385
    %v1439 = vpop.f32.mrb[0].mxu0
    %v1440 = vadd.f32 %v251, %v1439
    %v1441 = vpop.f32.mrb[0].mxu0
    %v1442 = vadd.f32 %v255, %v1441
    %v1443 = vpop.f32.mrb[0].mxu0
    %v1444 = vadd.f32 %v251, %v1443
    %v1445 = vpop.f32.mrb[0].mxu0
    %v1446 = vadd.f32 %v255, %v1445
    %1447 = vdwg.mxu0
    %1448 = vmatprep.subr.bf16.mxu0 %v831
    %1449 = vmatpush1.bf16.msra.mxu0 %v830
    %1450 = vmatprep.subr.bf16.mxu0 %v833
    %1451 = vmatpush1.bf16.msra.mxu0 %v832
    %1452 = vmatprep.subr.bf16.mxu0 %v835
    %1453 = vmatpush1.bf16.msra.mxu0 %v834
    %1454 = vmatprep.subr.bf16.mxu0 %v837
    %1455 = vmatpush1.bf16.msra.mxu0 %v836
    %1456 = vmatprep.subr.bf16.mxu0 %v839
    %1457 = vmatpush1.bf16.msra.mxu0 %v838
    %1458 = vmatprep.subr.bf16.mxu0 %v841
    %1459 = vmatpush1.bf16.msra.mxu0 %v840
    %1460 = vmatprep.subr.bf16.mxu0 %v843
    %1461 = vmatpush1.bf16.msra.mxu0 %v842
    %1462 = vmatprep.subr.bf16.mxu0 %v845
    %1463 = vmatpush1.bf16.msra.mxu0 %v844
    %1464 = vmatprep.subr.bf16.mxu0 %v847
    %1465 = vmatpush1.bf16.msra.mxu0 %v846
    %1466 = vmatprep.subr.bf16.mxu0 %v849
    %1467 = vmatpush1.bf16.msra.mxu0 %v848
    %1468 = vmatprep.subr.bf16.mxu0 %v851
    %1469 = vmatpush1.bf16.msra.mxu0 %v850
    %1470 = vmatprep.subr.bf16.mxu0 %v853
    %1471 = vmatpush1.bf16.msra.mxu0 %v852
    %1472 = vmatprep.subr.bf16.mxu0 %v855
    %1473 = vmatpush1.bf16.msra.mxu0 %v854
    %1474 = vmatprep.subr.bf16.mxu0 %v857
    %1475 = vmatpush1.bf16.msra.mxu0 %v856
    %1476 = vmatprep.subr.bf16.mxu0 %v859
    %1477 = vmatpush1.bf16.msra.mxu0 %v858
    %1478 = vmatprep.subr.bf16.mxu0 %v861
    %1479 = vmatpush1.bf16.msra.mxu0 %v860
    %1480 = vmatprep.mubr.bf16.mxu0 %v1388
    %1481 = vmatmul.mubr.bf16.gmra.mrb[0].mxu0 %v1387
    %v1482 = vpop.f32.mrb[0].mxu0
    %v1483 = vadd.f32 %v1440, %v1482
    %v1484 = vpop.f32.mrb[0].mxu0
    %v1485 = vadd.f32 %v1442, %v1484
    %v1486 = vpop.f32.mrb[0].mxu0
    %v1487 = vadd.f32 %v1444, %v1486
    %v1488 = vpop.f32.mrb[0].mxu0
    %v1489 = vadd.f32 %v1446, %v1488
    %1490 = vdwg.mxu0
    %1491 = vmatprep.subr.bf16.mxu0 %v863
    %1492 = vmatpush1.bf16.msra.mxu0 %v862
    %1493 = vmatprep.subr.bf16.mxu0 %v865
    %1494 = vmatpush1.bf16.msra.mxu0 %v864
    %1495 = vmatprep.subr.bf16.mxu0 %v867
    %1496 = vmatpush1.bf16.msra.mxu0 %v866
    %1497 = vmatprep.subr.bf16.mxu0 %v869
    %1498 = vmatpush1.bf16.msra.mxu0 %v868
    %1499 = vmatprep.subr.bf16.mxu0 %v871
    %1500 = vmatpush1.bf16.msra.mxu0 %v870
    %1501 = vmatprep.subr.bf16.mxu0 %v873
    %1502 = vmatpush1.bf16.msra.mxu0 %v872
    %1503 = vmatprep.subr.bf16.mxu0 %v875
    %1504 = vmatpush1.bf16.msra.mxu0 %v874
    %1505 = vmatprep.subr.bf16.mxu0 %v877
    %1506 = vmatpush1.bf16.msra.mxu0 %v876
    %1507 = vmatprep.subr.bf16.mxu0 %v879
    %1508 = vmatpush1.bf16.msra.mxu0 %v878
    %1509 = vmatprep.subr.bf16.mxu0 %v881
    %1510 = vmatpush1.bf16.msra.mxu0 %v880
    %1511 = vmatprep.subr.bf16.mxu0 %v883
    %1512 = vmatpush1.bf16.msra.mxu0 %v882
    %1513 = vmatprep.subr.bf16.mxu0 %v885
    %1514 = vmatpush1.bf16.msra.mxu0 %v884
    %1515 = vmatprep.subr.bf16.mxu0 %v887
    %1516 = vmatpush1.bf16.msra.mxu0 %v886
    %1517 = vmatprep.subr.bf16.mxu0 %v889
    %1518 = vmatpush1.bf16.msra.mxu0 %v888
    %1519 = vmatprep.subr.bf16.mxu0 %v891
    %1520 = vmatpush1.bf16.msra.mxu0 %v890
    %1521 = vmatprep.subr.bf16.mxu0 %v893
    %1522 = vmatpush1.bf16.msra.mxu0 %v892
    %1523 = vmatprep.mubr.bf16.mxu0 %v1390
    %1524 = vmatmul.mubr.bf16.gmra.mrb[0].mxu0 %v1389
    %v1525 = vpop.f32.mrb[0].mxu0
    %v1526 = vadd.f32 %v1483, %v1525
    %v1527 = vpop.f32.mrb[0].mxu0
    %v1528 = vadd.f32 %v1485, %v1527
    %v1529 = vpop.f32.mrb[0].mxu0
    %v1530 = vadd.f32 %v1487, %v1529
    %v1531 = vpop.f32.mrb[0].mxu0
    %v1532 = vadd.f32 %v1489, %v1531
    %1533 = vdwg.mxu0
    %1534 = vmatprep.subr.bf16.mxu0 %v895
    %1535 = vmatpush1.bf16.msra.mxu0 %v894
    %1536 = vmatprep.subr.bf16.mxu0 %v897
    %1537 = vmatpush1.bf16.msra.mxu0 %v896
    %1538 = vmatprep.subr.bf16.mxu0 %v899
    %1539 = vmatpush1.bf16.msra.mxu0 %v898
    %1540 = vmatprep.subr.bf16.mxu0 %v901
    %1541 = vmatpush1.bf16.msra.mxu0 %v900
    %1542 = vmatprep.subr.bf16.mxu0 %v903
    %1543 = vmatpush1.bf16.msra.mxu0 %v902
    %1544 = vmatprep.subr.bf16.mxu0 %v905
    %1545 = vmatpush1.bf16.msra.mxu0 %v904
    %1546 = vmatprep.subr.bf16.mxu0 %v907
    %1547 = vmatpush1.bf16.msra.mxu0 %v906
    %1548 = vmatprep.subr.bf16.mxu0 %v909
    %1549 = vmatpush1.bf16.msra.mxu0 %v908
    %1550 = vmatprep.subr.bf16.mxu0 %v911
    %1551 = vmatpush1.bf16.msra.mxu0 %v910
    %1552 = vmatprep.subr.bf16.mxu0 %v913
    %1553 = vmatpush1.bf16.msra.mxu0 %v912
    %1554 = vmatprep.subr.bf16.mxu0 %v915
    %1555 = vmatpush1.bf16.msra.mxu0 %v914
    %1556 = vmatprep.subr.bf16.mxu0 %v917
    %1557 = vmatpush1.bf16.msra.mxu0 %v916
    %1558 = vmatprep.subr.bf16.mxu0 %v919
    %1559 = vmatpush1.bf16.msra.mxu0 %v918
    %1560 = vmatprep.subr.bf16.mxu0 %v921
    %1561 = vmatpush1.bf16.msra.mxu0 %v920
    %1562 = vmatprep.subr.bf16.mxu0 %v923
    %1563 = vmatpush1.bf16.msra.mxu0 %v922
    %1564 = vmatprep.subr.bf16.mxu0 %v925
    %1565 = vmatpush1.bf16.msra.mxu0 %v924
    %1566 = vmatprep.mubr.bf16.mxu0 %v1392
    %1567 = vmatmul.mubr.bf16.gmra.mrb[0].mxu0 %v1391
    %v1568 = vpop.f32.mrb[0].mxu0
    %v1569 = vadd.f32 %v1526, %v1568
    %v1570 = vpop.f32.mrb[0].mxu0
    %v1571 = vadd.f32 %v1528, %v1570
    %v1572 = vpop.f32.mrb[0].mxu0
    %v1573 = vadd.f32 %v1530, %v1572
    %v1574 = vpop.f32.mrb[0].mxu0
    %v1575 = vadd.f32 %v1532, %v1574
    %1576 = vdwg.mxu0
    %1577 = vmatprep.subr.bf16.mxu0 %v927
    %1578 = vmatpush1.bf16.msra.mxu0 %v926
    %1579 = vmatprep.subr.bf16.mxu0 %v929
    %1580 = vmatpush1.bf16.msra.mxu0 %v928
    %1581 = vmatprep.subr.bf16.mxu0 %v931
    %1582 = vmatpush1.bf16.msra.mxu0 %v930
    %1583 = vmatprep.subr.bf16.mxu0 %v933
    %1584 = vmatpush1.bf16.msra.mxu0 %v932
    %1585 = vmatprep.subr.bf16.mxu0 %v935
    %1586 = vmatpush1.bf16.msra.mxu0 %v934
    %1587 = vmatprep.subr.bf16.mxu0 %v937
    %1588 = vmatpush1.bf16.msra.mxu0 %v936
    %1589 = vmatprep.subr.bf16.mxu0 %v939
    %1590 = vmatpush1.bf16.msra.mxu0 %v938
    %1591 = vmatprep.subr.bf16.mxu0 %v941
    %1592 = vmatpush1.bf16.msra.mxu0 %v940
    %1593 = vmatprep.subr.bf16.mxu0 %v943
    %1594 = vmatpush1.bf16.msra.mxu0 %v942
    %1595 = vmatprep.subr.bf16.mxu0 %v945
    %1596 = vmatpush1.bf16.msra.mxu0 %v944
    %1597 = vmatprep.subr.bf16.mxu0 %v947
    %1598 = vmatpush1.bf16.msra.mxu0 %v946
    %1599 = vmatprep.subr.bf16.mxu0 %v949
    %1600 = vmatpush1.bf16.msra.mxu0 %v948
    %1601 = vmatprep.subr.bf16.mxu0 %v951
    %1602 = vmatpush1.bf16.msra.mxu0 %v950
    %1603 = vmatprep.subr.bf16.mxu0 %v953
    %1604 = vmatpush1.bf16.msra.mxu0 %v952
    %1605 = vmatprep.subr.bf16.mxu0 %v955
    %1606 = vmatpush1.bf16.msra.mxu0 %v954
    %1607 = vmatprep.subr.bf16.mxu0 %v957
    %1608 = vmatpush1.bf16.msra.mxu0 %v956
    %1609 = vmatprep.mubr.bf16.mxu0 %v1394
    %1610 = vmatmul.mubr.bf16.gmra.mrb[0].mxu0 %v1393
    %v1611 = vpop.f32.mrb[0].mxu0
    %v1612 = vadd.f32 %v1569, %v1611
    %v1613 = vpop.f32.mrb[0].mxu0
    %v1614 = vadd.f32 %v1571, %v1613
    %v1615 = vpop.f32.mrb[0].mxu0
    %v1616 = vadd.f32 %v1573, %v1615
    %v1617 = vpop.f32.mrb[0].mxu0
    %v1618 = vadd.f32 %v1575, %v1617
    %1619 = vdwg.mxu0
    %v1620 = vmul.f32 %v1612, 0.01
    %v1621 = vmul.f32 %v1614, 0.01
    %v1622 = vmul.f32 %v1616, 0.01
    %v1623 = vmul.f32 %v1618, 0.01
    %v1624 = vmax.f32 %v1612, %v1620
    %v1625 = vmax.f32 %v1614, %v1621
    %v1626 = vmax.f32 %v1616, %v1622
    %v1627 = vmax.f32 %v1618, %v1623
    %v1628 = vpack.c.bf16 %v1626, %v1624
    %v1629 = vpack.c.bf16 %v1627, %v1625
    %1630 = vst [vmem:[#allocation2 + $0x10] sm:$0xff] %v1628
    %1631 = vst [vmem:[#allocation2 + $0x18] sm:$0xff] %v1629
    %v1632 = vld [vmem:[%s0 + $0x28] sm:$0xff]
    %v1633 = vld [vmem:[%s0 + $0x30] sm:$0xff]
    %v1634 = vld [vmem:[%s0 + $0x38] sm:$0xff]
    %v1635 = vld [vmem:[%s0 + $0x40] sm:$0xff]
    %v1636 = vld [vmem:[%s0 + $0x48] sm:$0xff]
    %v1637 = vld [vmem:[%s0 + $0xdc] sm:$0xff]
    %v1638 = vld [vmem:[%s0 + $0xe4] sm:$0xff]
    %v1639 = vld [vmem:[%s0 + $0xec] sm:$0xff]
    %v1640 = vld [vmem:[%s0 + $0xf4] sm:$0xff]
    %v1641 = vld [vmem:[%s0 + $0xfc] sm:$0xff]
    %v1652 = vunpack.c.l.b16 %v1632
    %v1653 = vunpack.c.h.b16 %v1632
    %v1654 = vunpack.c.l.b16 %v1633
    %v1655 = vunpack.c.h.b16 %v1633
    %v1656 = vunpack.c.l.b16 %v1634
    %v1657 = vunpack.c.h.b16 %v1634
    %v1658 = vunpack.c.l.b16 %v1635
    %v1659 = vunpack.c.h.b16 %v1635
    %v1660 = vunpack.c.l.b16 %v1636
    %v1661 = vunpack.c.h.b16 %v1636
    %v1662 = vunpack.c.l.b16 %v1637
    %v1663 = vunpack.c.h.b16 %v1637
    %v1664 = vunpack.c.l.b16 %v1638
    %v1665 = vunpack.c.h.b16 %v1638
    %v1666 = vunpack.c.l.b16 %v1639
    %v1667 = vunpack.c.h.b16 %v1639
    %v1668 = vunpack.c.l.b16 %v1640
    %v1669 = vunpack.c.h.b16 %v1640
    %v1670 = vunpack.c.l.b16 %v1641
    %v1671 = vunpack.c.h.b16 %v1641
    %v1672 = vpack.c.b16 %v1662, %v1652
    %v1673 = vpack.c.b16 %v1663, %v1653
    %v1674 = vpack.c.b16 %v1664, %v1654
    %v1675 = vpack.c.b16 %v1665, %v1655
    %v1676 = vpack.c.b16 %v1666, %v1656
    %v1677 = vpack.c.b16 %v1667, %v1657
    %v1678 = vpack.c.b16 %v1668, %v1658
    %v1679 = vpack.c.b16 %v1669, %v1659
    %v1680 = vpack.c.b16 %v1670, %v1660
    %v1681 = vpack.c.b16 %v1671, %v1661
    %1692 = vmatprep.subr.bf16.mxu0 %v799
    %1693 = vmatpush1.bf16.msra.mxu0 %v798
    %1694 = vmatprep.subr.bf16.mxu0 %v801
    %1695 = vmatpush1.bf16.msra.mxu0 %v800
    %1696 = vmatprep.subr.bf16.mxu0 %v803
    %1697 = vmatpush1.bf16.msra.mxu0 %v802
    %1698 = vmatprep.subr.bf16.mxu0 %v805
    %1699 = vmatpush1.bf16.msra.mxu0 %v804
    %1700 = vmatprep.subr.bf16.mxu0 %v807
    %1701 = vmatpush1.bf16.msra.mxu0 %v806
    %1702 = vmatprep.subr.bf16.mxu0 %v809
    %1703 = vmatpush1.bf16.msra.mxu0 %v808
    %1704 = vmatprep.subr.bf16.mxu0 %v811
    %1705 = vmatpush1.bf16.msra.mxu0 %v810
    %1706 = vmatprep.subr.bf16.mxu0 %v813
    %1707 = vmatpush1.bf16.msra.mxu0 %v812
    %1708 = vmatprep.subr.bf16.mxu0 %v815
    %1709 = vmatpush1.bf16.msra.mxu0 %v814
    %1710 = vmatprep.subr.bf16.mxu0 %v817
    %1711 = vmatpush1.bf16.msra.mxu0 %v816
    %1712 = vmatprep.subr.bf16.mxu0 %v819
    %1713 = vmatpush1.bf16.msra.mxu0 %v818
    %1714 = vmatprep.subr.bf16.mxu0 %v821
    %1715 = vmatpush1.bf16.msra.mxu0 %v820
    %1716 = vmatprep.subr.bf16.mxu0 %v823
    %1717 = vmatpush1.bf16.msra.mxu0 %v822
    %1718 = vmatprep.subr.bf16.mxu0 %v825
    %1719 = vmatpush1.bf16.msra.mxu0 %v824
    %1720 = vmatprep.subr.bf16.mxu0 %v827
    %1721 = vmatpush1.bf16.msra.mxu0 %v826
    %1722 = vmatprep.subr.bf16.mxu0 %v829
    %1723 = vmatpush1.bf16.msra.mxu0 %v828
    %1724 = vmatprep.mubr.bf16.mxu0 %v1673
    %1725 = vmatmul.mubr.bf16.gmra.mrb[0].mxu0 %v1672
    %v1726 = vpop.f32.mrb[0].mxu0
    %v1727 = vadd.f32 %v251, %v1726
    %v1728 = vpop.f32.mrb[0].mxu0
    %v1729 = vadd.f32 %v255, %v1728
    %v1730 = vpop.f32.mrb[0].mxu0
    %v1731 = vadd.f32 %v251, %v1730
    %v1732 = vpop.f32.mrb[0].mxu0
    %v1733 = vadd.f32 %v255, %v1732
    %1734 = vdwg.mxu0
    %1735 = vmatprep.subr.bf16.mxu0 %v831
    %1736 = vmatpush1.bf16.msra.mxu0 %v830
    %1737 = vmatprep.subr.bf16.mxu0 %v833
    %1738 = vmatpush1.bf16.msra.mxu0 %v832
    %1739 = vmatprep.subr.bf16.mxu0 %v835
    %1740 = vmatpush1.bf16.msra.mxu0 %v834
    %1741 = vmatprep.subr.bf16.mxu0 %v837
    %1742 = vmatpush1.bf16.msra.mxu0 %v836
    %1743 = vmatprep.subr.bf16.mxu0 %v839
    %1744 = vmatpush1.bf16.msra.mxu0 %v838
    %1745 = vmatprep.subr.bf16.mxu0 %v841
    %1746 = vmatpush1.bf16.msra.mxu0 %v840
    %1747 = vmatprep.subr.bf16.mxu0 %v843
    %1748 = vmatpush1.bf16.msra.mxu0 %v842
    %1749 = vmatprep.subr.bf16.mxu0 %v845
    %1750 = vmatpush1.bf16.msra.mxu0 %v844
    %1751 = vmatprep.subr.bf16.mxu0 %v847
    %1752 = vmatpush1.bf16.msra.mxu0 %v846
    %1753 = vmatprep.subr.bf16.mxu0 %v849
    %1754 = vmatpush1.bf16.msra.mxu0 %v848
    %1755 = vmatprep.subr.bf16.mxu0 %v851
    %1756 = vmatpush1.bf16.msra.mxu0 %v850
    %1757 = vmatprep.subr.bf16.mxu0 %v853
    %1758 = vmatpush1.bf16.msra.mxu0 %v852
    %1759 = vmatprep.subr.bf16.mxu0 %v855
    %1760 = vmatpush1.bf16.msra.mxu0 %v854
    %1761 = vmatprep.subr.bf16.mxu0 %v857
    %1762 = vmatpush1.bf16.msra.mxu0 %v856
    %1763 = vmatprep.subr.bf16.mxu0 %v859
    %1764 = vmatpush1.bf16.msra.mxu0 %v858
    %1765 = vmatprep.subr.bf16.mxu0 %v861
    %1766 = vmatpush1.bf16.msra.mxu0 %v860
    %1767 = vmatprep.mubr.bf16.mxu0 %v1675
    %1768 = vmatmul.mubr.bf16.gmra.mrb[0].mxu0 %v1674
    %v1769 = vpop.f32.mrb[0].mxu0
    %v1770 = vadd.f32 %v1727, %v1769
    %v1771 = vpop.f32.mrb[0].mxu0
    %v1772 = vadd.f32 %v1729, %v1771
    %v1773 = vpop.f32.mrb[0].mxu0
    %v1774 = vadd.f32 %v1731, %v1773
    %v1775 = vpop.f32.mrb[0].mxu0
    %v1776 = vadd.f32 %v1733, %v1775
    %1777 = vdwg.mxu0
    %1778 = vmatprep.subr.bf16.mxu0 %v863
    %1779 = vmatpush1.bf16.msra.mxu0 %v862
    %1780 = vmatprep.subr.bf16.mxu0 %v865
    %1781 = vmatpush1.bf16.msra.mxu0 %v864
    %1782 = vmatprep.subr.bf16.mxu0 %v867
    %1783 = vmatpush1.bf16.msra.mxu0 %v866
    %1784 = vmatprep.subr.bf16.mxu0 %v869
    %1785 = vmatpush1.bf16.msra.mxu0 %v868
    %1786 = vmatprep.subr.bf16.mxu0 %v871
    %1787 = vmatpush1.bf16.msra.mxu0 %v870
    %1788 = vmatprep.subr.bf16.mxu0 %v873
    %1789 = vmatpush1.bf16.msra.mxu0 %v872
    %1790 = vmatprep.subr.bf16.mxu0 %v875
    %1791 = vmatpush1.bf16.msra.mxu0 %v874
    %1792 = vmatprep.subr.bf16.mxu0 %v877
    %1793 = vmatpush1.bf16.msra.mxu0 %v876
    %1794 = vmatprep.subr.bf16.mxu0 %v879
    %1795 = vmatpush1.bf16.msra.mxu0 %v878
    %1796 = vmatprep.subr.bf16.mxu0 %v881
    %1797 = vmatpush1.bf16.msra.mxu0 %v880
    %1798 = vmatprep.subr.bf16.mxu0 %v883
    %1799 = vmatpush1.bf16.msra.mxu0 %v882
    %1800 = vmatprep.subr.bf16.mxu0 %v885
    %1801 = vmatpush1.bf16.msra.mxu0 %v884
    %1802 = vmatprep.subr.bf16.mxu0 %v887
    %1803 = vmatpush1.bf16.msra.mxu0 %v886
    %1804 = vmatprep.subr.bf16.mxu0 %v889
    %1805 = vmatpush1.bf16.msra.mxu0 %v888
    %1806 = vmatprep.subr.bf16.mxu0 %v891
    %1807 = vmatpush1.bf16.msra.mxu0 %v890
    %1808 = vmatprep.subr.bf16.mxu0 %v893
    %1809 = vmatpush1.bf16.msra.mxu0 %v892
    %1810 = vmatprep.mubr.bf16.mxu0 %v1677
    %1811 = vmatmul.mubr.bf16.gmra.mrb[0].mxu0 %v1676
    %v1812 = vpop.f32.mrb[0].mxu0
    %v1813 = vadd.f32 %v1770, %v1812
    %v1814 = vpop.f32.mrb[0].mxu0
    %v1815 = vadd.f32 %v1772, %v1814
    %v1816 = vpop.f32.mrb[0].mxu0
    %v1817 = vadd.f32 %v1774, %v1816
    %v1818 = vpop.f32.mrb[0].mxu0
    %v1819 = vadd.f32 %v1776, %v1818
    %1820 = vdwg.mxu0
    %1821 = vmatprep.subr.bf16.mxu0 %v895
    %1822 = vmatpush1.bf16.msra.mxu0 %v894
    %1823 = vmatprep.subr.bf16.mxu0 %v897
    %1824 = vmatpush1.bf16.msra.mxu0 %v896
    %1825 = vmatprep.subr.bf16.mxu0 %v899
    %1826 = vmatpush1.bf16.msra.mxu0 %v898
    %1827 = vmatprep.subr.bf16.mxu0 %v901
    %1828 = vmatpush1.bf16.msra.mxu0 %v900
    %1829 = vmatprep.subr.bf16.mxu0 %v903
    %1830 = vmatpush1.bf16.msra.mxu0 %v902
    %1831 = vmatprep.subr.bf16.mxu0 %v905
    %1832 = vmatpush1.bf16.msra.mxu0 %v904
    %1833 = vmatprep.subr.bf16.mxu0 %v907
    %1834 = vmatpush1.bf16.msra.mxu0 %v906
    %1835 = vmatprep.subr.bf16.mxu0 %v909
    %1836 = vmatpush1.bf16.msra.mxu0 %v908
    %1837 = vmatprep.subr.bf16.mxu0 %v911
    %1838 = vmatpush1.bf16.msra.mxu0 %v910
    %1839 = vmatprep.subr.bf16.mxu0 %v913
    %1840 = vmatpush1.bf16.msra.mxu0 %v912
    %1841 = vmatprep.subr.bf16.mxu0 %v915
    %1842 = vmatpush1.bf16.msra.mxu0 %v914
    %1843 = vmatprep.subr.bf16.mxu0 %v917
    %1844 = vmatpush1.bf16.msra.mxu0 %v916
    %1845 = vmatprep.subr.bf16.mxu0 %v919
    %1846 = vmatpush1.bf16.msra.mxu0 %v918
    %1847 = vmatprep.subr.bf16.mxu0 %v921
    %1848 = vmatpush1.bf16.msra.mxu0 %v920
    %1849 = vmatprep.subr.bf16.mxu0 %v923
    %1850 = vmatpush1.bf16.msra.mxu0 %v922
    %1851 = vmatprep.subr.bf16.mxu0 %v925
    %1852 = vmatpush1.bf16.msra.mxu0 %v924
    %1853 = vmatprep.mubr.bf16.mxu0 %v1679
    %1854 = vmatmul.mubr.bf16.gmra.mrb[0].mxu0 %v1678
    %v1855 = vpop.f32.mrb[0].mxu0
    %v1856 = vadd.f32 %v1813, %v1855
    %v1857 = vpop.f32.mrb[0].mxu0
    %v1858 = vadd.f32 %v1815, %v1857
    %v1859 = vpop.f32.mrb[0].mxu0
    %v1860 = vadd.f32 %v1817, %v1859
    %v1861 = vpop.f32.mrb[0].mxu0
    %v1862 = vadd.f32 %v1819, %v1861
    %1863 = vdwg.mxu0
    %1864 = vmatprep.subr.bf16.mxu0 %v927
    %1865 = vmatpush1.bf16.msra.mxu0 %v926
    %1866 = vmatprep.subr.bf16.mxu0 %v929
    %1867 = vmatpush1.bf16.msra.mxu0 %v928
    %1868 = vmatprep.subr.bf16.mxu0 %v931
    %1869 = vmatpush1.bf16.msra.mxu0 %v930
    %1870 = vmatprep.subr.bf16.mxu0 %v933
    %1871 = vmatpush1.bf16.msra.mxu0 %v932
    %1872 = vmatprep.subr.bf16.mxu0 %v935
    %1873 = vmatpush1.bf16.msra.mxu0 %v934
    %1874 = vmatprep.subr.bf16.mxu0 %v937
    %1875 = vmatpush1.bf16.msra.mxu0 %v936
    %1876 = vmatprep.subr.bf16.mxu0 %v939
    %1877 = vmatpush1.bf16.msra.mxu0 %v938
    %1878 = vmatprep.subr.bf16.mxu0 %v941
    %1879 = vmatpush1.bf16.msra.mxu0 %v940
    %1880 = vmatprep.subr.bf16.mxu0 %v943
    %1881 = vmatpush1.bf16.msra.mxu0 %v942
    %1882 = vmatprep.subr.bf16.mxu0 %v945
    %1883 = vmatpush1.bf16.msra.mxu0 %v944
    %1884 = vmatprep.subr.bf16.mxu0 %v947
    %1885 = vmatpush1.bf16.msra.mxu0 %v946
    %1886 = vmatprep.subr.bf16.mxu0 %v949
    %1887 = vmatpush1.bf16.msra.mxu0 %v948
    %1888 = vmatprep.subr.bf16.mxu0 %v951
    %1889 = vmatpush1.bf16.msra.mxu0 %v950
    %1890 = vmatprep.subr.bf16.mxu0 %v953
    %1891 = vmatpush1.bf16.msra.mxu0 %v952
    %1892 = vmatprep.subr.bf16.mxu0 %v955
    %1893 = vmatpush1.bf16.msra.mxu0 %v954
    %1894 = vmatprep.subr.bf16.mxu0 %v957
    %1895 = vmatpush1.bf16.msra.mxu0 %v956
    %1896 = vmatprep.mubr.bf16.mxu0 %v1681
    %1897 = vmatmul.mubr.bf16.gmra.mrb[0].mxu0 %v1680
    %v1898 = vpop.f32.mrb[0].mxu0
    %v1899 = vadd.f32 %v1856, %v1898
    %v1900 = vpop.f32.mrb[0].mxu0
    %v1901 = vadd.f32 %v1858, %v1900
    %v1902 = vpop.f32.mrb[0].mxu0
    %v1903 = vadd.f32 %v1860, %v1902
    %v1904 = vpop.f32.mrb[0].mxu0
    %v1905 = vadd.f32 %v1862, %v1904
    %1906 = vdwg.mxu0
    %v1907 = vmul.f32 %v1899, 0.01
    %v1908 = vmul.f32 %v1901, 0.01
    %v1909 = vmul.f32 %v1903, 0.01
    %v1910 = vmul.f32 %v1905, 0.01
    %v1911 = vmax.f32 %v1899, %v1907
    %v1912 = vmax.f32 %v1901, %v1908
    %v1913 = vmax.f32 %v1903, %v1909
    %v1914 = vmax.f32 %v1905, %v1910
    %v1915 = vpack.c.bf16 %v1913, %v1911
    %v1916 = vpack.c.bf16 %v1914, %v1912
    %1917 = vst [vmem:[#allocation2 + $0x20] sm:$0xff] %v1915
    %1918 = vst [vmem:[#allocation2 + $0x28] sm:$0xff] %v1916
    %v1919 = vld [vmem:[%s0 + $0x3c] sm:$0xff]
    %v1920 = vld [vmem:[%s0 + $0x44] sm:$0xff]
    %v1921 = vld [vmem:[%s0 + $0x4c] sm:$0xff]
    %v1922 = vld [vmem:[%s0 + $0x54] sm:$0xff]
    %v1923 = vld [vmem:[%s0 + $0x5c] sm:$0xff]
    %v1924 = vld [vmem:[%s0 + $0xf0] sm:$0xff]
    %v1925 = vld [vmem:[%s0 + $0xf8] sm:$0xff]
    %v1926 = vld [vmem:[%s0 + $0x100] sm:$0xff]
    %v1927 = vld [vmem:[%s0 + $0x108] sm:$0xff]
    %v1928 = vld [vmem:[%s0 + $0x110] sm:$0xff]
    %v1939 = vunpack.c.l.b16 %v1919
    %v1940 = vunpack.c.h.b16 %v1919
    %v1941 = vunpack.c.l.b16 %v1920
    %v1942 = vunpack.c.h.b16 %v1920
    %v1943 = vunpack.c.l.b16 %v1921
    %v1944 = vunpack.c.h.b16 %v1921
    %v1945 = vunpack.c.l.b16 %v1922
    %v1946 = vunpack.c.h.b16 %v1922
    %v1947 = vunpack.c.l.b16 %v1923
    %v1948 = vunpack.c.h.b16 %v1923
    %v1949 = vunpack.c.l.b16 %v1924
    %v1950 = vunpack.c.h.b16 %v1924
    %v1951 = vunpack.c.l.b16 %v1925
    %v1952 = vunpack.c.h.b16 %v1925
    %v1953 = vunpack.c.l.b16 %v1926
    %v1954 = vunpack.c.h.b16 %v1926
    %v1955 = vunpack.c.l.b16 %v1927
    %v1956 = vunpack.c.h.b16 %v1927
    %v1957 = vunpack.c.l.b16 %v1928
    %v1958 = vunpack.c.h.b16 %v1928
    %v1959 = vpack.c.b16 %v1949, %v1939
    %v1960 = vpack.c.b16 %v1950, %v1940
    %v1961 = vpack.c.b16 %v1951, %v1941
    %v1962 = vpack.c.b16 %v1952, %v1942
    %v1963 = vpack.c.b16 %v1953, %v1943
    %v1964 = vpack.c.b16 %v1954, %v1944
    %v1965 = vpack.c.b16 %v1955, %v1945
    %v1966 = vpack.c.b16 %v1956, %v1946
    %v1967 = vpack.c.b16 %v1957, %v1947
    %v1968 = vpack.c.b16 %v1958, %v1948
    %1979 = vmatprep.subr.bf16.mxu0 %v799
    %1980 = vmatpush1.bf16.msra.mxu0 %v798
    %1981 = vmatprep.subr.bf16.mxu0 %v801
    %1982 = vmatpush1.bf16.msra.mxu0 %v800
    %1983 = vmatprep.subr.bf16.mxu0 %v803
    %1984 = vmatpush1.bf16.msra.mxu0 %v802
    %1985 = vmatprep.subr.bf16.mxu0 %v805
    %1986 = vmatpush1.bf16.msra.mxu0 %v804
    %1987 = vmatprep.subr.bf16.mxu0 %v807
    %1988 = vmatpush1.bf16.msra.mxu0 %v806
    %1989 = vmatprep.subr.bf16.mxu0 %v809
    %1990 = vmatpush1.bf16.msra.mxu0 %v808
    %1991 = vmatprep.subr.bf16.mxu0 %v811
    %1992 = vmatpush1.bf16.msra.mxu0 %v810
    %1993 = vmatprep.subr.bf16.mxu0 %v813
    %1994 = vmatpush1.bf16.msra.mxu0 %v812
    %1995 = vmatprep.subr.bf16.mxu0 %v815
    %1996 = vmatpush1.bf16.msra.mxu0 %v814
    %1997 = vmatprep.subr.bf16.mxu0 %v817
    %1998 = vmatpush1.bf16.msra.mxu0 %v816
    %1999 = vmatprep.subr.bf16.mxu0 %v819
    %2000 = vmatpush1.bf16.msra.mxu0 %v818
    %2001 = vmatprep.subr.bf16.mxu0 %v821
    %2002 = vmatpush1.bf16.msra.mxu0 %v820
    %2003 = vmatprep.subr.bf16.mxu0 %v823
    %2004 = vmatpush1.bf16.msra.mxu0 %v822
    %2005 = vmatprep.subr.bf16.mxu0 %v825
    %2006 = vmatpush1.bf16.msra.mxu0 %v824
    %2007 = vmatprep.subr.bf16.mxu0 %v827
    %2008 = vmatpush1.bf16.msra.mxu0 %v826
    %2009 = vmatprep.subr.bf16.mxu0 %v829
    %2010 = vmatpush1.bf16.msra.mxu0 %v828
    %2011 = vmatprep.mubr.bf16.mxu0 %v1960
    %2012 = vmatmul.mubr.bf16.gmra.mrb[0].mxu0 %v1959
    %v2013 = vpop.f32.mrb[0].mxu0
    %v2014 = vadd.f32 %v251, %v2013
    %v2015 = vpop.f32.mrb[0].mxu0
    %v2016 = vadd.f32 %v255, %v2015
    %v2017 = vpop.f32.mrb[0].mxu0
    %v2018 = vadd.f32 %v251, %v2017
    %v2019 = vpop.f32.mrb[0].mxu0
    %v2020 = vadd.f32 %v255, %v2019
    %2021 = vdwg.mxu0
    %2022 = vmatprep.subr.bf16.mxu0 %v831
    %2023 = vmatpush1.bf16.msra.mxu0 %v830
    %2024 = vmatprep.subr.bf16.mxu0 %v833
    %2025 = vmatpush1.bf16.msra.mxu0 %v832
    %2026 = vmatprep.subr.bf16.mxu0 %v835
    %2027 = vmatpush1.bf16.msra.mxu0 %v834
    %2028 = vmatprep.subr.bf16.mxu0 %v837
    %2029 = vmatpush1.bf16.msra.mxu0 %v836
    %2030 = vmatprep.subr.bf16.mxu0 %v839
    %2031 = vmatpush1.bf16.msra.mxu0 %v838
    %2032 = vmatprep.subr.bf16.mxu0 %v841
    %2033 = vmatpush1.bf16.msra.mxu0 %v840
    %2034 = vmatprep.subr.bf16.mxu0 %v843
    %2035 = vmatpush1.bf16.msra.mxu0 %v842
    %2036 = vmatprep.subr.bf16.mxu0 %v845
    %2037 = vmatpush1.bf16.msra.mxu0 %v844
    %2038 = vmatprep.subr.bf16.mxu0 %v847
    %2039 = vmatpush1.bf16.msra.mxu0 %v846
    %2040 = vmatprep.subr.bf16.mxu0 %v849
    %2041 = vmatpush1.bf16.msra.mxu0 %v848
    %2042 = vmatprep.subr.bf16.mxu0 %v851
    %2043 = vmatpush1.bf16.msra.mxu0 %v850
    %2044 = vmatprep.subr.bf16.mxu0 %v853
    %2045 = vmatpush1.bf16.msra.mxu0 %v852
    %2046 = vmatprep.subr.bf16.mxu0 %v855
    %2047 = vmatpush1.bf16.msra.mxu0 %v854
    %2048 = vmatprep.subr.bf16.mxu0 %v857
    %2049 = vmatpush1.bf16.msra.mxu0 %v856
    %2050 = vmatprep.subr.bf16.mxu0 %v859
    %2051 = vmatpush1.bf16.msra.mxu0 %v858
    %2052 = vmatprep.subr.bf16.mxu0 %v861
    %2053 = vmatpush1.bf16.msra.mxu0 %v860
    %2054 = vmatprep.mubr.bf16.mxu0 %v1962
    %2055 = vmatmul.mubr.bf16.gmra.mrb[0].mxu0 %v1961
    %v2056 = vpop.f32.mrb[0].mxu0
    %v2057 = vadd.f32 %v2014, %v2056
    %v2058 = vpop.f32.mrb[0].mxu0
    %v2059 = vadd.f32 %v2016, %v2058
    %v2060 = vpop.f32.mrb[0].mxu0
    %v2061 = vadd.f32 %v2018, %v2060
    %v2062 = vpop.f32.mrb[0].mxu0
    %v2063 = vadd.f32 %v2020, %v2062
    %2064 = vdwg.mxu0
    %2065 = vmatprep.subr.bf16.mxu0 %v863
    %2066 = vmatpush1.bf16.msra.mxu0 %v862
    %2067 = vmatprep.subr.bf16.mxu0 %v865
    %2068 = vmatpush1.bf16.msra.mxu0 %v864
    %2069 = vmatprep.subr.bf16.mxu0 %v867
    %2070 = vmatpush1.bf16.msra.mxu0 %v866
    %2071 = vmatprep.subr.bf16.mxu0 %v869
    %2072 = vmatpush1.bf16.msra.mxu0 %v868
    %2073 = vmatprep.subr.bf16.mxu0 %v871
    %2074 = vmatpush1.bf16.msra.mxu0 %v870
    %2075 = vmatprep.subr.bf16.mxu0 %v873
    %2076 = vmatpush1.bf16.msra.mxu0 %v872
    %2077 = vmatprep.subr.bf16.mxu0 %v875
    %2078 = vmatpush1.bf16.msra.mxu0 %v874
    %2079 = vmatprep.subr.bf16.mxu0 %v877
    %2080 = vmatpush1.bf16.msra.mxu0 %v876
    %2081 = vmatprep.subr.bf16.mxu0 %v879
    %2082 = vmatpush1.bf16.msra.mxu0 %v878
    %2083 = vmatprep.subr.bf16.mxu0 %v881
    %2084 = vmatpush1.bf16.msra.mxu0 %v880
    %2085 = vmatprep.subr.bf16.mxu0 %v883
    %2086 = vmatpush1.bf16.msra.mxu0 %v882
    %2087 = vmatprep.subr.bf16.mxu0 %v885
    %2088 = vmatpush1.bf16.msra.mxu0 %v884
    %2089 = vmatprep.subr.bf16.mxu0 %v887
    %2090 = vmatpush1.bf16.msra.mxu0 %v886
    %2091 = vmatprep.subr.bf16.mxu0 %v889
    %2092 = vmatpush1.bf16.msra.mxu0 %v888
    %2093 = vmatprep.subr.bf16.mxu0 %v891
    %2094 = vmatpush1.bf16.msra.mxu0 %v890
    %2095 = vmatprep.subr.bf16.mxu0 %v893
    %2096 = vmatpush1.bf16.msra.mxu0 %v892
    %2097 = vmatprep.mubr.bf16.mxu0 %v1964
    %2098 = vmatmul.mubr.bf16.gmra.mrb[0].mxu0 %v1963
    %v2099 = vpop.f32.mrb[0].mxu0
    %v2100 = vadd.f32 %v2057, %v2099
    %v2101 = vpop.f32.mrb[0].mxu0
    %v2102 = vadd.f32 %v2059, %v2101
    %v2103 = vpop.f32.mrb[0].mxu0
    %v2104 = vadd.f32 %v2061, %v2103
    %v2105 = vpop.f32.mrb[0].mxu0
    %v2106 = vadd.f32 %v2063, %v2105
    %2107 = vdwg.mxu0
    %2108 = vmatprep.subr.bf16.mxu0 %v895
    %2109 = vmatpush1.bf16.msra.mxu0 %v894
    %2110 = vmatprep.subr.bf16.mxu0 %v897
    %2111 = vmatpush1.bf16.msra.mxu0 %v896
    %2112 = vmatprep.subr.bf16.mxu0 %v899
    %2113 = vmatpush1.bf16.msra.mxu0 %v898
    %2114 = vmatprep.subr.bf16.mxu0 %v901
    %2115 = vmatpush1.bf16.msra.mxu0 %v900
    %2116 = vmatprep.subr.bf16.mxu0 %v903
    %2117 = vmatpush1.bf16.msra.mxu0 %v902
    %2118 = vmatprep.subr.bf16.mxu0 %v905
    %2119 = vmatpush1.bf16.msra.mxu0 %v904
    %2120 = vmatprep.subr.bf16.mxu0 %v907
    %2121 = vmatpush1.bf16.msra.mxu0 %v906
    %2122 = vmatprep.subr.bf16.mxu0 %v909
    %2123 = vmatpush1.bf16.msra.mxu0 %v908
    %2124 = vmatprep.subr.bf16.mxu0 %v911
    %2125 = vmatpush1.bf16.msra.mxu0 %v910
    %2126 = vmatprep.subr.bf16.mxu0 %v913
    %2127 = vmatpush1.bf16.msra.mxu0 %v912
    %2128 = vmatprep.subr.bf16.mxu0 %v915
    %2129 = vmatpush1.bf16.msra.mxu0 %v914
    %2130 = vmatprep.subr.bf16.mxu0 %v917
    %2131 = vmatpush1.bf16.msra.mxu0 %v916
    %2132 = vmatprep.subr.bf16.mxu0 %v919
    %2133 = vmatpush1.bf16.msra.mxu0 %v918
    %2134 = vmatprep.subr.bf16.mxu0 %v921
    %2135 = vmatpush1.bf16.msra.mxu0 %v920
    %2136 = vmatprep.subr.bf16.mxu0 %v923
    %2137 = vmatpush1.bf16.msra.mxu0 %v922
    %2138 = vmatprep.subr.bf16.mxu0 %v925
    %2139 = vmatpush1.bf16.msra.mxu0 %v924
    %2140 = vmatprep.mubr.bf16.mxu0 %v1966
    %2141 = vmatmul.mubr.bf16.gmra.mrb[0].mxu0 %v1965
    %v2142 = vpop.f32.mrb[0].mxu0
    %v2143 = vadd.f32 %v2100, %v2142
    %v2144 = vpop.f32.mrb[0].mxu0
    %v2145 = vadd.f32 %v2102, %v2144
    %v2146 = vpop.f32.mrb[0].mxu0
    %v2147 = vadd.f32 %v2104, %v2146
    %v2148 = vpop.f32.mrb[0].mxu0
    %v2149 = vadd.f32 %v2106, %v2148
    %2150 = vdwg.mxu0
    %2151 = vmatprep.subr.bf16.mxu0 %v927
    %2152 = vmatpush1.bf16.msra.mxu0 %v926
    %2153 = vmatprep.subr.bf16.mxu0 %v929
    %2154 = vmatpush1.bf16.msra.mxu0 %v928
    %2155 = vmatprep.subr.bf16.mxu0 %v931
    %2156 = vmatpush1.bf16.msra.mxu0 %v930
    %2157 = vmatprep.subr.bf16.mxu0 %v933
    %2158 = vmatpush1.bf16.msra.mxu0 %v932
    %2159 = vmatprep.subr.bf16.mxu0 %v935
    %2160 = vmatpush1.bf16.msra.mxu0 %v934
    %2161 = vmatprep.subr.bf16.mxu0 %v937
    %2162 = vmatpush1.bf16.msra.mxu0 %v936
    %2163 = vmatprep.subr.bf16.mxu0 %v939
    %2164 = vmatpush1.bf16.msra.mxu0 %v938
    %2165 = vmatprep.subr.bf16.mxu0 %v941
    %2166 = vmatpush1.bf16.msra.mxu0 %v940
    %2167 = vmatprep.subr.bf16.mxu0 %v943
    %2168 = vmatpush1.bf16.msra.mxu0 %v942
    %2169 = vmatprep.subr.bf16.mxu0 %v945
    %2170 = vmatpush1.bf16.msra.mxu0 %v944
    %2171 = vmatprep.subr.bf16.mxu0 %v947
    %2172 = vmatpush1.bf16.msra.mxu0 %v946
    %2173 = vmatprep.subr.bf16.mxu0 %v949
    %2174 = vmatpush1.bf16.msra.mxu0 %v948
    %2175 = vmatprep.subr.bf16.mxu0 %v951
    %2176 = vmatpush1.bf16.msra.mxu0 %v950
    %2177 = vmatprep.subr.bf16.mxu0 %v953
    %2178 = vmatpush1.bf16.msra.mxu0 %v952
    %2179 = vmatprep.subr.bf16.mxu0 %v955
    %2180 = vmatpush1.bf16.msra.mxu0 %v954
    %2181 = vmatprep.subr.bf16.mxu0 %v957
    %2182 = vmatpush1.bf16.msra.mxu0 %v956
    %2183 = vmatprep.mubr.bf16.mxu0 %v1968
    %2184 = vmatmul.mubr.bf16.gmra.mrb[0].mxu0 %v1967
    %v2185 = vpop.f32.mrb[0].mxu0
    %v2186 = vadd.f32 %v2143, %v2185
    %v2187 = vpop.f32.mrb[0].mxu0
    %v2188 = vadd.f32 %v2145, %v2187
    %v2189 = vpop.f32.mrb[0].mxu0
    %v2190 = vadd.f32 %v2147, %v2189
    %v2191 = vpop.f32.mrb[0].mxu0
    %v2192 = vadd.f32 %v2149, %v2191
    %2193 = vdwg.mxu0
    %v2194 = vmul.f32 %v2186, 0.01
    %v2195 = vmul.f32 %v2188, 0.01
    %v2196 = vmul.f32 %v2190, 0.01
    %v2197 = vmul.f32 %v2192, 0.01
    %v2198 = vmax.f32 %v2186, %v2194
    %v2199 = vmax.f32 %v2188, %v2195
    %v2200 = vmax.f32 %v2190, %v2196
    %v2201 = vmax.f32 %v2192, %v2197
    %v2202 = vpack.c.bf16 %v2200, %v2198
    %v2203 = vpack.c.bf16 %v2201, %v2199
    %2204 = vst [vmem:[#allocation2 + $0x30] sm:$0xff] %v2202
    %2205 = vst [vmem:[#allocation2 + $0x38] sm:$0xff] %v2203
    %v2206 = vld [vmem:[%s0 + $0x50] sm:$0xff]
    %v2207 = vld [vmem:[%s0 + $0x58] sm:$0xff]
    %v2208 = vld [vmem:[%s0 + $0x60] sm:$0xff]
    %v2209 = vld [vmem:[%s0 + $0x68] sm:$0xff]
    %v2210 = vld [vmem:[%s0 + $0x70] sm:$0xff]
    %v2211 = vld [vmem:[%s0 + $0x104] sm:$0xff]
    %v2212 = vld [vmem:[%s0 + $0x10c] sm:$0xff]
    %v2213 = vld [vmem:[%s0 + $0x114] sm:$0xff]
    %v2214 = vld [vmem:[%s0 + $0x11c] sm:$0xff]
    %v2215 = vld [vmem:[%s0 + $0x124] sm:$0xff]
    %v2226 = vunpack.c.l.b16 %v2206
    %v2227 = vunpack.c.h.b16 %v2206
    %v2228 = vunpack.c.l.b16 %v2207
    %v2229 = vunpack.c.h.b16 %v2207
    %v2230 = vunpack.c.l.b16 %v2208
    %v2231 = vunpack.c.h.b16 %v2208
    %v2232 = vunpack.c.l.b16 %v2209
    %v2233 = vunpack.c.h.b16 %v2209
    %v2234 = vunpack.c.l.b16 %v2210
    %v2235 = vunpack.c.h.b16 %v2210
    %v2236 = vunpack.c.l.b16 %v2211
    %v2237 = vunpack.c.h.b16 %v2211
    %v2238 = vunpack.c.l.b16 %v2212
    %v2239 = vunpack.c.h.b16 %v2212
    %v2240 = vunpack.c.l.b16 %v2213
    %v2241 = vunpack.c.h.b16 %v2213
    %v2242 = vunpack.c.l.b16 %v2214
    %v2243 = vunpack.c.h.b16 %v2214
    %v2244 = vunpack.c.l.b16 %v2215
    %v2245 = vunpack.c.h.b16 %v2215
    %v2246 = vpack.c.b16 %v2236, %v2226
    %v2247 = vpack.c.b16 %v2237, %v2227
    %v2248 = vpack.c.b16 %v2238, %v2228
    %v2249 = vpack.c.b16 %v2239, %v2229
    %v2250 = vpack.c.b16 %v2240, %v2230
    %v2251 = vpack.c.b16 %v2241, %v2231
    %v2252 = vpack.c.b16 %v2242, %v2232
    %v2253 = vpack.c.b16 %v2243, %v2233
    %v2254 = vpack.c.b16 %v2244, %v2234
    %v2255 = vpack.c.b16 %v2245, %v2235
    %2266 = vmatprep.subr.bf16.mxu0 %v799
    %2267 = vmatpush1.bf16.msra.mxu0 %v798
    %2268 = vmatprep.subr.bf16.mxu0 %v801
    %2269 = vmatpush1.bf16.msra.mxu0 %v800
    %2270 = vmatprep.subr.bf16.mxu0 %v803
    %2271 = vmatpush1.bf16.msra.mxu0 %v802
    %2272 = vmatprep.subr.bf16.mxu0 %v805
    %2273 = vmatpush1.bf16.msra.mxu0 %v804
    %2274 = vmatprep.subr.bf16.mxu0 %v807
    %2275 = vmatpush1.bf16.msra.mxu0 %v806
    %2276 = vmatprep.subr.bf16.mxu0 %v809
    %2277 = vmatpush1.bf16.msra.mxu0 %v808
    %2278 = vmatprep.subr.bf16.mxu0 %v811
    %2279 = vmatpush1.bf16.msra.mxu0 %v810
    %2280 = vmatprep.subr.bf16.mxu0 %v813
    %2281 = vmatpush1.bf16.msra.mxu0 %v812
    %2282 = vmatprep.subr.bf16.mxu0 %v815
    %2283 = vmatpush1.bf16.msra.mxu0 %v814
    %2284 = vmatprep.subr.bf16.mxu0 %v817
    %2285 = vmatpush1.bf16.msra.mxu0 %v816
    %2286 = vmatprep.subr.bf16.mxu0 %v819
    %2287 = vmatpush1.bf16.msra.mxu0 %v818
    %2288 = vmatprep.subr.bf16.mxu0 %v821
    %2289 = vmatpush1.bf16.msra.mxu0 %v820
    %2290 = vmatprep.subr.bf16.mxu0 %v823
    %2291 = vmatpush1.bf16.msra.mxu0 %v822
    %2292 = vmatprep.subr.bf16.mxu0 %v825
    %2293 = vmatpush1.bf16.msra.mxu0 %v824
    %2294 = vmatprep.subr.bf16.mxu0 %v827
    %2295 = vmatpush1.bf16.msra.mxu0 %v826
    %2296 = vmatprep.subr.bf16.mxu0 %v829
    %2297 = vmatpush1.bf16.msra.mxu0 %v828
    %2298 = vmatprep.mubr.bf16.mxu0 %v2247
    %2299 = vmatmul.mubr.bf16.gmra.mrb[0].mxu0 %v2246
    %v2300 = vpop.f32.mrb[0].mxu0
    %v2301 = vadd.f32 %v251, %v2300
    %v2302 = vpop.f32.mrb[0].mxu0
    %v2303 = vadd.f32 %v255, %v2302
    %v2304 = vpop.f32.mrb[0].mxu0
    %v2305 = vadd.f32 %v251, %v2304
    %v2306 = vpop.f32.mrb[0].mxu0
    %v2307 = vadd.f32 %v255, %v2306
    %2308 = vdwg.mxu0
    %2309 = vmatprep.subr.bf16.mxu0 %v831
    %2310 = vmatpush1.bf16.msra.mxu0 %v830
    %2311 = vmatprep.subr.bf16.mxu0 %v833
    %2312 = vmatpush1.bf16.msra.mxu0 %v832
    %2313 = vmatprep.subr.bf16.mxu0 %v835
    %2314 = vmatpush1.bf16.msra.mxu0 %v834
    %2315 = vmatprep.subr.bf16.mxu0 %v837
    %2316 = vmatpush1.bf16.msra.mxu0 %v836
    %2317 = vmatprep.subr.bf16.mxu0 %v839
    %2318 = vmatpush1.bf16.msra.mxu0 %v838
    %2319 = vmatprep.subr.bf16.mxu0 %v841
    %2320 = vmatpush1.bf16.msra.mxu0 %v840
    %2321 = vmatprep.subr.bf16.mxu0 %v843
    %2322 = vmatpush1.bf16.msra.mxu0 %v842
    %2323 = vmatprep.subr.bf16.mxu0 %v845
    %2324 = vmatpush1.bf16.msra.mxu0 %v844
    %2325 = vmatprep.subr.bf16.mxu0 %v847
    %2326 = vmatpush1.bf16.msra.mxu0 %v846
    %2327 = vmatprep.subr.bf16.mxu0 %v849
    %2328 = vmatpush1.bf16.msra.mxu0 %v848
    %2329 = vmatprep.subr.bf16.mxu0 %v851
    %2330 = vmatpush1.bf16.msra.mxu0 %v850
    %2331 = vmatprep.subr.bf16.mxu0 %v853
    %2332 = vmatpush1.bf16.msra.mxu0 %v852
    %2333 = vmatprep.subr.bf16.mxu0 %v855
    %2334 = vmatpush1.bf16.msra.mxu0 %v854
    %2335 = vmatprep.subr.bf16.mxu0 %v857
    %2336 = vmatpush1.bf16.msra.mxu0 %v856
    %2337 = vmatprep.subr.bf16.mxu0 %v859
    %2338 = vmatpush1.bf16.msra.mxu0 %v858
    %2339 = vmatprep.subr.bf16.mxu0 %v861
    %2340 = vmatpush1.bf16.msra.mxu0 %v860
    %2341 = vmatprep.mubr.bf16.mxu0 %v2249
    %2342 = vmatmul.mubr.bf16.gmra.mrb[0].mxu0 %v2248
    %v2343 = vpop.f32.mrb[0].mxu0
    %v2344 = vadd.f32 %v2301, %v2343
    %v2345 = vpop.f32.mrb[0].mxu0
    %v2346 = vadd.f32 %v2303, %v2345
    %v2347 = vpop.f32.mrb[0].mxu0
    %v2348 = vadd.f32 %v2305, %v2347
    %v2349 = vpop.f32.mrb[0].mxu0
    %v2350 = vadd.f32 %v2307, %v2349
    %2351 = vdwg.mxu0
    %2352 = vmatprep.subr.bf16.mxu0 %v863
    %2353 = vmatpush1.bf16.msra.mxu0 %v862
    %2354 = vmatprep.subr.bf16.mxu0 %v865
    %2355 = vmatpush1.bf16.msra.mxu0 %v864
    %2356 = vmatprep.subr.bf16.mxu0 %v867
    %2357 = vmatpush1.bf16.msra.mxu0 %v866
    %2358 = vmatprep.subr.bf16.mxu0 %v869
    %2359 = vmatpush1.bf16.msra.mxu0 %v868
    %2360 = vmatprep.subr.bf16.mxu0 %v871
    %2361 = vmatpush1.bf16.msra.mxu0 %v870
    %2362 = vmatprep.subr.bf16.mxu0 %v873
    %2363 = vmatpush1.bf16.msra.mxu0 %v872
    %2364 = vmatprep.subr.bf16.mxu0 %v875
    %2365 = vmatpush1.bf16.msra.mxu0 %v874
    %2366 = vmatprep.subr.bf16.mxu0 %v877
    %2367 = vmatpush1.bf16.msra.mxu0 %v876
    %2368 = vmatprep.subr.bf16.mxu0 %v879
    %2369 = vmatpush1.bf16.msra.mxu0 %v878
    %2370 = vmatprep.subr.bf16.mxu0 %v881
    %2371 = vmatpush1.bf16.msra.mxu0 %v880
    %2372 = vmatprep.subr.bf16.mxu0 %v883
    %2373 = vmatpush1.bf16.msra.mxu0 %v882
    %2374 = vmatprep.subr.bf16.mxu0 %v885
    %2375 = vmatpush1.bf16.msra.mxu0 %v884
    %2376 = vmatprep.subr.bf16.mxu0 %v887
    %2377 = vmatpush1.bf16.msra.mxu0 %v886
    %2378 = vmatprep.subr.bf16.mxu0 %v889
    %2379 = vmatpush1.bf16.msra.mxu0 %v888
    %2380 = vmatprep.subr.bf16.mxu0 %v891
    %2381 = vmatpush1.bf16.msra.mxu0 %v890
    %2382 = vmatprep.subr.bf16.mxu0 %v893
    %2383 = vmatpush1.bf16.msra.mxu0 %v892
    %2384 = vmatprep.mubr.bf16.mxu0 %v2251
    %2385 = vmatmul.mubr.bf16.gmra.mrb[0].mxu0 %v2250
    %v2386 = vpop.f32.mrb[0].mxu0
    %v2387 = vadd.f32 %v2344, %v2386
    %v2388 = vpop.f32.mrb[0].mxu0
    %v2389 = vadd.f32 %v2346, %v2388
    %v2390 = vpop.f32.mrb[0].mxu0
    %v2391 = vadd.f32 %v2348, %v2390
    %v2392 = vpop.f32.mrb[0].mxu0
    %v2393 = vadd.f32 %v2350, %v2392
    %2394 = vdwg.mxu0
    %2395 = vmatprep.subr.bf16.mxu0 %v895
    %2396 = vmatpush1.bf16.msra.mxu0 %v894
    %2397 = vmatprep.subr.bf16.mxu0 %v897
    %2398 = vmatpush1.bf16.msra.mxu0 %v896
    %2399 = vmatprep.subr.bf16.mxu0 %v899
    %2400 = vmatpush1.bf16.msra.mxu0 %v898
    %2401 = vmatprep.subr.bf16.mxu0 %v901
    %2402 = vmatpush1.bf16.msra.mxu0 %v900
    %2403 = vmatprep.subr.bf16.mxu0 %v903
    %2404 = vmatpush1.bf16.msra.mxu0 %v902
    %2405 = vmatprep.subr.bf16.mxu0 %v905
    %2406 = vmatpush1.bf16.msra.mxu0 %v904
    %2407 = vmatprep.subr.bf16.mxu0 %v907
    %2408 = vmatpush1.bf16.msra.mxu0 %v906
    %2409 = vmatprep.subr.bf16.mxu0 %v909
    %2410 = vmatpush1.bf16.msra.mxu0 %v908
    %2411 = vmatprep.subr.bf16.mxu0 %v911
    %2412 = vmatpush1.bf16.msra.mxu0 %v910
    %2413 = vmatprep.subr.bf16.mxu0 %v913
    %2414 = vmatpush1.bf16.msra.mxu0 %v912
    %2415 = vmatprep.subr.bf16.mxu0 %v915
    %2416 = vmatpush1.bf16.msra.mxu0 %v914
    %2417 = vmatprep.subr.bf16.mxu0 %v917
    %2418 = vmatpush1.bf16.msra.mxu0 %v916
    %2419 = vmatprep.subr.bf16.mxu0 %v919
    %2420 = vmatpush1.bf16.msra.mxu0 %v918
    %2421 = vmatprep.subr.bf16.mxu0 %v921
    %2422 = vmatpush1.bf16.msra.mxu0 %v920
    %2423 = vmatprep.subr.bf16.mxu0 %v923
    %2424 = vmatpush1.bf16.msra.mxu0 %v922
    %2425 = vmatprep.subr.bf16.mxu0 %v925
    %2426 = vmatpush1.bf16.msra.mxu0 %v924
    %2427 = vmatprep.mubr.bf16.mxu0 %v2253
    %2428 = vmatmul.mubr.bf16.gmra.mrb[0].mxu0 %v2252
    %v2429 = vpop.f32.mrb[0].mxu0
    %v2430 = vadd.f32 %v2387, %v2429
    %v2431 = vpop.f32.mrb[0].mxu0
    %v2432 = vadd.f32 %v2389, %v2431
    %v2433 = vpop.f32.mrb[0].mxu0
    %v2434 = vadd.f32 %v2391, %v2433
    %v2435 = vpop.f32.mrb[0].mxu0
    %v2436 = vadd.f32 %v2393, %v2435
    %2437 = vdwg.mxu0
    %2438 = vmatprep.subr.bf16.mxu0 %v927
    %2439 = vmatpush1.bf16.msra.mxu0 %v926
    %2440 = vmatprep.subr.bf16.mxu0 %v929
    %2441 = vmatpush1.bf16.msra.mxu0 %v928
    %2442 = vmatprep.subr.bf16.mxu0 %v931
    %2443 = vmatpush1.bf16.msra.mxu0 %v930
    %2444 = vmatprep.subr.bf16.mxu0 %v933
    %2445 = vmatpush1.bf16.msra.mxu0 %v932
    %2446 = vmatprep.subr.bf16.mxu0 %v935
    %2447 = vmatpush1.bf16.msra.mxu0 %v934
    %2448 = vmatprep.subr.bf16.mxu0 %v937
    %2449 = vmatpush1.bf16.msra.mxu0 %v936
    %2450 = vmatprep.subr.bf16.mxu0 %v939
    %2451 = vmatpush1.bf16.msra.mxu0 %v938
    %2452 = vmatprep.subr.bf16.mxu0 %v941
    %2453 = vmatpush1.bf16.msra.mxu0 %v940
    %2454 = vmatprep.subr.bf16.mxu0 %v943
    %2455 = vmatpush1.bf16.msra.mxu0 %v942
    %2456 = vmatprep.subr.bf16.mxu0 %v945
    %2457 = vmatpush1.bf16.msra.mxu0 %v944
    %2458 = vmatprep.subr.bf16.mxu0 %v947
    %2459 = vmatpush1.bf16.msra.mxu0 %v946
    %2460 = vmatprep.subr.bf16.mxu0 %v949
    %2461 = vmatpush1.bf16.msra.mxu0 %v948
    %2462 = vmatprep.subr.bf16.mxu0 %v951
    %2463 = vmatpush1.bf16.msra.mxu0 %v950
    %2464 = vmatprep.subr.bf16.mxu0 %v953
    %2465 = vmatpush1.bf16.msra.mxu0 %v952
    %2466 = vmatprep.subr.bf16.mxu0 %v955
    %2467 = vmatpush1.bf16.msra.mxu0 %v954
    %2468 = vmatprep.subr.bf16.mxu0 %v957
    %2469 = vmatpush1.bf16.msra.mxu0 %v956
    %2470 = vmatprep.mubr.bf16.mxu0 %v2255
    %2471 = vmatmul.mubr.bf16.gmra.mrb[0].mxu0 %v2254
    %v2472 = vpop.f32.mrb[0].mxu0
    %v2473 = vadd.f32 %v2430, %v2472
    %v2474 = vpop.f32.mrb[0].mxu0
    %v2475 = vadd.f32 %v2432, %v2474
    %v2476 = vpop.f32.mrb[0].mxu0
    %v2477 = vadd.f32 %v2434, %v2476
    %v2478 = vpop.f32.mrb[0].mxu0
    %v2479 = vadd.f32 %v2436, %v2478
    %2480 = vdwg.mxu0
    %v2481 = vmul.f32 %v2473, 0.01
    %v2482 = vmul.f32 %v2475, 0.01
    %v2483 = vmul.f32 %v2477, 0.01
    %v2484 = vmul.f32 %v2479, 0.01
    %v2485 = vmax.f32 %v2473, %v2481
    %v2486 = vmax.f32 %v2475, %v2482
    %v2487 = vmax.f32 %v2477, %v2483
    %v2488 = vmax.f32 %v2479, %v2484
    %v2489 = vpack.c.bf16 %v2487, %v2485
    %v2490 = vpack.c.bf16 %v2488, %v2486
    %2491 = vst [vmem:[#allocation2 + $0x40] sm:$0xff] %v2489
    %2492 = vst [vmem:[#allocation2 + $0x48] sm:$0xff] %v2490
    %v2493 = vld [vmem:[%s0 + $0x64] sm:$0xff]
    %v2494 = vld [vmem:[%s0 + $0x6c] sm:$0xff]
    %v2495 = vld [vmem:[%s0 + $0x74] sm:$0xff]
    %v2496 = vld [vmem:[%s0 + $0x7c] sm:$0xff]
    %v2497 = vld [vmem:[%s0 + $0x84] sm:$0xff]
    %v2498 = vld [vmem:[%s0 + $0x118] sm:$0xff]
    %v2499 = vld [vmem:[%s0 + $0x120] sm:$0xff]
    %v2500 = vld [vmem:[%s0 + $0x128] sm:$0xff]
    %v2501 = vld [vmem:[%s0 + $0x130] sm:$0xff]
    %v2502 = vld [vmem:[%s0 + $0x138] sm:$0xff]
    %v2513 = vunpack.c.l.b16 %v2493
    %v2514 = vunpack.c.h.b16 %v2493
    %v2515 = vunpack.c.l.b16 %v2494
    %v2516 = vunpack.c.h.b16 %v2494
    %v2517 = vunpack.c.l.b16 %v2495
    %v2518 = vunpack.c.h.b16 %v2495
    %v2519 = vunpack.c.l.b16 %v2496
    %v2520 = vunpack.c.h.b16 %v2496
    %v2521 = vunpack.c.l.b16 %v2497
    %v2522 = vunpack.c.h.b16 %v2497
    %v2523 = vunpack.c.l.b16 %v2498
    %v2524 = vunpack.c.h.b16 %v2498
    %v2525 = vunpack.c.l.b16 %v2499
    %v2526 = vunpack.c.h.b16 %v2499
    %v2527 = vunpack.c.l.b16 %v2500
    %v2528 = vunpack.c.h.b16 %v2500
    %v2529 = vunpack.c.l.b16 %v2501
    %v2530 = vunpack.c.h.b16 %v2501
    %v2531 = vunpack.c.l.b16 %v2502
    %v2532 = vunpack.c.h.b16 %v2502
    %v2533 = vpack.c.b16 %v2523, %v2513
    %v2534 = vpack.c.b16 %v2524, %v2514
    %v2535 = vpack.c.b16 %v2525, %v2515
    %v2536 = vpack.c.b16 %v2526, %v2516
    %v2537 = vpack.c.b16 %v2527, %v2517
    %v2538 = vpack.c.b16 %v2528, %v2518
    %v2539 = vpack.c.b16 %v2529, %v2519
    %v2540 = vpack.c.b16 %v2530, %v2520
    %v2541 = vpack.c.b16 %v2531, %v2521
    %v2542 = vpack.c.b16 %v2532, %v2522
    %2553 = vmatprep.subr.bf16.mxu0 %v799
    %2554 = vmatpush1.bf16.msra.mxu0 %v798
    %2555 = vmatprep.subr.bf16.mxu0 %v801
    %2556 = vmatpush1.bf16.msra.mxu0 %v800
    %2557 = vmatprep.subr.bf16.mxu0 %v803
    %2558 = vmatpush1.bf16.msra.mxu0 %v802
    %2559 = vmatprep.subr.bf16.mxu0 %v805
    %2560 = vmatpush1.bf16.msra.mxu0 %v804
    %2561 = vmatprep.subr.bf16.mxu0 %v807
    %2562 = vmatpush1.bf16.msra.mxu0 %v806
    %2563 = vmatprep.subr.bf16.mxu0 %v809
    %2564 = vmatpush1.bf16.msra.mxu0 %v808
    %2565 = vmatprep.subr.bf16.mxu0 %v811
    %2566 = vmatpush1.bf16.msra.mxu0 %v810
    %2567 = vmatprep.subr.bf16.mxu0 %v813
    %2568 = vmatpush1.bf16.msra.mxu0 %v812
    %2569 = vmatprep.subr.bf16.mxu0 %v815
    %2570 = vmatpush1.bf16.msra.mxu0 %v814
    %2571 = vmatprep.subr.bf16.mxu0 %v817
    %2572 = vmatpush1.bf16.msra.mxu0 %v816
    %2573 = vmatprep.subr.bf16.mxu0 %v819
    %2574 = vmatpush1.bf16.msra.mxu0 %v818
    %2575 = vmatprep.subr.bf16.mxu0 %v821
    %2576 = vmatpush1.bf16.msra.mxu0 %v820
    %2577 = vmatprep.subr.bf16.mxu0 %v823
    %2578 = vmatpush1.bf16.msra.mxu0 %v822
    %2579 = vmatprep.subr.bf16.mxu0 %v825
    %2580 = vmatpush1.bf16.msra.mxu0 %v824
    %2581 = vmatprep.subr.bf16.mxu0 %v827
    %2582 = vmatpush1.bf16.msra.mxu0 %v826
    %2583 = vmatprep.subr.bf16.mxu0 %v829
    %2584 = vmatpush1.bf16.msra.mxu0 %v828
    %2585 = vmatprep.mubr.bf16.mxu0 %v2534
    %2586 = vmatmul.mubr.bf16.gmra.mrb[0].mxu0 %v2533
    %v2587 = vpop.f32.mrb[0].mxu0
    %v2588 = vadd.f32 %v251, %v2587
    %v2589 = vpop.f32.mrb[0].mxu0
    %v2590 = vadd.f32 %v255, %v2589
    %v2591 = vpop.f32.mrb[0].mxu0
    %v2592 = vadd.f32 %v251, %v2591
    %v2593 = vpop.f32.mrb[0].mxu0
    %v2594 = vadd.f32 %v255, %v2593
    %2595 = vdwg.mxu0
    %2596 = vmatprep.subr.bf16.mxu0 %v831
    %2597 = vmatpush1.bf16.msra.mxu0 %v830
    %2598 = vmatprep.subr.bf16.mxu0 %v833
    %2599 = vmatpush1.bf16.msra.mxu0 %v832
    %2600 = vmatprep.subr.bf16.mxu0 %v835
    %2601 = vmatpush1.bf16.msra.mxu0 %v834
    %2602 = vmatprep.subr.bf16.mxu0 %v837
    %2603 = vmatpush1.bf16.msra.mxu0 %v836
    %2604 = vmatprep.subr.bf16.mxu0 %v839
    %2605 = vmatpush1.bf16.msra.mxu0 %v838
    %2606 = vmatprep.subr.bf16.mxu0 %v841
    %2607 = vmatpush1.bf16.msra.mxu0 %v840
    %2608 = vmatprep.subr.bf16.mxu0 %v843
    %2609 = vmatpush1.bf16.msra.mxu0 %v842
    %2610 = vmatprep.subr.bf16.mxu0 %v845
    %2611 = vmatpush1.bf16.msra.mxu0 %v844
    %2612 = vmatprep.subr.bf16.mxu0 %v847
    %2613 = vmatpush1.bf16.msra.mxu0 %v846
    %2614 = vmatprep.subr.bf16.mxu0 %v849
    %2615 = vmatpush1.bf16.msra.mxu0 %v848
    %2616 = vmatprep.subr.bf16.mxu0 %v851
    %2617 = vmatpush1.bf16.msra.mxu0 %v850
    %2618 = vmatprep.subr.bf16.mxu0 %v853
    %2619 = vmatpush1.bf16.msra.mxu0 %v852
    %2620 = vmatprep.subr.bf16.mxu0 %v855
    %2621 = vmatpush1.bf16.msra.mxu0 %v854
    %2622 = vmatprep.subr.bf16.mxu0 %v857
    %2623 = vmatpush1.bf16.msra.mxu0 %v856
    %2624 = vmatprep.subr.bf16.mxu0 %v859
    %2625 = vmatpush1.bf16.msra.mxu0 %v858
    %2626 = vmatprep.subr.bf16.mxu0 %v861
    %2627 = vmatpush1.bf16.msra.mxu0 %v860
    %2628 = vmatprep.mubr.bf16.mxu0 %v2536
    %2629 = vmatmul.mubr.bf16.gmra.mrb[0].mxu0 %v2535
    %v2630 = vpop.f32.mrb[0].mxu0
    %v2631 = vadd.f32 %v2588, %v2630
    %v2632 = vpop.f32.mrb[0].mxu0
    %v2633 = vadd.f32 %v2590, %v2632
    %v2634 = vpop.f32.mrb[0].mxu0
    %v2635 = vadd.f32 %v2592, %v2634
    %v2636 = vpop.f32.mrb[0].mxu0
    %v2637 = vadd.f32 %v2594, %v2636
    %2638 = vdwg.mxu0
    %2639 = vmatprep.subr.bf16.mxu0 %v863
    %2640 = vmatpush1.bf16.msra.mxu0 %v862
    %2641 = vmatprep.subr.bf16.mxu0 %v865
    %2642 = vmatpush1.bf16.msra.mxu0 %v864
    %2643 = vmatprep.subr.bf16.mxu0 %v867
    %2644 = vmatpush1.bf16.msra.mxu0 %v866
    %2645 = vmatprep.subr.bf16.mxu0 %v869
    %2646 = vmatpush1.bf16.msra.mxu0 %v868
    %2647 = vmatprep.subr.bf16.mxu0 %v871
    %2648 = vmatpush1.bf16.msra.mxu0 %v870
    %2649 = vmatprep.subr.bf16.mxu0 %v873
    %2650 = vmatpush1.bf16.msra.mxu0 %v872
    %2651 = vmatprep.subr.bf16.mxu0 %v875
    %2652 = vmatpush1.bf16.msra.mxu0 %v874
    %2653 = vmatprep.subr.bf16.mxu0 %v877
    %2654 = vmatpush1.bf16.msra.mxu0 %v876
    %2655 = vmatprep.subr.bf16.mxu0 %v879
    %2656 = vmatpush1.bf16.msra.mxu0 %v878
    %2657 = vmatprep.subr.bf16.mxu0 %v881
    %2658 = vmatpush1.bf16.msra.mxu0 %v880
    %2659 = vmatprep.subr.bf16.mxu0 %v883
    %2660 = vmatpush1.bf16.msra.mxu0 %v882
    %2661 = vmatprep.subr.bf16.mxu0 %v885
    %2662 = vmatpush1.bf16.msra.mxu0 %v884
    %2663 = vmatprep.subr.bf16.mxu0 %v887
    %2664 = vmatpush1.bf16.msra.mxu0 %v886
    %2665 = vmatprep.subr.bf16.mxu0 %v889
    %2666 = vmatpush1.bf16.msra.mxu0 %v888
    %2667 = vmatprep.subr.bf16.mxu0 %v891
    %2668 = vmatpush1.bf16.msra.mxu0 %v890
    %2669 = vmatprep.subr.bf16.mxu0 %v893
    %2670 = vmatpush1.bf16.msra.mxu0 %v892
    %2671 = vmatprep.mubr.bf16.mxu0 %v2538
    %2672 = vmatmul.mubr.bf16.gmra.mrb[0].mxu0 %v2537
    %v2673 = vpop.f32.mrb[0].mxu0
    %v2674 = vadd.f32 %v2631, %v2673
    %v2675 = vpop.f32.mrb[0].mxu0
    %v2676 = vadd.f32 %v2633, %v2675
    %v2677 = vpop.f32.mrb[0].mxu0
    %v2678 = vadd.f32 %v2635, %v2677
    %v2679 = vpop.f32.mrb[0].mxu0
    %v2680 = vadd.f32 %v2637, %v2679
    %2681 = vdwg.mxu0
    %2682 = vmatprep.subr.bf16.mxu0 %v895
    %2683 = vmatpush1.bf16.msra.mxu0 %v894
    %2684 = vmatprep.subr.bf16.mxu0 %v897
    %2685 = vmatpush1.bf16.msra.mxu0 %v896
    %2686 = vmatprep.subr.bf16.mxu0 %v899
    %2687 = vmatpush1.bf16.msra.mxu0 %v898
    %2688 = vmatprep.subr.bf16.mxu0 %v901
    %2689 = vmatpush1.bf16.msra.mxu0 %v900
    %2690 = vmatprep.subr.bf16.mxu0 %v903
    %2691 = vmatpush1.bf16.msra.mxu0 %v902
    %2692 = vmatprep.subr.bf16.mxu0 %v905
    %2693 = vmatpush1.bf16.msra.mxu0 %v904
    %2694 = vmatprep.subr.bf16.mxu0 %v907
    %2695 = vmatpush1.bf16.msra.mxu0 %v906
    %2696 = vmatprep.subr.bf16.mxu0 %v909
    %2697 = vmatpush1.bf16.msra.mxu0 %v908
    %2698 = vmatprep.subr.bf16.mxu0 %v911
    %2699 = vmatpush1.bf16.msra.mxu0 %v910
    %2700 = vmatprep.subr.bf16.mxu0 %v913
    %2701 = vmatpush1.bf16.msra.mxu0 %v912
    %2702 = vmatprep.subr.bf16.mxu0 %v915
    %2703 = vmatpush1.bf16.msra.mxu0 %v914
    %2704 = vmatprep.subr.bf16.mxu0 %v917
    %2705 = vmatpush1.bf16.msra.mxu0 %v916
    %2706 = vmatprep.subr.bf16.mxu0 %v919
    %2707 = vmatpush1.bf16.msra.mxu0 %v918
    %2708 = vmatprep.subr.bf16.mxu0 %v921
    %2709 = vmatpush1.bf16.msra.mxu0 %v920
    %2710 = vmatprep.subr.bf16.mxu0 %v923
    %2711 = vmatpush1.bf16.msra.mxu0 %v922
    %2712 = vmatprep.subr.bf16.mxu0 %v925
    %2713 = vmatpush1.bf16.msra.mxu0 %v924
    %2714 = vmatprep.mubr.bf16.mxu0 %v2540
    %2715 = vmatmul.mubr.bf16.gmra.mrb[0].mxu0 %v2539
    %v2716 = vpop.f32.mrb[0].mxu0
    %v2717 = vadd.f32 %v2674, %v2716
    %v2718 = vpop.f32.mrb[0].mxu0
    %v2719 = vadd.f32 %v2676, %v2718
    %v2720 = vpop.f32.mrb[0].mxu0
    %v2721 = vadd.f32 %v2678, %v2720
    %v2722 = vpop.f32.mrb[0].mxu0
    %v2723 = vadd.f32 %v2680, %v2722
    %2724 = vdwg.mxu0
    %2725 = vmatprep.subr.bf16.mxu0 %v927
    %2726 = vmatpush1.bf16.msra.mxu0 %v926
    %2727 = vmatprep.subr.bf16.mxu0 %v929
    %2728 = vmatpush1.bf16.msra.mxu0 %v928
    %2729 = vmatprep.subr.bf16.mxu0 %v931
    %2730 = vmatpush1.bf16.msra.mxu0 %v930
    %2731 = vmatprep.subr.bf16.mxu0 %v933
    %2732 = vmatpush1.bf16.msra.mxu0 %v932
    %2733 = vmatprep.subr.bf16.mxu0 %v935
    %2734 = vmatpush1.bf16.msra.mxu0 %v934
    %2735 = vmatprep.subr.bf16.mxu0 %v937
    %2736 = vmatpush1.bf16.msra.mxu0 %v936
    %2737 = vmatprep.subr.bf16.mxu0 %v939
    %2738 = vmatpush1.bf16.msra.mxu0 %v938
    %2739 = vmatprep.subr.bf16.mxu0 %v941
    %2740 = vmatpush1.bf16.msra.mxu0 %v940
    %2741 = vmatprep.subr.bf16.mxu0 %v943
    %2742 = vmatpush1.bf16.msra.mxu0 %v942
    %2743 = vmatprep.subr.bf16.mxu0 %v945
    %2744 = vmatpush1.bf16.msra.mxu0 %v944
    %2745 = vmatprep.subr.bf16.mxu0 %v947
    %2746 = vmatpush1.bf16.msra.mxu0 %v946
    %2747 = vmatprep.subr.bf16.mxu0 %v949
    %2748 = vmatpush1.bf16.msra.mxu0 %v948
    %2749 = vmatprep.subr.bf16.mxu0 %v951
    %2750 = vmatpush1.bf16.msra.mxu0 %v950
    %2751 = vmatprep.subr.bf16.mxu0 %v953
    %2752 = vmatpush1.bf16.msra.mxu0 %v952
    %2753 = vmatprep.subr.bf16.mxu0 %v955
    %2754 = vmatpush1.bf16.msra.mxu0 %v954
    %2755 = vmatprep.subr.bf16.mxu0 %v957
    %2756 = vmatpush1.bf16.msra.mxu0 %v956
    %2757 = vmatprep.mubr.bf16.mxu0 %v2542
    %2758 = vmatmul.mubr.bf16.gmra.mrb[0].mxu0 %v2541
    %v2759 = vpop.f32.mrb[0].mxu0
    %v2760 = vadd.f32 %v2717, %v2759
    %v2761 = vpop.f32.mrb[0].mxu0
    %v2762 = vadd.f32 %v2719, %v2761
    %v2763 = vpop.f32.mrb[0].mxu0
    %v2764 = vadd.f32 %v2721, %v2763
    %v2765 = vpop.f32.mrb[0].mxu0
    %v2766 = vadd.f32 %v2723, %v2765
    %2767 = vdwg.mxu0
    %v2768 = vmul.f32 %v2760, 0.01
    %v2769 = vmul.f32 %v2762, 0.01
    %v2770 = vmul.f32 %v2764, 0.01
    %v2771 = vmul.f32 %v2766, 0.01
    %v2772 = vmax.f32 %v2760, %v2768
    %v2773 = vmax.f32 %v2762, %v2769
    %v2774 = vmax.f32 %v2764, %v2770
    %v2775 = vmax.f32 %v2766, %v2771
    %v2776 = vpack.c.bf16 %v2774, %v2772
    %v2777 = vpack.c.bf16 %v2775, %v2773
    %2778 = vst [vmem:[#allocation2 + $0x50] sm:$0xff] %v2776
    %2779 = vst [vmem:[#allocation2 + $0x58] sm:$0xff] %v2777
    %v2780 = vld [vmem:[%s0 + $0x78] sm:$0xff]
    %v2781 = vld [vmem:[%s0 + $0x80] sm:$0xff]
    %v2782 = vld [vmem:[%s0 + $0x88] sm:$0xff]
    %v2783 = vld [vmem:[%s0 + $0x90] sm:$0xff]
    %v2784 = vld [vmem:[%s0 + $0x98] sm:$0xff]
    %v2785 = vld [vmem:[%s0 + $0x12c] sm:$0xff]
    %v2786 = vld [vmem:[%s0 + $0x134] sm:$0xff]
    %v2787 = vld [vmem:[%s0 + $0x13c] sm:$0xff]
    %v2788 = vld [vmem:[%s0 + $0x144] sm:$0xff]
    %v2789 = vld [vmem:[%s0 + $0x14c] sm:$0xff]
    %v2800 = vunpack.c.l.b16 %v2780
    %v2801 = vunpack.c.h.b16 %v2780
    %v2802 = vunpack.c.l.b16 %v2781
    %v2803 = vunpack.c.h.b16 %v2781
    %v2804 = vunpack.c.l.b16 %v2782
    %v2805 = vunpack.c.h.b16 %v2782
    %v2806 = vunpack.c.l.b16 %v2783
    %v2807 = vunpack.c.h.b16 %v2783
    %v2808 = vunpack.c.l.b16 %v2784
    %v2809 = vunpack.c.h.b16 %v2784
    %v2810 = vunpack.c.l.b16 %v2785
    %v2811 = vunpack.c.h.b16 %v2785
    %v2812 = vunpack.c.l.b16 %v2786
    %v2813 = vunpack.c.h.b16 %v2786
    %v2814 = vunpack.c.l.b16 %v2787
    %v2815 = vunpack.c.h.b16 %v2787
    %v2816 = vunpack.c.l.b16 %v2788
    %v2817 = vunpack.c.h.b16 %v2788
    %v2818 = vunpack.c.l.b16 %v2789
    %v2819 = vunpack.c.h.b16 %v2789
    %v2820 = vpack.c.b16 %v2810, %v2800
    %v2821 = vpack.c.b16 %v2811, %v2801
    %v2822 = vpack.c.b16 %v2812, %v2802
    %v2823 = vpack.c.b16 %v2813, %v2803
    %v2824 = vpack.c.b16 %v2814, %v2804
    %v2825 = vpack.c.b16 %v2815, %v2805
    %v2826 = vpack.c.b16 %v2816, %v2806
    %v2827 = vpack.c.b16 %v2817, %v2807
    %v2828 = vpack.c.b16 %v2818, %v2808
    %v2829 = vpack.c.b16 %v2819, %v2809
    %2840 = vmatprep.subr.bf16.mxu0 %v799
    %2841 = vmatpush1.bf16.msra.mxu0 %v798
    %2842 = vmatprep.subr.bf16.mxu0 %v801
    %2843 = vmatpush1.bf16.msra.mxu0 %v800
    %2844 = vmatprep.subr.bf16.mxu0 %v803
    %2845 = vmatpush1.bf16.msra.mxu0 %v802
    %2846 = vmatprep.subr.bf16.mxu0 %v805
    %2847 = vmatpush1.bf16.msra.mxu0 %v804
    %2848 = vmatprep.subr.bf16.mxu0 %v807
    %2849 = vmatpush1.bf16.msra.mxu0 %v806
    %2850 = vmatprep.subr.bf16.mxu0 %v809
    %2851 = vmatpush1.bf16.msra.mxu0 %v808
    %2852 = vmatprep.subr.bf16.mxu0 %v811
    %2853 = vmatpush1.bf16.msra.mxu0 %v810
    %2854 = vmatprep.subr.bf16.mxu0 %v813
    %2855 = vmatpush1.bf16.msra.mxu0 %v812
    %2856 = vmatprep.subr.bf16.mxu0 %v815
    %2857 = vmatpush1.bf16.msra.mxu0 %v814
    %2858 = vmatprep.subr.bf16.mxu0 %v817
    %2859 = vmatpush1.bf16.msra.mxu0 %v816
    %2860 = vmatprep.subr.bf16.mxu0 %v819
    %2861 = vmatpush1.bf16.msra.mxu0 %v818
    %2862 = vmatprep.subr.bf16.mxu0 %v821
    %2863 = vmatpush1.bf16.msra.mxu0 %v820
    %2864 = vmatprep.subr.bf16.mxu0 %v823
    %2865 = vmatpush1.bf16.msra.mxu0 %v822
    %2866 = vmatprep.subr.bf16.mxu0 %v825
    %2867 = vmatpush1.bf16.msra.mxu0 %v824
    %2868 = vmatprep.subr.bf16.mxu0 %v827
    %2869 = vmatpush1.bf16.msra.mxu0 %v826
    %2870 = vmatprep.subr.bf16.mxu0 %v829
    %2871 = vmatpush1.bf16.msra.mxu0 %v828
    %2872 = vmatprep.mubr.bf16.mxu0 %v2821
    %2873 = vmatmul.mubr.bf16.gmra.mrb[0].mxu0 %v2820
    %v2874 = vpop.f32.mrb[0].mxu0
    %v2875 = vadd.f32 %v251, %v2874
    %v2876 = vpop.f32.mrb[0].mxu0
    %v2877 = vadd.f32 %v255, %v2876
    %v2878 = vpop.f32.mrb[0].mxu0
    %v2879 = vadd.f32 %v251, %v2878
    %v2880 = vpop.f32.mrb[0].mxu0
    %v2881 = vadd.f32 %v255, %v2880
    %2882 = vdwg.mxu0
    %2883 = vmatprep.subr.bf16.mxu0 %v831
    %2884 = vmatpush1.bf16.msra.mxu0 %v830
    %2885 = vmatprep.subr.bf16.mxu0 %v833
    %2886 = vmatpush1.bf16.msra.mxu0 %v832
    %2887 = vmatprep.subr.bf16.mxu0 %v835
    %2888 = vmatpush1.bf16.msra.mxu0 %v834
    %2889 = vmatprep.subr.bf16.mxu0 %v837
    %2890 = vmatpush1.bf16.msra.mxu0 %v836
    %2891 = vmatprep.subr.bf16.mxu0 %v839
    %2892 = vmatpush1.bf16.msra.mxu0 %v838
    %2893 = vmatprep.subr.bf16.mxu0 %v841
    %2894 = vmatpush1.bf16.msra.mxu0 %v840
    %2895 = vmatprep.subr.bf16.mxu0 %v843
    %2896 = vmatpush1.bf16.msra.mxu0 %v842
    %2897 = vmatprep.subr.bf16.mxu0 %v845
    %2898 = vmatpush1.bf16.msra.mxu0 %v844
    %2899 = vmatprep.subr.bf16.mxu0 %v847
    %2900 = vmatpush1.bf16.msra.mxu0 %v846
    %2901 = vmatprep.subr.bf16.mxu0 %v849
    %2902 = vmatpush1.bf16.msra.mxu0 %v848
    %2903 = vmatprep.subr.bf16.mxu0 %v851
    %2904 = vmatpush1.bf16.msra.mxu0 %v850
    %2905 = vmatprep.subr.bf16.mxu0 %v853
    %2906 = vmatpush1.bf16.msra.mxu0 %v852
    %2907 = vmatprep.subr.bf16.mxu0 %v855
    %2908 = vmatpush1.bf16.msra.mxu0 %v854
    %2909 = vmatprep.subr.bf16.mxu0 %v857
    %2910 = vmatpush1.bf16.msra.mxu0 %v856
    %2911 = vmatprep.subr.bf16.mxu0 %v859
    %2912 = vmatpush1.bf16.msra.mxu0 %v858
    %2913 = vmatprep.subr.bf16.mxu0 %v861
    %2914 = vmatpush1.bf16.msra.mxu0 %v860
    %2915 = vmatprep.mubr.bf16.mxu0 %v2823
    %2916 = vmatmul.mubr.bf16.gmra.mrb[0].mxu0 %v2822
    %v2917 = vpop.f32.mrb[0].mxu0
    %v2918 = vadd.f32 %v2875, %v2917
    %v2919 = vpop.f32.mrb[0].mxu0
    %v2920 = vadd.f32 %v2877, %v2919
    %v2921 = vpop.f32.mrb[0].mxu0
    %v2922 = vadd.f32 %v2879, %v2921
    %v2923 = vpop.f32.mrb[0].mxu0
    %v2924 = vadd.f32 %v2881, %v2923
    %2925 = vdwg.mxu0
    %2926 = vmatprep.subr.bf16.mxu0 %v863
    %2927 = vmatpush1.bf16.msra.mxu0 %v862
    %2928 = vmatprep.subr.bf16.mxu0 %v865
    %2929 = vmatpush1.bf16.msra.mxu0 %v864
    %2930 = vmatprep.subr.bf16.mxu0 %v867
    %2931 = vmatpush1.bf16.msra.mxu0 %v866
    %2932 = vmatprep.subr.bf16.mxu0 %v869
    %2933 = vmatpush1.bf16.msra.mxu0 %v868
    %2934 = vmatprep.subr.bf16.mxu0 %v871
    %2935 = vmatpush1.bf16.msra.mxu0 %v870
    %2936 = vmatprep.subr.bf16.mxu0 %v873
    %2937 = vmatpush1.bf16.msra.mxu0 %v872
    %2938 = vmatprep.subr.bf16.mxu0 %v875
    %2939 = vmatpush1.bf16.msra.mxu0 %v874
    %2940 = vmatprep.subr.bf16.mxu0 %v877
    %2941 = vmatpush1.bf16.msra.mxu0 %v876
    %2942 = vmatprep.subr.bf16.mxu0 %v879
    %2943 = vmatpush1.bf16.msra.mxu0 %v878
    %2944 = vmatprep.subr.bf16.mxu0 %v881
    %2945 = vmatpush1.bf16.msra.mxu0 %v880
    %2946 = vmatprep.subr.bf16.mxu0 %v883
    %2947 = vmatpush1.bf16.msra.mxu0 %v882
    %2948 = vmatprep.subr.bf16.mxu0 %v885
    %2949 = vmatpush1.bf16.msra.mxu0 %v884
    %2950 = vmatprep.subr.bf16.mxu0 %v887
    %2951 = vmatpush1.bf16.msra.mxu0 %v886
    %2952 = vmatprep.subr.bf16.mxu0 %v889
    %2953 = vmatpush1.bf16.msra.mxu0 %v888
    %2954 = vmatprep.subr.bf16.mxu0 %v891
    %2955 = vmatpush1.bf16.msra.mxu0 %v890
    %2956 = vmatprep.subr.bf16.mxu0 %v893
    %2957 = vmatpush1.bf16.msra.mxu0 %v892
    %2958 = vmatprep.mubr.bf16.mxu0 %v2825
    %2959 = vmatmul.mubr.bf16.gmra.mrb[0].mxu0 %v2824
    %v2960 = vpop.f32.mrb[0].mxu0
    %v2961 = vadd.f32 %v2918, %v2960
    %v2962 = vpop.f32.mrb[0].mxu0
    %v2963 = vadd.f32 %v2920, %v2962
    %v2964 = vpop.f32.mrb[0].mxu0
    %v2965 = vadd.f32 %v2922, %v2964
    %v2966 = vpop.f32.mrb[0].mxu0
    %v2967 = vadd.f32 %v2924, %v2966
    %2968 = vdwg.mxu0
    %2969 = vmatprep.subr.bf16.mxu0 %v895
    %2970 = vmatpush1.bf16.msra.mxu0 %v894
    %2971 = vmatprep.subr.bf16.mxu0 %v897
    %2972 = vmatpush1.bf16.msra.mxu0 %v896
    %2973 = vmatprep.subr.bf16.mxu0 %v899
    %2974 = vmatpush1.bf16.msra.mxu0 %v898
    %2975 = vmatprep.subr.bf16.mxu0 %v901
    %2976 = vmatpush1.bf16.msra.mxu0 %v900
    %2977 = vmatprep.subr.bf16.mxu0 %v903
    %2978 = vmatpush1.bf16.msra.mxu0 %v902
    %2979 = vmatprep.subr.bf16.mxu0 %v905
    %2980 = vmatpush1.bf16.msra.mxu0 %v904
    %2981 = vmatprep.subr.bf16.mxu0 %v907
    %2982 = vmatpush1.bf16.msra.mxu0 %v906
    %2983 = vmatprep.subr.bf16.mxu0 %v909
    %2984 = vmatpush1.bf16.msra.mxu0 %v908
    %2985 = vmatprep.subr.bf16.mxu0 %v911
    %2986 = vmatpush1.bf16.msra.mxu0 %v910
    %2987 = vmatprep.subr.bf16.mxu0 %v913
    %2988 = vmatpush1.bf16.msra.mxu0 %v912
    %2989 = vmatprep.subr.bf16.mxu0 %v915
    %2990 = vmatpush1.bf16.msra.mxu0 %v914
    %2991 = vmatprep.subr.bf16.mxu0 %v917
    %2992 = vmatpush1.bf16.msra.mxu0 %v916
    %2993 = vmatprep.subr.bf16.mxu0 %v919
    %2994 = vmatpush1.bf16.msra.mxu0 %v918
    %2995 = vmatprep.subr.bf16.mxu0 %v921
    %2996 = vmatpush1.bf16.msra.mxu0 %v920
    %2997 = vmatprep.subr.bf16.mxu0 %v923
    %2998 = vmatpush1.bf16.msra.mxu0 %v922
    %2999 = vmatprep.subr.bf16.mxu0 %v925
    %3000 = vmatpush1.bf16.msra.mxu0 %v924
    %3001 = vmatprep.mubr.bf16.mxu0 %v2827
    %3002 = vmatmul.mubr.bf16.gmra.mrb[0].mxu0 %v2826
    %v3003 = vpop.f32.mrb[0].mxu0
    %v3004 = vadd.f32 %v2961, %v3003
    %v3005 = vpop.f32.mrb[0].mxu0
    %v3006 = vadd.f32 %v2963, %v3005
    %v3007 = vpop.f32.mrb[0].mxu0
    %v3008 = vadd.f32 %v2965, %v3007
    %v3009 = vpop.f32.mrb[0].mxu0
    %v3010 = vadd.f32 %v2967, %v3009
    %3011 = vdwg.mxu0
    %3012 = vmatprep.subr.bf16.mxu0 %v927
    %3013 = vmatpush1.bf16.msra.mxu0 %v926
    %3014 = vmatprep.subr.bf16.mxu0 %v929
    %3015 = vmatpush1.bf16.msra.mxu0 %v928
    %3016 = vmatprep.subr.bf16.mxu0 %v931
    %3017 = vmatpush1.bf16.msra.mxu0 %v930
    %3018 = vmatprep.subr.bf16.mxu0 %v933
    %3019 = vmatpush1.bf16.msra.mxu0 %v932
    %3020 = vmatprep.subr.bf16.mxu0 %v935
    %3021 = vmatpush1.bf16.msra.mxu0 %v934
    %3022 = vmatprep.subr.bf16.mxu0 %v937
    %3023 = vmatpush1.bf16.msra.mxu0 %v936
    %3024 = vmatprep.subr.bf16.mxu0 %v939
    %3025 = vmatpush1.bf16.msra.mxu0 %v938
    %3026 = vmatprep.subr.bf16.mxu0 %v941
    %3027 = vmatpush1.bf16.msra.mxu0 %v940
    %3028 = vmatprep.subr.bf16.mxu0 %v943
    %3029 = vmatpush1.bf16.msra.mxu0 %v942
    %3030 = vmatprep.subr.bf16.mxu0 %v945
    %3031 = vmatpush1.bf16.msra.mxu0 %v944
    %3032 = vmatprep.subr.bf16.mxu0 %v947
    %3033 = vmatpush1.bf16.msra.mxu0 %v946
    %3034 = vmatprep.subr.bf16.mxu0 %v949
    %3035 = vmatpush1.bf16.msra.mxu0 %v948
    %3036 = vmatprep.subr.bf16.mxu0 %v951
    %3037 = vmatpush1.bf16.msra.mxu0 %v950
    %3038 = vmatprep.subr.bf16.mxu0 %v953
    %3039 = vmatpush1.bf16.msra.mxu0 %v952
    %3040 = vmatprep.subr.bf16.mxu0 %v955
    %3041 = vmatpush1.bf16.msra.mxu0 %v954
    %3042 = vmatprep.subr.bf16.mxu0 %v957
    %3043 = vmatpush1.bf16.msra.mxu0 %v956
    %3044 = vmatprep.mubr.bf16.mxu0 %v2829
    %3045 = vmatmul.mubr.bf16.gmra.mrb[0].mxu0 %v2828
    %v3046 = vpop.f32.mrb[0].mxu0
    %v3047 = vadd.f32 %v3004, %v3046
    %v3048 = vpop.f32.mrb[0].mxu0
    %v3049 = vadd.f32 %v3006, %v3048
    %v3050 = vpop.f32.mrb[0].mxu0
    %v3051 = vadd.f32 %v3008, %v3050
    %v3052 = vpop.f32.mrb[0].mxu0
    %v3053 = vadd.f32 %v3010, %v3052
    %3054 = vdwg.mxu0
    %v3055 = vmul.f32 %v3047, 0.01
    %v3056 = vmul.f32 %v3049, 0.01
    %v3057 = vmul.f32 %v3051, 0.01
    %v3058 = vmul.f32 %v3053, 0.01
    %v3059 = vmax.f32 %v3047, %v3055
    %v3060 = vmax.f32 %v3049, %v3056
    %v3061 = vmax.f32 %v3051, %v3057
    %v3062 = vmax.f32 %v3053, %v3058
    %v3063 = vpack.c.bf16 %v3061, %v3059
    %v3064 = vpack.c.bf16 %v3062, %v3060
    %3065 = vst [vmem:[#allocation2 + $0x60] sm:$0xff] %v3063
    %3066 = vst [vmem:[#allocation2 + $0x68] sm:$0xff] %v3064
    %v3067 = vld [vmem:[%s0 + $0x8c] sm:$0xff]
    %v3068 = vld [vmem:[%s0 + $0x94] sm:$0xff]
    %v3069 = vld [vmem:[%s0 + $0x9c] sm:$0xff]
    %v3070 = vld [vmem:[%s0 + $0xa4] sm:$0xff]
    %v3071 = vld [vmem:[%s0 + $0xac] sm:$0xff]
    %v3072 = vld [vmem:[%s0 + $0x140] sm:$0xff]
    %v3073 = vld [vmem:[%s0 + $0x148] sm:$0xff]
    %v3074 = vld [vmem:[%s0 + $0x150] sm:$0xff]
    %v3075 = vld [vmem:[%s0 + $0x158] sm:$0xff]
    %v3076 = vld [vmem:[%s0 + $0x160] sm:$0xff]
    %v3087 = vunpack.c.l.b16 %v3067
    %v3088 = vunpack.c.h.b16 %v3067
    %v3089 = vunpack.c.l.b16 %v3068
    %v3090 = vunpack.c.h.b16 %v3068
    %v3091 = vunpack.c.l.b16 %v3069
    %v3092 = vunpack.c.h.b16 %v3069
    %v3093 = vunpack.c.l.b16 %v3070
    %v3094 = vunpack.c.h.b16 %v3070
    %v3095 = vunpack.c.l.b16 %v3071
    %v3096 = vunpack.c.h.b16 %v3071
    %v3097 = vunpack.c.l.b16 %v3072
    %v3098 = vunpack.c.h.b16 %v3072
    %v3099 = vunpack.c.l.b16 %v3073
    %v3100 = vunpack.c.h.b16 %v3073
    %v3101 = vunpack.c.l.b16 %v3074
    %v3102 = vunpack.c.h.b16 %v3074
    %v3103 = vunpack.c.l.b16 %v3075
    %v3104 = vunpack.c.h.b16 %v3075
    %v3105 = vunpack.c.l.b16 %v3076
    %v3106 = vunpack.c.h.b16 %v3076
    %v3107 = vpack.c.b16 %v3097, %v3087
    %v3108 = vpack.c.b16 %v3098, %v3088
    %v3109 = vpack.c.b16 %v3099, %v3089
    %v3110 = vpack.c.b16 %v3100, %v3090
    %v3111 = vpack.c.b16 %v3101, %v3091
    %v3112 = vpack.c.b16 %v3102, %v3092
    %v3113 = vpack.c.b16 %v3103, %v3093
    %v3114 = vpack.c.b16 %v3104, %v3094
    %v3115 = vpack.c.b16 %v3105, %v3095
    %v3116 = vpack.c.b16 %v3106, %v3096
    %3127 = vmatprep.subr.bf16.mxu0 %v799
    %3128 = vmatpush1.bf16.msra.mxu0 %v798
    %3129 = vmatprep.subr.bf16.mxu0 %v801
    %3130 = vmatpush1.bf16.msra.mxu0 %v800
    %3131 = vmatprep.subr.bf16.mxu0 %v803
    %3132 = vmatpush1.bf16.msra.mxu0 %v802
    %3133 = vmatprep.subr.bf16.mxu0 %v805
    %3134 = vmatpush1.bf16.msra.mxu0 %v804
    %3135 = vmatprep.subr.bf16.mxu0 %v807
    %3136 = vmatpush1.bf16.msra.mxu0 %v806
    %3137 = vmatprep.subr.bf16.mxu0 %v809
    %3138 = vmatpush1.bf16.msra.mxu0 %v808
    %3139 = vmatprep.subr.bf16.mxu0 %v811
    %3140 = vmatpush1.bf16.msra.mxu0 %v810
    %3141 = vmatprep.subr.bf16.mxu0 %v813
    %3142 = vmatpush1.bf16.msra.mxu0 %v812
    %3143 = vmatprep.subr.bf16.mxu0 %v815
    %3144 = vmatpush1.bf16.msra.mxu0 %v814
    %3145 = vmatprep.subr.bf16.mxu0 %v817
    %3146 = vmatpush1.bf16.msra.mxu0 %v816
    %3147 = vmatprep.subr.bf16.mxu0 %v819
    %3148 = vmatpush1.bf16.msra.mxu0 %v818
    %3149 = vmatprep.subr.bf16.mxu0 %v821
    %3150 = vmatpush1.bf16.msra.mxu0 %v820
    %3151 = vmatprep.subr.bf16.mxu0 %v823
    %3152 = vmatpush1.bf16.msra.mxu0 %v822
    %3153 = vmatprep.subr.bf16.mxu0 %v825
    %3154 = vmatpush1.bf16.msra.mxu0 %v824
    %3155 = vmatprep.subr.bf16.mxu0 %v827
    %3156 = vmatpush1.bf16.msra.mxu0 %v826
    %3157 = vmatprep.subr.bf16.mxu0 %v829
    %3158 = vmatpush1.bf16.msra.mxu0 %v828
    %3159 = vmatprep.mubr.bf16.mxu0 %v3108
    %3160 = vmatmul.mubr.bf16.gmra.mrb[0].mxu0 %v3107
    %v3161 = vpop.f32.mrb[0].mxu0
    %v3162 = vadd.f32 %v251, %v3161
    %v3163 = vpop.f32.mrb[0].mxu0
    %v3164 = vadd.f32 %v255, %v3163
    %v3165 = vpop.f32.mrb[0].mxu0
    %v3166 = vadd.f32 %v251, %v3165
    %v3167 = vpop.f32.mrb[0].mxu0
    %v3168 = vadd.f32 %v255, %v3167
    %3169 = vdwg.mxu0
    %3170 = vmatprep.subr.bf16.mxu0 %v831
    %3171 = vmatpush1.bf16.msra.mxu0 %v830
    %3172 = vmatprep.subr.bf16.mxu0 %v833
    %3173 = vmatpush1.bf16.msra.mxu0 %v832
    %3174 = vmatprep.subr.bf16.mxu0 %v835
    %3175 = vmatpush1.bf16.msra.mxu0 %v834
    %3176 = vmatprep.subr.bf16.mxu0 %v837
    %3177 = vmatpush1.bf16.msra.mxu0 %v836
    %3178 = vmatprep.subr.bf16.mxu0 %v839
    %3179 = vmatpush1.bf16.msra.mxu0 %v838
    %3180 = vmatprep.subr.bf16.mxu0 %v841
    %3181 = vmatpush1.bf16.msra.mxu0 %v840
    %3182 = vmatprep.subr.bf16.mxu0 %v843
    %3183 = vmatpush1.bf16.msra.mxu0 %v842
    %3184 = vmatprep.subr.bf16.mxu0 %v845
    %3185 = vmatpush1.bf16.msra.mxu0 %v844
    %3186 = vmatprep.subr.bf16.mxu0 %v847
    %3187 = vmatpush1.bf16.msra.mxu0 %v846
    %3188 = vmatprep.subr.bf16.mxu0 %v849
    %3189 = vmatpush1.bf16.msra.mxu0 %v848
    %3190 = vmatprep.subr.bf16.mxu0 %v851
    %3191 = vmatpush1.bf16.msra.mxu0 %v850
    %3192 = vmatprep.subr.bf16.mxu0 %v853
    %3193 = vmatpush1.bf16.msra.mxu0 %v852
    %3194 = vmatprep.subr.bf16.mxu0 %v855
    %3195 = vmatpush1.bf16.msra.mxu0 %v854
    %3196 = vmatprep.subr.bf16.mxu0 %v857
    %3197 = vmatpush1.bf16.msra.mxu0 %v856
    %3198 = vmatprep.subr.bf16.mxu0 %v859
    %3199 = vmatpush1.bf16.msra.mxu0 %v858
    %3200 = vmatprep.subr.bf16.mxu0 %v861
    %3201 = vmatpush1.bf16.msra.mxu0 %v860
    %3202 = vmatprep.mubr.bf16.mxu0 %v3110
    %3203 = vmatmul.mubr.bf16.gmra.mrb[0].mxu0 %v3109
    %v3204 = vpop.f32.mrb[0].mxu0
    %v3205 = vadd.f32 %v3162, %v3204
    %v3206 = vpop.f32.mrb[0].mxu0
    %v3207 = vadd.f32 %v3164, %v3206
    %v3208 = vpop.f32.mrb[0].mxu0
    %v3209 = vadd.f32 %v3166, %v3208
    %v3210 = vpop.f32.mrb[0].mxu0
    %v3211 = vadd.f32 %v3168, %v3210
    %3212 = vdwg.mxu0
    %3213 = vmatprep.subr.bf16.mxu0 %v863
    %3214 = vmatpush1.bf16.msra.mxu0 %v862
    %3215 = vmatprep.subr.bf16.mxu0 %v865
    %3216 = vmatpush1.bf16.msra.mxu0 %v864
    %3217 = vmatprep.subr.bf16.mxu0 %v867
    %3218 = vmatpush1.bf16.msra.mxu0 %v866
    %3219 = vmatprep.subr.bf16.mxu0 %v869
    %3220 = vmatpush1.bf16.msra.mxu0 %v868
    %3221 = vmatprep.subr.bf16.mxu0 %v871
    %3222 = vmatpush1.bf16.msra.mxu0 %v870
    %3223 = vmatprep.subr.bf16.mxu0 %v873
    %3224 = vmatpush1.bf16.msra.mxu0 %v872
    %3225 = vmatprep.subr.bf16.mxu0 %v875
    %3226 = vmatpush1.bf16.msra.mxu0 %v874
    %3227 = vmatprep.subr.bf16.mxu0 %v877
    %3228 = vmatpush1.bf16.msra.mxu0 %v876
    %3229 = vmatprep.subr.bf16.mxu0 %v879
    %3230 = vmatpush1.bf16.msra.mxu0 %v878
    %3231 = vmatprep.subr.bf16.mxu0 %v881
    %3232 = vmatpush1.bf16.msra.mxu0 %v880
    %3233 = vmatprep.subr.bf16.mxu0 %v883
    %3234 = vmatpush1.bf16.msra.mxu0 %v882
    %3235 = vmatprep.subr.bf16.mxu0 %v885
    %3236 = vmatpush1.bf16.msra.mxu0 %v884
    %3237 = vmatprep.subr.bf16.mxu0 %v887
    %3238 = vmatpush1.bf16.msra.mxu0 %v886
    %3239 = vmatprep.subr.bf16.mxu0 %v889
    %3240 = vmatpush1.bf16.msra.mxu0 %v888
    %3241 = vmatprep.subr.bf16.mxu0 %v891
    %3242 = vmatpush1.bf16.msra.mxu0 %v890
    %3243 = vmatprep.subr.bf16.mxu0 %v893
    %3244 = vmatpush1.bf16.msra.mxu0 %v892
    %3245 = vmatprep.mubr.bf16.mxu0 %v3112
    %3246 = vmatmul.mubr.bf16.gmra.mrb[0].mxu0 %v3111
    %v3247 = vpop.f32.mrb[0].mxu0
    %v3248 = vadd.f32 %v3205, %v3247
    %v3249 = vpop.f32.mrb[0].mxu0
    %v3250 = vadd.f32 %v3207, %v3249
    %v3251 = vpop.f32.mrb[0].mxu0
    %v3252 = vadd.f32 %v3209, %v3251
    %v3253 = vpop.f32.mrb[0].mxu0
    %v3254 = vadd.f32 %v3211, %v3253
    %3255 = vdwg.mxu0
    %3256 = vmatprep.subr.bf16.mxu0 %v895
    %3257 = vmatpush1.bf16.msra.mxu0 %v894
    %3258 = vmatprep.subr.bf16.mxu0 %v897
    %3259 = vmatpush1.bf16.msra.mxu0 %v896
    %3260 = vmatprep.subr.bf16.mxu0 %v899
    %3261 = vmatpush1.bf16.msra.mxu0 %v898
    %3262 = vmatprep.subr.bf16.mxu0 %v901
    %3263 = vmatpush1.bf16.msra.mxu0 %v900
    %3264 = vmatprep.subr.bf16.mxu0 %v903
    %3265 = vmatpush1.bf16.msra.mxu0 %v902
    %3266 = vmatprep.subr.bf16.mxu0 %v905
    %3267 = vmatpush1.bf16.msra.mxu0 %v904
    %3268 = vmatprep.subr.bf16.mxu0 %v907
    %3269 = vmatpush1.bf16.msra.mxu0 %v906
    %3270 = vmatprep.subr.bf16.mxu0 %v909
    %3271 = vmatpush1.bf16.msra.mxu0 %v908
    %3272 = vmatprep.subr.bf16.mxu0 %v911
    %3273 = vmatpush1.bf16.msra.mxu0 %v910
    %3274 = vmatprep.subr.bf16.mxu0 %v913
    %3275 = vmatpush1.bf16.msra.mxu0 %v912
    %3276 = vmatprep.subr.bf16.mxu0 %v915
    %3277 = vmatpush1.bf16.msra.mxu0 %v914
    %3278 = vmatprep.subr.bf16.mxu0 %v917
    %3279 = vmatpush1.bf16.msra.mxu0 %v916
    %3280 = vmatprep.subr.bf16.mxu0 %v919
    %3281 = vmatpush1.bf16.msra.mxu0 %v918
    %3282 = vmatprep.subr.bf16.mxu0 %v921
    %3283 = vmatpush1.bf16.msra.mxu0 %v920
    %3284 = vmatprep.subr.bf16.mxu0 %v923
    %3285 = vmatpush1.bf16.msra.mxu0 %v922
    %3286 = vmatprep.subr.bf16.mxu0 %v925
    %3287 = vmatpush1.bf16.msra.mxu0 %v924
    %3288 = vmatprep.mubr.bf16.mxu0 %v3114
    %3289 = vmatmul.mubr.bf16.gmra.mrb[0].mxu0 %v3113
    %v3290 = vpop.f32.mrb[0].mxu0
    %v3291 = vadd.f32 %v3248, %v3290
    %v3292 = vpop.f32.mrb[0].mxu0
    %v3293 = vadd.f32 %v3250, %v3292
    %v3294 = vpop.f32.mrb[0].mxu0
    %v3295 = vadd.f32 %v3252, %v3294
    %v3296 = vpop.f32.mrb[0].mxu0
    %v3297 = vadd.f32 %v3254, %v3296
    %3298 = vdwg.mxu0
    %3299 = vmatprep.subr.bf16.mxu0 %v927
    %3300 = vmatpush1.bf16.msra.mxu0 %v926
    %3301 = vmatprep.subr.bf16.mxu0 %v929
    %3302 = vmatpush1.bf16.msra.mxu0 %v928
    %3303 = vmatprep.subr.bf16.mxu0 %v931
    %3304 = vmatpush1.bf16.msra.mxu0 %v930
    %3305 = vmatprep.subr.bf16.mxu0 %v933
    %3306 = vmatpush1.bf16.msra.mxu0 %v932
    %3307 = vmatprep.subr.bf16.mxu0 %v935
    %3308 = vmatpush1.bf16.msra.mxu0 %v934
    %3309 = vmatprep.subr.bf16.mxu0 %v937
    %3310 = vmatpush1.bf16.msra.mxu0 %v936
    %3311 = vmatprep.subr.bf16.mxu0 %v939
    %3312 = vmatpush1.bf16.msra.mxu0 %v938
    %3313 = vmatprep.subr.bf16.mxu0 %v941
    %3314 = vmatpush1.bf16.msra.mxu0 %v940
    %3315 = vmatprep.subr.bf16.mxu0 %v943
    %3316 = vmatpush1.bf16.msra.mxu0 %v942
    %3317 = vmatprep.subr.bf16.mxu0 %v945
    %3318 = vmatpush1.bf16.msra.mxu0 %v944
    %3319 = vmatprep.subr.bf16.mxu0 %v947
    %3320 = vmatpush1.bf16.msra.mxu0 %v946
    %3321 = vmatprep.subr.bf16.mxu0 %v949
    %3322 = vmatpush1.bf16.msra.mxu0 %v948
    %3323 = vmatprep.subr.bf16.mxu0 %v951
    %3324 = vmatpush1.bf16.msra.mxu0 %v950
    %3325 = vmatprep.subr.bf16.mxu0 %v953
    %3326 = vmatpush1.bf16.msra.mxu0 %v952
    %3327 = vmatprep.subr.bf16.mxu0 %v955
    %3328 = vmatpush1.bf16.msra.mxu0 %v954
    %3329 = vmatprep.subr.bf16.mxu0 %v957
    %3330 = vmatpush1.bf16.msra.mxu0 %v956
    %3331 = vmatprep.mubr.bf16.mxu0 %v3116
    %3332 = vmatmul.mubr.bf16.gmra.mrb[0].mxu0 %v3115
    %v3333 = vpop.f32.mrb[0].mxu0
    %v3334 = vadd.f32 %v3291, %v3333
    %v3335 = vpop.f32.mrb[0].mxu0
    %v3336 = vadd.f32 %v3293, %v3335
    %v3337 = vpop.f32.mrb[0].mxu0
    %v3338 = vadd.f32 %v3295, %v3337
    %v3339 = vpop.f32.mrb[0].mxu0
    %v3340 = vadd.f32 %v3297, %v3339
    %3341 = vdwg.mxu0
    %v3342 = vmul.f32 %v3334, 0.01
    %v3343 = vmul.f32 %v3336, 0.01
    %v3344 = vmul.f32 %v3338, 0.01
    %v3345 = vmul.f32 %v3340, 0.01
    %v3346 = vmax.f32 %v3334, %v3342
    %v3347 = vmax.f32 %v3336, %v3343
    %v3348 = vmax.f32 %v3338, %v3344
    %v3349 = vmax.f32 %v3340, %v3345
    %v3350 = vpack.c.bf16 %v3348, %v3346
    %v3351 = vpack.c.bf16 %v3349, %v3347
    %3352 = vst [vmem:[#allocation2 + $0x70] sm:$0xff] %v3350
    %3353 = vst [vmem:[#allocation2 + $0x78] sm:$0xff] %v3351
    %v3354 = vld [vmem:[%s3] sm:$0xff]
    %v3355 = vld [vmem:[%s3 + $0x8] sm:$0xff]
    %v3356 = vld [vmem:[%s3 + $0x10] sm:$0xff]
    %v3357 = vld [vmem:[%s3 + $0x18] sm:$0xff]
    %v3358 = vld [vmem:[%s3 + $0x20] sm:$0xff]
    %v3359 = vld [vmem:[%s3 + $0x28] sm:$0xff]
    %v3360 = vld [vmem:[%s3 + $0x30] sm:$0xff]
    %v3361 = vld [vmem:[%s3 + $0x38] sm:$0xff]
    %v3362 = vld [vmem:[%s3 + $0x40] sm:$0xff]
    %v3363 = vld [vmem:[%s3 + $0x48] sm:$0xff]
    %v3364 = vld [vmem:[%s3 + $0x50] sm:$0xff]
    %v3365 = vld [vmem:[%s3 + $0x58] sm:$0xff]
    %v3366 = vld [vmem:[%s3 + $0x60] sm:$0xff]
    %v3367 = vld [vmem:[%s3 + $0x68] sm:$0xff]
    %v3368 = vld [vmem:[%s3 + $0x70] sm:$0xff]
    %v3369 = vld [vmem:[%s3 + $0x78] sm:$0xff]
    %v3370 = vld [vmem:[%s3 + $0x80] sm:$0xff]
    %v3371 = vld [vmem:[%s3 + $0x88] sm:$0xff]
    %v3372 = vld [vmem:[%s3 + $0x90] sm:$0xff]
    %v3373 = vld [vmem:[%s3 + $0x98] sm:$0xff]
    %v3374 = vld [vmem:[%s3 + $0xa0] sm:$0xff]
    %v3375 = vld [vmem:[%s3 + $0xa8] sm:$0xff]
    %v3376 = vld [vmem:[%s3 + $0xb0] sm:$0xff]
    %v3377 = vld [vmem:[%s3 + $0xb8] sm:$0xff]
    %v3378 = vld [vmem:[%s3 + $0xc0] sm:$0xff]
    %v3379 = vld [vmem:[%s3 + $0xc8] sm:$0xff]
    %v3380 = vld [vmem:[%s3 + $0xd0] sm:$0xff]
    %v3381 = vld [vmem:[%s3 + $0xd8] sm:$0xff]
    %v3382 = vld [vmem:[%s3 + $0xe0] sm:$0xff]
    %v3383 = vld [vmem:[%s3 + $0xe8] sm:$0xff]
    %v3384 = vld [vmem:[%s3 + $0xf0] sm:$0xff]
    %v3385 = vld [vmem:[%s3 + $0xf8] sm:$0xff]
    %v3386 = vld [vmem:[%s3 + $0x100] sm:$0xff]
    %v3387 = vld [vmem:[%s3 + $0x108] sm:$0xff]
    %v3388 = vld [vmem:[%s3 + $0x110] sm:$0xff]
    %v3389 = vld [vmem:[%s3 + $0x118] sm:$0xff]
    %v3390 = vld [vmem:[%s3 + $0x120] sm:$0xff]
    %v3391 = vld [vmem:[%s3 + $0x128] sm:$0xff]
    %v3392 = vld [vmem:[%s3 + $0x130] sm:$0xff]
    %v3393 = vld [vmem:[%s3 + $0x138] sm:$0xff]
    %v3394 = vld [vmem:[%s3 + $0x140] sm:$0xff]
    %v3395 = vld [vmem:[%s3 + $0x148] sm:$0xff]
    %v3396 = vld [vmem:[%s3 + $0x150] sm:$0xff]
    %v3397 = vld [vmem:[%s3 + $0x158] sm:$0xff]
    %v3398 = vld [vmem:[%s3 + $0x160] sm:$0xff]
    %v3399 = vld [vmem:[%s3 + $0x168] sm:$0xff]
    %v3400 = vld [vmem:[%s3 + $0x170] sm:$0xff]
    %v3401 = vld [vmem:[%s3 + $0x178] sm:$0xff]
    %v3402 = vld [vmem:[%s3 + $0x180] sm:$0xff]
    %v3403 = vld [vmem:[%s3 + $0x188] sm:$0xff]
    %v3404 = vld [vmem:[%s3 + $0x190] sm:$0xff]
    %v3405 = vld [vmem:[%s3 + $0x198] sm:$0xff]
    %v3406 = vld [vmem:[%s3 + $0x1a0] sm:$0xff]
    %v3407 = vld [vmem:[%s3 + $0x1a8] sm:$0xff]
    %v3408 = vld [vmem:[%s3 + $0x1b0] sm:$0xff]
    %v3409 = vld [vmem:[%s3 + $0x1b8] sm:$0xff]
    %v3410 = vld [vmem:[%s3 + $0x1c0] sm:$0xff]
    %v3411 = vld [vmem:[%s3 + $0x1c8] sm:$0xff]
    %v3412 = vld [vmem:[%s3 + $0x1d0] sm:$0xff]
    %v3413 = vld [vmem:[%s3 + $0x1d8] sm:$0xff]
    %v3414 = vld [vmem:[%s3 + $0x1e0] sm:$0xff]
    %v3415 = vld [vmem:[%s3 + $0x1e8] sm:$0xff]
    %v3416 = vld [vmem:[%s3 + $0x1f0] sm:$0xff]
    %v3417 = vld [vmem:[%s3 + $0x1f8] sm:$0xff]
    %v3418 = vld [vmem:[%s3 + $0x200] sm:$0xff]
    %v3419 = vld [vmem:[%s3 + $0x208] sm:$0xff]
    %v3420 = vld [vmem:[%s3 + $0x210] sm:$0xff]
    %v3421 = vld [vmem:[%s3 + $0x218] sm:$0xff]
    %v3422 = vld [vmem:[%s3 + $0x220] sm:$0xff]
    %v3423 = vld [vmem:[%s3 + $0x228] sm:$0xff]
    %v3424 = vld [vmem:[%s3 + $0x230] sm:$0xff]
    %v3425 = vld [vmem:[%s3 + $0x238] sm:$0xff]
    %v3426 = vld [vmem:[%s3 + $0x240] sm:$0xff]
    %v3427 = vld [vmem:[%s3 + $0x248] sm:$0xff]
    %v3428 = vld [vmem:[%s3 + $0x250] sm:$0xff]
    %v3429 = vld [vmem:[%s3 + $0x258] sm:$0xff]
    %v3430 = vld [vmem:[%s3 + $0x260] sm:$0xff]
    %v3431 = vld [vmem:[%s3 + $0x268] sm:$0xff]
    %v3432 = vld [vmem:[%s3 + $0x270] sm:$0xff]
    %v3433 = vld [vmem:[%s3 + $0x278] sm:$0xff]
    %v3434 = vld [vmem:[%s3 + $0x280] sm:$0xff]
    %v3435 = vld [vmem:[%s3 + $0x288] sm:$0xff]
    %v3436 = vld [vmem:[%s3 + $0x290] sm:$0xff]
    %v3437 = vld [vmem:[%s3 + $0x298] sm:$0xff]
    %v3438 = vld [vmem:[%s3 + $0x2a0] sm:$0xff]
    %v3439 = vld [vmem:[%s3 + $0x2a8] sm:$0xff]
    %v3440 = vld [vmem:[%s3 + $0x2b0] sm:$0xff]
    %v3441 = vld [vmem:[%s3 + $0x2b8] sm:$0xff]
    %v3442 = vld [vmem:[%s3 + $0x2c0] sm:$0xff]
    %v3443 = vld [vmem:[%s3 + $0x2c8] sm:$0xff]
    %v3444 = vld [vmem:[%s3 + $0x2d0] sm:$0xff]
    %v3445 = vld [vmem:[%s3 + $0x2d8] sm:$0xff]
    %v3446 = vld [vmem:[%s3 + $0x2e0] sm:$0xff]
    %v3447 = vld [vmem:[%s3 + $0x2e8] sm:$0xff]
    %v3448 = vld [vmem:[%s3 + $0x2f0] sm:$0xff]
    %v3449 = vld [vmem:[%s3 + $0x2f8] sm:$0xff]
    %v3450 = vld [vmem:[%s3 + $0x300] sm:$0xff]
    %v3451 = vld [vmem:[%s3 + $0x308] sm:$0xff]
    %v3452 = vld [vmem:[%s3 + $0x310] sm:$0xff]
    %v3453 = vld [vmem:[%s3 + $0x318] sm:$0xff]
    %v3454 = vld [vmem:[%s3 + $0x320] sm:$0xff]
    %v3455 = vld [vmem:[%s3 + $0x328] sm:$0xff]
    %v3456 = vld [vmem:[%s3 + $0x330] sm:$0xff]
    %v3457 = vld [vmem:[%s3 + $0x338] sm:$0xff]
    %v3458 = vld [vmem:[%s3 + $0x340] sm:$0xff]
    %v3459 = vld [vmem:[%s3 + $0x348] sm:$0xff]
    %v3460 = vld [vmem:[%s3 + $0x350] sm:$0xff]
    %v3461 = vld [vmem:[%s3 + $0x358] sm:$0xff]
    %v3462 = vld [vmem:[%s3 + $0x360] sm:$0xff]
    %v3463 = vld [vmem:[%s3 + $0x368] sm:$0xff]
    %v3464 = vld [vmem:[%s3 + $0x370] sm:$0xff]
    %v3465 = vld [vmem:[%s3 + $0x378] sm:$0xff]
    %v3466 = vld [vmem:[%s3 + $0x380] sm:$0xff]
    %v3467 = vld [vmem:[%s3 + $0x388] sm:$0xff]
    %v3468 = vld [vmem:[%s3 + $0x390] sm:$0xff]
    %v3469 = vld [vmem:[%s3 + $0x398] sm:$0xff]
    %v3470 = vld [vmem:[%s3 + $0x3a0] sm:$0xff]
    %v3471 = vld [vmem:[%s3 + $0x3a8] sm:$0xff]
    %v3472 = vld [vmem:[%s3 + $0x3b0] sm:$0xff]
    %v3473 = vld [vmem:[%s3 + $0x3b8] sm:$0xff]
    %v3474 = vld [vmem:[%s3 + $0x3c0] sm:$0xff]
    %v3475 = vld [vmem:[%s3 + $0x3c8] sm:$0xff]
    %v3476 = vld [vmem:[%s3 + $0x3d0] sm:$0xff]
    %v3477 = vld [vmem:[%s3 + $0x3d8] sm:$0xff]
    %v3478 = vld [vmem:[%s3 + $0x3e0] sm:$0xff]
    %v3479 = vld [vmem:[%s3 + $0x3e8] sm:$0xff]
    %v3480 = vld [vmem:[%s3 + $0x3f0] sm:$0xff]
    %v3481 = vld [vmem:[%s3 + $0x3f8] sm:$0xff]
    %v3482 = vld [vmem:[%s4] sm:$0x3]
    %v3484 = vlaneseq
    %v3485 = vshrl.u32 %v3484, 7
    %v3486 = vsub.s32 0, %v3485
    %v3487 = vrot.slane %v3482, %v3486
    %v3488 = vlaneseq
    %v3489 = vshrl.u32 %v3488, 7
    %v3490 = vsub.s32 1, %v3489
    %v3491 = vrot.slane %v3482, %v3490
    %v3494 = vld [vmem:[#allocation2] sm:$0xff]
    %v3495 = vld [vmem:[#allocation2 + $0x8] sm:$0xff]
    %v3496 = vld [vmem:[#allocation2 + $0x10] sm:$0xff]
    %v3497 = vld [vmem:[#allocation2 + $0x18] sm:$0xff]
    %v3498 = vld [vmem:[#allocation2 + $0x20] sm:$0xff]
    %v3499 = vld [vmem:[#allocation2 + $0x28] sm:$0xff]
    %v3500 = vld [vmem:[#allocation2 + $0x30] sm:$0xff]
    %v3501 = vld [vmem:[#allocation2 + $0x38] sm:$0xff]
    %v3630 = vunpack.c.l.b16 %v3354
    %v3631 = vunpack.c.h.b16 %v3354
    %v3632 = vunpack.c.l.b16 %v3355
    %v3633 = vunpack.c.h.b16 %v3355
    %v3634 = vunpack.c.l.b16 %v3356
    %v3635 = vunpack.c.h.b16 %v3356
    %v3636 = vunpack.c.l.b16 %v3357
    %v3637 = vunpack.c.h.b16 %v3357
    %v3638 = vunpack.c.l.b16 %v3358
    %v3639 = vunpack.c.h.b16 %v3358
    %v3640 = vunpack.c.l.b16 %v3359
    %v3641 = vunpack.c.h.b16 %v3359
    %v3642 = vunpack.c.l.b16 %v3360
    %v3643 = vunpack.c.h.b16 %v3360
    %v3644 = vunpack.c.l.b16 %v3361
    %v3645 = vunpack.c.h.b16 %v3361
    %v3646 = vunpack.c.l.b16 %v3362
    %v3647 = vunpack.c.h.b16 %v3362
    %v3648 = vunpack.c.l.b16 %v3363
    %v3649 = vunpack.c.h.b16 %v3363
    %v3650 = vunpack.c.l.b16 %v3364
    %v3651 = vunpack.c.h.b16 %v3364
    %v3652 = vunpack.c.l.b16 %v3365
    %v3653 = vunpack.c.h.b16 %v3365
    %v3654 = vunpack.c.l.b16 %v3366
    %v3655 = vunpack.c.h.b16 %v3366
    %v3656 = vunpack.c.l.b16 %v3367
    %v3657 = vunpack.c.h.b16 %v3367
    %v3658 = vunpack.c.l.b16 %v3368
    %v3659 = vunpack.c.h.b16 %v3368
    %v3660 = vunpack.c.l.b16 %v3369
    %v3661 = vunpack.c.h.b16 %v3369
    %v3662 = vunpack.c.l.b16 %v3370
    %v3663 = vunpack.c.h.b16 %v3370
    %v3664 = vunpack.c.l.b16 %v3371
    %v3665 = vunpack.c.h.b16 %v3371
    %v3666 = vunpack.c.l.b16 %v3372
    %v3667 = vunpack.c.h.b16 %v3372
    %v3668 = vunpack.c.l.b16 %v3373
    %v3669 = vunpack.c.h.b16 %v3373
    %v3670 = vunpack.c.l.b16 %v3374
    %v3671 = vunpack.c.h.b16 %v3374
    %v3672 = vunpack.c.l.b16 %v3375
    %v3673 = vunpack.c.h.b16 %v3375
    %v3674 = vunpack.c.l.b16 %v3376
    %v3675 = vunpack.c.h.b16 %v3376
    %v3676 = vunpack.c.l.b16 %v3377
    %v3677 = vunpack.c.h.b16 %v3377
    %v3678 = vunpack.c.l.b16 %v3378
    %v3679 = vunpack.c.h.b16 %v3378
    %v3680 = vunpack.c.l.b16 %v3379
    %v3681 = vunpack.c.h.b16 %v3379
    %v3682 = vunpack.c.l.b16 %v3380
    %v3683 = vunpack.c.h.b16 %v3380
    %v3684 = vunpack.c.l.b16 %v3381
    %v3685 = vunpack.c.h.b16 %v3381
    %v3686 = vunpack.c.l.b16 %v3382
    %v3687 = vunpack.c.h.b16 %v3382
    %v3688 = vunpack.c.l.b16 %v3383
    %v3689 = vunpack.c.h.b16 %v3383
    %v3690 = vunpack.c.l.b16 %v3384
    %v3691 = vunpack.c.h.b16 %v3384
    %v3692 = vunpack.c.l.b16 %v3385
    %v3693 = vunpack.c.h.b16 %v3385
    %v3694 = vunpack.c.l.b16 %v3386
    %v3695 = vunpack.c.h.b16 %v3386
    %v3696 = vunpack.c.l.b16 %v3387
    %v3697 = vunpack.c.h.b16 %v3387
    %v3698 = vunpack.c.l.b16 %v3388
    %v3699 = vunpack.c.h.b16 %v3388
    %v3700 = vunpack.c.l.b16 %v3389
    %v3701 = vunpack.c.h.b16 %v3389
    %v3702 = vunpack.c.l.b16 %v3390
    %v3703 = vunpack.c.h.b16 %v3390
    %v3704 = vunpack.c.l.b16 %v3391
    %v3705 = vunpack.c.h.b16 %v3391
    %v3706 = vunpack.c.l.b16 %v3392
    %v3707 = vunpack.c.h.b16 %v3392
    %v3708 = vunpack.c.l.b16 %v3393
    %v3709 = vunpack.c.h.b16 %v3393
    %v3710 = vunpack.c.l.b16 %v3394
    %v3711 = vunpack.c.h.b16 %v3394
    %v3712 = vunpack.c.l.b16 %v3395
    %v3713 = vunpack.c.h.b16 %v3395
    %v3714 = vunpack.c.l.b16 %v3396
    %v3715 = vunpack.c.h.b16 %v3396
    %v3716 = vunpack.c.l.b16 %v3397
    %v3717 = vunpack.c.h.b16 %v3397
    %v3718 = vunpack.c.l.b16 %v3398
    %v3719 = vunpack.c.h.b16 %v3398
    %v3720 = vunpack.c.l.b16 %v3399
    %v3721 = vunpack.c.h.b16 %v3399
    %v3722 = vunpack.c.l.b16 %v3400
    %v3723 = vunpack.c.h.b16 %v3400
    %v3724 = vunpack.c.l.b16 %v3401
    %v3725 = vunpack.c.h.b16 %v3401
    %v3726 = vunpack.c.l.b16 %v3402
    %v3727 = vunpack.c.h.b16 %v3402
    %v3728 = vunpack.c.l.b16 %v3403
    %v3729 = vunpack.c.h.b16 %v3403
    %v3730 = vunpack.c.l.b16 %v3404
    %v3731 = vunpack.c.h.b16 %v3404
    %v3732 = vunpack.c.l.b16 %v3405
    %v3733 = vunpack.c.h.b16 %v3405
    %v3734 = vunpack.c.l.b16 %v3406
    %v3735 = vunpack.c.h.b16 %v3406
    %v3736 = vunpack.c.l.b16 %v3407
    %v3737 = vunpack.c.h.b16 %v3407
    %v3738 = vunpack.c.l.b16 %v3408
    %v3739 = vunpack.c.h.b16 %v3408
    %v3740 = vunpack.c.l.b16 %v3409
    %v3741 = vunpack.c.h.b16 %v3409
    %v3742 = vunpack.c.l.b16 %v3410
    %v3743 = vunpack.c.h.b16 %v3410
    %v3744 = vunpack.c.l.b16 %v3411
    %v3745 = vunpack.c.h.b16 %v3411
    %v3746 = vunpack.c.l.b16 %v3412
    %v3747 = vunpack.c.h.b16 %v3412
    %v3748 = vunpack.c.l.b16 %v3413
    %v3749 = vunpack.c.h.b16 %v3413
    %v3750 = vunpack.c.l.b16 %v3414
    %v3751 = vunpack.c.h.b16 %v3414
    %v3752 = vunpack.c.l.b16 %v3415
    %v3753 = vunpack.c.h.b16 %v3415
    %v3754 = vunpack.c.l.b16 %v3416
    %v3755 = vunpack.c.h.b16 %v3416
    %v3756 = vunpack.c.l.b16 %v3417
    %v3757 = vunpack.c.h.b16 %v3417
    %v3758 = vunpack.c.l.b16 %v3418
    %v3759 = vunpack.c.h.b16 %v3418
    %v3760 = vunpack.c.l.b16 %v3419
    %v3761 = vunpack.c.h.b16 %v3419
    %v3762 = vunpack.c.l.b16 %v3420
    %v3763 = vunpack.c.h.b16 %v3420
    %v3764 = vunpack.c.l.b16 %v3421
    %v3765 = vunpack.c.h.b16 %v3421
    %v3766 = vunpack.c.l.b16 %v3422
    %v3767 = vunpack.c.h.b16 %v3422
    %v3768 = vunpack.c.l.b16 %v3423
    %v3769 = vunpack.c.h.b16 %v3423
    %v3770 = vunpack.c.l.b16 %v3424
    %v3771 = vunpack.c.h.b16 %v3424
    %v3772 = vunpack.c.l.b16 %v3425
    %v3773 = vunpack.c.h.b16 %v3425
    %v3774 = vunpack.c.l.b16 %v3426
    %v3775 = vunpack.c.h.b16 %v3426
    %v3776 = vunpack.c.l.b16 %v3427
    %v3777 = vunpack.c.h.b16 %v3427
    %v3778 = vunpack.c.l.b16 %v3428
    %v3779 = vunpack.c.h.b16 %v3428
    %v3780 = vunpack.c.l.b16 %v3429
    %v3781 = vunpack.c.h.b16 %v3429
    %v3782 = vunpack.c.l.b16 %v3430
    %v3783 = vunpack.c.h.b16 %v3430
    %v3784 = vunpack.c.l.b16 %v3431
    %v3785 = vunpack.c.h.b16 %v3431
    %v3786 = vunpack.c.l.b16 %v3432
    %v3787 = vunpack.c.h.b16 %v3432
    %v3788 = vunpack.c.l.b16 %v3433
    %v3789 = vunpack.c.h.b16 %v3433
    %v3790 = vunpack.c.l.b16 %v3434
    %v3791 = vunpack.c.h.b16 %v3434
    %v3792 = vunpack.c.l.b16 %v3435
    %v3793 = vunpack.c.h.b16 %v3435
    %v3794 = vunpack.c.l.b16 %v3436
    %v3795 = vunpack.c.h.b16 %v3436
    %v3796 = vunpack.c.l.b16 %v3437
    %v3797 = vunpack.c.h.b16 %v3437
    %v3798 = vunpack.c.l.b16 %v3438
    %v3799 = vunpack.c.h.b16 %v3438
    %v3800 = vunpack.c.l.b16 %v3439
    %v3801 = vunpack.c.h.b16 %v3439
    %v3802 = vunpack.c.l.b16 %v3440
    %v3803 = vunpack.c.h.b16 %v3440
    %v3804 = vunpack.c.l.b16 %v3441
    %v3805 = vunpack.c.h.b16 %v3441
    %v3806 = vunpack.c.l.b16 %v3442
    %v3807 = vunpack.c.h.b16 %v3442
    %v3808 = vunpack.c.l.b16 %v3443
    %v3809 = vunpack.c.h.b16 %v3443
    %v3810 = vunpack.c.l.b16 %v3444
    %v3811 = vunpack.c.h.b16 %v3444
    %v3812 = vunpack.c.l.b16 %v3445
    %v3813 = vunpack.c.h.b16 %v3445
    %v3814 = vunpack.c.l.b16 %v3446
    %v3815 = vunpack.c.h.b16 %v3446
    %v3816 = vunpack.c.l.b16 %v3447
    %v3817 = vunpack.c.h.b16 %v3447
    %v3818 = vunpack.c.l.b16 %v3448
    %v3819 = vunpack.c.h.b16 %v3448
    %v3820 = vunpack.c.l.b16 %v3449
    %v3821 = vunpack.c.h.b16 %v3449
    %v3822 = vunpack.c.l.b16 %v3450
    %v3823 = vunpack.c.h.b16 %v3450
    %v3824 = vunpack.c.l.b16 %v3451
    %v3825 = vunpack.c.h.b16 %v3451
    %v3826 = vunpack.c.l.b16 %v3452
    %v3827 = vunpack.c.h.b16 %v3452
    %v3828 = vunpack.c.l.b16 %v3453
    %v3829 = vunpack.c.h.b16 %v3453
    %v3830 = vunpack.c.l.b16 %v3454
    %v3831 = vunpack.c.h.b16 %v3454
    %v3832 = vunpack.c.l.b16 %v3455
    %v3833 = vunpack.c.h.b16 %v3455
    %v3834 = vunpack.c.l.b16 %v3456
    %v3835 = vunpack.c.h.b16 %v3456
    %v3836 = vunpack.c.l.b16 %v3457
    %v3837 = vunpack.c.h.b16 %v3457
    %v3838 = vunpack.c.l.b16 %v3458
    %v3839 = vunpack.c.h.b16 %v3458
    %v3840 = vunpack.c.l.b16 %v3459
    %v3841 = vunpack.c.h.b16 %v3459
    %v3842 = vunpack.c.l.b16 %v3460
    %v3843 = vunpack.c.h.b16 %v3460
    %v3844 = vunpack.c.l.b16 %v3461
    %v3845 = vunpack.c.h.b16 %v3461
    %v3846 = vunpack.c.l.b16 %v3462
    %v3847 = vunpack.c.h.b16 %v3462
    %v3848 = vunpack.c.l.b16 %v3463
    %v3849 = vunpack.c.h.b16 %v3463
    %v3850 = vunpack.c.l.b16 %v3464
    %v3851 = vunpack.c.h.b16 %v3464
    %v3852 = vunpack.c.l.b16 %v3465
    %v3853 = vunpack.c.h.b16 %v3465
    %v3854 = vunpack.c.l.b16 %v3466
    %v3855 = vunpack.c.h.b16 %v3466
    %v3856 = vunpack.c.l.b16 %v3467
    %v3857 = vunpack.c.h.b16 %v3467
    %v3858 = vunpack.c.l.b16 %v3468
    %v3859 = vunpack.c.h.b16 %v3468
    %v3860 = vunpack.c.l.b16 %v3469
    %v3861 = vunpack.c.h.b16 %v3469
    %v3862 = vunpack.c.l.b16 %v3470
    %v3863 = vunpack.c.h.b16 %v3470
    %v3864 = vunpack.c.l.b16 %v3471
    %v3865 = vunpack.c.h.b16 %v3471
    %v3866 = vunpack.c.l.b16 %v3472
    %v3867 = vunpack.c.h.b16 %v3472
    %v3868 = vunpack.c.l.b16 %v3473
    %v3869 = vunpack.c.h.b16 %v3473
    %v3870 = vunpack.c.l.b16 %v3474
    %v3871 = vunpack.c.h.b16 %v3474
    %v3872 = vunpack.c.l.b16 %v3475
    %v3873 = vunpack.c.h.b16 %v3475
    %v3874 = vunpack.c.l.b16 %v3476
    %v3875 = vunpack.c.h.b16 %v3476
    %v3876 = vunpack.c.l.b16 %v3477
    %v3877 = vunpack.c.h.b16 %v3477
    %v3878 = vunpack.c.l.b16 %v3478
    %v3879 = vunpack.c.h.b16 %v3478
    %v3880 = vunpack.c.l.b16 %v3479
    %v3881 = vunpack.c.h.b16 %v3479
    %v3882 = vunpack.c.l.b16 %v3480
    %v3883 = vunpack.c.h.b16 %v3480
    %v3884 = vunpack.c.l.b16 %v3481
    %v3885 = vunpack.c.h.b16 %v3481
    %v3886 = vpack.c.b16 %v3632, %v3630
    %v3887 = vpack.c.b16 %v3633, %v3631
    %v3888 = vpack.c.b16 %v3636, %v3634
    %v3889 = vpack.c.b16 %v3637, %v3635
    %v3890 = vpack.c.b16 %v3640, %v3638
    %v3891 = vpack.c.b16 %v3641, %v3639
    %v3892 = vpack.c.b16 %v3644, %v3642
    %v3893 = vpack.c.b16 %v3645, %v3643
    %v3894 = vpack.c.b16 %v3648, %v3646
    %v3895 = vpack.c.b16 %v3649, %v3647
    %v3896 = vpack.c.b16 %v3652, %v3650
    %v3897 = vpack.c.b16 %v3653, %v3651
    %v3898 = vpack.c.b16 %v3656, %v3654
    %v3899 = vpack.c.b16 %v3657, %v3655
    %v3900 = vpack.c.b16 %v3660, %v3658
    %v3901 = vpack.c.b16 %v3661, %v3659
    %v3902 = vpack.c.b16 %v3664, %v3662
    %v3903 = vpack.c.b16 %v3665, %v3663
    %v3904 = vpack.c.b16 %v3668, %v3666
    %v3905 = vpack.c.b16 %v3669, %v3667
    %v3906 = vpack.c.b16 %v3672, %v3670
    %v3907 = vpack.c.b16 %v3673, %v3671
    %v3908 = vpack.c.b16 %v3676, %v3674
    %v3909 = vpack.c.b16 %v3677, %v3675
    %v3910 = vpack.c.b16 %v3680, %v3678
    %v3911 = vpack.c.b16 %v3681, %v3679
    %v3912 = vpack.c.b16 %v3684, %v3682
    %v3913 = vpack.c.b16 %v3685, %v3683
    %v3914 = vpack.c.b16 %v3688, %v3686
    %v3915 = vpack.c.b16 %v3689, %v3687
    %v3916 = vpack.c.b16 %v3692, %v3690
    %v3917 = vpack.c.b16 %v3693, %v3691
    %v3918 = vpack.c.b16 %v3696, %v3694
    %v3919 = vpack.c.b16 %v3697, %v3695
    %v3920 = vpack.c.b16 %v3700, %v3698
    %v3921 = vpack.c.b16 %v3701, %v3699
    %v3922 = vpack.c.b16 %v3704, %v3702
    %v3923 = vpack.c.b16 %v3705, %v3703
    %v3924 = vpack.c.b16 %v3708, %v3706
    %v3925 = vpack.c.b16 %v3709, %v3707
    %v3926 = vpack.c.b16 %v3712, %v3710
    %v3927 = vpack.c.b16 %v3713, %v3711
    %v3928 = vpack.c.b16 %v3716, %v3714
    %v3929 = vpack.c.b16 %v3717, %v3715
    %v3930 = vpack.c.b16 %v3720, %v3718
    %v3931 = vpack.c.b16 %v3721, %v3719
    %v3932 = vpack.c.b16 %v3724, %v3722
    %v3933 = vpack.c.b16 %v3725, %v3723
    %v3934 = vpack.c.b16 %v3728, %v3726
    %v3935 = vpack.c.b16 %v3729, %v3727
    %v3936 = vpack.c.b16 %v3732, %v3730
    %v3937 = vpack.c.b16 %v3733, %v3731
    %v3938 = vpack.c.b16 %v3736, %v3734
    %v3939 = vpack.c.b16 %v3737, %v3735
    %v3940 = vpack.c.b16 %v3740, %v3738
    %v3941 = vpack.c.b16 %v3741, %v3739
    %v3942 = vpack.c.b16 %v3744, %v3742
    %v3943 = vpack.c.b16 %v3745, %v3743
    %v3944 = vpack.c.b16 %v3748, %v3746
    %v3945 = vpack.c.b16 %v3749, %v3747
    %v3946 = vpack.c.b16 %v3752, %v3750
    %v3947 = vpack.c.b16 %v3753, %v3751
    %v3948 = vpack.c.b16 %v3756, %v3754
    %v3949 = vpack.c.b16 %v3757, %v3755
    %v3950 = vpack.c.b16 %v3760, %v3758
    %v3951 = vpack.c.b16 %v3761, %v3759
    %v3952 = vpack.c.b16 %v3764, %v3762
    %v3953 = vpack.c.b16 %v3765, %v3763
    %v3954 = vpack.c.b16 %v3768, %v3766
    %v3955 = vpack.c.b16 %v3769, %v3767
    %v3956 = vpack.c.b16 %v3772, %v3770
    %v3957 = vpack.c.b16 %v3773, %v3771
    %v3958 = vpack.c.b16 %v3776, %v3774
    %v3959 = vpack.c.b16 %v3777, %v3775
    %v3960 = vpack.c.b16 %v3780, %v3778
    %v3961 = vpack.c.b16 %v3781, %v3779
    %v3962 = vpack.c.b16 %v3784, %v3782
    %v3963 = vpack.c.b16 %v3785, %v3783
    %v3964 = vpack.c.b16 %v3788, %v3786
    %v3965 = vpack.c.b16 %v3789, %v3787
    %v3966 = vpack.c.b16 %v3792, %v3790
    %v3967 = vpack.c.b16 %v3793, %v3791
    %v3968 = vpack.c.b16 %v3796, %v3794
    %v3969 = vpack.c.b16 %v3797, %v3795
    %v3970 = vpack.c.b16 %v3800, %v3798
    %v3971 = vpack.c.b16 %v3801, %v3799
    %v3972 = vpack.c.b16 %v3804, %v3802
    %v3973 = vpack.c.b16 %v3805, %v3803
    %v3974 = vpack.c.b16 %v3808, %v3806
    %v3975 = vpack.c.b16 %v3809, %v3807
    %v3976 = vpack.c.b16 %v3812, %v3810
    %v3977 = vpack.c.b16 %v3813, %v3811
    %v3978 = vpack.c.b16 %v3816, %v3814
    %v3979 = vpack.c.b16 %v3817, %v3815
    %v3980 = vpack.c.b16 %v3820, %v3818
    %v3981 = vpack.c.b16 %v3821, %v3819
    %v3982 = vpack.c.b16 %v3824, %v3822
    %v3983 = vpack.c.b16 %v3825, %v3823
    %v3984 = vpack.c.b16 %v3828, %v3826
    %v3985 = vpack.c.b16 %v3829, %v3827
    %v3986 = vpack.c.b16 %v3832, %v3830
    %v3987 = vpack.c.b16 %v3833, %v3831
    %v3988 = vpack.c.b16 %v3836, %v3834
    %v3989 = vpack.c.b16 %v3837, %v3835
    %v3990 = vpack.c.b16 %v3840, %v3838
    %v3991 = vpack.c.b16 %v3841, %v3839
    %v3992 = vpack.c.b16 %v3844, %v3842
    %v3993 = vpack.c.b16 %v3845, %v3843
    %v3994 = vpack.c.b16 %v3848, %v3846
    %v3995 = vpack.c.b16 %v3849, %v3847
    %v3996 = vpack.c.b16 %v3852, %v3850
    %v3997 = vpack.c.b16 %v3853, %v3851
    %v3998 = vpack.c.b16 %v3856, %v3854
    %v3999 = vpack.c.b16 %v3857, %v3855
    %v4000 = vpack.c.b16 %v3860, %v3858
    %v4001 = vpack.c.b16 %v3861, %v3859
    %v4002 = vpack.c.b16 %v3864, %v3862
    %v4003 = vpack.c.b16 %v3865, %v3863
    %v4004 = vpack.c.b16 %v3868, %v3866
    %v4005 = vpack.c.b16 %v3869, %v3867
    %v4006 = vpack.c.b16 %v3872, %v3870
    %v4007 = vpack.c.b16 %v3873, %v3871
    %v4008 = vpack.c.b16 %v3876, %v3874
    %v4009 = vpack.c.b16 %v3877, %v3875
    %v4010 = vpack.c.b16 %v3880, %v3878
    %v4011 = vpack.c.b16 %v3881, %v3879
    %v4012 = vpack.c.b16 %v3884, %v3882
    %v4013 = vpack.c.b16 %v3885, %v3883
    %4142 = vmatprep.subr.bf16.mxu0 %v3887
    %4143 = vmatpush1.bf16.msra.mxu0 %v3886
    %4144 = vmatprep.subr.bf16.mxu0 %v3889
    %4145 = vmatpush1.bf16.msra.mxu0 %v3888
    %4146 = vmatprep.subr.bf16.mxu0 %v3891
    %4147 = vmatpush1.bf16.msra.mxu0 %v3890
    %4148 = vmatprep.subr.bf16.mxu0 %v3893
    %4149 = vmatpush1.bf16.msra.mxu0 %v3892
    %4150 = vmatprep.subr.bf16.mxu0 %v3895
    %4151 = vmatpush1.bf16.msra.mxu0 %v3894
    %4152 = vmatprep.subr.bf16.mxu0 %v3897
    %4153 = vmatpush1.bf16.msra.mxu0 %v3896
    %4154 = vmatprep.subr.bf16.mxu0 %v3899
    %4155 = vmatpush1.bf16.msra.mxu0 %v3898
    %4156 = vmatprep.subr.bf16.mxu0 %v3901
    %4157 = vmatpush1.bf16.msra.mxu0 %v3900
    %4158 = vmatprep.subr.bf16.mxu0 %v3903
    %4159 = vmatpush1.bf16.msra.mxu0 %v3902
    %4160 = vmatprep.subr.bf16.mxu0 %v3905
    %4161 = vmatpush1.bf16.msra.mxu0 %v3904
    %4162 = vmatprep.subr.bf16.mxu0 %v3907
    %4163 = vmatpush1.bf16.msra.mxu0 %v3906
    %4164 = vmatprep.subr.bf16.mxu0 %v3909
    %4165 = vmatpush1.bf16.msra.mxu0 %v3908
    %4166 = vmatprep.subr.bf16.mxu0 %v3911
    %4167 = vmatpush1.bf16.msra.mxu0 %v3910
    %4168 = vmatprep.subr.bf16.mxu0 %v3913
    %4169 = vmatpush1.bf16.msra.mxu0 %v3912
    %4170 = vmatprep.subr.bf16.mxu0 %v3915
    %4171 = vmatpush1.bf16.msra.mxu0 %v3914
    %4172 = vmatprep.subr.bf16.mxu0 %v3917
    %4173 = vmatpush1.bf16.msra.mxu0 %v3916
    %4174 = vmatprep.mubr.bf16.mxu0 %v3495
    %4175 = vmatmul.mubr.bf16.gmra.mrb[0].mxu0 %v3494
    %v4176 = vpop.f32.mrb[0].mxu0
    %v4177 = vadd.f32 %v3487, %v4176
    %v4178 = vpop.f32.mrb[0].mxu0
    %v4179 = vadd.f32 %v3491, %v4178
    %v4180 = vpop.f32.mrb[0].mxu0
    %v4181 = vadd.f32 %v3487, %v4180
    %v4182 = vpop.f32.mrb[0].mxu0
    %v4183 = vadd.f32 %v3491, %v4182
    %4184 = vdwg.mxu0
    %4185 = vmatprep.subr.bf16.mxu0 %v3919
    %4186 = vmatpush1.bf16.msra.mxu0 %v3918
    %4187 = vmatprep.subr.bf16.mxu0 %v3921
    %4188 = vmatpush1.bf16.msra.mxu0 %v3920
    %4189 = vmatprep.subr.bf16.mxu0 %v3923
    %4190 = vmatpush1.bf16.msra.mxu0 %v3922
    %4191 = vmatprep.subr.bf16.mxu0 %v3925
    %4192 = vmatpush1.bf16.msra.mxu0 %v3924
    %4193 = vmatprep.subr.bf16.mxu0 %v3927
    %4194 = vmatpush1.bf16.msra.mxu0 %v3926
    %4195 = vmatprep.subr.bf16.mxu0 %v3929
    %4196 = vmatpush1.bf16.msra.mxu0 %v3928
    %4197 = vmatprep.subr.bf16.mxu0 %v3931
    %4198 = vmatpush1.bf16.msra.mxu0 %v3930
    %4199 = vmatprep.subr.bf16.mxu0 %v3933
    %4200 = vmatpush1.bf16.msra.mxu0 %v3932
    %4201 = vmatprep.subr.bf16.mxu0 %v3935
    %4202 = vmatpush1.bf16.msra.mxu0 %v3934
    %4203 = vmatprep.subr.bf16.mxu0 %v3937
    %4204 = vmatpush1.bf16.msra.mxu0 %v3936
    %4205 = vmatprep.subr.bf16.mxu0 %v3939
    %4206 = vmatpush1.bf16.msra.mxu0 %v3938
    %4207 = vmatprep.subr.bf16.mxu0 %v3941
    %4208 = vmatpush1.bf16.msra.mxu0 %v3940
    %4209 = vmatprep.subr.bf16.mxu0 %v3943
    %4210 = vmatpush1.bf16.msra.mxu0 %v3942
    %4211 = vmatprep.subr.bf16.mxu0 %v3945
    %4212 = vmatpush1.bf16.msra.mxu0 %v3944
    %4213 = vmatprep.subr.bf16.mxu0 %v3947
    %4214 = vmatpush1.bf16.msra.mxu0 %v3946
    %4215 = vmatprep.subr.bf16.mxu0 %v3949
    %4216 = vmatpush1.bf16.msra.mxu0 %v3948
    %4217 = vmatprep.mubr.bf16.mxu0 %v3497
    %4218 = vmatmul.mubr.bf16.gmra.mrb[0].mxu0 %v3496
    %v4219 = vpop.f32.mrb[0].mxu0
    %v4220 = vadd.f32 %v4177, %v4219
    %v4221 = vpop.f32.mrb[0].mxu0
    %v4222 = vadd.f32 %v4179, %v4221
    %v4223 = vpop.f32.mrb[0].mxu0
    %v4224 = vadd.f32 %v4181, %v4223
    %v4225 = vpop.f32.mrb[0].mxu0
    %v4226 = vadd.f32 %v4183, %v4225
    %4227 = vdwg.mxu0
    %4228 = vmatprep.subr.bf16.mxu0 %v3951
    %4229 = vmatpush1.bf16.msra.mxu0 %v3950
    %4230 = vmatprep.subr.bf16.mxu0 %v3953
    %4231 = vmatpush1.bf16.msra.mxu0 %v3952
    %4232 = vmatprep.subr.bf16.mxu0 %v3955
    %4233 = vmatpush1.bf16.msra.mxu0 %v3954
    %4234 = vmatprep.subr.bf16.mxu0 %v3957
    %4235 = vmatpush1.bf16.msra.mxu0 %v3956
    %4236 = vmatprep.subr.bf16.mxu0 %v3959
    %4237 = vmatpush1.bf16.msra.mxu0 %v3958
    %4238 = vmatprep.subr.bf16.mxu0 %v3961
    %4239 = vmatpush1.bf16.msra.mxu0 %v3960
    %4240 = vmatprep.subr.bf16.mxu0 %v3963
    %4241 = vmatpush1.bf16.msra.mxu0 %v3962
    %4242 = vmatprep.subr.bf16.mxu0 %v3965
    %4243 = vmatpush1.bf16.msra.mxu0 %v3964
    %4244 = vmatprep.subr.bf16.mxu0 %v3967
    %4245 = vmatpush1.bf16.msra.mxu0 %v3966
    %4246 = vmatprep.subr.bf16.mxu0 %v3969
    %4247 = vmatpush1.bf16.msra.mxu0 %v3968
    %4248 = vmatprep.subr.bf16.mxu0 %v3971
    %4249 = vmatpush1.bf16.msra.mxu0 %v3970
    %4250 = vmatprep.subr.bf16.mxu0 %v3973
    %4251 = vmatpush1.bf16.msra.mxu0 %v3972
    %4252 = vmatprep.subr.bf16.mxu0 %v3975
    %4253 = vmatpush1.bf16.msra.mxu0 %v3974
    %4254 = vmatprep.subr.bf16.mxu0 %v3977
    %4255 = vmatpush1.bf16.msra.mxu0 %v3976
    %4256 = vmatprep.subr.bf16.mxu0 %v3979
    %4257 = vmatpush1.bf16.msra.mxu0 %v3978
    %4258 = vmatprep.subr.bf16.mxu0 %v3981
    %4259 = vmatpush1.bf16.msra.mxu0 %v3980
    %4260 = vmatprep.mubr.bf16.mxu0 %v3499
    %4261 = vmatmul.mubr.bf16.gmra.mrb[0].mxu0 %v3498
    %v4262 = vpop.f32.mrb[0].mxu0
    %v4263 = vadd.f32 %v4220, %v4262
    %v4264 = vpop.f32.mrb[0].mxu0
    %v4265 = vadd.f32 %v4222, %v4264
    %v4266 = vpop.f32.mrb[0].mxu0
    %v4267 = vadd.f32 %v4224, %v4266
    %v4268 = vpop.f32.mrb[0].mxu0
    %v4269 = vadd.f32 %v4226, %v4268
    %4270 = vdwg.mxu0
    %4271 = vmatprep.subr.bf16.mxu0 %v3983
    %4272 = vmatpush1.bf16.msra.mxu0 %v3982
    %4273 = vmatprep.subr.bf16.mxu0 %v3985
    %4274 = vmatpush1.bf16.msra.mxu0 %v3984
    %4275 = vmatprep.subr.bf16.mxu0 %v3987
    %4276 = vmatpush1.bf16.msra.mxu0 %v3986
    %4277 = vmatprep.subr.bf16.mxu0 %v3989
    %4278 = vmatpush1.bf16.msra.mxu0 %v3988
    %4279 = vmatprep.subr.bf16.mxu0 %v3991
    %4280 = vmatpush1.bf16.msra.mxu0 %v3990
    %4281 = vmatprep.subr.bf16.mxu0 %v3993
    %4282 = vmatpush1.bf16.msra.mxu0 %v3992
    %4283 = vmatprep.subr.bf16.mxu0 %v3995
    %4284 = vmatpush1.bf16.msra.mxu0 %v3994
    %4285 = vmatprep.subr.bf16.mxu0 %v3997
    %4286 = vmatpush1.bf16.msra.mxu0 %v3996
    %4287 = vmatprep.subr.bf16.mxu0 %v3999
    %4288 = vmatpush1.bf16.msra.mxu0 %v3998
    %4289 = vmatprep.subr.bf16.mxu0 %v4001
    %4290 = vmatpush1.bf16.msra.mxu0 %v4000
    %4291 = vmatprep.subr.bf16.mxu0 %v4003
    %4292 = vmatpush1.bf16.msra.mxu0 %v4002
    %4293 = vmatprep.subr.bf16.mxu0 %v4005
    %4294 = vmatpush1.bf16.msra.mxu0 %v4004
    %4295 = vmatprep.subr.bf16.mxu0 %v4007
    %4296 = vmatpush1.bf16.msra.mxu0 %v4006
    %4297 = vmatprep.subr.bf16.mxu0 %v4009
    %4298 = vmatpush1.bf16.msra.mxu0 %v4008
    %4299 = vmatprep.subr.bf16.mxu0 %v4011
    %4300 = vmatpush1.bf16.msra.mxu0 %v4010
    %4301 = vmatprep.subr.bf16.mxu0 %v4013
    %4302 = vmatpush1.bf16.msra.mxu0 %v4012
    %4303 = vmatprep.mubr.bf16.mxu0 %v3501
    %4304 = vmatmul.mubr.bf16.gmra.mrb[0].mxu0 %v3500
    %v4305 = vpop.f32.mrb[0].mxu0
    %v4306 = vadd.f32 %v4263, %v4305
    %v4307 = vpop.f32.mrb[0].mxu0
    %v4308 = vadd.f32 %v4265, %v4307
    %v4309 = vpop.f32.mrb[0].mxu0
    %v4310 = vadd.f32 %v4267, %v4309
    %v4311 = vpop.f32.mrb[0].mxu0
    %v4312 = vadd.f32 %v4269, %v4311
    %4313 = vdwg.mxu0
    %v4314 = vmul.f32 %v4306, 0.01
    %v4315 = vmul.f32 %v4308, 0.01
    %v4316 = vmul.f32 %v4310, 0.01
    %v4317 = vmul.f32 %v4312, 0.01
    %v4318 = vmax.f32 %v4306, %v4314
    %v4319 = vmax.f32 %v4308, %v4315
    %v4320 = vmax.f32 %v4310, %v4316
    %v4321 = vmax.f32 %v4312, %v4317
    %v4322 = vpack.c.bf16 %v4320, %v4318
    %v4323 = vpack.c.bf16 %v4321, %v4319
    %4324 = vst [vmem:[#allocation3] sm:$0xff] %v4322
    %4325 = vst [vmem:[#allocation3 + $0x8] sm:$0xff] %v4323
    %v4326 = vld [vmem:[#allocation2 + $0x20] sm:$0xff]
    %v4327 = vld [vmem:[#allocation2 + $0x28] sm:$0xff]
    %v4328 = vld [vmem:[#allocation2 + $0x30] sm:$0xff]
    %v4329 = vld [vmem:[#allocation2 + $0x38] sm:$0xff]
    %v4330 = vld [vmem:[#allocation2 + $0x40] sm:$0xff]
    %v4331 = vld [vmem:[#allocation2 + $0x48] sm:$0xff]
    %v4332 = vld [vmem:[#allocation2 + $0x50] sm:$0xff]
    %v4333 = vld [vmem:[#allocation2 + $0x58] sm:$0xff]
    %4334 = vmatprep.subr.bf16.mxu0 %v3887
    %4335 = vmatpush1.bf16.msra.mxu0 %v3886
    %4336 = vmatprep.subr.bf16.mxu0 %v3889
    %4337 = vmatpush1.bf16.msra.mxu0 %v3888
    %4338 = vmatprep.subr.bf16.mxu0 %v3891
    %4339 = vmatpush1.bf16.msra.mxu0 %v3890
    %4340 = vmatprep.subr.bf16.mxu0 %v3893
    %4341 = vmatpush1.bf16.msra.mxu0 %v3892
    %4342 = vmatprep.subr.bf16.mxu0 %v3895
    %4343 = vmatpush1.bf16.msra.mxu0 %v3894
    %4344 = vmatprep.subr.bf16.mxu0 %v3897
    %4345 = vmatpush1.bf16.msra.mxu0 %v3896
    %4346 = vmatprep.subr.bf16.mxu0 %v3899
    %4347 = vmatpush1.bf16.msra.mxu0 %v3898
    %4348 = vmatprep.subr.bf16.mxu0 %v3901
    %4349 = vmatpush1.bf16.msra.mxu0 %v3900
    %4350 = vmatprep.subr.bf16.mxu0 %v3903
    %4351 = vmatpush1.bf16.msra.mxu0 %v3902
    %4352 = vmatprep.subr.bf16.mxu0 %v3905
    %4353 = vmatpush1.bf16.msra.mxu0 %v3904
    %4354 = vmatprep.subr.bf16.mxu0 %v3907
    %4355 = vmatpush1.bf16.msra.mxu0 %v3906
    %4356 = vmatprep.subr.bf16.mxu0 %v3909
    %4357 = vmatpush1.bf16.msra.mxu0 %v3908
    %4358 = vmatprep.subr.bf16.mxu0 %v3911
    %4359 = vmatpush1.bf16.msra.mxu0 %v3910
    %4360 = vmatprep.subr.bf16.mxu0 %v3913
    %4361 = vmatpush1.bf16.msra.mxu0 %v3912
    %4362 = vmatprep.subr.bf16.mxu0 %v3915
    %4363 = vmatpush1.bf16.msra.mxu0 %v3914
    %4364 = vmatprep.subr.bf16.mxu0 %v3917
    %4365 = vmatpush1.bf16.msra.mxu0 %v3916
    %4366 = vmatprep.mubr.bf16.mxu0 %v4327
    %4367 = vmatmul.mubr.bf16.gmra.mrb[0].mxu0 %v4326
    %v4368 = vpop.f32.mrb[0].mxu0
    %v4369 = vadd.f32 %v3487, %v4368
    %v4370 = vpop.f32.mrb[0].mxu0
    %v4371 = vadd.f32 %v3491, %v4370
    %v4372 = vpop.f32.mrb[0].mxu0
    %v4373 = vadd.f32 %v3487, %v4372
    %v4374 = vpop.f32.mrb[0].mxu0
    %v4375 = vadd.f32 %v3491, %v4374
    %4376 = vdwg.mxu0
    %4377 = vmatprep.subr.bf16.mxu0 %v3919
    %4378 = vmatpush1.bf16.msra.mxu0 %v3918
    %4379 = vmatprep.subr.bf16.mxu0 %v3921
    %4380 = vmatpush1.bf16.msra.mxu0 %v3920
    %4381 = vmatprep.subr.bf16.mxu0 %v3923
    %4382 = vmatpush1.bf16.msra.mxu0 %v3922
    %4383 = vmatprep.subr.bf16.mxu0 %v3925
    %4384 = vmatpush1.bf16.msra.mxu0 %v3924
    %4385 = vmatprep.subr.bf16.mxu0 %v3927
    %4386 = vmatpush1.bf16.msra.mxu0 %v3926
    %4387 = vmatprep.subr.bf16.mxu0 %v3929
    %4388 = vmatpush1.bf16.msra.mxu0 %v3928
    %4389 = vmatprep.subr.bf16.mxu0 %v3931
    %4390 = vmatpush1.bf16.msra.mxu0 %v3930
    %4391 = vmatprep.subr.bf16.mxu0 %v3933
    %4392 = vmatpush1.bf16.msra.mxu0 %v3932
    %4393 = vmatprep.subr.bf16.mxu0 %v3935
    %4394 = vmatpush1.bf16.msra.mxu0 %v3934
    %4395 = vmatprep.subr.bf16.mxu0 %v3937
    %4396 = vmatpush1.bf16.msra.mxu0 %v3936
    %4397 = vmatprep.subr.bf16.mxu0 %v3939
    %4398 = vmatpush1.bf16.msra.mxu0 %v3938
    %4399 = vmatprep.subr.bf16.mxu0 %v3941
    %4400 = vmatpush1.bf16.msra.mxu0 %v3940
    %4401 = vmatprep.subr.bf16.mxu0 %v3943
    %4402 = vmatpush1.bf16.msra.mxu0 %v3942
    %4403 = vmatprep.subr.bf16.mxu0 %v3945
    %4404 = vmatpush1.bf16.msra.mxu0 %v3944
    %4405 = vmatprep.subr.bf16.mxu0 %v3947
    %4406 = vmatpush1.bf16.msra.mxu0 %v3946
    %4407 = vmatprep.subr.bf16.mxu0 %v3949
    %4408 = vmatpush1.bf16.msra.mxu0 %v3948
    %4409 = vmatprep.mubr.bf16.mxu0 %v4329
    %4410 = vmatmul.mubr.bf16.gmra.mrb[0].mxu0 %v4328
    %v4411 = vpop.f32.mrb[0].mxu0
    %v4412 = vadd.f32 %v4369, %v4411
    %v4413 = vpop.f32.mrb[0].mxu0
    %v4414 = vadd.f32 %v4371, %v4413
    %v4415 = vpop.f32.mrb[0].mxu0
    %v4416 = vadd.f32 %v4373, %v4415
    %v4417 = vpop.f32.mrb[0].mxu0
    %v4418 = vadd.f32 %v4375, %v4417
    %4419 = vdwg.mxu0
    %4420 = vmatprep.subr.bf16.mxu0 %v3951
    %4421 = vmatpush1.bf16.msra.mxu0 %v3950
    %4422 = vmatprep.subr.bf16.mxu0 %v3953
    %4423 = vmatpush1.bf16.msra.mxu0 %v3952
    %4424 = vmatprep.subr.bf16.mxu0 %v3955
    %4425 = vmatpush1.bf16.msra.mxu0 %v3954
    %4426 = vmatprep.subr.bf16.mxu0 %v3957
    %4427 = vmatpush1.bf16.msra.mxu0 %v3956
    %4428 = vmatprep.subr.bf16.mxu0 %v3959
    %4429 = vmatpush1.bf16.msra.mxu0 %v3958
    %4430 = vmatprep.subr.bf16.mxu0 %v3961
    %4431 = vmatpush1.bf16.msra.mxu0 %v3960
    %4432 = vmatprep.subr.bf16.mxu0 %v3963
    %4433 = vmatpush1.bf16.msra.mxu0 %v3962
    %4434 = vmatprep.subr.bf16.mxu0 %v3965
    %4435 = vmatpush1.bf16.msra.mxu0 %v3964
    %4436 = vmatprep.subr.bf16.mxu0 %v3967
    %4437 = vmatpush1.bf16.msra.mxu0 %v3966
    %4438 = vmatprep.subr.bf16.mxu0 %v3969
    %4439 = vmatpush1.bf16.msra.mxu0 %v3968
    %4440 = vmatprep.subr.bf16.mxu0 %v3971
    %4441 = vmatpush1.bf16.msra.mxu0 %v3970
    %4442 = vmatprep.subr.bf16.mxu0 %v3973
    %4443 = vmatpush1.bf16.msra.mxu0 %v3972
    %4444 = vmatprep.subr.bf16.mxu0 %v3975
    %4445 = vmatpush1.bf16.msra.mxu0 %v3974
    %4446 = vmatprep.subr.bf16.mxu0 %v3977
    %4447 = vmatpush1.bf16.msra.mxu0 %v3976
    %4448 = vmatprep.subr.bf16.mxu0 %v3979
    %4449 = vmatpush1.bf16.msra.mxu0 %v3978
    %4450 = vmatprep.subr.bf16.mxu0 %v3981
    %4451 = vmatpush1.bf16.msra.mxu0 %v3980
    %4452 = vmatprep.mubr.bf16.mxu0 %v4331
    %4453 = vmatmul.mubr.bf16.gmra.mrb[0].mxu0 %v4330
    %v4454 = vpop.f32.mrb[0].mxu0
    %v4455 = vadd.f32 %v4412, %v4454
    %v4456 = vpop.f32.mrb[0].mxu0
    %v4457 = vadd.f32 %v4414, %v4456
    %v4458 = vpop.f32.mrb[0].mxu0
    %v4459 = vadd.f32 %v4416, %v4458
    %v4460 = vpop.f32.mrb[0].mxu0
    %v4461 = vadd.f32 %v4418, %v4460
    %4462 = vdwg.mxu0
    %4463 = vmatprep.subr.bf16.mxu0 %v3983
    %4464 = vmatpush1.bf16.msra.mxu0 %v3982
    %4465 = vmatprep.subr.bf16.mxu0 %v3985
    %4466 = vmatpush1.bf16.msra.mxu0 %v3984
    %4467 = vmatprep.subr.bf16.mxu0 %v3987
    %4468 = vmatpush1.bf16.msra.mxu0 %v3986
    %4469 = vmatprep.subr.bf16.mxu0 %v3989
    %4470 = vmatpush1.bf16.msra.mxu0 %v3988
    %4471 = vmatprep.subr.bf16.mxu0 %v3991
    %4472 = vmatpush1.bf16.msra.mxu0 %v3990
    %4473 = vmatprep.subr.bf16.mxu0 %v3993
    %4474 = vmatpush1.bf16.msra.mxu0 %v3992
    %4475 = vmatprep.subr.bf16.mxu0 %v3995
    %4476 = vmatpush1.bf16.msra.mxu0 %v3994
    %4477 = vmatprep.subr.bf16.mxu0 %v3997
    %4478 = vmatpush1.bf16.msra.mxu0 %v3996
    %4479 = vmatprep.subr.bf16.mxu0 %v3999
    %4480 = vmatpush1.bf16.msra.mxu0 %v3998
    %4481 = vmatprep.subr.bf16.mxu0 %v4001
    %4482 = vmatpush1.bf16.msra.mxu0 %v4000
    %4483 = vmatprep.subr.bf16.mxu0 %v4003
    %4484 = vmatpush1.bf16.msra.mxu0 %v4002
    %4485 = vmatprep.subr.bf16.mxu0 %v4005
    %4486 = vmatpush1.bf16.msra.mxu0 %v4004
    %4487 = vmatprep.subr.bf16.mxu0 %v4007
    %4488 = vmatpush1.bf16.msra.mxu0 %v4006
    %4489 = vmatprep.subr.bf16.mxu0 %v4009
    %4490 = vmatpush1.bf16.msra.mxu0 %v4008
    %4491 = vmatprep.subr.bf16.mxu0 %v4011
    %4492 = vmatpush1.bf16.msra.mxu0 %v4010
    %4493 = vmatprep.subr.bf16.mxu0 %v4013
    %4494 = vmatpush1.bf16.msra.mxu0 %v4012
    %4495 = vmatprep.mubr.bf16.mxu0 %v4333
    %4496 = vmatmul.mubr.bf16.gmra.mrb[0].mxu0 %v4332
    %v4497 = vpop.f32.mrb[0].mxu0
    %v4498 = vadd.f32 %v4455, %v4497
    %v4499 = vpop.f32.mrb[0].mxu0
    %v4500 = vadd.f32 %v4457, %v4499
    %v4501 = vpop.f32.mrb[0].mxu0
    %v4502 = vadd.f32 %v4459, %v4501
    %v4503 = vpop.f32.mrb[0].mxu0
    %v4504 = vadd.f32 %v4461, %v4503
    %4505 = vdwg.mxu0
    %v4506 = vmul.f32 %v4498, 0.01
    %v4507 = vmul.f32 %v4500, 0.01
    %v4508 = vmul.f32 %v4502, 0.01
    %v4509 = vmul.f32 %v4504, 0.01
    %v4510 = vmax.f32 %v4498, %v4506
    %v4511 = vmax.f32 %v4500, %v4507
    %v4512 = vmax.f32 %v4502, %v4508
    %v4513 = vmax.f32 %v4504, %v4509
    %v4514 = vpack.c.bf16 %v4512, %v4510
    %v4515 = vpack.c.bf16 %v4513, %v4511
    %4516 = vst [vmem:[#allocation3 + $0x10] sm:$0xff] %v4514
    %4517 = vst [vmem:[#allocation3 + $0x18] sm:$0xff] %v4515
    %v4518 = vld [vmem:[#allocation2 + $0x40] sm:$0xff]
    %v4519 = vld [vmem:[#allocation2 + $0x48] sm:$0xff]
    %v4520 = vld [vmem:[#allocation2 + $0x50] sm:$0xff]
    %v4521 = vld [vmem:[#allocation2 + $0x58] sm:$0xff]
    %v4522 = vld [vmem:[#allocation2 + $0x60] sm:$0xff]
    %v4523 = vld [vmem:[#allocation2 + $0x68] sm:$0xff]
    %v4524 = vld [vmem:[#allocation2 + $0x70] sm:$0xff]
    %v4525 = vld [vmem:[#allocation2 + $0x78] sm:$0xff]
    %4526 = vmatprep.subr.bf16.mxu0 %v3887
    %4527 = vmatpush1.bf16.msra.mxu0 %v3886
    %4528 = vmatprep.subr.bf16.mxu0 %v3889
    %4529 = vmatpush1.bf16.msra.mxu0 %v3888
    %4530 = vmatprep.subr.bf16.mxu0 %v3891
    %4531 = vmatpush1.bf16.msra.mxu0 %v3890
    %4532 = vmatprep.subr.bf16.mxu0 %v3893
    %4533 = vmatpush1.bf16.msra.mxu0 %v3892
    %4534 = vmatprep.subr.bf16.mxu0 %v3895
    %4535 = vmatpush1.bf16.msra.mxu0 %v3894
    %4536 = vmatprep.subr.bf16.mxu0 %v3897
    %4537 = vmatpush1.bf16.msra.mxu0 %v3896
    %4538 = vmatprep.subr.bf16.mxu0 %v3899
    %4539 = vmatpush1.bf16.msra.mxu0 %v3898
    %4540 = vmatprep.subr.bf16.mxu0 %v3901
    %4541 = vmatpush1.bf16.msra.mxu0 %v3900
    %4542 = vmatprep.subr.bf16.mxu0 %v3903
    %4543 = vmatpush1.bf16.msra.mxu0 %v3902
    %4544 = vmatprep.subr.bf16.mxu0 %v3905
    %4545 = vmatpush1.bf16.msra.mxu0 %v3904
    %4546 = vmatprep.subr.bf16.mxu0 %v3907
    %4547 = vmatpush1.bf16.msra.mxu0 %v3906
    %4548 = vmatprep.subr.bf16.mxu0 %v3909
    %4549 = vmatpush1.bf16.msra.mxu0 %v3908
    %4550 = vmatprep.subr.bf16.mxu0 %v3911
    %4551 = vmatpush1.bf16.msra.mxu0 %v3910
    %4552 = vmatprep.subr.bf16.mxu0 %v3913
    %4553 = vmatpush1.bf16.msra.mxu0 %v3912
    %4554 = vmatprep.subr.bf16.mxu0 %v3915
    %4555 = vmatpush1.bf16.msra.mxu0 %v3914
    %4556 = vmatprep.subr.bf16.mxu0 %v3917
    %4557 = vmatpush1.bf16.msra.mxu0 %v3916
    %4558 = vmatprep.mubr.bf16.mxu0 %v4519
    %4559 = vmatmul.mubr.bf16.gmra.mrb[0].mxu0 %v4518
    %v4560 = vpop.f32.mrb[0].mxu0
    %v4561 = vadd.f32 %v3487, %v4560
    %v4562 = vpop.f32.mrb[0].mxu0
    %v4563 = vadd.f32 %v3491, %v4562
    %v4564 = vpop.f32.mrb[0].mxu0
    %v4565 = vadd.f32 %v3487, %v4564
    %v4566 = vpop.f32.mrb[0].mxu0
    %v4567 = vadd.f32 %v3491, %v4566
    %4568 = vdwg.mxu0
    %4569 = vmatprep.subr.bf16.mxu0 %v3919
    %4570 = vmatpush1.bf16.msra.mxu0 %v3918
    %4571 = vmatprep.subr.bf16.mxu0 %v3921
    %4572 = vmatpush1.bf16.msra.mxu0 %v3920
    %4573 = vmatprep.subr.bf16.mxu0 %v3923
    %4574 = vmatpush1.bf16.msra.mxu0 %v3922
    %4575 = vmatprep.subr.bf16.mxu0 %v3925
    %4576 = vmatpush1.bf16.msra.mxu0 %v3924
    %4577 = vmatprep.subr.bf16.mxu0 %v3927
    %4578 = vmatpush1.bf16.msra.mxu0 %v3926
    %4579 = vmatprep.subr.bf16.mxu0 %v3929
    %4580 = vmatpush1.bf16.msra.mxu0 %v3928
    %4581 = vmatprep.subr.bf16.mxu0 %v3931
    %4582 = vmatpush1.bf16.msra.mxu0 %v3930
    %4583 = vmatprep.subr.bf16.mxu0 %v3933
    %4584 = vmatpush1.bf16.msra.mxu0 %v3932
    %4585 = vmatprep.subr.bf16.mxu0 %v3935
    %4586 = vmatpush1.bf16.msra.mxu0 %v3934
    %4587 = vmatprep.subr.bf16.mxu0 %v3937
    %4588 = vmatpush1.bf16.msra.mxu0 %v3936
    %4589 = vmatprep.subr.bf16.mxu0 %v3939
    %4590 = vmatpush1.bf16.msra.mxu0 %v3938
    %4591 = vmatprep.subr.bf16.mxu0 %v3941
    %4592 = vmatpush1.bf16.msra.mxu0 %v3940
    %4593 = vmatprep.subr.bf16.mxu0 %v3943
    %4594 = vmatpush1.bf16.msra.mxu0 %v3942
    %4595 = vmatprep.subr.bf16.mxu0 %v3945
    %4596 = vmatpush1.bf16.msra.mxu0 %v3944
    %4597 = vmatprep.subr.bf16.mxu0 %v3947
    %4598 = vmatpush1.bf16.msra.mxu0 %v3946
    %4599 = vmatprep.subr.bf16.mxu0 %v3949
    %4600 = vmatpush1.bf16.msra.mxu0 %v3948
    %4601 = vmatprep.mubr.bf16.mxu0 %v4521
    %4602 = vmatmul.mubr.bf16.gmra.mrb[0].mxu0 %v4520
    %v4603 = vpop.f32.mrb[0].mxu0
    %v4604 = vadd.f32 %v4561, %v4603
    %v4605 = vpop.f32.mrb[0].mxu0
    %v4606 = vadd.f32 %v4563, %v4605
    %v4607 = vpop.f32.mrb[0].mxu0
    %v4608 = vadd.f32 %v4565, %v4607
    %v4609 = vpop.f32.mrb[0].mxu0
    %v4610 = vadd.f32 %v4567, %v4609
    %4611 = vdwg.mxu0
    %4612 = vmatprep.subr.bf16.mxu0 %v3951
    %4613 = vmatpush1.bf16.msra.mxu0 %v3950
    %4614 = vmatprep.subr.bf16.mxu0 %v3953
    %4615 = vmatpush1.bf16.msra.mxu0 %v3952
    %4616 = vmatprep.subr.bf16.mxu0 %v3955
    %4617 = vmatpush1.bf16.msra.mxu0 %v3954
    %4618 = vmatprep.subr.bf16.mxu0 %v3957
    %4619 = vmatpush1.bf16.msra.mxu0 %v3956
    %4620 = vmatprep.subr.bf16.mxu0 %v3959
    %4621 = vmatpush1.bf16.msra.mxu0 %v3958
    %4622 = vmatprep.subr.bf16.mxu0 %v3961
    %4623 = vmatpush1.bf16.msra.mxu0 %v3960
    %4624 = vmatprep.subr.bf16.mxu0 %v3963
    %4625 = vmatpush1.bf16.msra.mxu0 %v3962
    %4626 = vmatprep.subr.bf16.mxu0 %v3965
    %4627 = vmatpush1.bf16.msra.mxu0 %v3964
    %4628 = vmatprep.subr.bf16.mxu0 %v3967
    %4629 = vmatpush1.bf16.msra.mxu0 %v3966
    %4630 = vmatprep.subr.bf16.mxu0 %v3969
    %4631 = vmatpush1.bf16.msra.mxu0 %v3968
    %4632 = vmatprep.subr.bf16.mxu0 %v3971
    %4633 = vmatpush1.bf16.msra.mxu0 %v3970
    %4634 = vmatprep.subr.bf16.mxu0 %v3973
    %4635 = vmatpush1.bf16.msra.mxu0 %v3972
    %4636 = vmatprep.subr.bf16.mxu0 %v3975
    %4637 = vmatpush1.bf16.msra.mxu0 %v3974
    %4638 = vmatprep.subr.bf16.mxu0 %v3977
    %4639 = vmatpush1.bf16.msra.mxu0 %v3976
    %4640 = vmatprep.subr.bf16.mxu0 %v3979
    %4641 = vmatpush1.bf16.msra.mxu0 %v3978
    %4642 = vmatprep.subr.bf16.mxu0 %v3981
    %4643 = vmatpush1.bf16.msra.mxu0 %v3980
    %4644 = vmatprep.mubr.bf16.mxu0 %v4523
    %4645 = vmatmul.mubr.bf16.gmra.mrb[0].mxu0 %v4522
    %v4646 = vpop.f32.mrb[0].mxu0
    %v4647 = vadd.f32 %v4604, %v4646
    %v4648 = vpop.f32.mrb[0].mxu0
    %v4649 = vadd.f32 %v4606, %v4648
    %v4650 = vpop.f32.mrb[0].mxu0
    %v4651 = vadd.f32 %v4608, %v4650
    %v4652 = vpop.f32.mrb[0].mxu0
    %v4653 = vadd.f32 %v4610, %v4652
    %4654 = vdwg.mxu0
    %4655 = vmatprep.subr.bf16.mxu0 %v3983
    %4656 = vmatpush1.bf16.msra.mxu0 %v3982
    %4657 = vmatprep.subr.bf16.mxu0 %v3985
    %4658 = vmatpush1.bf16.msra.mxu0 %v3984
    %4659 = vmatprep.subr.bf16.mxu0 %v3987
    %4660 = vmatpush1.bf16.msra.mxu0 %v3986
    %4661 = vmatprep.subr.bf16.mxu0 %v3989
    %4662 = vmatpush1.bf16.msra.mxu0 %v3988
    %4663 = vmatprep.subr.bf16.mxu0 %v3991
    %4664 = vmatpush1.bf16.msra.mxu0 %v3990
    %4665 = vmatprep.subr.bf16.mxu0 %v3993
    %4666 = vmatpush1.bf16.msra.mxu0 %v3992
    %4667 = vmatprep.subr.bf16.mxu0 %v3995
    %4668 = vmatpush1.bf16.msra.mxu0 %v3994
    %4669 = vmatprep.subr.bf16.mxu0 %v3997
    %4670 = vmatpush1.bf16.msra.mxu0 %v3996
    %4671 = vmatprep.subr.bf16.mxu0 %v3999
    %4672 = vmatpush1.bf16.msra.mxu0 %v3998
    %4673 = vmatprep.subr.bf16.mxu0 %v4001
    %4674 = vmatpush1.bf16.msra.mxu0 %v4000
    %4675 = vmatprep.subr.bf16.mxu0 %v4003
    %4676 = vmatpush1.bf16.msra.mxu0 %v4002
    %4677 = vmatprep.subr.bf16.mxu0 %v4005
    %4678 = vmatpush1.bf16.msra.mxu0 %v4004
    %4679 = vmatprep.subr.bf16.mxu0 %v4007
    %4680 = vmatpush1.bf16.msra.mxu0 %v4006
    %4681 = vmatprep.subr.bf16.mxu0 %v4009
    %4682 = vmatpush1.bf16.msra.mxu0 %v4008
    %4683 = vmatprep.subr.bf16.mxu0 %v4011
    %4684 = vmatpush1.bf16.msra.mxu0 %v4010
    %4685 = vmatprep.subr.bf16.mxu0 %v4013
    %4686 = vmatpush1.bf16.msra.mxu0 %v4012
    %4687 = vmatprep.mubr.bf16.mxu0 %v4525
    %4688 = vmatmul.mubr.bf16.gmra.mrb[0].mxu0 %v4524
    %v4689 = vpop.f32.mrb[0].mxu0
    %v4690 = vadd.f32 %v4647, %v4689
    %v4691 = vpop.f32.mrb[0].mxu0
    %v4692 = vadd.f32 %v4649, %v4691
    %v4693 = vpop.f32.mrb[0].mxu0
    %v4694 = vadd.f32 %v4651, %v4693
    %v4695 = vpop.f32.mrb[0].mxu0
    %v4696 = vadd.f32 %v4653, %v4695
    %4697 = vdwg.mxu0
    %v4698 = vmul.f32 %v4690, 0.01
    %v4699 = vmul.f32 %v4692, 0.01
    %v4700 = vmul.f32 %v4694, 0.01
    %v4701 = vmul.f32 %v4696, 0.01
    %v4702 = vmax.f32 %v4690, %v4698
    %v4703 = vmax.f32 %v4692, %v4699
    %v4704 = vmax.f32 %v4694, %v4700
    %v4705 = vmax.f32 %v4696, %v4701
    %v4706 = vpack.c.bf16 %v4704, %v4702
    %v4707 = vpack.c.bf16 %v4705, %v4703
    %4708 = vst [vmem:[#allocation3 + $0x20] sm:$0xff] %v4706
    %4709 = vst [vmem:[#allocation3 + $0x28] sm:$0xff] %v4707
    %v4710 = vld [vmem:[#allocation5] sm:$0xf]
    %v4711 = vld [vmem:[#allocation5 + $0x4] sm:$0xf]
    %v4712 = vld [vmem:[#allocation5 + $0x8] sm:$0xf]
    %v4713 = vld [vmem:[#allocation5 + $0xc] sm:$0xf]
    %v4714 = vld [vmem:[#allocation5 + $0x10] sm:$0xf]
    %v4715 = vld [vmem:[#allocation5 + $0x14] sm:$0xf]
    %v4716 = vld [vmem:[#allocation5 + $0x18] sm:$0xf]
    %v4717 = vld [vmem:[#allocation5 + $0x1c] sm:$0xf]
    %v4718 = vld [vmem:[#allocation5 + $0x20] sm:$0xf]
    %v4719 = vld [vmem:[#allocation5 + $0x24] sm:$0xf]
    %v4720 = vld [vmem:[#allocation5 + $0x28] sm:$0xf]
    %v4721 = vld [vmem:[#allocation5 + $0x2c] sm:$0xf]
    %v4722 = vld [vmem:[#allocation5 + $0x30] sm:$0xf]
    %v4723 = vld [vmem:[#allocation5 + $0x34] sm:$0xf]
    %v4724 = vld [vmem:[#allocation5 + $0x38] sm:$0xf]
    %v4725 = vld [vmem:[#allocation5 + $0x3c] sm:$0xf]
    %v4726 = vld [vmem:[#allocation5 + $0x40] sm:$0xf]
    %v4727 = vld [vmem:[#allocation5 + $0x44] sm:$0xf]
    %v4728 = vld [vmem:[#allocation5 + $0x48] sm:$0xf]
    %v4729 = vld [vmem:[#allocation5 + $0x4c] sm:$0xf]
    %v4730 = vld [vmem:[#allocation5 + $0x50] sm:$0xf]
    %v4731 = vld [vmem:[#allocation5 + $0x54] sm:$0xf]
    %v4732 = vld [vmem:[#allocation5 + $0x58] sm:$0xf]
    %v4733 = vld [vmem:[#allocation5 + $0x5c] sm:$0xf]
    %v4734 = vld [vmem:[#allocation5 + $0x60] sm:$0xf]
    %v4735 = vld [vmem:[#allocation5 + $0x64] sm:$0xf]
    %v4736 = vld [vmem:[#allocation5 + $0x68] sm:$0xf]
    %v4737 = vld [vmem:[#allocation5 + $0x6c] sm:$0xf]
    %v4738 = vld [vmem:[#allocation5 + $0x70] sm:$0xf]
    %v4739 = vld [vmem:[#allocation5 + $0x74] sm:$0xf]
    %v4740 = vld [vmem:[#allocation5 + $0x78] sm:$0xf]
    %v4741 = vld [vmem:[#allocation5 + $0x7c] sm:$0xf]
    %v4742 = vld [vmem:[#allocation5 + $0x80] sm:$0xf]
    %v4743 = vld [vmem:[#allocation5 + $0x84] sm:$0xf]
    %v4744 = vld [vmem:[#allocation5 + $0x88] sm:$0xf]
    %v4745 = vld [vmem:[#allocation5 + $0x8c] sm:$0xf]
    %v4746 = vld [vmem:[#allocation5 + $0x90] sm:$0xf]
    %v4747 = vld [vmem:[#allocation5 + $0x94] sm:$0xf]
    %v4748 = vld [vmem:[#allocation5 + $0x98] sm:$0xf]
    %v4749 = vld [vmem:[#allocation5 + $0x9c] sm:$0xf]
    %v4750 = vld [vmem:[#allocation5 + $0xa0] sm:$0xf]
    %v4751 = vld [vmem:[#allocation5 + $0xa4] sm:$0xf]
    %v4752 = vld [vmem:[#allocation5 + $0xa8] sm:$0xf]
    %v4753 = vld [vmem:[#allocation5 + $0xac] sm:$0xf]
    %v4754 = vld [vmem:[#allocation5 + $0xb0] sm:$0xf]
    %v4755 = vld [vmem:[#allocation5 + $0xb4] sm:$0xf]
    %v4756 = vld [vmem:[#allocation5 + $0xb8] sm:$0xf]
    %v4757 = vld [vmem:[#allocation5 + $0xbc] sm:$0xf]
    %v4758 = vld [vmem:[#allocation5 + $0xc0] sm:$0xf]
    %v4759 = vld [vmem:[#allocation5 + $0xc4] sm:$0xf]
    %v4760 = vld [vmem:[#allocation5 + $0xc8] sm:$0xf]
    %v4761 = vld [vmem:[#allocation5 + $0xcc] sm:$0xf]
    %v4762 = vld [vmem:[#allocation5 + $0xd0] sm:$0xf]
    %v4763 = vld [vmem:[#allocation5 + $0xd4] sm:$0xf]
    %v4764 = vld [vmem:[#allocation5 + $0xd8] sm:$0xf]
    %v4765 = vld [vmem:[#allocation5 + $0xdc] sm:$0xf]
    %v4766 = vld [vmem:[#allocation5 + $0xe0] sm:$0xf]
    %v4767 = vld [vmem:[#allocation5 + $0xe4] sm:$0xf]
    %v4768 = vld [vmem:[#allocation5 + $0xe8] sm:$0xf]
    %v4769 = vld [vmem:[#allocation5 + $0xec] sm:$0xf]
    %v4770 = vld [vmem:[#allocation5 + $0xf0] sm:$0xf]
    %v4771 = vld [vmem:[#allocation5 + $0xf4] sm:$0xf]
    %v4772 = vld [vmem:[#allocation5 + $0xf8] sm:$0xf]
    %v4773 = vld [vmem:[#allocation5 + $0xfc] sm:$0xf]
    %v4774 = vld [vmem:[#allocation5 + $0x100] sm:$0xf]
    %v4775 = vld [vmem:[#allocation5 + $0x104] sm:$0xf]
    %v4776 = vld [vmem:[#allocation5 + $0x108] sm:$0xf]
    %v4777 = vld [vmem:[#allocation5 + $0x10c] sm:$0xf]
    %v4778 = vld [vmem:[#allocation5 + $0x110] sm:$0xf]
    %v4779 = vld [vmem:[#allocation5 + $0x114] sm:$0xf]
    %v4780 = vld [vmem:[#allocation5 + $0x118] sm:$0xf]
    %v4781 = vld [vmem:[#allocation5 + $0x11c] sm:$0xf]
    %v4782 = vld [vmem:[#allocation5 + $0x120] sm:$0xf]
    %v4783 = vld [vmem:[#allocation5 + $0x124] sm:$0xf]
    %v4784 = vld [vmem:[#allocation5 + $0x128] sm:$0xf]
    %v4785 = vld [vmem:[#allocation5 + $0x12c] sm:$0xf]
    %v4786 = vld [vmem:[#allocation5 + $0x130] sm:$0xf]
    %v4787 = vld [vmem:[#allocation5 + $0x134] sm:$0xf]
    %v4788 = vld [vmem:[#allocation5 + $0x138] sm:$0xf]
    %v4789 = vld [vmem:[#allocation5 + $0x13c] sm:$0xf]
    %v4790 = vld [vmem:[#allocation5 + $0x140] sm:$0xf]
    %v4791 = vld [vmem:[#allocation5 + $0x144] sm:$0xf]
    %v4792 = vld [vmem:[#allocation5 + $0x148] sm:$0xf]
    %v4793 = vld [vmem:[#allocation5 + $0x14c] sm:$0xf]
    %v4794 = vld [vmem:[#allocation5 + $0x150] sm:$0xf]
    %v4795 = vld [vmem:[#allocation5 + $0x154] sm:$0xf]
    %v4796 = vld [vmem:[#allocation5 + $0x158] sm:$0xf]
    %v4797 = vld [vmem:[#allocation5 + $0x15c] sm:$0xf]
    %v4798 = vld [vmem:[#allocation5 + $0x160] sm:$0xf]
    %v4799 = vld [vmem:[#allocation5 + $0x164] sm:$0xf]
    %v4800 = vld [vmem:[#allocation5 + $0x168] sm:$0xf]
    %v4801 = vld [vmem:[#allocation5 + $0x16c] sm:$0xf]
    %v4802 = vld [vmem:[#allocation5 + $0x170] sm:$0xf]
    %v4803 = vld [vmem:[#allocation5 + $0x174] sm:$0xf]
    %v4804 = vld [vmem:[#allocation5 + $0x178] sm:$0xf]
    %v4805 = vld [vmem:[#allocation5 + $0x17c] sm:$0xf]
    %v4806 = vld [vmem:[%s6] sm:$0x1]
    %v4808 = vlaneseq
    %v4809 = vshrl.u32 %v4808, 7
    %v4810 = vsub.s32 0, %v4809
    %v4811 = vrot.slane %v4806, %v4810
    %v4813 = vld [vmem:[#allocation3] sm:$0xff]
    %v4814 = vld [vmem:[#allocation3 + $0x8] sm:$0xff]
    %v4815 = vld [vmem:[#allocation3 + $0x10] sm:$0xff]
    %v4816 = vld [vmem:[#allocation3 + $0x18] sm:$0xff]
    %v4817 = vld [vmem:[#allocation3 + $0x20] sm:$0xff]
    %v4818 = vld [vmem:[#allocation3 + $0x28] sm:$0xff]
    %v4915 = vunpack.c.l.b16 %v4710
    %v4916 = vunpack.c.l.b16 %v4711
    %v4917 = vunpack.c.l.b16 %v4712
    %v4918 = vunpack.c.l.b16 %v4713
    %v4919 = vunpack.c.l.b16 %v4714
    %v4920 = vunpack.c.l.b16 %v4715
    %v4921 = vunpack.c.l.b16 %v4716
    %v4922 = vunpack.c.l.b16 %v4717
    %v4923 = vunpack.c.l.b16 %v4718
    %v4924 = vunpack.c.l.b16 %v4719
    %v4925 = vunpack.c.l.b16 %v4720
    %v4926 = vunpack.c.l.b16 %v4721
    %v4927 = vunpack.c.l.b16 %v4722
    %v4928 = vunpack.c.l.b16 %v4723
    %v4929 = vunpack.c.l.b16 %v4724
    %v4930 = vunpack.c.l.b16 %v4725
    %v4931 = vunpack.c.l.b16 %v4726
    %v4932 = vunpack.c.l.b16 %v4727
    %v4933 = vunpack.c.l.b16 %v4728
    %v4934 = vunpack.c.l.b16 %v4729
    %v4935 = vunpack.c.l.b16 %v4730
    %v4936 = vunpack.c.l.b16 %v4731
    %v4937 = vunpack.c.l.b16 %v4732
    %v4938 = vunpack.c.l.b16 %v4733
    %v4939 = vunpack.c.l.b16 %v4734
    %v4940 = vunpack.c.l.b16 %v4735
    %v4941 = vunpack.c.l.b16 %v4736
    %v4942 = vunpack.c.l.b16 %v4737
    %v4943 = vunpack.c.l.b16 %v4738
    %v4944 = vunpack.c.l.b16 %v4739
    %v4945 = vunpack.c.l.b16 %v4740
    %v4946 = vunpack.c.l.b16 %v4741
    %v4947 = vunpack.c.l.b16 %v4742
    %v4948 = vunpack.c.l.b16 %v4743
    %v4949 = vunpack.c.l.b16 %v4744
    %v4950 = vunpack.c.l.b16 %v4745
    %v4951 = vunpack.c.l.b16 %v4746
    %v4952 = vunpack.c.l.b16 %v4747
    %v4953 = vunpack.c.l.b16 %v4748
    %v4954 = vunpack.c.l.b16 %v4749
    %v4955 = vunpack.c.l.b16 %v4750
    %v4956 = vunpack.c.l.b16 %v4751
    %v4957 = vunpack.c.l.b16 %v4752
    %v4958 = vunpack.c.l.b16 %v4753
    %v4959 = vunpack.c.l.b16 %v4754
    %v4960 = vunpack.c.l.b16 %v4755
    %v4961 = vunpack.c.l.b16 %v4756
    %v4962 = vunpack.c.l.b16 %v4757
    %v4963 = vunpack.c.l.b16 %v4758
    %v4964 = vunpack.c.l.b16 %v4759
    %v4965 = vunpack.c.l.b16 %v4760
    %v4966 = vunpack.c.l.b16 %v4761
    %v4967 = vunpack.c.l.b16 %v4762
    %v4968 = vunpack.c.l.b16 %v4763
    %v4969 = vunpack.c.l.b16 %v4764
    %v4970 = vunpack.c.l.b16 %v4765
    %v4971 = vunpack.c.l.b16 %v4766
    %v4972 = vunpack.c.l.b16 %v4767
    %v4973 = vunpack.c.l.b16 %v4768
    %v4974 = vunpack.c.l.b16 %v4769
    %v4975 = vunpack.c.l.b16 %v4770
    %v4976 = vunpack.c.l.b16 %v4771
    %v4977 = vunpack.c.l.b16 %v4772
    %v4978 = vunpack.c.l.b16 %v4773
    %v4979 = vunpack.c.l.b16 %v4774
    %v4980 = vunpack.c.l.b16 %v4775
    %v4981 = vunpack.c.l.b16 %v4776
    %v4982 = vunpack.c.l.b16 %v4777
    %v4983 = vunpack.c.l.b16 %v4778
    %v4984 = vunpack.c.l.b16 %v4779
    %v4985 = vunpack.c.l.b16 %v4780
    %v4986 = vunpack.c.l.b16 %v4781
    %v4987 = vunpack.c.l.b16 %v4782
    %v4988 = vunpack.c.l.b16 %v4783
    %v4989 = vunpack.c.l.b16 %v4784
    %v4990 = vunpack.c.l.b16 %v4785
    %v4991 = vunpack.c.l.b16 %v4786
    %v4992 = vunpack.c.l.b16 %v4787
    %v4993 = vunpack.c.l.b16 %v4788
    %v4994 = vunpack.c.l.b16 %v4789
    %v4995 = vunpack.c.l.b16 %v4790
    %v4996 = vunpack.c.l.b16 %v4791
    %v4997 = vunpack.c.l.b16 %v4792
    %v4998 = vunpack.c.l.b16 %v4793
    %v4999 = vunpack.c.l.b16 %v4794
    %v5000 = vunpack.c.l.b16 %v4795
    %v5001 = vunpack.c.l.b16 %v4796
    %v5002 = vunpack.c.l.b16 %v4797
    %v5003 = vunpack.c.l.b16 %v4798
    %v5004 = vunpack.c.l.b16 %v4799
    %v5005 = vunpack.c.l.b16 %v4800
    %v5006 = vunpack.c.l.b16 %v4801
    %v5007 = vunpack.c.l.b16 %v4802
    %v5008 = vunpack.c.l.b16 %v4803
    %v5009 = vunpack.c.l.b16 %v4804
    %v5010 = vunpack.c.l.b16 %v4805
    %v5011 = vpack.c.b16 %v4916, %v4915
    %v5012 = vpack.c.b16 %v4918, %v4917
    %v5013 = vpack.c.b16 %v4920, %v4919
    %v5014 = vpack.c.b16 %v4922, %v4921
    %v5015 = vpack.c.b16 %v4924, %v4923
    %v5016 = vpack.c.b16 %v4926, %v4925
    %v5017 = vpack.c.b16 %v4928, %v4927
    %v5018 = vpack.c.b16 %v4930, %v4929
    %v5019 = vpack.c.b16 %v4932, %v4931
    %v5020 = vpack.c.b16 %v4934, %v4933
    %v5021 = vpack.c.b16 %v4936, %v4935
    %v5022 = vpack.c.b16 %v4938, %v4937
    %v5023 = vpack.c.b16 %v4940, %v4939
    %v5024 = vpack.c.b16 %v4942, %v4941
    %v5025 = vpack.c.b16 %v4944, %v4943
    %v5026 = vpack.c.b16 %v4946, %v4945
    %v5027 = vpack.c.b16 %v4948, %v4947
    %v5028 = vpack.c.b16 %v4950, %v4949
    %v5029 = vpack.c.b16 %v4952, %v4951
    %v5030 = vpack.c.b16 %v4954, %v4953
    %v5031 = vpack.c.b16 %v4956, %v4955
    %v5032 = vpack.c.b16 %v4958, %v4957
    %v5033 = vpack.c.b16 %v4960, %v4959
    %v5034 = vpack.c.b16 %v4962, %v4961
    %v5035 = vpack.c.b16 %v4964, %v4963
    %v5036 = vpack.c.b16 %v4966, %v4965
    %v5037 = vpack.c.b16 %v4968, %v4967
    %v5038 = vpack.c.b16 %v4970, %v4969
    %v5039 = vpack.c.b16 %v4972, %v4971
    %v5040 = vpack.c.b16 %v4974, %v4973
    %v5041 = vpack.c.b16 %v4976, %v4975
    %v5042 = vpack.c.b16 %v4978, %v4977
    %v5043 = vpack.c.b16 %v4980, %v4979
    %v5044 = vpack.c.b16 %v4982, %v4981
    %v5045 = vpack.c.b16 %v4984, %v4983
    %v5046 = vpack.c.b16 %v4986, %v4985
    %v5047 = vpack.c.b16 %v4988, %v4987
    %v5048 = vpack.c.b16 %v4990, %v4989
    %v5049 = vpack.c.b16 %v4992, %v4991
    %v5050 = vpack.c.b16 %v4994, %v4993
    %v5051 = vpack.c.b16 %v4996, %v4995
    %v5052 = vpack.c.b16 %v4998, %v4997
    %v5053 = vpack.c.b16 %v5000, %v4999
    %v5054 = vpack.c.b16 %v5002, %v5001
    %v5055 = vpack.c.b16 %v5004, %v5003
    %v5056 = vpack.c.b16 %v5006, %v5005
    %v5057 = vpack.c.b16 %v5008, %v5007
    %v5058 = vpack.c.b16 %v5010, %v5009
    %5107 = vmatprep.subr.bf16.mxu0 0
    %5108 = vmatpush1.bf16.msra.mxu0 %v5011
    %5109 = vmatprep.subr.bf16.mxu0 0
    %5110 = vmatpush1.bf16.msra.mxu0 %v5012
    %5111 = vmatprep.subr.bf16.mxu0 0
    %5112 = vmatpush1.bf16.msra.mxu0 %v5013
    %5113 = vmatprep.subr.bf16.mxu0 0
    %5114 = vmatpush1.bf16.msra.mxu0 %v5014
    %5115 = vmatprep.subr.bf16.mxu0 0
    %5116 = vmatpush1.bf16.msra.mxu0 %v5015
    %5117 = vmatprep.subr.bf16.mxu0 0
    %5118 = vmatpush1.bf16.msra.mxu0 %v5016
    %5119 = vmatprep.subr.bf16.mxu0 0
    %5120 = vmatpush1.bf16.msra.mxu0 %v5017
    %5121 = vmatprep.subr.bf16.mxu0 0
    %5122 = vmatpush1.bf16.msra.mxu0 %v5018
    %5123 = vmatprep.subr.bf16.mxu0 0
    %5124 = vmatpush1.bf16.msra.mxu0 %v5019
    %5125 = vmatprep.subr.bf16.mxu0 0
    %5126 = vmatpush1.bf16.msra.mxu0 %v5020
    %5127 = vmatprep.subr.bf16.mxu0 0
    %5128 = vmatpush1.bf16.msra.mxu0 %v5021
    %5129 = vmatprep.subr.bf16.mxu0 0
    %5130 = vmatpush1.bf16.msra.mxu0 %v5022
    %5131 = vmatprep.subr.bf16.mxu0 0
    %5132 = vmatpush1.bf16.msra.mxu0 %v5023
    %5133 = vmatprep.subr.bf16.mxu0 0
    %5134 = vmatpush1.bf16.msra.mxu0 %v5024
    %5135 = vmatprep.subr.bf16.mxu0 0
    %5136 = vmatpush1.bf16.msra.mxu0 %v5025
    %5137 = vmatprep.subr.bf16.mxu0 0
    %5138 = vmatpush1.bf16.msra.mxu0 %v5026
    %5139 = vmatprep.mubr.bf16.mxu0 %v4814
    %5140 = vmatmul.mubr.bf16.gmra.mrb[0].mxu0 %v4813
    %v5141 = vpop.f32.mrb[0].mxu0
    %v5142 = vadd.f32 %v4811, %v5141
    %v5143 = vpop.f32.mrb[0].mxu0
    %v5144 = vpop.f32.mrb[0].mxu0
    %v5145 = vadd.f32 %v4811, %v5144
    %v5146 = vpop.f32.mrb[0].mxu0
    %5147 = vdwg.mxu0
    %5148 = vmatprep.subr.bf16.mxu0 0
    %5149 = vmatpush1.bf16.msra.mxu0 %v5027
    %5150 = vmatprep.subr.bf16.mxu0 0
    %5151 = vmatpush1.bf16.msra.mxu0 %v5028
    %5152 = vmatprep.subr.bf16.mxu0 0
    %5153 = vmatpush1.bf16.msra.mxu0 %v5029
    %5154 = vmatprep.subr.bf16.mxu0 0
    %5155 = vmatpush1.bf16.msra.mxu0 %v5030
    %5156 = vmatprep.subr.bf16.mxu0 0
    %5157 = vmatpush1.bf16.msra.mxu0 %v5031
    %5158 = vmatprep.subr.bf16.mxu0 0
    %5159 = vmatpush1.bf16.msra.mxu0 %v5032
    %5160 = vmatprep.subr.bf16.mxu0 0
    %5161 = vmatpush1.bf16.msra.mxu0 %v5033
    %5162 = vmatprep.subr.bf16.mxu0 0
    %5163 = vmatpush1.bf16.msra.mxu0 %v5034
    %5164 = vmatprep.subr.bf16.mxu0 0
    %5165 = vmatpush1.bf16.msra.mxu0 %v5035
    %5166 = vmatprep.subr.bf16.mxu0 0
    %5167 = vmatpush1.bf16.msra.mxu0 %v5036
    %5168 = vmatprep.subr.bf16.mxu0 0
    %5169 = vmatpush1.bf16.msra.mxu0 %v5037
    %5170 = vmatprep.subr.bf16.mxu0 0
    %5171 = vmatpush1.bf16.msra.mxu0 %v5038
    %5172 = vmatprep.subr.bf16.mxu0 0
    %5173 = vmatpush1.bf16.msra.mxu0 %v5039
    %5174 = vmatprep.subr.bf16.mxu0 0
    %5175 = vmatpush1.bf16.msra.mxu0 %v5040
    %5176 = vmatprep.subr.bf16.mxu0 0
    %5177 = vmatpush1.bf16.msra.mxu0 %v5041
    %5178 = vmatprep.subr.bf16.mxu0 0
    %5179 = vmatpush1.bf16.msra.mxu0 %v5042
    %5180 = vmatprep.mubr.bf16.mxu0 %v4816
    %5181 = vmatmul.mubr.bf16.gmra.mrb[0].mxu0 %v4815
    %v5182 = vpop.f32.mrb[0].mxu0
    %v5183 = vadd.f32 %v5142, %v5182
    %v5184 = vpop.f32.mrb[0].mxu0
    %v5185 = vpop.f32.mrb[0].mxu0
    %v5186 = vadd.f32 %v5145, %v5185
    %v5187 = vpop.f32.mrb[0].mxu0
    %5188 = vdwg.mxu0
    %5189 = vmatprep.subr.bf16.mxu0 0
    %5190 = vmatpush1.bf16.msra.mxu0 %v5043
    %5191 = vmatprep.subr.bf16.mxu0 0
    %5192 = vmatpush1.bf16.msra.mxu0 %v5044
    %5193 = vmatprep.subr.bf16.mxu0 0
    %5194 = vmatpush1.bf16.msra.mxu0 %v5045
    %5195 = vmatprep.subr.bf16.mxu0 0
    %5196 = vmatpush1.bf16.msra.mxu0 %v5046
    %5197 = vmatprep.subr.bf16.mxu0 0
    %5198 = vmatpush1.bf16.msra.mxu0 %v5047
    %5199 = vmatprep.subr.bf16.mxu0 0
    %5200 = vmatpush1.bf16.msra.mxu0 %v5048
    %5201 = vmatprep.subr.bf16.mxu0 0
    %5202 = vmatpush1.bf16.msra.mxu0 %v5049
    %5203 = vmatprep.subr.bf16.mxu0 0
    %5204 = vmatpush1.bf16.msra.mxu0 %v5050
    %5205 = vmatprep.subr.bf16.mxu0 0
    %5206 = vmatpush1.bf16.msra.mxu0 %v5051
    %5207 = vmatprep.subr.bf16.mxu0 0
    %5208 = vmatpush1.bf16.msra.mxu0 %v5052
    %5209 = vmatprep.subr.bf16.mxu0 0
    %5210 = vmatpush1.bf16.msra.mxu0 %v5053
    %5211 = vmatprep.subr.bf16.mxu0 0
    %5212 = vmatpush1.bf16.msra.mxu0 %v5054
    %5213 = vmatprep.subr.bf16.mxu0 0
    %5214 = vmatpush1.bf16.msra.mxu0 %v5055
    %5215 = vmatprep.subr.bf16.mxu0 0
    %5216 = vmatpush1.bf16.msra.mxu0 %v5056
    %5217 = vmatprep.subr.bf16.mxu0 0
    %5218 = vmatpush1.bf16.msra.mxu0 %v5057
    %5219 = vmatprep.subr.bf16.mxu0 0
    %5220 = vmatpush1.bf16.msra.mxu0 %v5058
    %5221 = vmatprep.mubr.bf16.mxu0 %v4818
    %5222 = vmatmul.mubr.bf16.gmra.mrb[0].mxu0 %v4817
    %v5223 = vpop.f32.mrb[0].mxu0
    %v5224 = vadd.f32 %v5183, %v5223
    %v5225 = vpop.f32.mrb[0].mxu0
    %v5226 = vpop.f32.mrb[0].mxu0
    %v5227 = vadd.f32 %v5186, %v5226
    %v5228 = vpop.f32.mrb[0].mxu0
    %5229 = vdwg.mxu0
    %v5230 = vmul.f32 %v5224, 0.01
    %v5231 = vmul.f32 %v5227, 0.01
    %v5232 = vmax.f32 %v5224, %v5230
    %v5233 = vmax.f32 %v5227, %v5231
    %v5234 = vpack.c.bf16 %v5233, %v5232
    %5235 = vst [vmem:[#allocation4] sm:$0xff] %v5234
    %v5236 = vld [vmem:[#allocation4] sm:$0xff]
    %v5237 = vld [vmem:[%s7] sm:$0xff]
    %v5238 = vld [vmem:[%s7 + $0x8] sm:$0xff]
    %v5239 = vld [vmem:[%s7 + $0x10] sm:$0xff]
    %v5240 = vld [vmem:[%s7 + $0x18] sm:$0xff]
    %v5241 = vld [vmem:[%s7 + $0x20] sm:$0xff]
    %v5242 = vld [vmem:[%s7 + $0x28] sm:$0xff]
    %v5243 = vld [vmem:[%s7 + $0x30] sm:$0xff]
    %v5244 = vld [vmem:[%s7 + $0x38] sm:$0xff]
    %v5245 = vld [vmem:[%s7 + $0x40] sm:$0xff]
    %v5246 = vld [vmem:[%s7 + $0x48] sm:$0xff]
    %v5247 = vld [vmem:[%s7 + $0x50] sm:$0xff]
    %v5248 = vld [vmem:[%s7 + $0x58] sm:$0xff]
    %v5249 = vld [vmem:[%s7 + $0x60] sm:$0xff]
    %v5250 = vld [vmem:[%s7 + $0x68] sm:$0xff]
    %v5251 = vld [vmem:[%s7 + $0x70] sm:$0xff]
    %v5252 = vld [vmem:[%s7 + $0x78] sm:$0xff]
    %v5253 = vld [vmem:[%s7 + $0x80] sm:$0xff]
    %v5254 = vld [vmem:[%s7 + $0x88] sm:$0xff]
    %v5255 = vld [vmem:[%s7 + $0x90] sm:$0xff]
    %v5256 = vld [vmem:[%s7 + $0x98] sm:$0xff]
    %v5257 = vld [vmem:[%s7 + $0xa0] sm:$0xff]
    %v5258 = vld [vmem:[%s7 + $0xa8] sm:$0xff]
    %v5259 = vld [vmem:[%s7 + $0xb0] sm:$0xff]
    %v5260 = vld [vmem:[%s7 + $0xb8] sm:$0xff]
    %v5261 = vld [vmem:[%s7 + $0xc0] sm:$0xff]
    %v5262 = vld [vmem:[%s7 + $0xc8] sm:$0xff]
    %v5263 = vld [vmem:[%s7 + $0xd0] sm:$0xff]
    %v5264 = vld [vmem:[%s7 + $0xd8] sm:$0xff]
    %v5265 = vld [vmem:[%s7 + $0xe0] sm:$0xff]
    %v5266 = vld [vmem:[%s7 + $0xe8] sm:$0xff]
    %v5267 = vld [vmem:[%s7 + $0xf0] sm:$0xff]
    %v5268 = vld [vmem:[%s7 + $0xf8] sm:$0xff]
    %v5269 = vld [vmem:[%s8] sm:$0xf]
    %v5271 = vlaneseq
    %v5272 = vshrl.u32 %v5271, 7
    %v5273 = vsub.s32 0, %v5272
    %v5274 = vrot.slane %v5269, %v5273
    %v5275 = vlaneseq
    %v5276 = vshrl.u32 %v5275, 7
    %v5277 = vsub.s32 1, %v5276
    %v5278 = vrot.slane %v5269, %v5277
    %v5279 = vlaneseq
    %v5280 = vshrl.u32 %v5279, 7
    %v5281 = vsub.s32 2, %v5280
    %v5282 = vrot.slane %v5269, %v5281
    %v5283 = vlaneseq
    %v5284 = vshrl.u32 %v5283, 7
    %v5285 = vsub.s32 3, %v5284
    %v5286 = vrot.slane %v5269, %v5285
    %v5323 = vunpack.c.l.b16 %v5237
    %v5324 = vunpack.c.h.b16 %v5237
    %v5325 = vunpack.c.l.b16 %v5238
    %v5326 = vunpack.c.h.b16 %v5238
    %v5327 = vunpack.c.l.b16 %v5239
    %v5328 = vunpack.c.h.b16 %v5239
    %v5329 = vunpack.c.l.b16 %v5240
    %v5330 = vunpack.c.h.b16 %v5240
    %v5331 = vunpack.c.l.b16 %v5241
    %v5332 = vunpack.c.h.b16 %v5241
    %v5333 = vunpack.c.l.b16 %v5242
    %v5334 = vunpack.c.h.b16 %v5242
    %v5335 = vunpack.c.l.b16 %v5243
    %v5336 = vunpack.c.h.b16 %v5243
    %v5337 = vunpack.c.l.b16 %v5244
    %v5338 = vunpack.c.h.b16 %v5244
    %v5339 = vunpack.c.l.b16 %v5245
    %v5340 = vunpack.c.h.b16 %v5245
    %v5341 = vunpack.c.l.b16 %v5246
    %v5342 = vunpack.c.h.b16 %v5246
    %v5343 = vunpack.c.l.b16 %v5247
    %v5344 = vunpack.c.h.b16 %v5247
    %v5345 = vunpack.c.l.b16 %v5248
    %v5346 = vunpack.c.h.b16 %v5248
    %v5347 = vunpack.c.l.b16 %v5249
    %v5348 = vunpack.c.h.b16 %v5249
    %v5349 = vunpack.c.l.b16 %v5250
    %v5350 = vunpack.c.h.b16 %v5250
    %v5351 = vunpack.c.l.b16 %v5251
    %v5352 = vunpack.c.h.b16 %v5251
    %v5353 = vunpack.c.l.b16 %v5252
    %v5354 = vunpack.c.h.b16 %v5252
    %v5355 = vunpack.c.l.b16 %v5253
    %v5356 = vunpack.c.h.b16 %v5253
    %v5357 = vunpack.c.l.b16 %v5254
    %v5358 = vunpack.c.h.b16 %v5254
    %v5359 = vunpack.c.l.b16 %v5255
    %v5360 = vunpack.c.h.b16 %v5255
    %v5361 = vunpack.c.l.b16 %v5256
    %v5362 = vunpack.c.h.b16 %v5256
    %v5363 = vunpack.c.l.b16 %v5257
    %v5364 = vunpack.c.h.b16 %v5257
    %v5365 = vunpack.c.l.b16 %v5258
    %v5366 = vunpack.c.h.b16 %v5258
    %v5367 = vunpack.c.l.b16 %v5259
    %v5368 = vunpack.c.h.b16 %v5259
    %v5369 = vunpack.c.l.b16 %v5260
    %v5370 = vunpack.c.h.b16 %v5260
    %v5371 = vunpack.c.l.b16 %v5261
    %v5372 = vunpack.c.h.b16 %v5261
    %v5373 = vunpack.c.l.b16 %v5262
    %v5374 = vunpack.c.h.b16 %v5262
    %v5375 = vunpack.c.l.b16 %v5263
    %v5376 = vunpack.c.h.b16 %v5263
    %v5377 = vunpack.c.l.b16 %v5264
    %v5378 = vunpack.c.h.b16 %v5264
    %v5379 = vunpack.c.l.b16 %v5265
    %v5380 = vunpack.c.h.b16 %v5265
    %v5381 = vunpack.c.l.b16 %v5266
    %v5382 = vunpack.c.h.b16 %v5266
    %v5383 = vunpack.c.l.b16 %v5267
    %v5384 = vunpack.c.h.b16 %v5267
    %v5385 = vunpack.c.l.b16 %v5268
    %v5386 = vunpack.c.h.b16 %v5268
    %v5387 = vpack.c.b16 %v5327, %v5323
    %v5388 = vpack.c.b16 %v5328, %v5324
    %v5389 = vpack.c.b16 %v5329, %v5325
    %v5390 = vpack.c.b16 %v5330, %v5326
    %v5391 = vpack.c.b16 %v5335, %v5331
    %v5392 = vpack.c.b16 %v5336, %v5332
    %v5393 = vpack.c.b16 %v5337, %v5333
    %v5394 = vpack.c.b16 %v5338, %v5334
    %v5395 = vpack.c.b16 %v5343, %v5339
    %v5396 = vpack.c.b16 %v5344, %v5340
    %v5397 = vpack.c.b16 %v5345, %v5341
    %v5398 = vpack.c.b16 %v5346, %v5342
    %v5399 = vpack.c.b16 %v5351, %v5347
    %v5400 = vpack.c.b16 %v5352, %v5348
    %v5401 = vpack.c.b16 %v5353, %v5349
    %v5402 = vpack.c.b16 %v5354, %v5350
    %v5403 = vpack.c.b16 %v5359, %v5355
    %v5404 = vpack.c.b16 %v5360, %v5356
    %v5405 = vpack.c.b16 %v5361, %v5357
    %v5406 = vpack.c.b16 %v5362, %v5358
    %v5407 = vpack.c.b16 %v5367, %v5363
    %v5408 = vpack.c.b16 %v5368, %v5364
    %v5409 = vpack.c.b16 %v5369, %v5365
    %v5410 = vpack.c.b16 %v5370, %v5366
    %v5411 = vpack.c.b16 %v5375, %v5371
    %v5412 = vpack.c.b16 %v5376, %v5372
    %v5413 = vpack.c.b16 %v5377, %v5373
    %v5414 = vpack.c.b16 %v5378, %v5374
    %v5415 = vpack.c.b16 %v5383, %v5379
    %v5416 = vpack.c.b16 %v5384, %v5380
    %v5417 = vpack.c.b16 %v5385, %v5381
    %v5418 = vpack.c.b16 %v5386, %v5382
    %5451 = vmatprep.subr.bf16.mxu0 %v5388
    %5452 = vmatpush1.bf16.msra.mxu0 %v5387
    %5453 = vmatprep.subr.bf16.mxu0 %v5392
    %5454 = vmatpush1.bf16.msra.mxu0 %v5391
    %5455 = vmatprep.subr.bf16.mxu0 %v5396
    %5456 = vmatpush1.bf16.msra.mxu0 %v5395
    %5457 = vmatprep.subr.bf16.mxu0 %v5400
    %5458 = vmatpush1.bf16.msra.mxu0 %v5399
    %5459 = vmatprep.subr.bf16.mxu0 %v5404
    %5460 = vmatpush1.bf16.msra.mxu0 %v5403
    %5461 = vmatprep.subr.bf16.mxu0 %v5408
    %5462 = vmatpush1.bf16.msra.mxu0 %v5407
    %5463 = vmatprep.subr.bf16.mxu0 %v5412
    %5464 = vmatpush1.bf16.msra.mxu0 %v5411
    %5465 = vmatprep.subr.bf16.mxu0 %v5416
    %5466 = vmatpush1.bf16.msra.mxu0 %v5415
    %5467 = vmatprep.subr.bf16.mxu0 0
    %5468 = vmatpush1.bf16.msra.mxu0 0
    %5469 = vmatprep.subr.bf16.mxu0 0
    %5470 = vmatpush1.bf16.msra.mxu0 0
    %5471 = vmatprep.subr.bf16.mxu0 0
    %5472 = vmatpush1.bf16.msra.mxu0 0
    %5473 = vmatprep.subr.bf16.mxu0 0
    %5474 = vmatpush1.bf16.msra.mxu0 0
    %5475 = vmatprep.subr.bf16.mxu0 0
    %5476 = vmatpush1.bf16.msra.mxu0 0
    %5477 = vmatprep.subr.bf16.mxu0 0
    %5478 = vmatpush1.bf16.msra.mxu0 0
    %5479 = vmatprep.subr.bf16.mxu0 0
    %5480 = vmatpush1.bf16.msra.mxu0 0
    %5481 = vmatprep.subr.bf16.mxu0 0
    %5482 = vmatpush1.bf16.msra.mxu0 0
    %5483 = vmatprep.mubr.bf16.mxu0 0
    %5484 = vmatmul.mubr.bf16.gmra.mrb[0].mxu0 %v5236
    %v5485 = vpop.f32.mrb[0].mxu0
    %v5486 = vadd.f32 %v5274, %v5485
    %v5487 = vpop.f32.mrb[0].mxu0
    %v5488 = vadd.f32 %v5278, %v5487
    %v5489 = vpop.f32.mrb[0].mxu0
    %v5490 = vadd.f32 %v5274, %v5489
    %v5491 = vpop.f32.mrb[0].mxu0
    %v5492 = vadd.f32 %v5278, %v5491
    %5493 = vdwg.mxu0
    %5494 = vmatprep.subr.bf16.mxu0 %v5390
    %5495 = vmatpush1.bf16.msra.mxu0 %v5389
    %5496 = vmatprep.subr.bf16.mxu0 %v5394
    %5497 = vmatpush1.bf16.msra.mxu0 %v5393
    %5498 = vmatprep.subr.bf16.mxu0 %v5398
    %5499 = vmatpush1.bf16.msra.mxu0 %v5397
    %5500 = vmatprep.subr.bf16.mxu0 %v5402
    %5501 = vmatpush1.bf16.msra.mxu0 %v5401
    %5502 = vmatprep.subr.bf16.mxu0 %v5406
    %5503 = vmatpush1.bf16.msra.mxu0 %v5405
    %5504 = vmatprep.subr.bf16.mxu0 %v5410
    %5505 = vmatpush1.bf16.msra.mxu0 %v5409
    %5506 = vmatprep.subr.bf16.mxu0 %v5414
    %5507 = vmatpush1.bf16.msra.mxu0 %v5413
    %5508 = vmatprep.subr.bf16.mxu0 %v5418
    %5509 = vmatpush1.bf16.msra.mxu0 %v5417
    %5510 = vmatprep.subr.bf16.mxu0 0
    %5511 = vmatpush1.bf16.msra.mxu0 0
    %5512 = vmatprep.subr.bf16.mxu0 0
    %5513 = vmatpush1.bf16.msra.mxu0 0
    %5514 = vmatprep.subr.bf16.mxu0 0
    %5515 = vmatpush1.bf16.msra.mxu0 0
    %5516 = vmatprep.subr.bf16.mxu0 0
    %5517 = vmatpush1.bf16.msra.mxu0 0
    %5518 = vmatprep.subr.bf16.mxu0 0
    %5519 = vmatpush1.bf16.msra.mxu0 0
    %5520 = vmatprep.subr.bf16.mxu0 0
    %5521 = vmatpush1.bf16.msra.mxu0 0
    %5522 = vmatprep.subr.bf16.mxu0 0
    %5523 = vmatpush1.bf16.msra.mxu0 0
    %5524 = vmatprep.subr.bf16.mxu0 0
    %5525 = vmatpush1.bf16.msra.mxu0 0
    %5526 = vmatprep.mubr.bf16.mxu0 0
    %5527 = vmatmul.mubr.bf16.gmra.mrb[0].mxu0 %v5236
    %v5528 = vpop.f32.mrb[0].mxu0
    %v5529 = vadd.f32 %v5282, %v5528
    %v5530 = vpop.f32.mrb[0].mxu0
    %v5531 = vadd.f32 %v5286, %v5530
    %v5532 = vpop.f32.mrb[0].mxu0
    %v5533 = vadd.f32 %v5282, %v5532
    %v5534 = vpop.f32.mrb[0].mxu0
    %v5535 = vadd.f32 %v5286, %v5534
    %5536 = vdwg.mxu0
    %v5537 = vmax.f32 %v5486, 0.0
    %v5538 = vmax.f32 %v5488, 0.0
    %v5539 = vmax.f32 %v5529, 0.0
    %v5540 = vmax.f32 %v5531, 0.0
    %v5541 = vmax.f32 %v5490, 0.0
    %v5542 = vmax.f32 %v5492, 0.0
    %v5543 = vmax.f32 %v5533, 0.0
    %v5544 = vmax.f32 %v5535, 0.0
    %v5545 = vpack.c.bf16 %v5541, %v5537
    %v5546 = vpack.c.bf16 %v5542, %v5538
    %v5547 = vpack.c.bf16 %v5543, %v5539
    %v5548 = vpack.c.bf16 %v5544, %v5540
    %v5549 = vld [vmem:[#allocation7] sm:$0xff]
    %v5550 = vld [vmem:[#allocation7 + $0x8] sm:$0xff]
    %v5551 = vld [vmem:[#allocation7 + $0x10] sm:$0xff]
    %v5552 = vld [vmem:[#allocation7 + $0x18] sm:$0xff]
    %v5553 = vld [vmem:[#allocation7 + $0x20] sm:$0xff]
    %v5554 = vld [vmem:[#allocation7 + $0x28] sm:$0xff]
    %v5555 = vld [vmem:[#allocation7 + $0x30] sm:$0xff]
    %v5556 = vld [vmem:[#allocation7 + $0x38] sm:$0xff]
    %v5557 = vld [vmem:[#allocation7 + $0x40] sm:$0xff]
    %v5558 = vld [vmem:[#allocation7 + $0x48] sm:$0xff]
    %v5559 = vld [vmem:[#allocation7 + $0x50] sm:$0xff]
    %v5560 = vld [vmem:[#allocation7 + $0x58] sm:$0xff]
    %v5561 = vld [vmem:[#allocation7 + $0x60] sm:$0xff]
    %v5562 = vld [vmem:[#allocation7 + $0x68] sm:$0xff]
    %v5563 = vld [vmem:[#allocation7 + $0x70] sm:$0xff]
    %v5564 = vld [vmem:[#allocation7 + $0x78] sm:$0xff]
    %v5565 = vld [vmem:[#allocation7 + $0x80] sm:$0xff]
    %v5566 = vld [vmem:[#allocation7 + $0x88] sm:$0xff]
    %v5567 = vld [vmem:[#allocation7 + $0x90] sm:$0xff]
    %v5568 = vld [vmem:[#allocation7 + $0x98] sm:$0xff]
    %v5569 = vld [vmem:[#allocation7 + $0xa0] sm:$0xff]
    %v5570 = vld [vmem:[#allocation7 + $0xa8] sm:$0xff]
    %v5571 = vld [vmem:[#allocation7 + $0xb0] sm:$0xff]
    %v5572 = vld [vmem:[#allocation7 + $0xb8] sm:$0xff]
    %v5573 = vld [vmem:[#allocation7 + $0xc0] sm:$0xff]
    %v5574 = vld [vmem:[#allocation7 + $0xc8] sm:$0xff]
    %v5575 = vld [vmem:[#allocation7 + $0xd0] sm:$0xff]
    %v5576 = vld [vmem:[#allocation7 + $0xd8] sm:$0xff]
    %v5577 = vld [vmem:[#allocation7 + $0xe0] sm:$0xff]
    %v5578 = vld [vmem:[#allocation7 + $0xe8] sm:$0xff]
    %v5579 = vld [vmem:[#allocation7 + $0xf0] sm:$0xff]
    %v5580 = vld [vmem:[#allocation7 + $0xf8] sm:$0xff]
    %v5581 = vld [vmem:[#allocation7 + $0x100] sm:$0xff]
    %v5582 = vld [vmem:[#allocation7 + $0x108] sm:$0xff]
    %v5583 = vld [vmem:[#allocation7 + $0x110] sm:$0xff]
    %v5584 = vld [vmem:[#allocation7 + $0x118] sm:$0xff]
    %v5585 = vld [vmem:[#allocation7 + $0x120] sm:$0xff]
    %v5586 = vld [vmem:[#allocation7 + $0x128] sm:$0xff]
    %v5587 = vld [vmem:[#allocation7 + $0x130] sm:$0xff]
    %v5588 = vld [vmem:[#allocation7 + $0x138] sm:$0xff]
    %v5589 = vld [vmem:[#allocation7 + $0x140] sm:$0xff]
    %v5590 = vld [vmem:[#allocation7 + $0x148] sm:$0xff]
    %v5591 = vld [vmem:[#allocation7 + $0x150] sm:$0xff]
    %v5592 = vld [vmem:[#allocation7 + $0x158] sm:$0xff]
    %v5593 = vld [vmem:[#allocation7 + $0x160] sm:$0xff]
    %v5594 = vld [vmem:[#allocation7 + $0x168] sm:$0xff]
    %v5595 = vld [vmem:[#allocation7 + $0x170] sm:$0xff]
    %v5596 = vld [vmem:[#allocation7 + $0x178] sm:$0xff]
    %v5597 = vld [vmem:[#allocation7 + $0x180] sm:$0xff]
    %v5598 = vld [vmem:[#allocation7 + $0x188] sm:$0xff]
    %v5599 = vld [vmem:[#allocation7 + $0x190] sm:$0xff]
    %v5600 = vld [vmem:[#allocation7 + $0x198] sm:$0xff]
    %v5601 = vld [vmem:[#allocation7 + $0x1a0] sm:$0xff]
    %v5602 = vld [vmem:[#allocation7 + $0x1a8] sm:$0xff]
    %v5603 = vld [vmem:[#allocation7 + $0x1b0] sm:$0xff]
    %v5604 = vld [vmem:[#allocation7 + $0x1b8] sm:$0xff]
    %v5605 = vld [vmem:[#allocation7 + $0x1c0] sm:$0xff]
    %v5606 = vld [vmem:[#allocation7 + $0x1c8] sm:$0xff]
    %v5607 = vld [vmem:[#allocation7 + $0x1d0] sm:$0xff]
    %v5608 = vld [vmem:[#allocation7 + $0x1d8] sm:$0xff]
    %v5609 = vld [vmem:[#allocation7 + $0x1e0] sm:$0xff]
    %v5610 = vld [vmem:[#allocation7 + $0x1e8] sm:$0xff]
    %v5611 = vld [vmem:[#allocation7 + $0x1f0] sm:$0xff]
    %v5612 = vld [vmem:[#allocation7 + $0x1f8] sm:$0xff]
    %v5613 = vld [vmem:[#allocation7 + $0x200] sm:$0xff]
    %v5614 = vld [vmem:[#allocation7 + $0x208] sm:$0xff]
    %v5615 = vld [vmem:[#allocation7 + $0x210] sm:$0xff]
    %v5616 = vld [vmem:[#allocation7 + $0x218] sm:$0xff]
    %v5617 = vld [vmem:[#allocation7 + $0x220] sm:$0xff]
    %v5618 = vld [vmem:[#allocation7 + $0x228] sm:$0xff]
    %v5619 = vld [vmem:[#allocation7 + $0x230] sm:$0xff]
    %v5620 = vld [vmem:[#allocation7 + $0x238] sm:$0xff]
    %v5621 = vld [vmem:[#allocation7 + $0x240] sm:$0xff]
    %v5622 = vld [vmem:[#allocation7 + $0x248] sm:$0xff]
    %v5623 = vld [vmem:[#allocation7 + $0x250] sm:$0xff]
    %v5624 = vld [vmem:[#allocation7 + $0x258] sm:$0xff]
    %v5625 = vld [vmem:[#allocation7 + $0x260] sm:$0xff]
    %v5626 = vld [vmem:[#allocation7 + $0x268] sm:$0xff]
    %v5627 = vld [vmem:[#allocation7 + $0x270] sm:$0xff]
    %v5628 = vld [vmem:[#allocation7 + $0x278] sm:$0xff]
    %v5629 = vld [vmem:[#allocation7 + $0x280] sm:$0xff]
    %v5630 = vld [vmem:[#allocation7 + $0x288] sm:$0xff]
    %v5631 = vld [vmem:[#allocation7 + $0x290] sm:$0xff]
    %v5632 = vld [vmem:[#allocation7 + $0x298] sm:$0xff]
    %v5633 = vld [vmem:[#allocation7 + $0x2a0] sm:$0xff]
    %v5634 = vld [vmem:[#allocation7 + $0x2a8] sm:$0xff]
    %v5635 = vld [vmem:[#allocation7 + $0x2b0] sm:$0xff]
    %v5636 = vld [vmem:[#allocation7 + $0x2b8] sm:$0xff]
    %v5637 = vld [vmem:[#allocation7 + $0x2c0] sm:$0xff]
    %v5638 = vld [vmem:[#allocation7 + $0x2c8] sm:$0xff]
    %v5639 = vld [vmem:[#allocation7 + $0x2d0] sm:$0xff]
    %v5640 = vld [vmem:[#allocation7 + $0x2d8] sm:$0xff]
    %v5641 = vld [vmem:[#allocation7 + $0x2e0] sm:$0xff]
    %v5642 = vld [vmem:[#allocation7 + $0x2e8] sm:$0xff]
    %v5643 = vld [vmem:[#allocation7 + $0x2f0] sm:$0xff]
    %v5644 = vld [vmem:[#allocation7 + $0x2f8] sm:$0xff]
    %v5645 = vld [vmem:[#allocation7 + $0x300] sm:$0xff]
    %v5646 = vld [vmem:[#allocation7 + $0x308] sm:$0xff]
    %v5647 = vld [vmem:[#allocation7 + $0x310] sm:$0xff]
    %v5648 = vld [vmem:[#allocation7 + $0x318] sm:$0xff]
    %v5649 = vld [vmem:[#allocation7 + $0x320] sm:$0xff]
    %v5650 = vld [vmem:[#allocation7 + $0x328] sm:$0xff]
    %v5651 = vld [vmem:[#allocation7 + $0x330] sm:$0xff]
    %v5652 = vld [vmem:[#allocation7 + $0x338] sm:$0xff]
    %v5653 = vld [vmem:[#allocation7 + $0x340] sm:$0xff]
    %v5654 = vld [vmem:[#allocation7 + $0x348] sm:$0xff]
    %v5655 = vld [vmem:[#allocation7 + $0x350] sm:$0xff]
    %v5656 = vld [vmem:[#allocation7 + $0x358] sm:$0xff]
    %v5657 = vld [vmem:[#allocation7 + $0x360] sm:$0xff]
    %v5658 = vld [vmem:[#allocation7 + $0x368] sm:$0xff]
    %v5659 = vld [vmem:[#allocation7 + $0x370] sm:$0xff]
    %v5660 = vld [vmem:[#allocation7 + $0x378] sm:$0xff]
    %v5661 = vld [vmem:[#allocation7 + $0x380] sm:$0xff]
    %v5662 = vld [vmem:[#allocation7 + $0x388] sm:$0xff]
    %v5663 = vld [vmem:[#allocation7 + $0x390] sm:$0xff]
    %v5664 = vld [vmem:[#allocation7 + $0x398] sm:$0xff]
    %v5665 = vld [vmem:[#allocation7 + $0x3a0] sm:$0xff]
    %v5666 = vld [vmem:[#allocation7 + $0x3a8] sm:$0xff]
    %v5667 = vld [vmem:[#allocation7 + $0x3b0] sm:$0xff]
    %v5668 = vld [vmem:[#allocation7 + $0x3b8] sm:$0xff]
    %v5669 = vld [vmem:[#allocation7 + $0x3c0] sm:$0xff]
    %v5670 = vld [vmem:[#allocation7 + $0x3c8] sm:$0xff]
    %v5671 = vld [vmem:[#allocation7 + $0x3d0] sm:$0xff]
    %v5672 = vld [vmem:[#allocation7 + $0x3d8] sm:$0xff]
    %v5673 = vld [vmem:[#allocation7 + $0x3e0] sm:$0xff]
    %v5674 = vld [vmem:[#allocation7 + $0x3e8] sm:$0xff]
    %v5675 = vld [vmem:[#allocation7 + $0x3f0] sm:$0xff]
    %v5676 = vld [vmem:[#allocation7 + $0x3f8] sm:$0xff]
    %v5677 = vld [vmem:[%s10] sm:$0xf]
    %v5679 = vlaneseq
    %v5680 = vshrl.u32 %v5679, 7
    %v5681 = vsub.s32 0, %v5680
    %v5682 = vrot.slane %v5677, %v5681
    %v5683 = vlaneseq
    %v5684 = vshrl.u32 %v5683, 7
    %v5685 = vsub.s32 1, %v5684
    %v5686 = vrot.slane %v5677, %v5685
    %v5687 = vlaneseq
    %v5688 = vshrl.u32 %v5687, 7
    %v5689 = vsub.s32 2, %v5688
    %v5690 = vrot.slane %v5677, %v5689
    %v5691 = vlaneseq
    %v5692 = vshrl.u32 %v5691, 7
    %v5693 = vsub.s32 3, %v5692
    %v5694 = vrot.slane %v5677, %v5693
    %v5827 = vunpack.c.l.b16 %v5549
    %v5828 = vunpack.c.h.b16 %v5549
    %v5829 = vunpack.c.l.b16 %v5550
    %v5830 = vunpack.c.h.b16 %v5550
    %v5831 = vunpack.c.l.b16 %v5551
    %v5832 = vunpack.c.h.b16 %v5551
    %v5833 = vunpack.c.l.b16 %v5552
    %v5834 = vunpack.c.h.b16 %v5552
    %v5835 = vunpack.c.l.b16 %v5553
    %v5836 = vunpack.c.h.b16 %v5553
    %v5837 = vunpack.c.l.b16 %v5554
    %v5838 = vunpack.c.h.b16 %v5554
    %v5839 = vunpack.c.l.b16 %v5555
    %v5840 = vunpack.c.h.b16 %v5555
    %v5841 = vunpack.c.l.b16 %v5556
    %v5842 = vunpack.c.h.b16 %v5556
    %v5843 = vunpack.c.l.b16 %v5557
    %v5844 = vunpack.c.h.b16 %v5557
    %v5845 = vunpack.c.l.b16 %v5558
    %v5846 = vunpack.c.h.b16 %v5558
    %v5847 = vunpack.c.l.b16 %v5559
    %v5848 = vunpack.c.h.b16 %v5559
    %v5849 = vunpack.c.l.b16 %v5560
    %v5850 = vunpack.c.h.b16 %v5560
    %v5851 = vunpack.c.l.b16 %v5561
    %v5852 = vunpack.c.h.b16 %v5561
    %v5853 = vunpack.c.l.b16 %v5562
    %v5854 = vunpack.c.h.b16 %v5562
    %v5855 = vunpack.c.l.b16 %v5563
    %v5856 = vunpack.c.h.b16 %v5563
    %v5857 = vunpack.c.l.b16 %v5564
    %v5858 = vunpack.c.h.b16 %v5564
    %v5859 = vunpack.c.l.b16 %v5565
    %v5860 = vunpack.c.h.b16 %v5565
    %v5861 = vunpack.c.l.b16 %v5566
    %v5862 = vunpack.c.h.b16 %v5566
    %v5863 = vunpack.c.l.b16 %v5567
    %v5864 = vunpack.c.h.b16 %v5567
    %v5865 = vunpack.c.l.b16 %v5568
    %v5866 = vunpack.c.h.b16 %v5568
    %v5867 = vunpack.c.l.b16 %v5569
    %v5868 = vunpack.c.h.b16 %v5569
    %v5869 = vunpack.c.l.b16 %v5570
    %v5870 = vunpack.c.h.b16 %v5570
    %v5871 = vunpack.c.l.b16 %v5571
    %v5872 = vunpack.c.h.b16 %v5571
    %v5873 = vunpack.c.l.b16 %v5572
    %v5874 = vunpack.c.h.b16 %v5572
    %v5875 = vunpack.c.l.b16 %v5573
    %v5876 = vunpack.c.h.b16 %v5573
    %v5877 = vunpack.c.l.b16 %v5574
    %v5878 = vunpack.c.h.b16 %v5574
    %v5879 = vunpack.c.l.b16 %v5575
    %v5880 = vunpack.c.h.b16 %v5575
    %v5881 = vunpack.c.l.b16 %v5576
    %v5882 = vunpack.c.h.b16 %v5576
    %v5883 = vunpack.c.l.b16 %v5577
    %v5884 = vunpack.c.h.b16 %v5577
    %v5885 = vunpack.c.l.b16 %v5578
    %v5886 = vunpack.c.h.b16 %v5578
    %v5887 = vunpack.c.l.b16 %v5579
    %v5888 = vunpack.c.h.b16 %v5579
    %v5889 = vunpack.c.l.b16 %v5580
    %v5890 = vunpack.c.h.b16 %v5580
    %v5891 = vunpack.c.l.b16 %v5581
    %v5892 = vunpack.c.h.b16 %v5581
    %v5893 = vunpack.c.l.b16 %v5582
    %v5894 = vunpack.c.h.b16 %v5582
    %v5895 = vunpack.c.l.b16 %v5583
    %v5896 = vunpack.c.h.b16 %v5583
    %v5897 = vunpack.c.l.b16 %v5584
    %v5898 = vunpack.c.h.b16 %v5584
    %v5899 = vunpack.c.l.b16 %v5585
    %v5900 = vunpack.c.h.b16 %v5585
    %v5901 = vunpack.c.l.b16 %v5586
    %v5902 = vunpack.c.h.b16 %v5586
    %v5903 = vunpack.c.l.b16 %v5587
    %v5904 = vunpack.c.h.b16 %v5587
    %v5905 = vunpack.c.l.b16 %v5588
    %v5906 = vunpack.c.h.b16 %v5588
    %v5907 = vunpack.c.l.b16 %v5589
    %v5908 = vunpack.c.h.b16 %v5589
    %v5909 = vunpack.c.l.b16 %v5590
    %v5910 = vunpack.c.h.b16 %v5590
    %v5911 = vunpack.c.l.b16 %v5591
    %v5912 = vunpack.c.h.b16 %v5591
    %v5913 = vunpack.c.l.b16 %v5592
    %v5914 = vunpack.c.h.b16 %v5592
    %v5915 = vunpack.c.l.b16 %v5593
    %v5916 = vunpack.c.h.b16 %v5593
    %v5917 = vunpack.c.l.b16 %v5594
    %v5918 = vunpack.c.h.b16 %v5594
    %v5919 = vunpack.c.l.b16 %v5595
    %v5920 = vunpack.c.h.b16 %v5595
    %v5921 = vunpack.c.l.b16 %v5596
    %v5922 = vunpack.c.h.b16 %v5596
    %v5923 = vunpack.c.l.b16 %v5597
    %v5924 = vunpack.c.h.b16 %v5597
    %v5925 = vunpack.c.l.b16 %v5598
    %v5926 = vunpack.c.h.b16 %v5598
    %v5927 = vunpack.c.l.b16 %v5599
    %v5928 = vunpack.c.h.b16 %v5599
    %v5929 = vunpack.c.l.b16 %v5600
    %v5930 = vunpack.c.h.b16 %v5600
    %v5931 = vunpack.c.l.b16 %v5601
    %v5932 = vunpack.c.h.b16 %v5601
    %v5933 = vunpack.c.l.b16 %v5602
    %v5934 = vunpack.c.h.b16 %v5602
    %v5935 = vunpack.c.l.b16 %v5603
    %v5936 = vunpack.c.h.b16 %v5603
    %v5937 = vunpack.c.l.b16 %v5604
    %v5938 = vunpack.c.h.b16 %v5604
    %v5939 = vunpack.c.l.b16 %v5605
    %v5940 = vunpack.c.h.b16 %v5605
    %v5941 = vunpack.c.l.b16 %v5606
    %v5942 = vunpack.c.h.b16 %v5606
    %v5943 = vunpack.c.l.b16 %v5607
    %v5944 = vunpack.c.h.b16 %v5607
    %v5945 = vunpack.c.l.b16 %v5608
    %v5946 = vunpack.c.h.b16 %v5608
    %v5947 = vunpack.c.l.b16 %v5609
    %v5948 = vunpack.c.h.b16 %v5609
    %v5949 = vunpack.c.l.b16 %v5610
    %v5950 = vunpack.c.h.b16 %v5610
    %v5951 = vunpack.c.l.b16 %v5611
    %v5952 = vunpack.c.h.b16 %v5611
    %v5953 = vunpack.c.l.b16 %v5612
    %v5954 = vunpack.c.h.b16 %v5612
    %v5955 = vunpack.c.l.b16 %v5613
    %v5956 = vunpack.c.h.b16 %v5613
    %v5957 = vunpack.c.l.b16 %v5614
    %v5958 = vunpack.c.h.b16 %v5614
    %v5959 = vunpack.c.l.b16 %v5615
    %v5960 = vunpack.c.h.b16 %v5615
    %v5961 = vunpack.c.l.b16 %v5616
    %v5962 = vunpack.c.h.b16 %v5616
    %v5963 = vunpack.c.l.b16 %v5617
    %v5964 = vunpack.c.h.b16 %v5617
    %v5965 = vunpack.c.l.b16 %v5618
    %v5966 = vunpack.c.h.b16 %v5618
    %v5967 = vunpack.c.l.b16 %v5619
    %v5968 = vunpack.c.h.b16 %v5619
    %v5969 = vunpack.c.l.b16 %v5620
    %v5970 = vunpack.c.h.b16 %v5620
    %v5971 = vunpack.c.l.b16 %v5621
    %v5972 = vunpack.c.h.b16 %v5621
    %v5973 = vunpack.c.l.b16 %v5622
    %v5974 = vunpack.c.h.b16 %v5622
    %v5975 = vunpack.c.l.b16 %v5623
    %v5976 = vunpack.c.h.b16 %v5623
    %v5977 = vunpack.c.l.b16 %v5624
    %v5978 = vunpack.c.h.b16 %v5624
    %v5979 = vunpack.c.l.b16 %v5625
    %v5980 = vunpack.c.h.b16 %v5625
    %v5981 = vunpack.c.l.b16 %v5626
    %v5982 = vunpack.c.h.b16 %v5626
    %v5983 = vunpack.c.l.b16 %v5627
    %v5984 = vunpack.c.h.b16 %v5627
    %v5985 = vunpack.c.l.b16 %v5628
    %v5986 = vunpack.c.h.b16 %v5628
    %v5987 = vunpack.c.l.b16 %v5629
    %v5988 = vunpack.c.h.b16 %v5629
    %v5989 = vunpack.c.l.b16 %v5630
    %v5990 = vunpack.c.h.b16 %v5630
    %v5991 = vunpack.c.l.b16 %v5631
    %v5992 = vunpack.c.h.b16 %v5631
    %v5993 = vunpack.c.l.b16 %v5632
    %v5994 = vunpack.c.h.b16 %v5632
    %v5995 = vunpack.c.l.b16 %v5633
    %v5996 = vunpack.c.h.b16 %v5633
    %v5997 = vunpack.c.l.b16 %v5634
    %v5998 = vunpack.c.h.b16 %v5634
    %v5999 = vunpack.c.l.b16 %v5635
    %v6000 = vunpack.c.h.b16 %v5635
    %v6001 = vunpack.c.l.b16 %v5636
    %v6002 = vunpack.c.h.b16 %v5636
    %v6003 = vunpack.c.l.b16 %v5637
    %v6004 = vunpack.c.h.b16 %v5637
    %v6005 = vunpack.c.l.b16 %v5638
    %v6006 = vunpack.c.h.b16 %v5638
    %v6007 = vunpack.c.l.b16 %v5639
    %v6008 = vunpack.c.h.b16 %v5639
    %v6009 = vunpack.c.l.b16 %v5640
    %v6010 = vunpack.c.h.b16 %v5640
    %v6011 = vunpack.c.l.b16 %v5641
    %v6012 = vunpack.c.h.b16 %v5641
    %v6013 = vunpack.c.l.b16 %v5642
    %v6014 = vunpack.c.h.b16 %v5642
    %v6015 = vunpack.c.l.b16 %v5643
    %v6016 = vunpack.c.h.b16 %v5643
    %v6017 = vunpack.c.l.b16 %v5644
    %v6018 = vunpack.c.h.b16 %v5644
    %v6019 = vunpack.c.l.b16 %v5645
    %v6020 = vunpack.c.h.b16 %v5645
    %v6021 = vunpack.c.l.b16 %v5646
    %v6022 = vunpack.c.h.b16 %v5646
    %v6023 = vunpack.c.l.b16 %v5647
    %v6024 = vunpack.c.h.b16 %v5647
    %v6025 = vunpack.c.l.b16 %v5648
    %v6026 = vunpack.c.h.b16 %v5648
    %v6027 = vunpack.c.l.b16 %v5649
    %v6028 = vunpack.c.h.b16 %v5649
    %v6029 = vunpack.c.l.b16 %v5650
    %v6030 = vunpack.c.h.b16 %v5650
    %v6031 = vunpack.c.l.b16 %v5651
    %v6032 = vunpack.c.h.b16 %v5651
    %v6033 = vunpack.c.l.b16 %v5652
    %v6034 = vunpack.c.h.b16 %v5652
    %v6035 = vunpack.c.l.b16 %v5653
    %v6036 = vunpack.c.h.b16 %v5653
    %v6037 = vunpack.c.l.b16 %v5654
    %v6038 = vunpack.c.h.b16 %v5654
    %v6039 = vunpack.c.l.b16 %v5655
    %v6040 = vunpack.c.h.b16 %v5655
    %v6041 = vunpack.c.l.b16 %v5656
    %v6042 = vunpack.c.h.b16 %v5656
    %v6043 = vunpack.c.l.b16 %v5657
    %v6044 = vunpack.c.h.b16 %v5657
    %v6045 = vunpack.c.l.b16 %v5658
    %v6046 = vunpack.c.h.b16 %v5658
    %v6047 = vunpack.c.l.b16 %v5659
    %v6048 = vunpack.c.h.b16 %v5659
    %v6049 = vunpack.c.l.b16 %v5660
    %v6050 = vunpack.c.h.b16 %v5660
    %v6051 = vunpack.c.l.b16 %v5661
    %v6052 = vunpack.c.h.b16 %v5661
    %v6053 = vunpack.c.l.b16 %v5662
    %v6054 = vunpack.c.h.b16 %v5662
    %v6055 = vunpack.c.l.b16 %v5663
    %v6056 = vunpack.c.h.b16 %v5663
    %v6057 = vunpack.c.l.b16 %v5664
    %v6058 = vunpack.c.h.b16 %v5664
    %v6059 = vunpack.c.l.b16 %v5665
    %v6060 = vunpack.c.h.b16 %v5665
    %v6061 = vunpack.c.l.b16 %v5666
    %v6062 = vunpack.c.h.b16 %v5666
    %v6063 = vunpack.c.l.b16 %v5667
    %v6064 = vunpack.c.h.b16 %v5667
    %v6065 = vunpack.c.l.b16 %v5668
    %v6066 = vunpack.c.h.b16 %v5668
    %v6067 = vunpack.c.l.b16 %v5669
    %v6068 = vunpack.c.h.b16 %v5669
    %v6069 = vunpack.c.l.b16 %v5670
    %v6070 = vunpack.c.h.b16 %v5670
    %v6071 = vunpack.c.l.b16 %v5671
    %v6072 = vunpack.c.h.b16 %v5671
    %v6073 = vunpack.c.l.b16 %v5672
    %v6074 = vunpack.c.h.b16 %v5672
    %v6075 = vunpack.c.l.b16 %v5673
    %v6076 = vunpack.c.h.b16 %v5673
    %v6077 = vunpack.c.l.b16 %v5674
    %v6078 = vunpack.c.h.b16 %v5674
    %v6079 = vunpack.c.l.b16 %v5675
    %v6080 = vunpack.c.h.b16 %v5675
    %v6081 = vunpack.c.l.b16 %v5676
    %v6082 = vunpack.c.h.b16 %v5676
    %v6083 = vpack.c.b16 %v5831, %v5827
    %v6084 = vpack.c.b16 %v5832, %v5828
    %v6085 = vpack.c.b16 %v5833, %v5829
    %v6086 = vpack.c.b16 %v5834, %v5830
    %v6087 = vpack.c.b16 %v5839, %v5835
    %v6088 = vpack.c.b16 %v5840, %v5836
    %v6089 = vpack.c.b16 %v5841, %v5837
    %v6090 = vpack.c.b16 %v5842, %v5838
    %v6091 = vpack.c.b16 %v5847, %v5843
    %v6092 = vpack.c.b16 %v5848, %v5844
    %v6093 = vpack.c.b16 %v5849, %v5845
    %v6094 = vpack.c.b16 %v5850, %v5846
    %v6095 = vpack.c.b16 %v5855, %v5851
    %v6096 = vpack.c.b16 %v5856, %v5852
    %v6097 = vpack.c.b16 %v5857, %v5853
    %v6098 = vpack.c.b16 %v5858, %v5854
    %v6099 = vpack.c.b16 %v5863, %v5859
    %v6100 = vpack.c.b16 %v5864, %v5860
    %v6101 = vpack.c.b16 %v5865, %v5861
    %v6102 = vpack.c.b16 %v5866, %v5862
    %v6103 = vpack.c.b16 %v5871, %v5867
    %v6104 = vpack.c.b16 %v5872, %v5868
    %v6105 = vpack.c.b16 %v5873, %v5869
    %v6106 = vpack.c.b16 %v5874, %v5870
    %v6107 = vpack.c.b16 %v5879, %v5875
    %v6108 = vpack.c.b16 %v5880, %v5876
    %v6109 = vpack.c.b16 %v5881, %v5877
    %v6110 = vpack.c.b16 %v5882, %v5878
    %v6111 = vpack.c.b16 %v5887, %v5883
    %v6112 = vpack.c.b16 %v5888, %v5884
    %v6113 = vpack.c.b16 %v5889, %v5885
    %v6114 = vpack.c.b16 %v5890, %v5886
    %v6115 = vpack.c.b16 %v5895, %v5891
    %v6116 = vpack.c.b16 %v5896, %v5892
    %v6117 = vpack.c.b16 %v5897, %v5893
    %v6118 = vpack.c.b16 %v5898, %v5894
    %v6119 = vpack.c.b16 %v5903, %v5899
    %v6120 = vpack.c.b16 %v5904, %v5900
    %v6121 = vpack.c.b16 %v5905, %v5901
    %v6122 = vpack.c.b16 %v5906, %v5902
    %v6123 = vpack.c.b16 %v5911, %v5907
    %v6124 = vpack.c.b16 %v5912, %v5908
    %v6125 = vpack.c.b16 %v5913, %v5909
    %v6126 = vpack.c.b16 %v5914, %v5910
    %v6127 = vpack.c.b16 %v5919, %v5915
    %v6128 = vpack.c.b16 %v5920, %v5916
    %v6129 = vpack.c.b16 %v5921, %v5917
    %v6130 = vpack.c.b16 %v5922, %v5918
    %v6131 = vpack.c.b16 %v5927, %v5923
    %v6132 = vpack.c.b16 %v5928, %v5924
    %v6133 = vpack.c.b16 %v5929, %v5925
    %v6134 = vpack.c.b16 %v5930, %v5926
    %v6135 = vpack.c.b16 %v5935, %v5931
    %v6136 = vpack.c.b16 %v5936, %v5932
    %v6137 = vpack.c.b16 %v5937, %v5933
    %v6138 = vpack.c.b16 %v5938, %v5934
    %v6139 = vpack.c.b16 %v5943, %v5939
    %v6140 = vpack.c.b16 %v5944, %v5940
    %v6141 = vpack.c.b16 %v5945, %v5941
    %v6142 = vpack.c.b16 %v5946, %v5942
    %v6143 = vpack.c.b16 %v5951, %v5947
    %v6144 = vpack.c.b16 %v5952, %v5948
    %v6145 = vpack.c.b16 %v5953, %v5949
    %v6146 = vpack.c.b16 %v5954, %v5950
    %v6147 = vpack.c.b16 %v5959, %v5955
    %v6148 = vpack.c.b16 %v5960, %v5956
    %v6149 = vpack.c.b16 %v5961, %v5957
    %v6150 = vpack.c.b16 %v5962, %v5958
    %v6151 = vpack.c.b16 %v5967, %v5963
    %v6152 = vpack.c.b16 %v5968, %v5964
    %v6153 = vpack.c.b16 %v5969, %v5965
    %v6154 = vpack.c.b16 %v5970, %v5966
    %v6155 = vpack.c.b16 %v5975, %v5971
    %v6156 = vpack.c.b16 %v5976, %v5972
    %v6157 = vpack.c.b16 %v5977, %v5973
    %v6158 = vpack.c.b16 %v5978, %v5974
    %v6159 = vpack.c.b16 %v5983, %v5979
    %v6160 = vpack.c.b16 %v5984, %v5980
    %v6161 = vpack.c.b16 %v5985, %v5981
    %v6162 = vpack.c.b16 %v5986, %v5982
    %v6163 = vpack.c.b16 %v5991, %v5987
    %v6164 = vpack.c.b16 %v5992, %v5988
    %v6165 = vpack.c.b16 %v5993, %v5989
    %v6166 = vpack.c.b16 %v5994, %v5990
    %v6167 = vpack.c.b16 %v5999, %v5995
    %v6168 = vpack.c.b16 %v6000, %v5996
    %v6169 = vpack.c.b16 %v6001, %v5997
    %v6170 = vpack.c.b16 %v6002, %v5998
    %v6171 = vpack.c.b16 %v6007, %v6003
    %v6172 = vpack.c.b16 %v6008, %v6004
    %v6173 = vpack.c.b16 %v6009, %v6005
    %v6174 = vpack.c.b16 %v6010, %v6006
    %v6175 = vpack.c.b16 %v6015, %v6011
    %v6176 = vpack.c.b16 %v6016, %v6012
    %v6177 = vpack.c.b16 %v6017, %v6013
    %v6178 = vpack.c.b16 %v6018, %v6014
    %v6179 = vpack.c.b16 %v6023, %v6019
    %v6180 = vpack.c.b16 %v6024, %v6020
    %v6181 = vpack.c.b16 %v6025, %v6021
    %v6182 = vpack.c.b16 %v6026, %v6022
    %v6183 = vpack.c.b16 %v6031, %v6027
    %v6184 = vpack.c.b16 %v6032, %v6028
    %v6185 = vpack.c.b16 %v6033, %v6029
    %v6186 = vpack.c.b16 %v6034, %v6030
    %v6187 = vpack.c.b16 %v6039, %v6035
    %v6188 = vpack.c.b16 %v6040, %v6036
    %v6189 = vpack.c.b16 %v6041, %v6037
    %v6190 = vpack.c.b16 %v6042, %v6038
    %v6191 = vpack.c.b16 %v6047, %v6043
    %v6192 = vpack.c.b16 %v6048, %v6044
    %v6193 = vpack.c.b16 %v6049, %v6045
    %v6194 = vpack.c.b16 %v6050, %v6046
    %v6195 = vpack.c.b16 %v6055, %v6051
    %v6196 = vpack.c.b16 %v6056, %v6052
    %v6197 = vpack.c.b16 %v6057, %v6053
    %v6198 = vpack.c.b16 %v6058, %v6054
    %v6199 = vpack.c.b16 %v6063, %v6059
    %v6200 = vpack.c.b16 %v6064, %v6060
    %v6201 = vpack.c.b16 %v6065, %v6061
    %v6202 = vpack.c.b16 %v6066, %v6062
    %v6203 = vpack.c.b16 %v6071, %v6067
    %v6204 = vpack.c.b16 %v6072, %v6068
    %v6205 = vpack.c.b16 %v6073, %v6069
    %v6206 = vpack.c.b16 %v6074, %v6070
    %v6207 = vpack.c.b16 %v6079, %v6075
    %v6208 = vpack.c.b16 %v6080, %v6076
    %v6209 = vpack.c.b16 %v6081, %v6077
    %v6210 = vpack.c.b16 %v6082, %v6078
    %6339 = vmatprep.subr.bf16.mxu0 %v6084
    %6340 = vmatpush1.bf16.msra.mxu0 %v6083
    %6341 = vmatprep.subr.bf16.mxu0 %v6088
    %6342 = vmatpush1.bf16.msra.mxu0 %v6087
    %6343 = vmatprep.subr.bf16.mxu0 %v6092
    %6344 = vmatpush1.bf16.msra.mxu0 %v6091
    %6345 = vmatprep.subr.bf16.mxu0 %v6096
    %6346 = vmatpush1.bf16.msra.mxu0 %v6095
    %6347 = vmatprep.subr.bf16.mxu0 %v6100
    %6348 = vmatpush1.bf16.msra.mxu0 %v6099
    %6349 = vmatprep.subr.bf16.mxu0 %v6104
    %6350 = vmatpush1.bf16.msra.mxu0 %v6103
    %6351 = vmatprep.subr.bf16.mxu0 %v6108
    %6352 = vmatpush1.bf16.msra.mxu0 %v6107
    %6353 = vmatprep.subr.bf16.mxu0 %v6112
    %6354 = vmatpush1.bf16.msra.mxu0 %v6111
    %6355 = vmatprep.subr.bf16.mxu0 %v6116
    %6356 = vmatpush1.bf16.msra.mxu0 %v6115
    %6357 = vmatprep.subr.bf16.mxu0 %v6120
    %6358 = vmatpush1.bf16.msra.mxu0 %v6119
    %6359 = vmatprep.subr.bf16.mxu0 %v6124
    %6360 = vmatpush1.bf16.msra.mxu0 %v6123
    %6361 = vmatprep.subr.bf16.mxu0 %v6128
    %6362 = vmatpush1.bf16.msra.mxu0 %v6127
    %6363 = vmatprep.subr.bf16.mxu0 %v6132
    %6364 = vmatpush1.bf16.msra.mxu0 %v6131
    %6365 = vmatprep.subr.bf16.mxu0 %v6136
    %6366 = vmatpush1.bf16.msra.mxu0 %v6135
    %6367 = vmatprep.subr.bf16.mxu0 %v6140
    %6368 = vmatpush1.bf16.msra.mxu0 %v6139
    %6369 = vmatprep.subr.bf16.mxu0 %v6144
    %6370 = vmatpush1.bf16.msra.mxu0 %v6143
    %6371 = vmatprep.mubr.bf16.mxu0 %v5546
    %6372 = vmatmul.mubr.bf16.gmra.mrb[0].mxu0 %v5545
    %v6373 = vpop.f32.mrb[0].mxu0
    %v6374 = vadd.f32 %v5682, %v6373
    %v6375 = vpop.f32.mrb[0].mxu0
    %v6376 = vadd.f32 %v5686, %v6375
    %v6377 = vpop.f32.mrb[0].mxu0
    %v6378 = vadd.f32 %v5682, %v6377
    %v6379 = vpop.f32.mrb[0].mxu0
    %v6380 = vadd.f32 %v5686, %v6379
    %6381 = vdwg.mxu0
    %6382 = vmatprep.subr.bf16.mxu0 %v6148
    %6383 = vmatpush1.bf16.msra.mxu0 %v6147
    %6384 = vmatprep.subr.bf16.mxu0 %v6152
    %6385 = vmatpush1.bf16.msra.mxu0 %v6151
    %6386 = vmatprep.subr.bf16.mxu0 %v6156
    %6387 = vmatpush1.bf16.msra.mxu0 %v6155
    %6388 = vmatprep.subr.bf16.mxu0 %v6160
    %6389 = vmatpush1.bf16.msra.mxu0 %v6159
    %6390 = vmatprep.subr.bf16.mxu0 %v6164
    %6391 = vmatpush1.bf16.msra.mxu0 %v6163
    %6392 = vmatprep.subr.bf16.mxu0 %v6168
    %6393 = vmatpush1.bf16.msra.mxu0 %v6167
    %6394 = vmatprep.subr.bf16.mxu0 %v6172
    %6395 = vmatpush1.bf16.msra.mxu0 %v6171
    %6396 = vmatprep.subr.bf16.mxu0 %v6176
    %6397 = vmatpush1.bf16.msra.mxu0 %v6175
    %6398 = vmatprep.subr.bf16.mxu0 %v6180
    %6399 = vmatpush1.bf16.msra.mxu0 %v6179
    %6400 = vmatprep.subr.bf16.mxu0 %v6184
    %6401 = vmatpush1.bf16.msra.mxu0 %v6183
    %6402 = vmatprep.subr.bf16.mxu0 %v6188
    %6403 = vmatpush1.bf16.msra.mxu0 %v6187
    %6404 = vmatprep.subr.bf16.mxu0 %v6192
    %6405 = vmatpush1.bf16.msra.mxu0 %v6191
    %6406 = vmatprep.subr.bf16.mxu0 %v6196
    %6407 = vmatpush1.bf16.msra.mxu0 %v6195
    %6408 = vmatprep.subr.bf16.mxu0 %v6200
    %6409 = vmatpush1.bf16.msra.mxu0 %v6199
    %6410 = vmatprep.subr.bf16.mxu0 %v6204
    %6411 = vmatpush1.bf16.msra.mxu0 %v6203
    %6412 = vmatprep.subr.bf16.mxu0 %v6208
    %6413 = vmatpush1.bf16.msra.mxu0 %v6207
    %6414 = vmatprep.mubr.bf16.mxu0 %v5548
    %6415 = vmatmul.mubr.bf16.gmra.mrb[0].mxu0 %v5547
    %v6416 = vpop.f32.mrb[0].mxu0
    %v6417 = vadd.f32 %v6374, %v6416
    %v6418 = vpop.f32.mrb[0].mxu0
    %v6419 = vadd.f32 %v6376, %v6418
    %v6420 = vpop.f32.mrb[0].mxu0
    %v6421 = vadd.f32 %v6378, %v6420
    %v6422 = vpop.f32.mrb[0].mxu0
    %v6423 = vadd.f32 %v6380, %v6422
    %6424 = vdwg.mxu0
    %6425 = vmatprep.subr.bf16.mxu0 %v6086
    %6426 = vmatpush1.bf16.msra.mxu0 %v6085
    %6427 = vmatprep.subr.bf16.mxu0 %v6090
    %6428 = vmatpush1.bf16.msra.mxu0 %v6089
    %6429 = vmatprep.subr.bf16.mxu0 %v6094
    %6430 = vmatpush1.bf16.msra.mxu0 %v6093
    %6431 = vmatprep.subr.bf16.mxu0 %v6098
    %6432 = vmatpush1.bf16.msra.mxu0 %v6097
    %6433 = vmatprep.subr.bf16.mxu0 %v6102
    %6434 = vmatpush1.bf16.msra.mxu0 %v6101
    %6435 = vmatprep.subr.bf16.mxu0 %v6106
    %6436 = vmatpush1.bf16.msra.mxu0 %v6105
    %6437 = vmatprep.subr.bf16.mxu0 %v6110
    %6438 = vmatpush1.bf16.msra.mxu0 %v6109
    %6439 = vmatprep.subr.bf16.mxu0 %v6114
    %6440 = vmatpush1.bf16.msra.mxu0 %v6113
    %6441 = vmatprep.subr.bf16.mxu0 %v6118
    %6442 = vmatpush1.bf16.msra.mxu0 %v6117
    %6443 = vmatprep.subr.bf16.mxu0 %v6122
    %6444 = vmatpush1.bf16.msra.mxu0 %v6121
    %6445 = vmatprep.subr.bf16.mxu0 %v6126
    %6446 = vmatpush1.bf16.msra.mxu0 %v6125
    %6447 = vmatprep.subr.bf16.mxu0 %v6130
    %6448 = vmatpush1.bf16.msra.mxu0 %v6129
    %6449 = vmatprep.subr.bf16.mxu0 %v6134
    %6450 = vmatpush1.bf16.msra.mxu0 %v6133
    %6451 = vmatprep.subr.bf16.mxu0 %v6138
    %6452 = vmatpush1.bf16.msra.mxu0 %v6137
    %6453 = vmatprep.subr.bf16.mxu0 %v6142
    %6454 = vmatpush1.bf16.msra.mxu0 %v6141
    %6455 = vmatprep.subr.bf16.mxu0 %v6146
    %6456 = vmatpush1.bf16.msra.mxu0 %v6145
    %6457 = vmatprep.mubr.bf16.mxu0 %v5546
    %6458 = vmatmul.mubr.bf16.gmra.mrb[0].mxu0 %v5545
    %v6459 = vpop.f32.mrb[0].mxu0
    %v6460 = vadd.f32 %v5690, %v6459
    %v6461 = vpop.f32.mrb[0].mxu0
    %v6462 = vadd.f32 %v5694, %v6461
    %v6463 = vpop.f32.mrb[0].mxu0
    %v6464 = vadd.f32 %v5690, %v6463
    %v6465 = vpop.f32.mrb[0].mxu0
    %v6466 = vadd.f32 %v5694, %v6465
    %6467 = vdwg.mxu0
    %6468 = vmatprep.subr.bf16.mxu0 %v6150
    %6469 = vmatpush1.bf16.msra.mxu0 %v6149
    %6470 = vmatprep.subr.bf16.mxu0 %v6154
    %6471 = vmatpush1.bf16.msra.mxu0 %v6153
    %6472 = vmatprep.subr.bf16.mxu0 %v6158
    %6473 = vmatpush1.bf16.msra.mxu0 %v6157
    %6474 = vmatprep.subr.bf16.mxu0 %v6162
    %6475 = vmatpush1.bf16.msra.mxu0 %v6161
    %6476 = vmatprep.subr.bf16.mxu0 %v6166
    %6477 = vmatpush1.bf16.msra.mxu0 %v6165
    %6478 = vmatprep.subr.bf16.mxu0 %v6170
    %6479 = vmatpush1.bf16.msra.mxu0 %v6169
    %6480 = vmatprep.subr.bf16.mxu0 %v6174
    %6481 = vmatpush1.bf16.msra.mxu0 %v6173
    %6482 = vmatprep.subr.bf16.mxu0 %v6178
    %6483 = vmatpush1.bf16.msra.mxu0 %v6177
    %6484 = vmatprep.subr.bf16.mxu0 %v6182
    %6485 = vmatpush1.bf16.msra.mxu0 %v6181
    %6486 = vmatprep.subr.bf16.mxu0 %v6186
    %6487 = vmatpush1.bf16.msra.mxu0 %v6185
    %6488 = vmatprep.subr.bf16.mxu0 %v6190
    %6489 = vmatpush1.bf16.msra.mxu0 %v6189
    %6490 = vmatprep.subr.bf16.mxu0 %v6194
    %6491 = vmatpush1.bf16.msra.mxu0 %v6193
    %6492 = vmatprep.subr.bf16.mxu0 %v6198
    %6493 = vmatpush1.bf16.msra.mxu0 %v6197
    %6494 = vmatprep.subr.bf16.mxu0 %v6202
    %6495 = vmatpush1.bf16.msra.mxu0 %v6201
    %6496 = vmatprep.subr.bf16.mxu0 %v6206
    %6497 = vmatpush1.bf16.msra.mxu0 %v6205
    %6498 = vmatprep.subr.bf16.mxu0 %v6210
    %6499 = vmatpush1.bf16.msra.mxu0 %v6209
    %6500 = vmatprep.mubr.bf16.mxu0 %v5548
    %6501 = vmatmul.mubr.bf16.gmra.mrb[0].mxu0 %v5547
    %v6502 = vpop.f32.mrb[0].mxu0
    %v6503 = vadd.f32 %v6460, %v6502
    %v6504 = vpop.f32.mrb[0].mxu0
    %v6505 = vadd.f32 %v6462, %v6504
    %v6506 = vpop.f32.mrb[0].mxu0
    %v6507 = vadd.f32 %v6464, %v6506
    %v6508 = vpop.f32.mrb[0].mxu0
    %v6509 = vadd.f32 %v6466, %v6508
    %6510 = vdwg.mxu0
    %v6511 = vmax.f32 %v6417, 0.0
    %v6512 = vmax.f32 %v6419, 0.0
    %v6513 = vmax.f32 %v6503, 0.0
    %v6514 = vmax.f32 %v6505, 0.0
    %v6515 = vmax.f32 %v6421, 0.0
    %v6516 = vmax.f32 %v6423, 0.0
    %v6517 = vmax.f32 %v6507, 0.0
    %v6518 = vmax.f32 %v6509, 0.0
    %v6519 = vpack.c.bf16 %v6515, %v6511
    %v6520 = vpack.c.bf16 %v6516, %v6512
    %v6521 = vpack.c.bf16 %v6517, %v6513
    %v6522 = vpack.c.bf16 %v6518, %v6514
    %v6523 = vld [vmem:[#allocation9] sm:$0xff]
    %v6524 = vld [vmem:[#allocation9 + $0x8] sm:$0xff]
    %v6525 = vld [vmem:[#allocation9 + $0x10] sm:$0xff]
    %v6526 = vld [vmem:[#allocation9 + $0x18] sm:$0xff]
    %v6527 = vld [vmem:[#allocation9 + $0x20] sm:$0xff]
    %v6528 = vld [vmem:[#allocation9 + $0x28] sm:$0xff]
    %v6529 = vld [vmem:[#allocation9 + $0x30] sm:$0xff]
    %v6530 = vld [vmem:[#allocation9 + $0x38] sm:$0xff]
    %v6531 = vld [vmem:[#allocation9 + $0x40] sm:$0xff]
    %v6532 = vld [vmem:[#allocation9 + $0x48] sm:$0xff]
    %v6533 = vld [vmem:[#allocation9 + $0x50] sm:$0xff]
    %v6534 = vld [vmem:[#allocation9 + $0x58] sm:$0xff]
    %v6535 = vld [vmem:[#allocation9 + $0x60] sm:$0xff]
    %v6536 = vld [vmem:[#allocation9 + $0x68] sm:$0xff]
    %v6537 = vld [vmem:[#allocation9 + $0x70] sm:$0xff]
    %v6538 = vld [vmem:[#allocation9 + $0x78] sm:$0xff]
    %v6539 = vld [vmem:[#allocation9 + $0x80] sm:$0xff]
    %v6540 = vld [vmem:[#allocation9 + $0x88] sm:$0xff]
    %v6541 = vld [vmem:[#allocation9 + $0x90] sm:$0xff]
    %v6542 = vld [vmem:[#allocation9 + $0x98] sm:$0xff]
    %v6543 = vld [vmem:[#allocation9 + $0xa0] sm:$0xff]
    %v6544 = vld [vmem:[#allocation9 + $0xa8] sm:$0xff]
    %v6545 = vld [vmem:[#allocation9 + $0xb0] sm:$0xff]
    %v6546 = vld [vmem:[#allocation9 + $0xb8] sm:$0xff]
    %v6547 = vld [vmem:[#allocation9 + $0xc0] sm:$0xff]
    %v6548 = vld [vmem:[#allocation9 + $0xc8] sm:$0xff]
    %v6549 = vld [vmem:[#allocation9 + $0xd0] sm:$0xff]
    %v6550 = vld [vmem:[#allocation9 + $0xd8] sm:$0xff]
    %v6551 = vld [vmem:[#allocation9 + $0xe0] sm:$0xff]
    %v6552 = vld [vmem:[#allocation9 + $0xe8] sm:$0xff]
    %v6553 = vld [vmem:[#allocation9 + $0xf0] sm:$0xff]
    %v6554 = vld [vmem:[#allocation9 + $0xf8] sm:$0xff]
    %v6555 = vld [vmem:[#allocation9 + $0x100] sm:$0xff]
    %v6556 = vld [vmem:[#allocation9 + $0x108] sm:$0xff]
    %v6557 = vld [vmem:[#allocation9 + $0x110] sm:$0xff]
    %v6558 = vld [vmem:[#allocation9 + $0x118] sm:$0xff]
    %v6559 = vld [vmem:[#allocation9 + $0x120] sm:$0xff]
    %v6560 = vld [vmem:[#allocation9 + $0x128] sm:$0xff]
    %v6561 = vld [vmem:[#allocation9 + $0x130] sm:$0xff]
    %v6562 = vld [vmem:[#allocation9 + $0x138] sm:$0xff]
    %v6563 = vld [vmem:[#allocation9 + $0x140] sm:$0xff]
    %v6564 = vld [vmem:[#allocation9 + $0x148] sm:$0xff]
    %v6565 = vld [vmem:[#allocation9 + $0x150] sm:$0xff]
    %v6566 = vld [vmem:[#allocation9 + $0x158] sm:$0xff]
    %v6567 = vld [vmem:[#allocation9 + $0x160] sm:$0xff]
    %v6568 = vld [vmem:[#allocation9 + $0x168] sm:$0xff]
    %v6569 = vld [vmem:[#allocation9 + $0x170] sm:$0xff]
    %v6570 = vld [vmem:[#allocation9 + $0x178] sm:$0xff]
    %v6571 = vld [vmem:[#allocation9 + $0x180] sm:$0xff]
    %v6572 = vld [vmem:[#allocation9 + $0x188] sm:$0xff]
    %v6573 = vld [vmem:[#allocation9 + $0x190] sm:$0xff]
    %v6574 = vld [vmem:[#allocation9 + $0x198] sm:$0xff]
    %v6575 = vld [vmem:[#allocation9 + $0x1a0] sm:$0xff]
    %v6576 = vld [vmem:[#allocation9 + $0x1a8] sm:$0xff]
    %v6577 = vld [vmem:[#allocation9 + $0x1b0] sm:$0xff]
    %v6578 = vld [vmem:[#allocation9 + $0x1b8] sm:$0xff]
    %v6579 = vld [vmem:[#allocation9 + $0x1c0] sm:$0xff]
    %v6580 = vld [vmem:[#allocation9 + $0x1c8] sm:$0xff]
    %v6581 = vld [vmem:[#allocation9 + $0x1d0] sm:$0xff]
    %v6582 = vld [vmem:[#allocation9 + $0x1d8] sm:$0xff]
    %v6583 = vld [vmem:[#allocation9 + $0x1e0] sm:$0xff]
    %v6584 = vld [vmem:[#allocation9 + $0x1e8] sm:$0xff]
    %v6585 = vld [vmem:[#allocation9 + $0x1f0] sm:$0xff]
    %v6586 = vld [vmem:[#allocation9 + $0x1f8] sm:$0xff]
    %v6587 = vld [vmem:[%s12] sm:$0x3]
    %v6589 = vlaneseq
    %v6590 = vshrl.u32 %v6589, 7
    %v6591 = vsub.s32 0, %v6590
    %v6592 = vrot.slane %v6587, %v6591
    %v6593 = vlaneseq
    %v6594 = vshrl.u32 %v6593, 7
    %v6595 = vsub.s32 1, %v6594
    %v6596 = vrot.slane %v6587, %v6595
    %v6663 = vunpack.c.l.b16 %v6523
    %v6664 = vunpack.c.h.b16 %v6523
    %v6665 = vunpack.c.l.b16 %v6524
    %v6666 = vunpack.c.h.b16 %v6524
    %v6667 = vunpack.c.l.b16 %v6525
    %v6668 = vunpack.c.h.b16 %v6525
    %v6669 = vunpack.c.l.b16 %v6526
    %v6670 = vunpack.c.h.b16 %v6526
    %v6671 = vunpack.c.l.b16 %v6527
    %v6672 = vunpack.c.h.b16 %v6527
    %v6673 = vunpack.c.l.b16 %v6528
    %v6674 = vunpack.c.h.b16 %v6528
    %v6675 = vunpack.c.l.b16 %v6529
    %v6676 = vunpack.c.h.b16 %v6529
    %v6677 = vunpack.c.l.b16 %v6530
    %v6678 = vunpack.c.h.b16 %v6530
    %v6679 = vunpack.c.l.b16 %v6531
    %v6680 = vunpack.c.h.b16 %v6531
    %v6681 = vunpack.c.l.b16 %v6532
    %v6682 = vunpack.c.h.b16 %v6532
    %v6683 = vunpack.c.l.b16 %v6533
    %v6684 = vunpack.c.h.b16 %v6533
    %v6685 = vunpack.c.l.b16 %v6534
    %v6686 = vunpack.c.h.b16 %v6534
    %v6687 = vunpack.c.l.b16 %v6535
    %v6688 = vunpack.c.h.b16 %v6535
    %v6689 = vunpack.c.l.b16 %v6536
    %v6690 = vunpack.c.h.b16 %v6536
    %v6691 = vunpack.c.l.b16 %v6537
    %v6692 = vunpack.c.h.b16 %v6537
    %v6693 = vunpack.c.l.b16 %v6538
    %v6694 = vunpack.c.h.b16 %v6538
    %v6695 = vunpack.c.l.b16 %v6539
    %v6696 = vunpack.c.h.b16 %v6539
    %v6697 = vunpack.c.l.b16 %v6540
    %v6698 = vunpack.c.h.b16 %v6540
    %v6699 = vunpack.c.l.b16 %v6541
    %v6700 = vunpack.c.h.b16 %v6541
    %v6701 = vunpack.c.l.b16 %v6542
    %v6702 = vunpack.c.h.b16 %v6542
    %v6703 = vunpack.c.l.b16 %v6543
    %v6704 = vunpack.c.h.b16 %v6543
    %v6705 = vunpack.c.l.b16 %v6544
    %v6706 = vunpack.c.h.b16 %v6544
    %v6707 = vunpack.c.l.b16 %v6545
    %v6708 = vunpack.c.h.b16 %v6545
    %v6709 = vunpack.c.l.b16 %v6546
    %v6710 = vunpack.c.h.b16 %v6546
    %v6711 = vunpack.c.l.b16 %v6547
    %v6712 = vunpack.c.h.b16 %v6547
    %v6713 = vunpack.c.l.b16 %v6548
    %v6714 = vunpack.c.h.b16 %v6548
    %v6715 = vunpack.c.l.b16 %v6549
    %v6716 = vunpack.c.h.b16 %v6549
    %v6717 = vunpack.c.l.b16 %v6550
    %v6718 = vunpack.c.h.b16 %v6550
    %v6719 = vunpack.c.l.b16 %v6551
    %v6720 = vunpack.c.h.b16 %v6551
    %v6721 = vunpack.c.l.b16 %v6552
    %v6722 = vunpack.c.h.b16 %v6552
    %v6723 = vunpack.c.l.b16 %v6553
    %v6724 = vunpack.c.h.b16 %v6553
    %v6725 = vunpack.c.l.b16 %v6554
    %v6726 = vunpack.c.h.b16 %v6554
    %v6727 = vunpack.c.l.b16 %v6555
    %v6728 = vunpack.c.h.b16 %v6555
    %v6729 = vunpack.c.l.b16 %v6556
    %v6730 = vunpack.c.h.b16 %v6556
    %v6731 = vunpack.c.l.b16 %v6557
    %v6732 = vunpack.c.h.b16 %v6557
    %v6733 = vunpack.c.l.b16 %v6558
    %v6734 = vunpack.c.h.b16 %v6558
    %v6735 = vunpack.c.l.b16 %v6559
    %v6736 = vunpack.c.h.b16 %v6559
    %v6737 = vunpack.c.l.b16 %v6560
    %v6738 = vunpack.c.h.b16 %v6560
    %v6739 = vunpack.c.l.b16 %v6561
    %v6740 = vunpack.c.h.b16 %v6561
    %v6741 = vunpack.c.l.b16 %v6562
    %v6742 = vunpack.c.h.b16 %v6562
    %v6743 = vunpack.c.l.b16 %v6563
    %v6744 = vunpack.c.h.b16 %v6563
    %v6745 = vunpack.c.l.b16 %v6564
    %v6746 = vunpack.c.h.b16 %v6564
    %v6747 = vunpack.c.l.b16 %v6565
    %v6748 = vunpack.c.h.b16 %v6565
    %v6749 = vunpack.c.l.b16 %v6566
    %v6750 = vunpack.c.h.b16 %v6566
    %v6751 = vunpack.c.l.b16 %v6567
    %v6752 = vunpack.c.h.b16 %v6567
    %v6753 = vunpack.c.l.b16 %v6568
    %v6754 = vunpack.c.h.b16 %v6568
    %v6755 = vunpack.c.l.b16 %v6569
    %v6756 = vunpack.c.h.b16 %v6569
    %v6757 = vunpack.c.l.b16 %v6570
    %v6758 = vunpack.c.h.b16 %v6570
    %v6759 = vunpack.c.l.b16 %v6571
    %v6760 = vunpack.c.h.b16 %v6571
    %v6761 = vunpack.c.l.b16 %v6572
    %v6762 = vunpack.c.h.b16 %v6572
    %v6763 = vunpack.c.l.b16 %v6573
    %v6764 = vunpack.c.h.b16 %v6573
    %v6765 = vunpack.c.l.b16 %v6574
    %v6766 = vunpack.c.h.b16 %v6574
    %v6767 = vunpack.c.l.b16 %v6575
    %v6768 = vunpack.c.h.b16 %v6575
    %v6769 = vunpack.c.l.b16 %v6576
    %v6770 = vunpack.c.h.b16 %v6576
    %v6771 = vunpack.c.l.b16 %v6577
    %v6772 = vunpack.c.h.b16 %v6577
    %v6773 = vunpack.c.l.b16 %v6578
    %v6774 = vunpack.c.h.b16 %v6578
    %v6775 = vunpack.c.l.b16 %v6579
    %v6776 = vunpack.c.h.b16 %v6579
    %v6777 = vunpack.c.l.b16 %v6580
    %v6778 = vunpack.c.h.b16 %v6580
    %v6779 = vunpack.c.l.b16 %v6581
    %v6780 = vunpack.c.h.b16 %v6581
    %v6781 = vunpack.c.l.b16 %v6582
    %v6782 = vunpack.c.h.b16 %v6582
    %v6783 = vunpack.c.l.b16 %v6583
    %v6784 = vunpack.c.h.b16 %v6583
    %v6785 = vunpack.c.l.b16 %v6584
    %v6786 = vunpack.c.h.b16 %v6584
    %v6787 = vunpack.c.l.b16 %v6585
    %v6788 = vunpack.c.h.b16 %v6585
    %v6789 = vunpack.c.l.b16 %v6586
    %v6790 = vunpack.c.h.b16 %v6586
    %v6791 = vpack.c.b16 %v6665, %v6663
    %v6792 = vpack.c.b16 %v6666, %v6664
    %v6793 = vpack.c.b16 %v6669, %v6667
    %v6794 = vpack.c.b16 %v6670, %v6668
    %v6795 = vpack.c.b16 %v6673, %v6671
    %v6796 = vpack.c.b16 %v6674, %v6672
    %v6797 = vpack.c.b16 %v6677, %v6675
    %v6798 = vpack.c.b16 %v6678, %v6676
    %v6799 = vpack.c.b16 %v6681, %v6679
    %v6800 = vpack.c.b16 %v6682, %v6680
    %v6801 = vpack.c.b16 %v6685, %v6683
    %v6802 = vpack.c.b16 %v6686, %v6684
    %v6803 = vpack.c.b16 %v6689, %v6687
    %v6804 = vpack.c.b16 %v6690, %v6688
    %v6805 = vpack.c.b16 %v6693, %v6691
    %v6806 = vpack.c.b16 %v6694, %v6692
    %v6807 = vpack.c.b16 %v6697, %v6695
    %v6808 = vpack.c.b16 %v6698, %v6696
    %v6809 = vpack.c.b16 %v6701, %v6699
    %v6810 = vpack.c.b16 %v6702, %v6700
    %v6811 = vpack.c.b16 %v6705, %v6703
    %v6812 = vpack.c.b16 %v6706, %v6704
    %v6813 = vpack.c.b16 %v6709, %v6707
    %v6814 = vpack.c.b16 %v6710, %v6708
    %v6815 = vpack.c.b16 %v6713, %v6711
    %v6816 = vpack.c.b16 %v6714, %v6712
    %v6817 = vpack.c.b16 %v6717, %v6715
    %v6818 = vpack.c.b16 %v6718, %v6716
    %v6819 = vpack.c.b16 %v6721, %v6719
    %v6820 = vpack.c.b16 %v6722, %v6720
    %v6821 = vpack.c.b16 %v6725, %v6723
    %v6822 = vpack.c.b16 %v6726, %v6724
    %v6823 = vpack.c.b16 %v6729, %v6727
    %v6824 = vpack.c.b16 %v6730, %v6728
    %v6825 = vpack.c.b16 %v6733, %v6731
    %v6826 = vpack.c.b16 %v6734, %v6732
    %v6827 = vpack.c.b16 %v6737, %v6735
    %v6828 = vpack.c.b16 %v6738, %v6736
    %v6829 = vpack.c.b16 %v6741, %v6739
    %v6830 = vpack.c.b16 %v6742, %v6740
    %v6831 = vpack.c.b16 %v6745, %v6743
    %v6832 = vpack.c.b16 %v6746, %v6744
    %v6833 = vpack.c.b16 %v6749, %v6747
    %v6834 = vpack.c.b16 %v6750, %v6748
    %v6835 = vpack.c.b16 %v6753, %v6751
    %v6836 = vpack.c.b16 %v6754, %v6752
    %v6837 = vpack.c.b16 %v6757, %v6755
    %v6838 = vpack.c.b16 %v6758, %v6756
    %v6839 = vpack.c.b16 %v6761, %v6759
    %v6840 = vpack.c.b16 %v6762, %v6760
    %v6841 = vpack.c.b16 %v6765, %v6763
    %v6842 = vpack.c.b16 %v6766, %v6764
    %v6843 = vpack.c.b16 %v6769, %v6767
    %v6844 = vpack.c.b16 %v6770, %v6768
    %v6845 = vpack.c.b16 %v6773, %v6771
    %v6846 = vpack.c.b16 %v6774, %v6772
    %v6847 = vpack.c.b16 %v6777, %v6775
    %v6848 = vpack.c.b16 %v6778, %v6776
    %v6849 = vpack.c.b16 %v6781, %v6779
    %v6850 = vpack.c.b16 %v6782, %v6780
    %v6851 = vpack.c.b16 %v6785, %v6783
    %v6852 = vpack.c.b16 %v6786, %v6784
    %v6853 = vpack.c.b16 %v6789, %v6787
    %v6854 = vpack.c.b16 %v6790, %v6788
    %6919 = vmatprep.subr.bf16.mxu0 %v6792
    %6920 = vmatpush1.bf16.msra.mxu0 %v6791
    %6921 = vmatprep.subr.bf16.mxu0 %v6794
    %6922 = vmatpush1.bf16.msra.mxu0 %v6793
    %6923 = vmatprep.subr.bf16.mxu0 %v6796
    %6924 = vmatpush1.bf16.msra.mxu0 %v6795
    %6925 = vmatprep.subr.bf16.mxu0 %v6798
    %6926 = vmatpush1.bf16.msra.mxu0 %v6797
    %6927 = vmatprep.subr.bf16.mxu0 %v6800
    %6928 = vmatpush1.bf16.msra.mxu0 %v6799
    %6929 = vmatprep.subr.bf16.mxu0 %v6802
    %6930 = vmatpush1.bf16.msra.mxu0 %v6801
    %6931 = vmatprep.subr.bf16.mxu0 %v6804
    %6932 = vmatpush1.bf16.msra.mxu0 %v6803
    %6933 = vmatprep.subr.bf16.mxu0 %v6806
    %6934 = vmatpush1.bf16.msra.mxu0 %v6805
    %6935 = vmatprep.subr.bf16.mxu0 %v6808
    %6936 = vmatpush1.bf16.msra.mxu0 %v6807
    %6937 = vmatprep.subr.bf16.mxu0 %v6810
    %6938 = vmatpush1.bf16.msra.mxu0 %v6809
    %6939 = vmatprep.subr.bf16.mxu0 %v6812
    %6940 = vmatpush1.bf16.msra.mxu0 %v6811
    %6941 = vmatprep.subr.bf16.mxu0 %v6814
    %6942 = vmatpush1.bf16.msra.mxu0 %v6813
    %6943 = vmatprep.subr.bf16.mxu0 %v6816
    %6944 = vmatpush1.bf16.msra.mxu0 %v6815
    %6945 = vmatprep.subr.bf16.mxu0 %v6818
    %6946 = vmatpush1.bf16.msra.mxu0 %v6817
    %6947 = vmatprep.subr.bf16.mxu0 %v6820
    %6948 = vmatpush1.bf16.msra.mxu0 %v6819
    %6949 = vmatprep.subr.bf16.mxu0 %v6822
    %6950 = vmatpush1.bf16.msra.mxu0 %v6821
    %6951 = vmatprep.mubr.bf16.mxu0 %v6520
    %6952 = vmatmul.mubr.bf16.gmra.mrb[0].mxu0 %v6519
    %v6953 = vpop.f32.mrb[0].mxu0
    %v6954 = vadd.f32 %v6592, %v6953
    %v6955 = vpop.f32.mrb[0].mxu0
    %v6956 = vadd.f32 %v6596, %v6955
    %v6957 = vpop.f32.mrb[0].mxu0
    %v6958 = vadd.f32 %v6592, %v6957
    %v6959 = vpop.f32.mrb[0].mxu0
    %v6960 = vadd.f32 %v6596, %v6959
    %6961 = vdwg.mxu0
    %6962 = vmatprep.subr.bf16.mxu0 %v6824
    %6963 = vmatpush1.bf16.msra.mxu0 %v6823
    %6964 = vmatprep.subr.bf16.mxu0 %v6826
    %6965 = vmatpush1.bf16.msra.mxu0 %v6825
    %6966 = vmatprep.subr.bf16.mxu0 %v6828
    %6967 = vmatpush1.bf16.msra.mxu0 %v6827
    %6968 = vmatprep.subr.bf16.mxu0 %v6830
    %6969 = vmatpush1.bf16.msra.mxu0 %v6829
    %6970 = vmatprep.subr.bf16.mxu0 %v6832
    %6971 = vmatpush1.bf16.msra.mxu0 %v6831
    %6972 = vmatprep.subr.bf16.mxu0 %v6834
    %6973 = vmatpush1.bf16.msra.mxu0 %v6833
    %6974 = vmatprep.subr.bf16.mxu0 %v6836
    %6975 = vmatpush1.bf16.msra.mxu0 %v6835
    %6976 = vmatprep.subr.bf16.mxu0 %v6838
    %6977 = vmatpush1.bf16.msra.mxu0 %v6837
    %6978 = vmatprep.subr.bf16.mxu0 %v6840
    %6979 = vmatpush1.bf16.msra.mxu0 %v6839
    %6980 = vmatprep.subr.bf16.mxu0 %v6842
    %6981 = vmatpush1.bf16.msra.mxu0 %v6841
    %6982 = vmatprep.subr.bf16.mxu0 %v6844
    %6983 = vmatpush1.bf16.msra.mxu0 %v6843
    %6984 = vmatprep.subr.bf16.mxu0 %v6846
    %6985 = vmatpush1.bf16.msra.mxu0 %v6845
    %6986 = vmatprep.subr.bf16.mxu0 %v6848
    %6987 = vmatpush1.bf16.msra.mxu0 %v6847
    %6988 = vmatprep.subr.bf16.mxu0 %v6850
    %6989 = vmatpush1.bf16.msra.mxu0 %v6849
    %6990 = vmatprep.subr.bf16.mxu0 %v6852
    %6991 = vmatpush1.bf16.msra.mxu0 %v6851
    %6992 = vmatprep.subr.bf16.mxu0 %v6854
    %6993 = vmatpush1.bf16.msra.mxu0 %v6853
    %6994 = vmatprep.mubr.bf16.mxu0 %v6522
    %6995 = vmatmul.mubr.bf16.gmra.mrb[0].mxu0 %v6521
    %v6996 = vpop.f32.mrb[0].mxu0
    %v6997 = vadd.f32 %v6954, %v6996
    %v6998 = vpop.f32.mrb[0].mxu0
    %v6999 = vadd.f32 %v6956, %v6998
    %v7000 = vpop.f32.mrb[0].mxu0
    %v7001 = vadd.f32 %v6958, %v7000
    %v7002 = vpop.f32.mrb[0].mxu0
    %v7003 = vadd.f32 %v6960, %v7002
    %7004 = vdwg.mxu0
    %7005 = vst [vmem:[%s13] sm:$0xff] %v6997
    %7006 = vst [vmem:[%s13 + $0x8] sm:$0xff] %v6999
    %7007 = vst [vmem:[%s13 + $0x10] sm:$0xff] %v7001
    %7008 = vst [vmem:[%s13 + $0x18] sm:$0xff] %v7003
    // Predicated region
    $region66: #{rnd_forward.1} parent=1 // pred_check
      _
    $region67: #{rnd_forward.1} parent=1 // pred_check_branch
      %7010 = sbr.rel (0) target = $region69
    $region68: #{rnd_forward.1} parent=1 // pred_region
      _
    $region69: #{rnd_forward.1} parent=1 // pred_fallthru
      _
    // Predicated region
    $region70: #{rnd_forward.1} parent=1 // pred_check
      _
    $region71: #{rnd_forward.1} parent=1 // pred_check_branch
      %7012 = sbr.rel (0) target = $region73
    $region72: #{rnd_forward.1} parent=1 // pred_region
      _
    $region73: #{rnd_forward.1} parent=1 // pred_fallthru
      _
    %7013 = vsyncpa [#allocation6], 1
    %7014 = vsyncpa [#allocation8], 1

</llo_original>
